<compile_context>
chip_gen: v6e
topology: v6e:2x2x1
jax: 0.10.0
libtpu: 0.0.40
codegen_flags: <defaults>
</compile_context>

<pallas_src>
import jax
import jax.numpy as jnp
from jax.experimental import pallas as pl
from jax.experimental.pallas import tpu as pltpu

NEG_SLOPE = 0.01  # nn.LeakyReLU default negative_slope
K_PAD = 128       # layer-1 contraction dim, zero-padded from 25 for lane/MXU alignment


def _leaky_relu(x):
    return jnp.where(x > 0, x, NEG_SLOPE * x)


def mlp_kernel(x_ref, w1_ref, b1_ref, w2_ref, b2_ref, w3_ref, b3_ref,
               w4_ref, b4_ref, o_ref):
    # layer1: (TB, 128)bf16 @ (128, 1024)bf16 -> f32 acc, + bias, LeakyReLU (K zero-padded, exact)
    h = jnp.dot(x_ref[...], w1_ref[...], preferred_element_type=jnp.float32) + b1_ref[...]
    h = _leaky_relu(h)
    # layer2: (TB, 1024)bf16 @ (1024, 1024)bf16 -> f32 acc (dominant layer)
    h = jnp.dot(h.astype(jnp.bfloat16), w2_ref[...],
                preferred_element_type=jnp.float32) + b2_ref[...]
    h = _leaky_relu(h)
    # layer3: (TB, 1024)bf16 @ (1024, 128)bf16 -> f32 acc
    h = jnp.dot(h.astype(jnp.bfloat16), w3_ref[...],
                preferred_element_type=jnp.float32) + b3_ref[...]
    h = _leaky_relu(h)
    # layer4: N=1 output -> f32 VPU/XLU lane reduction instead of a wasteful (128, 1) MXU matmul.
    out = jnp.sum(h * w4_ref[...], axis=-1, keepdims=True) + b4_ref[...]   # (TB, 1) f32
    # Lane-dense store: (TB, 1) -> (1, TB//128, 128) tile (row-major => batch order preserved).
    o_ref[...] = out.reshape(o_ref.shape).astype(o_ref.dtype)


def _choose_tb(b_pad):
    """b_pad is a multiple of 128.  Prefer >=2 grid steps (v7x has 2 TCs), TB in {128,256,512}."""
    for tb in (512, 256, 128):
        if b_pad % tb == 0 and b_pad // tb >= 2:
            return tb
    return b_pad  # b_pad == 128: single small step (small-batch latency path)


def _resident_spec(a):
    """Whole-array block, constant index_map -> stays VMEM-resident; single pipeline buffer."""
    idx = lambda i: (0, 0)
    try:
        return pl.BlockSpec(a.shape, idx, pipeline_mode=pl.Buffered(1))
    except Exception:  # older jax without pipeline_mode kwarg: fall back to default buffering
        return pl.BlockSpec(a.shape, idx)


def five_by_five_sig(x, params):
    """x: (B, 5, 5) float32 -> (B, 1) float32 (matches torch.flatten(x, 1) + 4 Linear layers)."""
    B = x.shape[0]
    x_flat = x.reshape(B, 25).astype(jnp.float32)  # torch.flatten(x, 1)
    (w1, b1), (w2, b2), (w3, b3), (w4, b4) = params

    # Pad batch to a multiple of 128 (keeps the lane-dense output layout uniform) and
    # layer-1 K 25 -> 128 with zeros (exact math).  Padded rows are sliced off at the end.
    B_pad = ((B + 127) // 128) * 128
    TB = _choose_tb(B_pad)
    G = B_pad // TB
    SUB = TB // 128

    x_p = jnp.zeros((B_pad, K_PAD), jnp.float32).at[:B, :25].set(x_flat).astype(jnp.bfloat16)
    w1_p = jnp.zeros((K_PAD, w1.shape[1]), jnp.float32).at[:25, :].set(w1).astype(jnp.bfloat16)
    w2_b = w2.astype(jnp.bfloat16)
    w3_b = w3.astype(jnp.bfloat16)
    # Layer-4 weight presented as a (1, 128) f32 row for the in-kernel lane reduction.
    w4_row = w4.reshape(1, w4.shape[0]).astype(jnp.float32)

    operands = (x_p, w1_p, b1, w2_b, b2, w3_b, b3, w4_row, b4)
    in_specs = ([pl.BlockSpec((TB, K_PAD), lambda i: (i, 0))]
                + [_resident_spec(a) for a in operands[1:]])

    out3 = pl.pallas_call(
        mlp_kernel,
        out_shape=jax.ShapeDtypeStruct((G, SUB, 128), jnp.float32),
        grid=(G,),
        in_specs=in_specs,
        out_specs=pl.BlockSpec((1, SUB, 128), lambda i: (i, 0, 0)),
        compiler_params=pltpu.CompilerParams(
            dimension_semantics=("parallel",),
            vmem_limit_bytes=32 << 20,
        ),
    )(*operands)

    # (G, SUB, 128) row-major flatten == batch order: block i, sublane r, lane c -> i*TB + r*128 + c.
    return out3.reshape(-1)[:B].reshape(B, 1)


def init_params(key):
    """Deterministic init mimicking nn.Linear default (uniform +-1/sqrt(fan_in)).
    Weights stored as (in_features, out_features); biases as (1, out_features)."""
    dims = [(25, 1024), (1024, 1024), (1024, 128), (128, 1)]
    params = []
    for i, (fan_in, fan_out) in enumerate(dims):
        kw, kb = jax.random.split(jax.random.fold_in(key, i))
        bound = 1.0 / jnp.sqrt(jnp.float32(fan_in))
        w = jax.random.uniform(kw, (fan_in, fan_out), jnp.float32, -bound, bound)
        b = jax.random.uniform(kb, (1, fan_out), jnp.float32, -bound, bound)
        params.append((w, b))
    return params


def reference(x, params):
    """Pure-JAX f32 reference of the PyTorch forward pass."""
    h = x.reshape(x.shape[0], 25)
    (w1, b1), (w2, b2), (w3, b3), (w4, b4) = params
    h = _leaky_relu(h @ w1 + b1)
    h = _leaky_relu(h @ w2 + b2)
    h = _leaky_relu(h @ w3 + b3)
    return h @ w4 + b4


if __name__ == "__main__":
    key = jax.random.PRNGKey(0)
    kx, kp = jax.random.split(key)
    params = init_params(kp)

    # Tolerance relaxed vs. the f32 reference because the kernel uses bf16 MXU inputs
    # (f32 accumulation); expected error is at the ~1e-3..1e-2 level.
    ATOL = RTOL = 5e-2

    # Small-batch (single grid step) path.
    B = 8
    x = jax.random.normal(kx, (B, 5, 5), jnp.float32)
    out = jax.block_until_ready(five_by_five_sig(x, params))
    ref = reference(x, params)
    assert out.shape == (B, 1), out.shape
    err = jnp.max(jnp.abs(out - ref))
    assert jnp.allclose(out, ref, atol=ATOL, rtol=RTOL), f"max abs err {err}"

    # Multi-tile path (grid > 1, non-multiple-of-128 batch) to exercise the lane-dense
    # output layout and the flatten-back logic.
    B2 = 333
    x2 = jax.random.normal(jax.random.fold_in(kx, 1), (B2, 5, 5), jnp.float32)
    out2 = jax.block_until_ready(five_by_five_sig(x2, params))
    ref2 = reference(x2, params)
    assert out2.shape == (B2, 1), out2.shape
    err2 = jnp.max(jnp.abs(out2 - ref2))
    assert jnp.allclose(out2, ref2, atol=ATOL, rtol=RTOL), f"max abs err {err2}"

    print("KERNEL_OK")
</pallas_src>

<mosaic_0001>
module attributes {stable_mosaic.version = 11 : i64} {
  func.func @mlp_kernel(%arg0: i32, %arg1: memref<128x128xbf16, #tpu.memory_space<vmem>>, %arg2: memref<128x1024xbf16, #tpu.memory_space<vmem>>, %arg3: memref<1x1024xf32, #tpu.memory_space<vmem>>, %arg4: memref<1024x1024xbf16, #tpu.memory_space<vmem>>, %arg5: memref<1x1024xf32, #tpu.memory_space<vmem>>, %arg6: memref<1024x128xbf16, #tpu.memory_space<vmem>>, %arg7: memref<1x128xf32, #tpu.memory_space<vmem>>, %arg8: memref<1x128xf32, #tpu.memory_space<vmem>>, %arg9: memref<1x1xf32, #tpu.memory_space<vmem>>, %arg10: memref<1x1x128xf32, #tpu.memory_space<vmem>>) attributes {dimension_semantics = [#tpu.dimension_semantics<parallel>], iteration_bounds = array<i64: 1>, scalar_prefetch = 0 : i64, scratch_operands = 0 : i64, tpu.core_type = #tpu.core_type<tc>, window_params = [{transform_indices = @transform_0, window_bounds = array<i64: 128, 128>}, {pipeline_mode = #tpu.pipeline_mode<synchronous>, transform_indices = @transform_1, window_bounds = array<i64: 128, 1024>}, {pipeline_mode = #tpu.pipeline_mode<synchronous>, transform_indices = @transform_2, window_bounds = array<i64: 1, 1024>}, {pipeline_mode = #tpu.pipeline_mode<synchronous>, transform_indices = @transform_3, window_bounds = array<i64: 1024, 1024>}, {pipeline_mode = #tpu.pipeline_mode<synchronous>, transform_indices = @transform_4, window_bounds = array<i64: 1, 1024>}, {pipeline_mode = #tpu.pipeline_mode<synchronous>, transform_indices = @transform_5, window_bounds = array<i64: 1024, 128>}, {pipeline_mode = #tpu.pipeline_mode<synchronous>, transform_indices = @transform_6, window_bounds = array<i64: 1, 128>}, {pipeline_mode = #tpu.pipeline_mode<synchronous>, transform_indices = @transform_7, window_bounds = array<i64: 1, 128>}, {pipeline_mode = #tpu.pipeline_mode<synchronous>, transform_indices = @transform_8, window_bounds = array<i64: 1, 1>}, {transform_indices = @transform_9, window_bounds = array<i64: 1, 1, 128>}]} {
    %c0 = arith.constant 0 : index
    %c0_0 = arith.constant 0 : index
    %0 = vector.load %arg1[%c0, %c0_0] : memref<128x128xbf16, #tpu.memory_space<vmem>>, vector<128x128xbf16>
    %c0_1 = arith.constant 0 : index
    %c0_2 = arith.constant 0 : index
    %1 = vector.load %arg2[%c0_1, %c0_2] : memref<128x1024xbf16, #tpu.memory_space<vmem>>, vector<128x1024xbf16>
    %cst = arith.constant dense<0.000000e+00> : vector<128x1024xf32>
    %2 = tpu.matmul %0, %1, %cst {dimension_numbers = #tpu.dot_dimension_numbers<[1], [0], [0], [1], [0, 0, 1, 1], [], []>} : vector<128x128xbf16>, vector<128x1024xbf16>, vector<128x1024xf32> -> vector<128x1024xf32>
    %c0_3 = arith.constant 0 : index
    %c0_4 = arith.constant 0 : index
    %3 = vector.load %arg3[%c0_3, %c0_4] : memref<1x1024xf32, #tpu.memory_space<vmem>>, vector<1x1024xf32>
    %4 = vector.broadcast %3 : vector<1x1024xf32> to vector<128x1024xf32>
    %5 = arith.addf %2, %4 : vector<128x1024xf32>
    %cst_5 = arith.constant 0.000000e+00 : f32
    %6 = vector.broadcast %cst_5 : f32 to vector<128x1024xf32>
    %7 = arith.cmpf ogt, %5, %6 : vector<128x1024xf32>
    %cst_6 = arith.constant 0.00999999977 : f32
    %8 = vector.broadcast %cst_6 : f32 to vector<128x1024xf32>
    %9 = arith.mulf %8, %5 : vector<128x1024xf32>
    %10 = arith.select %7, %5, %9 : vector<128x1024xi1>, vector<128x1024xf32>
    %11 = arith.truncf %10 : vector<128x1024xf32> to vector<128x1024xbf16>
    %c0_7 = arith.constant 0 : index
    %c0_8 = arith.constant 0 : index
    %12 = vector.load %arg4[%c0_7, %c0_8] : memref<1024x1024xbf16, #tpu.memory_space<vmem>>, vector<1024x1024xbf16>
    %cst_9 = arith.constant dense<0.000000e+00> : vector<128x1024xf32>
    %13 = tpu.matmul %11, %12, %cst_9 {dimension_numbers = #tpu.dot_dimension_numbers<[1], [0], [0], [1], [0, 0, 1, 1], [], []>} : vector<128x1024xbf16>, vector<1024x1024xbf16>, vector<128x1024xf32> -> vector<128x1024xf32>
    %c0_10 = arith.constant 0 : index
    %c0_11 = arith.constant 0 : index
    %14 = vector.load %arg5[%c0_10, %c0_11] : memref<1x1024xf32, #tpu.memory_space<vmem>>, vector<1x1024xf32>
    %15 = vector.broadcast %14 : vector<1x1024xf32> to vector<128x1024xf32>
    %16 = arith.addf %13, %15 : vector<128x1024xf32>
    %cst_12 = arith.constant 0.000000e+00 : f32
    %17 = vector.broadcast %cst_12 : f32 to vector<128x1024xf32>
    %18 = arith.cmpf ogt, %16, %17 : vector<128x1024xf32>
    %cst_13 = arith.constant 0.00999999977 : f32
    %19 = vector.broadcast %cst_13 : f32 to vector<128x1024xf32>
    %20 = arith.mulf %19, %16 : vector<128x1024xf32>
    %21 = arith.select %18, %16, %20 : vector<128x1024xi1>, vector<128x1024xf32>
    %22 = arith.truncf %21 : vector<128x1024xf32> to vector<128x1024xbf16>
    %c0_14 = arith.constant 0 : index
    %c0_15 = arith.constant 0 : index
    %23 = vector.load %arg6[%c0_14, %c0_15] : memref<1024x128xbf16, #tpu.memory_space<vmem>>, vector<1024x128xbf16>
    %cst_16 = arith.constant dense<0.000000e+00> : vector<128x128xf32>
    %24 = tpu.matmul %22, %23, %cst_16 {dimension_numbers = #tpu.dot_dimension_numbers<[1], [0], [0], [1], [0, 0, 1, 1], [], []>} : vector<128x1024xbf16>, vector<1024x128xbf16>, vector<128x128xf32> -> vector<128x128xf32>
    %c0_17 = arith.constant 0 : index
    %c0_18 = arith.constant 0 : index
    %25 = vector.load %arg7[%c0_17, %c0_18] : memref<1x128xf32, #tpu.memory_space<vmem>>, vector<1x128xf32>
    %26 = vector.broadcast %25 : vector<1x128xf32> to vector<128x128xf32>
    %27 = arith.addf %24, %26 : vector<128x128xf32>
    %cst_19 = arith.constant 0.000000e+00 : f32
    %28 = vector.broadcast %cst_19 : f32 to vector<128x128xf32>
    %29 = arith.cmpf ogt, %27, %28 : vector<128x128xf32>
    %cst_20 = arith.constant 0.00999999977 : f32
    %30 = vector.broadcast %cst_20 : f32 to vector<128x128xf32>
    %31 = arith.mulf %30, %27 : vector<128x128xf32>
    %32 = arith.select %29, %27, %31 : vector<128x128xi1>, vector<128x128xf32>
    %c0_21 = arith.constant 0 : index
    %c0_22 = arith.constant 0 : index
    %33 = vector.load %arg8[%c0_21, %c0_22] : memref<1x128xf32, #tpu.memory_space<vmem>>, vector<1x128xf32>
    %34 = vector.broadcast %33 : vector<1x128xf32> to vector<128x128xf32>
    %35 = arith.mulf %32, %34 : vector<128x128xf32>
    %cst_23 = arith.constant dense<0.000000e+00> : vector<128xf32>
    %36 = vector.multi_reduction <add>, %35, %cst_23 [1] : vector<128x128xf32> to vector<128xf32>
    %37 = vector.shape_cast %36 : vector<128xf32> to vector<128x1xf32>
    %c0_24 = arith.constant 0 : index
    %c0_25 = arith.constant 0 : index
    %38 = vector.load %arg9[%c0_24, %c0_25] : memref<1x1xf32, #tpu.memory_space<vmem>>, vector<1x1xf32>
    %39 = vector.broadcast %38 : vector<1x1xf32> to vector<128x1xf32>
    %40 = arith.addf %37, %39 : vector<128x1xf32>
    %41 = vector.shape_cast %40 : vector<128x1xf32> to vector<1x1x128xf32>
    %c0_26 = arith.constant 0 : index
    %c0_27 = arith.constant 0 : index
    %c0_28 = arith.constant 0 : index
    %42 = vector.load %arg10[%c0_26, %c0_27, %c0_28] : memref<1x1x128xf32, #tpu.memory_space<vmem>>, vector<1x1x128xf32>
    tpu.vector_store %arg10[%c0_26, %c0_27, %c0_28], %41 {strides = array<i32>} : memref<1x1x128xf32, #tpu.memory_space<vmem>>, vector<1x1x128xf32>,
    return
  }
  func.func @transform_0(%arg0: i32) -> (i32, i32) {
    %c0_i32 = arith.constant 0 : i32
    %c0_i32_0 = arith.constant 0 : i32
    return %arg0, %c0_i32 : i32, i32
  }
  func.func @transform_1(%arg0: i32) -> (i32, i32) {
    %c0_i32 = arith.constant 0 : i32
    %c0_i32_0 = arith.constant 0 : i32
    %c0_i32_1 = arith.constant 0 : i32
    return %c0_i32, %c0_i32_0 : i32, i32
  }
  func.func @transform_2(%arg0: i32) -> (i32, i32) {
    %c0_i32 = arith.constant 0 : i32
    %c0_i32_0 = arith.constant 0 : i32
    %c0_i32_1 = arith.constant 0 : i32
    return %c0_i32, %c0_i32_0 : i32, i32
  }
  func.func @transform_3(%arg0: i32) -> (i32, i32) {
    %c0_i32 = arith.constant 0 : i32
    %c0_i32_0 = arith.constant 0 : i32
    %c0_i32_1 = arith.constant 0 : i32
    return %c0_i32, %c0_i32_0 : i32, i32
  }
  func.func @transform_4(%arg0: i32) -> (i32, i32) {
    %c0_i32 = arith.constant 0 : i32
    %c0_i32_0 = arith.constant 0 : i32
    %c0_i32_1 = arith.constant 0 : i32
    return %c0_i32, %c0_i32_0 : i32, i32
  }
  func.func @transform_5(%arg0: i32) -> (i32, i32) {
    %c0_i32 = arith.constant 0 : i32
    %c0_i32_0 = arith.constant 0 : i32
    %c0_i32_1 = arith.constant 0 : i32
    return %c0_i32, %c0_i32_0 : i32, i32
  }
  func.func @transform_6(%arg0: i32) -> (i32, i32) {
    %c0_i32 = arith.constant 0 : i32
    %c0_i32_0 = arith.constant 0 : i32
    %c0_i32_1 = arith.constant 0 : i32
    return %c0_i32, %c0_i32_0 : i32, i32
  }
  func.func @transform_7(%arg0: i32) -> (i32, i32) {
    %c0_i32 = arith.constant 0 : i32
    %c0_i32_0 = arith.constant 0 : i32
    %c0_i32_1 = arith.constant 0 : i32
    return %c0_i32, %c0_i32_0 : i32, i32
  }
  func.func @transform_8(%arg0: i32) -> (i32, i32) {
    %c0_i32 = arith.constant 0 : i32
    %c0_i32_0 = arith.constant 0 : i32
    %c0_i32_1 = arith.constant 0 : i32
    return %c0_i32, %c0_i32_0 : i32, i32
  }
  func.func @transform_9(%arg0: i32) -> (i32, i32, i32) {
    %c0_i32 = arith.constant 0 : i32
    %c0_i32_0 = arith.constant 0 : i32
    %c0_i32_1 = arith.constant 0 : i32
    return %arg0, %c0_i32, %c0_i32_0 : i32, i32, i32
  }
}

</mosaic_0001>

<llo_original>
// kernel: tpu_custom_call.1
$region0: #{tpu_custom_call.1}
  #allocation0 [shape = 'u32[]', space=smem, size = 0x4, offset = 0x4, fixed_abs, tag = 'smem constant byte address 0x4 - core index']
  #allocation1 [shape = 'u32[144,128]{1,0:T(1,128)}', space=vmem, size = 0x12000, scoped, tag = 'internal scratch']
  #allocation2 [shape = 'f32[1,1]{1,0:T(1,128)S(1)}', space=vmem, size = 0x200, scoped, tag = 'scoped memory for tpu_custom_call.1']
  %s0 = inlined_call_operand.hbm [shape: bf16[128,128], index: 0, kind: input, shape index: {}]
  %s1 = inlined_call_operand.hbm [shape: bf16[128,1024], index: 1, kind: input, shape index: {}]
  %s2 = inlined_call_operand.hbm [shape: f32[1,1024], index: 2, kind: input, shape index: {}]
  %s3 = inlined_call_operand.hbm [shape: bf16[1024,1024], index: 3, kind: input, shape index: {}]
  %s4 = inlined_call_operand.hbm [shape: f32[1,1024], index: 4, kind: input, shape index: {}]
  %s5 = inlined_call_operand.hbm [shape: bf16[1024,128], index: 5, kind: input, shape index: {}]
  %s6 = inlined_call_operand.hbm [shape: f32[1,128], index: 6, kind: input, shape index: {}]
  %s7 = inlined_call_operand.hbm [shape: f32[1,128], index: 7, kind: input, shape index: {}]
  %s8 = inlined_call_operand.<no memory space> [shape: f32[1,1], index: 8, kind: input, shape index: {}]
  %s9 = inlined_call_operand.hbm [shape: f32[1,1,128], index: 9, kind: output, shape index: {}]
  %s10 = sld [smem:[#allocation0]]
  $region78: #{tpu_custom_call.1} parent=0
    _
  %s12 = ssub.s32 1, %s10
  %s13 = scalar_select 0, %s12, %s10
  %v14 = vstv %s8
  %15 = vst [vmem:[#allocation2] sm:$0x1] %v14
  $region1: #{tpu_custom_call.1} parent=0
    #allocation3 [shape = 'u8[32768]{0}', space=vmem, size = 0x8000, scoped, tag = 'input window, operand 0, single buffered']
    #allocation4 [shape = 's32[1]{0}', space=sflag, size = 0x4, scoped, tag = 'scoped memory for tpu_custom_call.1']
    #allocation5 [shape = 's32[1]{0}', space=sflag, size = 0x4, scoped, tag = 'scoped memory for tpu_custom_call.1']
    #allocation6 [shape = 'u8[262144]{0}', space=vmem, size = 0x40000, scoped, tag = 'input window, operand 1, single buffered']
    #allocation7 [shape = 's32[1]{0}', space=sflag, size = 0x4, scoped, tag = 'scoped memory for tpu_custom_call.1']
    #allocation8 [shape = 'u8[4096]{0}', space=vmem, size = 0x1000, scoped, tag = 'input window, operand 2, single buffered']
    #allocation9 [shape = 'u8[2097152]{0}', space=vmem, size = 0x200000, scoped, tag = 'input window, operand 3, single buffered']
    #allocation10 [shape = 's32[1]{0}', space=sflag, size = 0x4, scoped, tag = 'scoped memory for tpu_custom_call.1']
    #allocation11 [shape = 'u8[4096]{0}', space=vmem, size = 0x1000, scoped, tag = 'input window, operand 4, single buffered']
    #allocation12 [shape = 'u8[262144]{0}', space=vmem, size = 0x40000, scoped, tag = 'input window, operand 5, single buffered']
    #allocation13 [shape = 's32[1]{0}', space=sflag, size = 0x4, scoped, tag = 'scoped memory for tpu_custom_call.1']
    #allocation14 [shape = 'u8[512]{0}', space=vmem, size = 0x400, scoped, tag = 'input window, operand 6, single buffered']
    #allocation15 [shape = 'u8[512]{0}', space=vmem, size = 0x400, scoped, tag = 'input window, operand 7, single buffered']
    #allocation16 [shape = 's32[1]{0}', space=sflag, size = 0x4, scoped, tag = 'scoped memory for tpu_custom_call.1']
    #allocation17 [shape = 'u8[512]{0}', space=vmem, size = 0x400, scoped, tag = 'output window, operand 0, single buffered']
    %16 = vsyncpa [#allocation4], 0
    %17 = vsyncpa [#allocation7], 0
    %18 = vsyncpa [#allocation10], 0
    %19 = vsyncpa [#allocation13], 0
    %20 = vsyncpa [#allocation16], 0
    %21 = vsyncpa [#allocation5], 0
    // Predicated region
    $region2: #{tpu_custom_call.1} parent=1 // pred_check
      _
    $region3: #{tpu_custom_call.1} parent=1 // pred_check_branch
      %23 = sbr.rel (0) target = $region5
    $region4: #{tpu_custom_call.1} parent=1 // pred_region
      %s25 = ssub.s32 1024, 1024
      %26 = vsyncadd [#allocation4], %s25
      %s27 = sshll.u32 [#allocation3], 4
      %s28 = int_to_ptr.vmem [resolvable:$true] %s27
      %33 = dma.hbm_to_vmem [thread:$0]  %s0, 1024, %s28, [#allocation4], 64, 64, 4
    $region5: #{tpu_custom_call.1} parent=1 // pred_fallthru
      _
    // Predicated region
    $region6: #{tpu_custom_call.1} parent=1 // pred_check
      _
    $region7: #{tpu_custom_call.1} parent=1 // pred_check_branch
      %35 = sbr.rel (0) target = $region9
    $region8: #{tpu_custom_call.1} parent=1 // pred_region
      %s37 = ssub.s32 8192, 8192
      %38 = vsyncadd [#allocation7], %s37
      %s39 = sshll.u32 [#allocation6], 4
      %s40 = int_to_ptr.vmem [resolvable:$true] %s39
      %45 = dma.hbm_to_vmem [thread:$0]  %s1, 8192, %s40, [#allocation7], 512, 512, 32
    $region9: #{tpu_custom_call.1} parent=1 // pred_fallthru
      _
    // Predicated region
    $region10: #{tpu_custom_call.1} parent=1 // pred_check
      _
    $region11: #{tpu_custom_call.1} parent=1 // pred_check_branch
      %47 = sbr.rel (0) target = $region13
    $region12: #{tpu_custom_call.1} parent=1 // pred_region
      %s49 = ssub.s32 128, 128
      %50 = vsyncadd [#allocation7], %s49
      %s52 = sshll.u32 [#allocation8], 4
      %s53 = int_to_ptr.vmem [resolvable:$true] %s52
      %55 = dma.hbm_to_vmem [thread:$0]  %s2, 128, %s53, [#allocation7]
    $region13: #{tpu_custom_call.1} parent=1 // pred_fallthru
      _
    // Predicated region
    $region14: #{tpu_custom_call.1} parent=1 // pred_check
      _
    $region15: #{tpu_custom_call.1} parent=1 // pred_check_branch
      %57 = sbr.rel (0) target = $region17
    $region16: #{tpu_custom_call.1} parent=1 // pred_region
      %s59 = ssub.s32 65536, 65536
      %60 = vsyncadd [#allocation10], %s59
      %s61 = sshll.u32 [#allocation9], 4
      %s62 = int_to_ptr.vmem [resolvable:$true] %s61
      %67 = dma.hbm_to_vmem [thread:$0]  %s3, 65536, %s62, [#allocation10], 512, 512, 32
    $region17: #{tpu_custom_call.1} parent=1 // pred_fallthru
      _
    // Predicated region
    $region18: #{tpu_custom_call.1} parent=1 // pred_check
      _
    $region19: #{tpu_custom_call.1} parent=1 // pred_check_branch
      %69 = sbr.rel (0) target = $region21
    $region20: #{tpu_custom_call.1} parent=1 // pred_region
      %s71 = ssub.s32 128, 128
      %72 = vsyncadd [#allocation10], %s71
      %s74 = sshll.u32 [#allocation11], 4
      %s75 = int_to_ptr.vmem [resolvable:$true] %s74
      %77 = dma.hbm_to_vmem [thread:$0]  %s4, 128, %s75, [#allocation10]
    $region21: #{tpu_custom_call.1} parent=1 // pred_fallthru
      _
    // Predicated region
    $region22: #{tpu_custom_call.1} parent=1 // pred_check
      _
    $region23: #{tpu_custom_call.1} parent=1 // pred_check_branch
      %79 = sbr.rel (0) target = $region25
    $region24: #{tpu_custom_call.1} parent=1 // pred_region
      %s81 = ssub.s32 8192, 8192
      %82 = vsyncadd [#allocation13], %s81
      %s83 = sshll.u32 [#allocation12], 4
      %s84 = int_to_ptr.vmem [resolvable:$true] %s83
      %89 = dma.hbm_to_vmem [thread:$0]  %s5, 8192, %s84, [#allocation13], 64, 64, 4
    $region25: #{tpu_custom_call.1} parent=1 // pred_fallthru
      _
    // Predicated region
    $region26: #{tpu_custom_call.1} parent=1 // pred_check
      _
    $region27: #{tpu_custom_call.1} parent=1 // pred_check_branch
      %91 = sbr.rel (0) target = $region29
    $region28: #{tpu_custom_call.1} parent=1 // pred_region
      %s93 = ssub.s32 16, 16
      %94 = vsyncadd [#allocation13], %s93
      %s96 = sshll.u32 [#allocation14], 4
      %s97 = int_to_ptr.vmem [resolvable:$true] %s96
      %99 = dma.hbm_to_vmem [thread:$0]  %s6, 16, %s97, [#allocation13]
    $region29: #{tpu_custom_call.1} parent=1 // pred_fallthru
      _
    // Predicated region
    $region30: #{tpu_custom_call.1} parent=1 // pred_check
      _
    $region31: #{tpu_custom_call.1} parent=1 // pred_check_branch
      %101 = sbr.rel (0) target = $region33
    $region32: #{tpu_custom_call.1} parent=1 // pred_region
      %s103 = ssub.s32 16, 16
      %104 = vsyncadd [#allocation16], %s103
      %s106 = sshll.u32 [#allocation15], 4
      %s107 = int_to_ptr.vmem [resolvable:$true] %s106
      %109 = dma.hbm_to_vmem [thread:$0]  %s7, 16, %s107, [#allocation16]
    $region33: #{tpu_custom_call.1} parent=1 // pred_fallthru
      _
    // Predicated region
    $region34: #{tpu_custom_call.1} parent=1 // pred_check
      _
    $region35: #{tpu_custom_call.1} parent=1 // pred_check_branch
      %111 = sbr.rel (0) target = $region37
    $region36: #{tpu_custom_call.1} parent=1 // pred_region
      _
    $region37: #{tpu_custom_call.1} parent=1 // pred_fallthru
      _
    // Predicated region
    $region38: #{tpu_custom_call.1} parent=1 // pred_check
      _
    $region39: #{tpu_custom_call.1} parent=1 // pred_check_branch
      %113 = sbr.rel (0) target = $region41
    $region40: #{tpu_custom_call.1} parent=1 // pred_region
      %114 = dma.done [#allocation4], 1024
    $region41: #{tpu_custom_call.1} parent=1 // pred_fallthru
      _
    // Predicated region
    $region42: #{tpu_custom_call.1} parent=1 // pred_check
      _
    $region43: #{tpu_custom_call.1} parent=1 // pred_check_branch
      %116 = sbr.rel (0) target = $region45
    $region44: #{tpu_custom_call.1} parent=1 // pred_region
      %117 = dma.done [#allocation7], 8192
    $region45: #{tpu_custom_call.1} parent=1 // pred_fallthru
      _
    // Predicated region
    $region46: #{tpu_custom_call.1} parent=1 // pred_check
      _
    $region47: #{tpu_custom_call.1} parent=1 // pred_check_branch
      %119 = sbr.rel (0) target = $region49
    $region48: #{tpu_custom_call.1} parent=1 // pred_region
      %120 = dma.done [#allocation7], 128
    $region49: #{tpu_custom_call.1} parent=1 // pred_fallthru
      _
    // Predicated region
    $region50: #{tpu_custom_call.1} parent=1 // pred_check
      _
    $region51: #{tpu_custom_call.1} parent=1 // pred_check_branch
      %122 = sbr.rel (0) target = $region53
    $region52: #{tpu_custom_call.1} parent=1 // pred_region
      %123 = dma.done [#allocation10], 65536
    $region53: #{tpu_custom_call.1} parent=1 // pred_fallthru
      _
    // Predicated region
    $region54: #{tpu_custom_call.1} parent=1 // pred_check
      _
    $region55: #{tpu_custom_call.1} parent=1 // pred_check_branch
      %125 = sbr.rel (0) target = $region57
    $region56: #{tpu_custom_call.1} parent=1 // pred_region
      %126 = dma.done [#allocation10], 128
    $region57: #{tpu_custom_call.1} parent=1 // pred_fallthru
      _
    // Predicated region
    $region58: #{tpu_custom_call.1} parent=1 // pred_check
      _
    $region59: #{tpu_custom_call.1} parent=1 // pred_check_branch
      %128 = sbr.rel (0) target = $region61
    $region60: #{tpu_custom_call.1} parent=1 // pred_region
      %129 = dma.done [#allocation13], 8192
    $region61: #{tpu_custom_call.1} parent=1 // pred_fallthru
      _
    // Predicated region
    $region62: #{tpu_custom_call.1} parent=1 // pred_check
      _
    $region63: #{tpu_custom_call.1} parent=1 // pred_check_branch
      %131 = sbr.rel (0) target = $region65
    $region64: #{tpu_custom_call.1} parent=1 // pred_region
      %132 = dma.done [#allocation13], 16
    $region65: #{tpu_custom_call.1} parent=1 // pred_fallthru
      _
    // Predicated region
    $region66: #{tpu_custom_call.1} parent=1 // pred_check
      _
    $region67: #{tpu_custom_call.1} parent=1 // pred_check_branch
      %134 = sbr.rel (0) target = $region69
    $region68: #{tpu_custom_call.1} parent=1 // pred_region
      %135 = dma.done [#allocation16], 16
    $region69: #{tpu_custom_call.1} parent=1 // pred_fallthru
      _
    %v137 = vld [vmem:[#allocation3] sm:$0xf]
    %v138 = vld [vmem:[#allocation3 + $0x4] sm:$0xf]
    %v139 = vld [vmem:[#allocation3 + $0x8] sm:$0xf]
    %v140 = vld [vmem:[#allocation3 + $0xc] sm:$0xf]
    %v141 = vld [vmem:[#allocation3 + $0x10] sm:$0xf]
    %v142 = vld [vmem:[#allocation3 + $0x14] sm:$0xf]
    %v143 = vld [vmem:[#allocation3 + $0x18] sm:$0xf]
    %v144 = vld [vmem:[#allocation3 + $0x1c] sm:$0xf]
    %v145 = vld [vmem:[#allocation3 + $0x20] sm:$0xf]
    %v146 = vld [vmem:[#allocation3 + $0x24] sm:$0xf]
    %v147 = vld [vmem:[#allocation3 + $0x28] sm:$0xf]
    %v148 = vld [vmem:[#allocation3 + $0x2c] sm:$0xf]
    %v149 = vld [vmem:[#allocation3 + $0x30] sm:$0xf]
    %v150 = vld [vmem:[#allocation3 + $0x34] sm:$0xf]
    %v151 = vld [vmem:[#allocation3 + $0x38] sm:$0xf]
    %v152 = vld [vmem:[#allocation3 + $0x3c] sm:$0xf]
    %v153 = vld [vmem:[#allocation6] sm:$0xff]
    %v154 = vld [vmem:[#allocation6 + $0x8] sm:$0xff]
    %v155 = vld [vmem:[#allocation6 + $0x10] sm:$0xff]
    %v156 = vld [vmem:[#allocation6 + $0x18] sm:$0xff]
    %v157 = vld [vmem:[#allocation6 + $0x20] sm:$0xff]
    %v158 = vld [vmem:[#allocation6 + $0x28] sm:$0xff]
    %v159 = vld [vmem:[#allocation6 + $0x30] sm:$0xff]
    %v160 = vld [vmem:[#allocation6 + $0x38] sm:$0xff]
    %v161 = vld [vmem:[#allocation6 + $0x40] sm:$0xff]
    %v162 = vld [vmem:[#allocation6 + $0x48] sm:$0xff]
    %v163 = vld [vmem:[#allocation6 + $0x50] sm:$0xff]
    %v164 = vld [vmem:[#allocation6 + $0x58] sm:$0xff]
    %v165 = vld [vmem:[#allocation6 + $0x60] sm:$0xff]
    %v166 = vld [vmem:[#allocation6 + $0x68] sm:$0xff]
    %v167 = vld [vmem:[#allocation6 + $0x70] sm:$0xff]
    %v168 = vld [vmem:[#allocation6 + $0x78] sm:$0xff]
    %v169 = vld [vmem:[#allocation6 + $0x80] sm:$0xff]
    %v170 = vld [vmem:[#allocation6 + $0x88] sm:$0xff]
    %v171 = vld [vmem:[#allocation6 + $0x90] sm:$0xff]
    %v172 = vld [vmem:[#allocation6 + $0x98] sm:$0xff]
    %v173 = vld [vmem:[#allocation6 + $0xa0] sm:$0xff]
    %v174 = vld [vmem:[#allocation6 + $0xa8] sm:$0xff]
    %v175 = vld [vmem:[#allocation6 + $0xb0] sm:$0xff]
    %v176 = vld [vmem:[#allocation6 + $0xb8] sm:$0xff]
    %v177 = vld [vmem:[#allocation6 + $0xc0] sm:$0xff]
    %v178 = vld [vmem:[#allocation6 + $0xc8] sm:$0xff]
    %v179 = vld [vmem:[#allocation6 + $0xd0] sm:$0xff]
    %v180 = vld [vmem:[#allocation6 + $0xd8] sm:$0xff]
    %v181 = vld [vmem:[#allocation6 + $0xe0] sm:$0xff]
    %v182 = vld [vmem:[#allocation6 + $0xe8] sm:$0xff]
    %v183 = vld [vmem:[#allocation6 + $0xf0] sm:$0xff]
    %v184 = vld [vmem:[#allocation6 + $0xf8] sm:$0xff]
    %v185 = vld [vmem:[#allocation6 + $0x100] sm:$0xff]
    %v186 = vld [vmem:[#allocation6 + $0x108] sm:$0xff]
    %v187 = vld [vmem:[#allocation6 + $0x110] sm:$0xff]
    %v188 = vld [vmem:[#allocation6 + $0x118] sm:$0xff]
    %v189 = vld [vmem:[#allocation6 + $0x120] sm:$0xff]
    %v190 = vld [vmem:[#allocation6 + $0x128] sm:$0xff]
    %v191 = vld [vmem:[#allocation6 + $0x130] sm:$0xff]
    %v192 = vld [vmem:[#allocation6 + $0x138] sm:$0xff]
    %v193 = vld [vmem:[#allocation6 + $0x140] sm:$0xff]
    %v194 = vld [vmem:[#allocation6 + $0x148] sm:$0xff]
    %v195 = vld [vmem:[#allocation6 + $0x150] sm:$0xff]
    %v196 = vld [vmem:[#allocation6 + $0x158] sm:$0xff]
    %v197 = vld [vmem:[#allocation6 + $0x160] sm:$0xff]
    %v198 = vld [vmem:[#allocation6 + $0x168] sm:$0xff]
    %v199 = vld [vmem:[#allocation6 + $0x170] sm:$0xff]
    %v200 = vld [vmem:[#allocation6 + $0x178] sm:$0xff]
    %v201 = vld [vmem:[#allocation6 + $0x180] sm:$0xff]
    %v202 = vld [vmem:[#allocation6 + $0x188] sm:$0xff]
    %v203 = vld [vmem:[#allocation6 + $0x190] sm:$0xff]
    %v204 = vld [vmem:[#allocation6 + $0x198] sm:$0xff]
    %v205 = vld [vmem:[#allocation6 + $0x1a0] sm:$0xff]
    %v206 = vld [vmem:[#allocation6 + $0x1a8] sm:$0xff]
    %v207 = vld [vmem:[#allocation6 + $0x1b0] sm:$0xff]
    %v208 = vld [vmem:[#allocation6 + $0x1b8] sm:$0xff]
    %v209 = vld [vmem:[#allocation6 + $0x1c0] sm:$0xff]
    %v210 = vld [vmem:[#allocation6 + $0x1c8] sm:$0xff]
    %v211 = vld [vmem:[#allocation6 + $0x1d0] sm:$0xff]
    %v212 = vld [vmem:[#allocation6 + $0x1d8] sm:$0xff]
    %v213 = vld [vmem:[#allocation6 + $0x1e0] sm:$0xff]
    %v214 = vld [vmem:[#allocation6 + $0x1e8] sm:$0xff]
    %v215 = vld [vmem:[#allocation6 + $0x1f0] sm:$0xff]
    %v216 = vld [vmem:[#allocation6 + $0x1f8] sm:$0xff]
    %v217 = vld [vmem:[#allocation8] sm:$0xff]
    %v219 = vlaneseq
    %v220 = vshrl.u32 %v219, 7
    %v221 = vsub.s32 0, %v220
    %v222 = vrot.slane %v217, %v221
    %v223 = vlaneseq
    %v224 = vshrl.u32 %v223, 7
    %v225 = vsub.s32 1, %v224
    %v226 = vrot.slane %v217, %v225
    %v227 = vlaneseq
    %v228 = vshrl.u32 %v227, 7
    %v229 = vsub.s32 2, %v228
    %v230 = vrot.slane %v217, %v229
    %v231 = vlaneseq
    %v232 = vshrl.u32 %v231, 7
    %v233 = vsub.s32 3, %v232
    %v234 = vrot.slane %v217, %v233
    %v235 = vlaneseq
    %v236 = vshrl.u32 %v235, 7
    %v237 = vsub.s32 4, %v236
    %v238 = vrot.slane %v217, %v237
    %v239 = vlaneseq
    %v240 = vshrl.u32 %v239, 7
    %v241 = vsub.s32 5, %v240
    %v242 = vrot.slane %v217, %v241
    %v243 = vlaneseq
    %v244 = vshrl.u32 %v243, 7
    %v245 = vsub.s32 6, %v244
    %v246 = vrot.slane %v217, %v245
    %v247 = vlaneseq
    %v248 = vshrl.u32 %v247, 7
    %v249 = vsub.s32 7, %v248
    %v250 = vrot.slane %v217, %v249
    %v275 = vunpack.c.l.b16 %v137
    %v276 = vunpack.c.l.b16 %v138
    %v277 = vunpack.c.l.b16 %v139
    %v278 = vunpack.c.l.b16 %v140
    %v279 = vunpack.c.l.b16 %v141
    %v280 = vunpack.c.l.b16 %v142
    %v281 = vunpack.c.l.b16 %v143
    %v282 = vunpack.c.l.b16 %v144
    %v283 = vunpack.c.l.b16 %v145
    %v284 = vunpack.c.l.b16 %v146
    %v285 = vunpack.c.l.b16 %v147
    %v286 = vunpack.c.l.b16 %v148
    %v287 = vunpack.c.l.b16 %v149
    %v288 = vunpack.c.l.b16 %v150
    %v289 = vunpack.c.l.b16 %v151
    %v290 = vunpack.c.l.b16 %v152
    %v291 = vpack.c.b16 %v276, %v275
    %v292 = vpack.c.b16 %v278, %v277
    %v293 = vpack.c.b16 %v280, %v279
    %v294 = vpack.c.b16 %v282, %v281
    %v295 = vpack.c.b16 %v284, %v283
    %v296 = vpack.c.b16 %v286, %v285
    %v297 = vpack.c.b16 %v288, %v287
    %v298 = vpack.c.b16 %v290, %v289
    %v371 = vunpack.c.l.b16 %v153
    %v372 = vunpack.c.h.b16 %v153
    %v373 = vunpack.c.l.b16 %v154
    %v374 = vunpack.c.h.b16 %v154
    %v375 = vunpack.c.l.b16 %v155
    %v376 = vunpack.c.h.b16 %v155
    %v377 = vunpack.c.l.b16 %v156
    %v378 = vunpack.c.h.b16 %v156
    %v379 = vunpack.c.l.b16 %v157
    %v380 = vunpack.c.h.b16 %v157
    %v381 = vunpack.c.l.b16 %v158
    %v382 = vunpack.c.h.b16 %v158
    %v383 = vunpack.c.l.b16 %v159
    %v384 = vunpack.c.h.b16 %v159
    %v385 = vunpack.c.l.b16 %v160
    %v386 = vunpack.c.h.b16 %v160
    %v387 = vunpack.c.l.b16 %v161
    %v388 = vunpack.c.h.b16 %v161
    %v389 = vunpack.c.l.b16 %v162
    %v390 = vunpack.c.h.b16 %v162
    %v391 = vunpack.c.l.b16 %v163
    %v392 = vunpack.c.h.b16 %v163
    %v393 = vunpack.c.l.b16 %v164
    %v394 = vunpack.c.h.b16 %v164
    %v395 = vunpack.c.l.b16 %v165
    %v396 = vunpack.c.h.b16 %v165
    %v397 = vunpack.c.l.b16 %v166
    %v398 = vunpack.c.h.b16 %v166
    %v399 = vunpack.c.l.b16 %v167
    %v400 = vunpack.c.h.b16 %v167
    %v401 = vunpack.c.l.b16 %v168
    %v402 = vunpack.c.h.b16 %v168
    %v403 = vunpack.c.l.b16 %v169
    %v404 = vunpack.c.h.b16 %v169
    %v405 = vunpack.c.l.b16 %v170
    %v406 = vunpack.c.h.b16 %v170
    %v407 = vunpack.c.l.b16 %v171
    %v408 = vunpack.c.h.b16 %v171
    %v409 = vunpack.c.l.b16 %v172
    %v410 = vunpack.c.h.b16 %v172
    %v411 = vunpack.c.l.b16 %v173
    %v412 = vunpack.c.h.b16 %v173
    %v413 = vunpack.c.l.b16 %v174
    %v414 = vunpack.c.h.b16 %v174
    %v415 = vunpack.c.l.b16 %v175
    %v416 = vunpack.c.h.b16 %v175
    %v417 = vunpack.c.l.b16 %v176
    %v418 = vunpack.c.h.b16 %v176
    %v419 = vunpack.c.l.b16 %v177
    %v420 = vunpack.c.h.b16 %v177
    %v421 = vunpack.c.l.b16 %v178
    %v422 = vunpack.c.h.b16 %v178
    %v423 = vunpack.c.l.b16 %v179
    %v424 = vunpack.c.h.b16 %v179
    %v425 = vunpack.c.l.b16 %v180
    %v426 = vunpack.c.h.b16 %v180
    %v427 = vunpack.c.l.b16 %v181
    %v428 = vunpack.c.h.b16 %v181
    %v429 = vunpack.c.l.b16 %v182
    %v430 = vunpack.c.h.b16 %v182
    %v431 = vunpack.c.l.b16 %v183
    %v432 = vunpack.c.h.b16 %v183
    %v433 = vunpack.c.l.b16 %v184
    %v434 = vunpack.c.h.b16 %v184
    %v435 = vunpack.c.l.b16 %v185
    %v436 = vunpack.c.h.b16 %v185
    %v437 = vunpack.c.l.b16 %v186
    %v438 = vunpack.c.h.b16 %v186
    %v439 = vunpack.c.l.b16 %v187
    %v440 = vunpack.c.h.b16 %v187
    %v441 = vunpack.c.l.b16 %v188
    %v442 = vunpack.c.h.b16 %v188
    %v443 = vunpack.c.l.b16 %v189
    %v444 = vunpack.c.h.b16 %v189
    %v445 = vunpack.c.l.b16 %v190
    %v446 = vunpack.c.h.b16 %v190
    %v447 = vunpack.c.l.b16 %v191
    %v448 = vunpack.c.h.b16 %v191
    %v449 = vunpack.c.l.b16 %v192
    %v450 = vunpack.c.h.b16 %v192
    %v451 = vunpack.c.l.b16 %v193
    %v452 = vunpack.c.h.b16 %v193
    %v453 = vunpack.c.l.b16 %v194
    %v454 = vunpack.c.h.b16 %v194
    %v455 = vunpack.c.l.b16 %v195
    %v456 = vunpack.c.h.b16 %v195
    %v457 = vunpack.c.l.b16 %v196
    %v458 = vunpack.c.h.b16 %v196
    %v459 = vunpack.c.l.b16 %v197
    %v460 = vunpack.c.h.b16 %v197
    %v461 = vunpack.c.l.b16 %v198
    %v462 = vunpack.c.h.b16 %v198
    %v463 = vunpack.c.l.b16 %v199
    %v464 = vunpack.c.h.b16 %v199
    %v465 = vunpack.c.l.b16 %v200
    %v466 = vunpack.c.h.b16 %v200
    %v467 = vunpack.c.l.b16 %v201
    %v468 = vunpack.c.h.b16 %v201
    %v469 = vunpack.c.l.b16 %v202
    %v470 = vunpack.c.h.b16 %v202
    %v471 = vunpack.c.l.b16 %v203
    %v472 = vunpack.c.h.b16 %v203
    %v473 = vunpack.c.l.b16 %v204
    %v474 = vunpack.c.h.b16 %v204
    %v475 = vunpack.c.l.b16 %v205
    %v476 = vunpack.c.h.b16 %v205
    %v477 = vunpack.c.l.b16 %v206
    %v478 = vunpack.c.h.b16 %v206
    %v479 = vunpack.c.l.b16 %v207
    %v480 = vunpack.c.h.b16 %v207
    %v481 = vunpack.c.l.b16 %v208
    %v482 = vunpack.c.h.b16 %v208
    %v483 = vunpack.c.l.b16 %v209
    %v484 = vunpack.c.h.b16 %v209
    %v485 = vunpack.c.l.b16 %v210
    %v486 = vunpack.c.h.b16 %v210
    %v487 = vunpack.c.l.b16 %v211
    %v488 = vunpack.c.h.b16 %v211
    %v489 = vunpack.c.l.b16 %v212
    %v490 = vunpack.c.h.b16 %v212
    %v491 = vunpack.c.l.b16 %v213
    %v492 = vunpack.c.h.b16 %v213
    %v493 = vunpack.c.l.b16 %v214
    %v494 = vunpack.c.h.b16 %v214
    %v495 = vunpack.c.l.b16 %v215
    %v496 = vunpack.c.h.b16 %v215
    %v497 = vunpack.c.l.b16 %v216
    %v498 = vunpack.c.h.b16 %v216
    %v499 = vpack.c.b16 %v379, %v371
    %v500 = vpack.c.b16 %v380, %v372
    %v501 = vpack.c.b16 %v381, %v373
    %v502 = vpack.c.b16 %v382, %v374
    %v503 = vpack.c.b16 %v383, %v375
    %v504 = vpack.c.b16 %v384, %v376
    %v505 = vpack.c.b16 %v385, %v377
    %v506 = vpack.c.b16 %v386, %v378
    %v507 = vpack.c.b16 %v395, %v387
    %v508 = vpack.c.b16 %v396, %v388
    %v509 = vpack.c.b16 %v397, %v389
    %v510 = vpack.c.b16 %v398, %v390
    %v511 = vpack.c.b16 %v399, %v391
    %v512 = vpack.c.b16 %v400, %v392
    %v513 = vpack.c.b16 %v401, %v393
    %v514 = vpack.c.b16 %v402, %v394
    %v515 = vpack.c.b16 %v411, %v403
    %v516 = vpack.c.b16 %v412, %v404
    %v517 = vpack.c.b16 %v413, %v405
    %v518 = vpack.c.b16 %v414, %v406
    %v519 = vpack.c.b16 %v415, %v407
    %v520 = vpack.c.b16 %v416, %v408
    %v521 = vpack.c.b16 %v417, %v409
    %v522 = vpack.c.b16 %v418, %v410
    %v523 = vpack.c.b16 %v427, %v419
    %v524 = vpack.c.b16 %v428, %v420
    %v525 = vpack.c.b16 %v429, %v421
    %v526 = vpack.c.b16 %v430, %v422
    %v527 = vpack.c.b16 %v431, %v423
    %v528 = vpack.c.b16 %v432, %v424
    %v529 = vpack.c.b16 %v433, %v425
    %v530 = vpack.c.b16 %v434, %v426
    %v531 = vpack.c.b16 %v443, %v435
    %v532 = vpack.c.b16 %v444, %v436
    %v533 = vpack.c.b16 %v445, %v437
    %v534 = vpack.c.b16 %v446, %v438
    %v535 = vpack.c.b16 %v447, %v439
    %v536 = vpack.c.b16 %v448, %v440
    %v537 = vpack.c.b16 %v449, %v441
    %v538 = vpack.c.b16 %v450, %v442
    %v539 = vpack.c.b16 %v459, %v451
    %v540 = vpack.c.b16 %v460, %v452
    %v541 = vpack.c.b16 %v461, %v453
    %v542 = vpack.c.b16 %v462, %v454
    %v543 = vpack.c.b16 %v463, %v455
    %v544 = vpack.c.b16 %v464, %v456
    %v545 = vpack.c.b16 %v465, %v457
    %v546 = vpack.c.b16 %v466, %v458
    %v547 = vpack.c.b16 %v475, %v467
    %v548 = vpack.c.b16 %v476, %v468
    %v549 = vpack.c.b16 %v477, %v469
    %v550 = vpack.c.b16 %v478, %v470
    %v551 = vpack.c.b16 %v479, %v471
    %v552 = vpack.c.b16 %v480, %v472
    %v553 = vpack.c.b16 %v481, %v473
    %v554 = vpack.c.b16 %v482, %v474
    %v555 = vpack.c.b16 %v491, %v483
    %v556 = vpack.c.b16 %v492, %v484
    %v557 = vpack.c.b16 %v493, %v485
    %v558 = vpack.c.b16 %v494, %v486
    %v559 = vpack.c.b16 %v495, %v487
    %v560 = vpack.c.b16 %v496, %v488
    %v561 = vpack.c.b16 %v497, %v489
    %v562 = vpack.c.b16 %v498, %v490
    %627 = vmatprep.subr.bf16.mxu0 %v556
    %628 = vmatpush1.bf16.msra.mxu0 %v555
    %629 = vmatprep.subr.bf16.mxu0 %v548
    %630 = vmatpush1.bf16.msra.mxu0 %v547
    %631 = vmatprep.subr.bf16.mxu0 %v540
    %632 = vmatpush1.bf16.msra.mxu0 %v539
    %633 = vmatprep.subr.bf16.mxu0 %v532
    %634 = vmatpush1.bf16.msra.mxu0 %v531
    %635 = vmatprep.subr.bf16.mxu0 %v524
    %636 = vmatpush1.bf16.msra.mxu0 %v523
    %637 = vmatprep.subr.bf16.mxu0 %v516
    %638 = vmatpush1.bf16.msra.mxu0 %v515
    %639 = vmatprep.subr.bf16.mxu0 %v508
    %640 = vmatpush1.bf16.msra.mxu0 %v507
    %641 = vmatprep.subr.bf16.mxu0 %v500
    %642 = vmatpush1.bf16.msra.mxu0 %v499
    %643 = vmatprep.subr.bf16.mxu0 0
    %644 = vmatpush2.bf16.msra.mxu0 0
    %645 = vmatprep.subr.bf16.mxu0 0
    %646 = vmatpush2.bf16.msra.mxu0 0
    %647 = vmatprep.subr.bf16.mxu0 0
    %648 = vmatpush2.bf16.msra.mxu0 0
    %649 = vmatprep.subr.bf16.mxu0 0
    %650 = vmatpush2.bf16.msra.mxu0 0
    %651 = vmatprep.subr.bf16.mxu0 0
    %652 = vmatpush2.bf16.msra.mxu0 0
    %653 = vmatprep.subr.bf16.mxu0 0
    %654 = vmatpush2.bf16.msra.mxu0 0
    %655 = vmatprep.subr.bf16.mxu0 0
    %656 = vmatpush2.bf16.msra.mxu0 0
    %657 = vmatprep.subr.bf16.mxu0 0
    %658 = vmatpush2.bf16.msra.mxu0 0
    %659 = vmatprep.mubr.bf16.mxu0 0
    %660 = vmatmul.mubr.bf16.gmra.mxu0 %v291
    %v661 = vpop.f32.mrf.mxu0
    %v662 = vadd.f32 %v222, %v661
    %v663 = vpop.f32.mrf.mxu0
    %v664 = vadd.f32 %v226, %v663
    %v665 = vpop.f32.mrf.mxu0
    %v666 = vadd.f32 %v222, %v665
    %v667 = vpop.f32.mrf.mxu0
    %v668 = vadd.f32 %v226, %v667
    %669 = vmatprep.mubr.bf16.mxu0 0
    %670 = vmatmul.mubr.bf16.gmra.mxu0 %v292
    %v671 = vpop.f32.mrf.mxu0
    %v672 = vadd.f32 %v222, %v671
    %v673 = vpop.f32.mrf.mxu0
    %v674 = vadd.f32 %v226, %v673
    %v675 = vpop.f32.mrf.mxu0
    %v676 = vadd.f32 %v222, %v675
    %v677 = vpop.f32.mrf.mxu0
    %v678 = vadd.f32 %v226, %v677
    %679 = vmatprep.mubr.bf16.mxu0 0
    %680 = vmatmul.mubr.bf16.gmra.mxu0 %v293
    %v681 = vpop.f32.mrf.mxu0
    %v682 = vadd.f32 %v222, %v681
    %v683 = vpop.f32.mrf.mxu0
    %v684 = vadd.f32 %v226, %v683
    %v685 = vpop.f32.mrf.mxu0
    %v686 = vadd.f32 %v222, %v685
    %v687 = vpop.f32.mrf.mxu0
    %v688 = vadd.f32 %v226, %v687
    %689 = vmatprep.mubr.bf16.mxu0 0
    %690 = vmatmul.mubr.bf16.gmra.mxu0 %v294
    %v691 = vpop.f32.mrf.mxu0
    %v692 = vadd.f32 %v222, %v691
    %v693 = vpop.f32.mrf.mxu0
    %v694 = vadd.f32 %v226, %v693
    %v695 = vpop.f32.mrf.mxu0
    %v696 = vadd.f32 %v222, %v695
    %v697 = vpop.f32.mrf.mxu0
    %v698 = vadd.f32 %v226, %v697
    %699 = vmatprep.mubr.bf16.mxu0 0
    %700 = vmatmul.mubr.bf16.gmra.mxu0 %v295
    %v701 = vpop.f32.mrf.mxu0
    %v702 = vadd.f32 %v222, %v701
    %v703 = vpop.f32.mrf.mxu0
    %v704 = vadd.f32 %v226, %v703
    %v705 = vpop.f32.mrf.mxu0
    %v706 = vadd.f32 %v222, %v705
    %v707 = vpop.f32.mrf.mxu0
    %v708 = vadd.f32 %v226, %v707
    %709 = vmatprep.mubr.bf16.mxu0 0
    %710 = vmatmul.mubr.bf16.gmra.mxu0 %v296
    %v711 = vpop.f32.mrf.mxu0
    %v712 = vadd.f32 %v222, %v711
    %v713 = vpop.f32.mrf.mxu0
    %v714 = vadd.f32 %v226, %v713
    %v715 = vpop.f32.mrf.mxu0
    %v716 = vadd.f32 %v222, %v715
    %v717 = vpop.f32.mrf.mxu0
    %v718 = vadd.f32 %v226, %v717
    %719 = vmatprep.mubr.bf16.mxu0 0
    %720 = vmatmul.mubr.bf16.gmra.mxu0 %v297
    %v721 = vpop.f32.mrf.mxu0
    %v722 = vadd.f32 %v222, %v721
    %v723 = vpop.f32.mrf.mxu0
    %v724 = vadd.f32 %v226, %v723
    %v725 = vpop.f32.mrf.mxu0
    %v726 = vadd.f32 %v222, %v725
    %v727 = vpop.f32.mrf.mxu0
    %v728 = vadd.f32 %v226, %v727
    %729 = vmatprep.mubr.bf16.mxu0 0
    %730 = vmatmul.mubr.bf16.gmra.mxu0 %v298
    %v731 = vpop.f32.mrf.mxu0
    %v732 = vadd.f32 %v222, %v731
    %v733 = vpop.f32.mrf.mxu0
    %v734 = vadd.f32 %v226, %v733
    %v735 = vpop.f32.mrf.mxu0
    %v736 = vadd.f32 %v222, %v735
    %v737 = vpop.f32.mrf.mxu0
    %v738 = vadd.f32 %v226, %v737
    %739 = vdwg.mxu0
    %740 = vmatprep.subr.bf16.mxu0 %v558
    %741 = vmatpush1.bf16.msra.mxu0 %v557
    %742 = vmatprep.subr.bf16.mxu0 %v550
    %743 = vmatpush1.bf16.msra.mxu0 %v549
    %744 = vmatprep.subr.bf16.mxu0 %v542
    %745 = vmatpush1.bf16.msra.mxu0 %v541
    %746 = vmatprep.subr.bf16.mxu0 %v534
    %747 = vmatpush1.bf16.msra.mxu0 %v533
    %748 = vmatprep.subr.bf16.mxu0 %v526
    %749 = vmatpush1.bf16.msra.mxu0 %v525
    %750 = vmatprep.subr.bf16.mxu0 %v518
    %751 = vmatpush1.bf16.msra.mxu0 %v517
    %752 = vmatprep.subr.bf16.mxu0 %v510
    %753 = vmatpush1.bf16.msra.mxu0 %v509
    %754 = vmatprep.subr.bf16.mxu0 %v502
    %755 = vmatpush1.bf16.msra.mxu0 %v501
    %756 = vmatprep.subr.bf16.mxu0 0
    %757 = vmatpush2.bf16.msra.mxu0 0
    %758 = vmatprep.subr.bf16.mxu0 0
    %759 = vmatpush2.bf16.msra.mxu0 0
    %760 = vmatprep.subr.bf16.mxu0 0
    %761 = vmatpush2.bf16.msra.mxu0 0
    %762 = vmatprep.subr.bf16.mxu0 0
    %763 = vmatpush2.bf16.msra.mxu0 0
    %764 = vmatprep.subr.bf16.mxu0 0
    %765 = vmatpush2.bf16.msra.mxu0 0
    %766 = vmatprep.subr.bf16.mxu0 0
    %767 = vmatpush2.bf16.msra.mxu0 0
    %768 = vmatprep.subr.bf16.mxu0 0
    %769 = vmatpush2.bf16.msra.mxu0 0
    %770 = vmatprep.subr.bf16.mxu0 0
    %771 = vmatpush2.bf16.msra.mxu0 0
    %772 = vmatprep.mubr.bf16.mxu0 0
    %773 = vmatmul.mubr.bf16.gmra.mxu0 %v291
    %v774 = vpop.f32.mrf.mxu0
    %v775 = vadd.f32 %v230, %v774
    %v776 = vpop.f32.mrf.mxu0
    %v777 = vadd.f32 %v234, %v776
    %v778 = vpop.f32.mrf.mxu0
    %v779 = vadd.f32 %v230, %v778
    %v780 = vpop.f32.mrf.mxu0
    %v781 = vadd.f32 %v234, %v780
    %782 = vmatprep.mubr.bf16.mxu0 0
    %783 = vmatmul.mubr.bf16.gmra.mxu0 %v292
    %v784 = vpop.f32.mrf.mxu0
    %v785 = vadd.f32 %v230, %v784
    %v786 = vpop.f32.mrf.mxu0
    %v787 = vadd.f32 %v234, %v786
    %v788 = vpop.f32.mrf.mxu0
    %v789 = vadd.f32 %v230, %v788
    %v790 = vpop.f32.mrf.mxu0
    %v791 = vadd.f32 %v234, %v790
    %792 = vmatprep.mubr.bf16.mxu0 0
    %793 = vmatmul.mubr.bf16.gmra.mxu0 %v293
    %v794 = vpop.f32.mrf.mxu0
    %v795 = vadd.f32 %v230, %v794
    %v796 = vpop.f32.mrf.mxu0
    %v797 = vadd.f32 %v234, %v796
    %v798 = vpop.f32.mrf.mxu0
    %v799 = vadd.f32 %v230, %v798
    %v800 = vpop.f32.mrf.mxu0
    %v801 = vadd.f32 %v234, %v800
    %802 = vmatprep.mubr.bf16.mxu0 0
    %803 = vmatmul.mubr.bf16.gmra.mxu0 %v294
    %v804 = vpop.f32.mrf.mxu0
    %v805 = vadd.f32 %v230, %v804
    %v806 = vpop.f32.mrf.mxu0
    %v807 = vadd.f32 %v234, %v806
    %v808 = vpop.f32.mrf.mxu0
    %v809 = vadd.f32 %v230, %v808
    %v810 = vpop.f32.mrf.mxu0
    %v811 = vadd.f32 %v234, %v810
    %812 = vmatprep.mubr.bf16.mxu0 0
    %813 = vmatmul.mubr.bf16.gmra.mxu0 %v295
    %v814 = vpop.f32.mrf.mxu0
    %v815 = vadd.f32 %v230, %v814
    %v816 = vpop.f32.mrf.mxu0
    %v817 = vadd.f32 %v234, %v816
    %v818 = vpop.f32.mrf.mxu0
    %v819 = vadd.f32 %v230, %v818
    %v820 = vpop.f32.mrf.mxu0
    %v821 = vadd.f32 %v234, %v820
    %822 = vmatprep.mubr.bf16.mxu0 0
    %823 = vmatmul.mubr.bf16.gmra.mxu0 %v296
    %v824 = vpop.f32.mrf.mxu0
    %v825 = vadd.f32 %v230, %v824
    %v826 = vpop.f32.mrf.mxu0
    %v827 = vadd.f32 %v234, %v826
    %v828 = vpop.f32.mrf.mxu0
    %v829 = vadd.f32 %v230, %v828
    %v830 = vpop.f32.mrf.mxu0
    %v831 = vadd.f32 %v234, %v830
    %832 = vmatprep.mubr.bf16.mxu0 0
    %833 = vmatmul.mubr.bf16.gmra.mxu0 %v297
    %v834 = vpop.f32.mrf.mxu0
    %v835 = vadd.f32 %v230, %v834
    %v836 = vpop.f32.mrf.mxu0
    %v837 = vadd.f32 %v234, %v836
    %v838 = vpop.f32.mrf.mxu0
    %v839 = vadd.f32 %v230, %v838
    %v840 = vpop.f32.mrf.mxu0
    %v841 = vadd.f32 %v234, %v840
    %842 = vmatprep.mubr.bf16.mxu0 0
    %843 = vmatmul.mubr.bf16.gmra.mxu0 %v298
    %v844 = vpop.f32.mrf.mxu0
    %v845 = vadd.f32 %v230, %v844
    %v846 = vpop.f32.mrf.mxu0
    %v847 = vadd.f32 %v234, %v846
    %v848 = vpop.f32.mrf.mxu0
    %v849 = vadd.f32 %v230, %v848
    %v850 = vpop.f32.mrf.mxu0
    %v851 = vadd.f32 %v234, %v850
    %852 = vdwg.mxu0
    %853 = vmatprep.subr.bf16.mxu0 %v560
    %854 = vmatpush1.bf16.msra.mxu0 %v559
    %855 = vmatprep.subr.bf16.mxu0 %v552
    %856 = vmatpush1.bf16.msra.mxu0 %v551
    %857 = vmatprep.subr.bf16.mxu0 %v544
    %858 = vmatpush1.bf16.msra.mxu0 %v543
    %859 = vmatprep.subr.bf16.mxu0 %v536
    %860 = vmatpush1.bf16.msra.mxu0 %v535
    %861 = vmatprep.subr.bf16.mxu0 %v528
    %862 = vmatpush1.bf16.msra.mxu0 %v527
    %863 = vmatprep.subr.bf16.mxu0 %v520
    %864 = vmatpush1.bf16.msra.mxu0 %v519
    %865 = vmatprep.subr.bf16.mxu0 %v512
    %866 = vmatpush1.bf16.msra.mxu0 %v511
    %867 = vmatprep.subr.bf16.mxu0 %v504
    %868 = vmatpush1.bf16.msra.mxu0 %v503
    %869 = vmatprep.subr.bf16.mxu0 0
    %870 = vmatpush2.bf16.msra.mxu0 0
    %871 = vmatprep.subr.bf16.mxu0 0
    %872 = vmatpush2.bf16.msra.mxu0 0
    %873 = vmatprep.subr.bf16.mxu0 0
    %874 = vmatpush2.bf16.msra.mxu0 0
    %875 = vmatprep.subr.bf16.mxu0 0
    %876 = vmatpush2.bf16.msra.mxu0 0
    %877 = vmatprep.subr.bf16.mxu0 0
    %878 = vmatpush2.bf16.msra.mxu0 0
    %879 = vmatprep.subr.bf16.mxu0 0
    %880 = vmatpush2.bf16.msra.mxu0 0
    %881 = vmatprep.subr.bf16.mxu0 0
    %882 = vmatpush2.bf16.msra.mxu0 0
    %883 = vmatprep.subr.bf16.mxu0 0
    %884 = vmatpush2.bf16.msra.mxu0 0
    %885 = vmatprep.mubr.bf16.mxu0 0
    %886 = vmatmul.mubr.bf16.gmra.mxu0 %v291
    %v887 = vpop.f32.mrf.mxu0
    %v888 = vadd.f32 %v238, %v887
    %v889 = vpop.f32.mrf.mxu0
    %v890 = vadd.f32 %v242, %v889
    %v891 = vpop.f32.mrf.mxu0
    %v892 = vadd.f32 %v238, %v891
    %v893 = vpop.f32.mrf.mxu0
    %v894 = vadd.f32 %v242, %v893
    %895 = vmatprep.mubr.bf16.mxu0 0
    %896 = vmatmul.mubr.bf16.gmra.mxu0 %v292
    %v897 = vpop.f32.mrf.mxu0
    %v898 = vadd.f32 %v238, %v897
    %v899 = vpop.f32.mrf.mxu0
    %v900 = vadd.f32 %v242, %v899
    %v901 = vpop.f32.mrf.mxu0
    %v902 = vadd.f32 %v238, %v901
    %v903 = vpop.f32.mrf.mxu0
    %v904 = vadd.f32 %v242, %v903
    %905 = vmatprep.mubr.bf16.mxu0 0
    %906 = vmatmul.mubr.bf16.gmra.mxu0 %v293
    %v907 = vpop.f32.mrf.mxu0
    %v908 = vadd.f32 %v238, %v907
    %v909 = vpop.f32.mrf.mxu0
    %v910 = vadd.f32 %v242, %v909
    %v911 = vpop.f32.mrf.mxu0
    %v912 = vadd.f32 %v238, %v911
    %v913 = vpop.f32.mrf.mxu0
    %v914 = vadd.f32 %v242, %v913
    %915 = vmatprep.mubr.bf16.mxu0 0
    %916 = vmatmul.mubr.bf16.gmra.mxu0 %v294
    %v917 = vpop.f32.mrf.mxu0
    %v918 = vadd.f32 %v238, %v917
    %v919 = vpop.f32.mrf.mxu0
    %v920 = vadd.f32 %v242, %v919
    %v921 = vpop.f32.mrf.mxu0
    %v922 = vadd.f32 %v238, %v921
    %v923 = vpop.f32.mrf.mxu0
    %v924 = vadd.f32 %v242, %v923
    %925 = vmatprep.mubr.bf16.mxu0 0
    %926 = vmatmul.mubr.bf16.gmra.mxu0 %v295
    %v927 = vpop.f32.mrf.mxu0
    %v928 = vadd.f32 %v238, %v927
    %v929 = vpop.f32.mrf.mxu0
    %v930 = vadd.f32 %v242, %v929
    %v931 = vpop.f32.mrf.mxu0
    %v932 = vadd.f32 %v238, %v931
    %v933 = vpop.f32.mrf.mxu0
    %v934 = vadd.f32 %v242, %v933
    %935 = vmatprep.mubr.bf16.mxu0 0
    %936 = vmatmul.mubr.bf16.gmra.mxu0 %v296
    %v937 = vpop.f32.mrf.mxu0
    %v938 = vadd.f32 %v238, %v937
    %v939 = vpop.f32.mrf.mxu0
    %v940 = vadd.f32 %v242, %v939
    %v941 = vpop.f32.mrf.mxu0
    %v942 = vadd.f32 %v238, %v941
    %v943 = vpop.f32.mrf.mxu0
    %v944 = vadd.f32 %v242, %v943
    %945 = vmatprep.mubr.bf16.mxu0 0
    %946 = vmatmul.mubr.bf16.gmra.mxu0 %v297
    %v947 = vpop.f32.mrf.mxu0
    %v948 = vadd.f32 %v238, %v947
    %v949 = vpop.f32.mrf.mxu0
    %v950 = vadd.f32 %v242, %v949
    %v951 = vpop.f32.mrf.mxu0
    %v952 = vadd.f32 %v238, %v951
    %v953 = vpop.f32.mrf.mxu0
    %v954 = vadd.f32 %v242, %v953
    %955 = vmatprep.mubr.bf16.mxu0 0
    %956 = vmatmul.mubr.bf16.gmra.mxu0 %v298
    %v957 = vpop.f32.mrf.mxu0
    %v958 = vadd.f32 %v238, %v957
    %v959 = vpop.f32.mrf.mxu0
    %v960 = vadd.f32 %v242, %v959
    %v961 = vpop.f32.mrf.mxu0
    %v962 = vadd.f32 %v238, %v961
    %v963 = vpop.f32.mrf.mxu0
    %v964 = vadd.f32 %v242, %v963
    %965 = vdwg.mxu0
    %966 = vmatprep.subr.bf16.mxu0 %v562
    %967 = vmatpush1.bf16.msra.mxu0 %v561
    %968 = vmatprep.subr.bf16.mxu0 %v554
    %969 = vmatpush1.bf16.msra.mxu0 %v553
    %970 = vmatprep.subr.bf16.mxu0 %v546
    %971 = vmatpush1.bf16.msra.mxu0 %v545
    %972 = vmatprep.subr.bf16.mxu0 %v538
    %973 = vmatpush1.bf16.msra.mxu0 %v537
    %974 = vmatprep.subr.bf16.mxu0 %v530
    %975 = vmatpush1.bf16.msra.mxu0 %v529
    %976 = vmatprep.subr.bf16.mxu0 %v522
    %977 = vmatpush1.bf16.msra.mxu0 %v521
    %978 = vmatprep.subr.bf16.mxu0 %v514
    %979 = vmatpush1.bf16.msra.mxu0 %v513
    %980 = vmatprep.subr.bf16.mxu0 %v506
    %981 = vmatpush1.bf16.msra.mxu0 %v505
    %982 = vmatprep.subr.bf16.mxu0 0
    %983 = vmatpush2.bf16.msra.mxu0 0
    %984 = vmatprep.subr.bf16.mxu0 0
    %985 = vmatpush2.bf16.msra.mxu0 0
    %986 = vmatprep.subr.bf16.mxu0 0
    %987 = vmatpush2.bf16.msra.mxu0 0
    %988 = vmatprep.subr.bf16.mxu0 0
    %989 = vmatpush2.bf16.msra.mxu0 0
    %990 = vmatprep.subr.bf16.mxu0 0
    %991 = vmatpush2.bf16.msra.mxu0 0
    %992 = vmatprep.subr.bf16.mxu0 0
    %993 = vmatpush2.bf16.msra.mxu0 0
    %994 = vmatprep.subr.bf16.mxu0 0
    %995 = vmatpush2.bf16.msra.mxu0 0
    %996 = vmatprep.subr.bf16.mxu0 0
    %997 = vmatpush2.bf16.msra.mxu0 0
    %998 = vmatprep.mubr.bf16.mxu0 0
    %999 = vmatmul.mubr.bf16.gmra.mxu0 %v291
    %v1000 = vpop.f32.mrf.mxu0
    %v1001 = vadd.f32 %v246, %v1000
    %v1002 = vpop.f32.mrf.mxu0
    %v1003 = vadd.f32 %v250, %v1002
    %v1004 = vpop.f32.mrf.mxu0
    %v1005 = vadd.f32 %v246, %v1004
    %v1006 = vpop.f32.mrf.mxu0
    %v1007 = vadd.f32 %v250, %v1006
    %1008 = vmatprep.mubr.bf16.mxu0 0
    %1009 = vmatmul.mubr.bf16.gmra.mxu0 %v292
    %v1010 = vpop.f32.mrf.mxu0
    %v1011 = vadd.f32 %v246, %v1010
    %v1012 = vpop.f32.mrf.mxu0
    %v1013 = vadd.f32 %v250, %v1012
    %v1014 = vpop.f32.mrf.mxu0
    %v1015 = vadd.f32 %v246, %v1014
    %v1016 = vpop.f32.mrf.mxu0
    %v1017 = vadd.f32 %v250, %v1016
    %1018 = vmatprep.mubr.bf16.mxu0 0
    %1019 = vmatmul.mubr.bf16.gmra.mxu0 %v293
    %v1020 = vpop.f32.mrf.mxu0
    %v1021 = vadd.f32 %v246, %v1020
    %v1022 = vpop.f32.mrf.mxu0
    %v1023 = vadd.f32 %v250, %v1022
    %v1024 = vpop.f32.mrf.mxu0
    %v1025 = vadd.f32 %v246, %v1024
    %v1026 = vpop.f32.mrf.mxu0
    %v1027 = vadd.f32 %v250, %v1026
    %1028 = vmatprep.mubr.bf16.mxu0 0
    %1029 = vmatmul.mubr.bf16.gmra.mxu0 %v294
    %v1030 = vpop.f32.mrf.mxu0
    %v1031 = vadd.f32 %v246, %v1030
    %v1032 = vpop.f32.mrf.mxu0
    %v1033 = vadd.f32 %v250, %v1032
    %v1034 = vpop.f32.mrf.mxu0
    %v1035 = vadd.f32 %v246, %v1034
    %v1036 = vpop.f32.mrf.mxu0
    %v1037 = vadd.f32 %v250, %v1036
    %1038 = vmatprep.mubr.bf16.mxu0 0
    %1039 = vmatmul.mubr.bf16.gmra.mxu0 %v295
    %v1040 = vpop.f32.mrf.mxu0
    %v1041 = vadd.f32 %v246, %v1040
    %v1042 = vpop.f32.mrf.mxu0
    %v1043 = vadd.f32 %v250, %v1042
    %v1044 = vpop.f32.mrf.mxu0
    %v1045 = vadd.f32 %v246, %v1044
    %v1046 = vpop.f32.mrf.mxu0
    %v1047 = vadd.f32 %v250, %v1046
    %1048 = vmatprep.mubr.bf16.mxu0 0
    %1049 = vmatmul.mubr.bf16.gmra.mxu0 %v296
    %v1050 = vpop.f32.mrf.mxu0
    %v1051 = vadd.f32 %v246, %v1050
    %v1052 = vpop.f32.mrf.mxu0
    %v1053 = vadd.f32 %v250, %v1052
    %v1054 = vpop.f32.mrf.mxu0
    %v1055 = vadd.f32 %v246, %v1054
    %v1056 = vpop.f32.mrf.mxu0
    %v1057 = vadd.f32 %v250, %v1056
    %1058 = vmatprep.mubr.bf16.mxu0 0
    %1059 = vmatmul.mubr.bf16.gmra.mxu0 %v297
    %v1060 = vpop.f32.mrf.mxu0
    %v1061 = vadd.f32 %v246, %v1060
    %v1062 = vpop.f32.mrf.mxu0
    %v1063 = vadd.f32 %v250, %v1062
    %v1064 = vpop.f32.mrf.mxu0
    %v1065 = vadd.f32 %v246, %v1064
    %v1066 = vpop.f32.mrf.mxu0
    %v1067 = vadd.f32 %v250, %v1066
    %1068 = vmatprep.mubr.bf16.mxu0 0
    %1069 = vmatmul.mubr.bf16.gmra.mxu0 %v298
    %v1070 = vpop.f32.mrf.mxu0
    %v1071 = vadd.f32 %v246, %v1070
    %v1072 = vpop.f32.mrf.mxu0
    %v1073 = vadd.f32 %v250, %v1072
    %v1074 = vpop.f32.mrf.mxu0
    %v1075 = vadd.f32 %v246, %v1074
    %v1076 = vpop.f32.mrf.mxu0
    %v1077 = vadd.f32 %v250, %v1076
    %1078 = vdwg.mxu0
    %vm1079 = vcmp.gt.f32.partialorder %v662, 0.0
    %vm1080 = vcmp.gt.f32.partialorder %v664, 0.0
    %vm1081 = vcmp.gt.f32.partialorder %v775, 0.0
    %vm1082 = vcmp.gt.f32.partialorder %v777, 0.0
    %vm1083 = vcmp.gt.f32.partialorder %v888, 0.0
    %vm1084 = vcmp.gt.f32.partialorder %v890, 0.0
    %vm1085 = vcmp.gt.f32.partialorder %v1001, 0.0
    %vm1086 = vcmp.gt.f32.partialorder %v1003, 0.0
    %vm1087 = vcmp.gt.f32.partialorder %v666, 0.0
    %vm1088 = vcmp.gt.f32.partialorder %v668, 0.0
    %vm1089 = vcmp.gt.f32.partialorder %v779, 0.0
    %vm1090 = vcmp.gt.f32.partialorder %v781, 0.0
    %vm1091 = vcmp.gt.f32.partialorder %v892, 0.0
    %vm1092 = vcmp.gt.f32.partialorder %v894, 0.0
    %vm1093 = vcmp.gt.f32.partialorder %v1005, 0.0
    %vm1094 = vcmp.gt.f32.partialorder %v1007, 0.0
    %vm1095 = vcmp.gt.f32.partialorder %v672, 0.0
    %vm1096 = vcmp.gt.f32.partialorder %v674, 0.0
    %vm1097 = vcmp.gt.f32.partialorder %v785, 0.0
    %vm1098 = vcmp.gt.f32.partialorder %v787, 0.0
    %vm1099 = vcmp.gt.f32.partialorder %v898, 0.0
    %vm1100 = vcmp.gt.f32.partialorder %v900, 0.0
    %vm1101 = vcmp.gt.f32.partialorder %v1011, 0.0
    %vm1102 = vcmp.gt.f32.partialorder %v1013, 0.0
    %vm1103 = vcmp.gt.f32.partialorder %v676, 0.0
    %vm1104 = vcmp.gt.f32.partialorder %v678, 0.0
    %vm1105 = vcmp.gt.f32.partialorder %v789, 0.0
    %vm1106 = vcmp.gt.f32.partialorder %v791, 0.0
    %vm1107 = vcmp.gt.f32.partialorder %v902, 0.0
    %vm1108 = vcmp.gt.f32.partialorder %v904, 0.0
    %vm1109 = vcmp.gt.f32.partialorder %v1015, 0.0
    %vm1110 = vcmp.gt.f32.partialorder %v1017, 0.0
    %vm1111 = vcmp.gt.f32.partialorder %v682, 0.0
    %vm1112 = vcmp.gt.f32.partialorder %v684, 0.0
    %vm1113 = vcmp.gt.f32.partialorder %v795, 0.0
    %vm1114 = vcmp.gt.f32.partialorder %v797, 0.0
    %vm1115 = vcmp.gt.f32.partialorder %v908, 0.0
    %vm1116 = vcmp.gt.f32.partialorder %v910, 0.0
    %vm1117 = vcmp.gt.f32.partialorder %v1021, 0.0
    %vm1118 = vcmp.gt.f32.partialorder %v1023, 0.0
    %vm1119 = vcmp.gt.f32.partialorder %v686, 0.0
    %vm1120 = vcmp.gt.f32.partialorder %v688, 0.0
    %vm1121 = vcmp.gt.f32.partialorder %v799, 0.0
    %vm1122 = vcmp.gt.f32.partialorder %v801, 0.0
    %vm1123 = vcmp.gt.f32.partialorder %v912, 0.0
    %vm1124 = vcmp.gt.f32.partialorder %v914, 0.0
    %vm1125 = vcmp.gt.f32.partialorder %v1025, 0.0
    %vm1126 = vcmp.gt.f32.partialorder %v1027, 0.0
    %vm1127 = vcmp.gt.f32.partialorder %v692, 0.0
    %vm1128 = vcmp.gt.f32.partialorder %v694, 0.0
    %vm1129 = vcmp.gt.f32.partialorder %v805, 0.0
    %vm1130 = vcmp.gt.f32.partialorder %v807, 0.0
    %vm1131 = vcmp.gt.f32.partialorder %v918, 0.0
    %vm1132 = vcmp.gt.f32.partialorder %v920, 0.0
    %vm1133 = vcmp.gt.f32.partialorder %v1031, 0.0
    %vm1134 = vcmp.gt.f32.partialorder %v1033, 0.0
    %vm1135 = vcmp.gt.f32.partialorder %v696, 0.0
    %vm1136 = vcmp.gt.f32.partialorder %v698, 0.0
    %vm1137 = vcmp.gt.f32.partialorder %v809, 0.0
    %vm1138 = vcmp.gt.f32.partialorder %v811, 0.0
    %vm1139 = vcmp.gt.f32.partialorder %v922, 0.0
    %vm1140 = vcmp.gt.f32.partialorder %v924, 0.0
    %vm1141 = vcmp.gt.f32.partialorder %v1035, 0.0
    %vm1142 = vcmp.gt.f32.partialorder %v1037, 0.0
    %vm1143 = vcmp.gt.f32.partialorder %v702, 0.0
    %vm1144 = vcmp.gt.f32.partialorder %v704, 0.0
    %vm1145 = vcmp.gt.f32.partialorder %v815, 0.0
    %vm1146 = vcmp.gt.f32.partialorder %v817, 0.0
    %vm1147 = vcmp.gt.f32.partialorder %v928, 0.0
    %vm1148 = vcmp.gt.f32.partialorder %v930, 0.0
    %vm1149 = vcmp.gt.f32.partialorder %v1041, 0.0
    %vm1150 = vcmp.gt.f32.partialorder %v1043, 0.0
    %vm1151 = vcmp.gt.f32.partialorder %v706, 0.0
    %vm1152 = vcmp.gt.f32.partialorder %v708, 0.0
    %vm1153 = vcmp.gt.f32.partialorder %v819, 0.0
    %vm1154 = vcmp.gt.f32.partialorder %v821, 0.0
    %vm1155 = vcmp.gt.f32.partialorder %v932, 0.0
    %vm1156 = vcmp.gt.f32.partialorder %v934, 0.0
    %vm1157 = vcmp.gt.f32.partialorder %v1045, 0.0
    %vm1158 = vcmp.gt.f32.partialorder %v1047, 0.0
    %vm1159 = vcmp.gt.f32.partialorder %v712, 0.0
    %vm1160 = vcmp.gt.f32.partialorder %v714, 0.0
    %vm1161 = vcmp.gt.f32.partialorder %v825, 0.0
    %vm1162 = vcmp.gt.f32.partialorder %v827, 0.0
    %vm1163 = vcmp.gt.f32.partialorder %v938, 0.0
    %vm1164 = vcmp.gt.f32.partialorder %v940, 0.0
    %vm1165 = vcmp.gt.f32.partialorder %v1051, 0.0
    %vm1166 = vcmp.gt.f32.partialorder %v1053, 0.0
    %vm1167 = vcmp.gt.f32.partialorder %v716, 0.0
    %vm1168 = vcmp.gt.f32.partialorder %v718, 0.0
    %vm1169 = vcmp.gt.f32.partialorder %v829, 0.0
    %vm1170 = vcmp.gt.f32.partialorder %v831, 0.0
    %vm1171 = vcmp.gt.f32.partialorder %v942, 0.0
    %vm1172 = vcmp.gt.f32.partialorder %v944, 0.0
    %vm1173 = vcmp.gt.f32.partialorder %v1055, 0.0
    %vm1174 = vcmp.gt.f32.partialorder %v1057, 0.0
    %vm1175 = vcmp.gt.f32.partialorder %v722, 0.0
    %vm1176 = vcmp.gt.f32.partialorder %v724, 0.0
    %vm1177 = vcmp.gt.f32.partialorder %v835, 0.0
    %vm1178 = vcmp.gt.f32.partialorder %v837, 0.0
    %vm1179 = vcmp.gt.f32.partialorder %v948, 0.0
    %vm1180 = vcmp.gt.f32.partialorder %v950, 0.0
    %vm1181 = vcmp.gt.f32.partialorder %v1061, 0.0
    %vm1182 = vcmp.gt.f32.partialorder %v1063, 0.0
    %vm1183 = vcmp.gt.f32.partialorder %v726, 0.0
    %vm1184 = vcmp.gt.f32.partialorder %v728, 0.0
    %vm1185 = vcmp.gt.f32.partialorder %v839, 0.0
    %vm1186 = vcmp.gt.f32.partialorder %v841, 0.0
    %vm1187 = vcmp.gt.f32.partialorder %v952, 0.0
    %vm1188 = vcmp.gt.f32.partialorder %v954, 0.0
    %vm1189 = vcmp.gt.f32.partialorder %v1065, 0.0
    %vm1190 = vcmp.gt.f32.partialorder %v1067, 0.0
    %vm1191 = vcmp.gt.f32.partialorder %v732, 0.0
    %vm1192 = vcmp.gt.f32.partialorder %v734, 0.0
    %vm1193 = vcmp.gt.f32.partialorder %v845, 0.0
    %vm1194 = vcmp.gt.f32.partialorder %v847, 0.0
    %vm1195 = vcmp.gt.f32.partialorder %v958, 0.0
    %vm1196 = vcmp.gt.f32.partialorder %v960, 0.0
    %vm1197 = vcmp.gt.f32.partialorder %v1071, 0.0
    %vm1198 = vcmp.gt.f32.partialorder %v1073, 0.0
    %vm1199 = vcmp.gt.f32.partialorder %v736, 0.0
    %vm1200 = vcmp.gt.f32.partialorder %v738, 0.0
    %vm1201 = vcmp.gt.f32.partialorder %v849, 0.0
    %vm1202 = vcmp.gt.f32.partialorder %v851, 0.0
    %vm1203 = vcmp.gt.f32.partialorder %v962, 0.0
    %vm1204 = vcmp.gt.f32.partialorder %v964, 0.0
    %vm1205 = vcmp.gt.f32.partialorder %v1075, 0.0
    %vm1206 = vcmp.gt.f32.partialorder %v1077, 0.0
    %v1207 = vmul.f32 %v662, 0.01
    %v1208 = vmul.f32 %v664, 0.01
    %v1209 = vmul.f32 %v775, 0.01
    %v1210 = vmul.f32 %v777, 0.01
    %v1211 = vmul.f32 %v888, 0.01
    %v1212 = vmul.f32 %v890, 0.01
    %v1213 = vmul.f32 %v1001, 0.01
    %v1214 = vmul.f32 %v1003, 0.01
    %v1215 = vmul.f32 %v666, 0.01
    %v1216 = vmul.f32 %v668, 0.01
    %v1217 = vmul.f32 %v779, 0.01
    %v1218 = vmul.f32 %v781, 0.01
    %v1219 = vmul.f32 %v892, 0.01
    %v1220 = vmul.f32 %v894, 0.01
    %v1221 = vmul.f32 %v1005, 0.01
    %v1222 = vmul.f32 %v1007, 0.01
    %v1223 = vmul.f32 %v672, 0.01
    %v1224 = vmul.f32 %v674, 0.01
    %v1225 = vmul.f32 %v785, 0.01
    %v1226 = vmul.f32 %v787, 0.01
    %v1227 = vmul.f32 %v898, 0.01
    %v1228 = vmul.f32 %v900, 0.01
    %v1229 = vmul.f32 %v1011, 0.01
    %v1230 = vmul.f32 %v1013, 0.01
    %v1231 = vmul.f32 %v676, 0.01
    %v1232 = vmul.f32 %v678, 0.01
    %v1233 = vmul.f32 %v789, 0.01
    %v1234 = vmul.f32 %v791, 0.01
    %v1235 = vmul.f32 %v902, 0.01
    %v1236 = vmul.f32 %v904, 0.01
    %v1237 = vmul.f32 %v1015, 0.01
    %v1238 = vmul.f32 %v1017, 0.01
    %v1239 = vmul.f32 %v682, 0.01
    %v1240 = vmul.f32 %v684, 0.01
    %v1241 = vmul.f32 %v795, 0.01
    %v1242 = vmul.f32 %v797, 0.01
    %v1243 = vmul.f32 %v908, 0.01
    %v1244 = vmul.f32 %v910, 0.01
    %v1245 = vmul.f32 %v1021, 0.01
    %v1246 = vmul.f32 %v1023, 0.01
    %v1247 = vmul.f32 %v686, 0.01
    %v1248 = vmul.f32 %v688, 0.01
    %v1249 = vmul.f32 %v799, 0.01
    %v1250 = vmul.f32 %v801, 0.01
    %v1251 = vmul.f32 %v912, 0.01
    %v1252 = vmul.f32 %v914, 0.01
    %v1253 = vmul.f32 %v1025, 0.01
    %v1254 = vmul.f32 %v1027, 0.01
    %v1255 = vmul.f32 %v692, 0.01
    %v1256 = vmul.f32 %v694, 0.01
    %v1257 = vmul.f32 %v805, 0.01
    %v1258 = vmul.f32 %v807, 0.01
    %v1259 = vmul.f32 %v918, 0.01
    %v1260 = vmul.f32 %v920, 0.01
    %v1261 = vmul.f32 %v1031, 0.01
    %v1262 = vmul.f32 %v1033, 0.01
    %v1263 = vmul.f32 %v696, 0.01
    %v1264 = vmul.f32 %v698, 0.01
    %v1265 = vmul.f32 %v809, 0.01
    %v1266 = vmul.f32 %v811, 0.01
    %v1267 = vmul.f32 %v922, 0.01
    %v1268 = vmul.f32 %v924, 0.01
    %v1269 = vmul.f32 %v1035, 0.01
    %v1270 = vmul.f32 %v1037, 0.01
    %v1271 = vmul.f32 %v702, 0.01
    %v1272 = vmul.f32 %v704, 0.01
    %v1273 = vmul.f32 %v815, 0.01
    %v1274 = vmul.f32 %v817, 0.01
    %v1275 = vmul.f32 %v928, 0.01
    %v1276 = vmul.f32 %v930, 0.01
    %v1277 = vmul.f32 %v1041, 0.01
    %v1278 = vmul.f32 %v1043, 0.01
    %v1279 = vmul.f32 %v706, 0.01
    %v1280 = vmul.f32 %v708, 0.01
    %v1281 = vmul.f32 %v819, 0.01
    %v1282 = vmul.f32 %v821, 0.01
    %v1283 = vmul.f32 %v932, 0.01
    %v1284 = vmul.f32 %v934, 0.01
    %v1285 = vmul.f32 %v1045, 0.01
    %v1286 = vmul.f32 %v1047, 0.01
    %v1287 = vmul.f32 %v712, 0.01
    %v1288 = vmul.f32 %v714, 0.01
    %v1289 = vmul.f32 %v825, 0.01
    %v1290 = vmul.f32 %v827, 0.01
    %v1291 = vmul.f32 %v938, 0.01
    %v1292 = vmul.f32 %v940, 0.01
    %v1293 = vmul.f32 %v1051, 0.01
    %v1294 = vmul.f32 %v1053, 0.01
    %v1295 = vmul.f32 %v716, 0.01
    %v1296 = vmul.f32 %v718, 0.01
    %v1297 = vmul.f32 %v829, 0.01
    %v1298 = vmul.f32 %v831, 0.01
    %v1299 = vmul.f32 %v942, 0.01
    %v1300 = vmul.f32 %v944, 0.01
    %v1301 = vmul.f32 %v1055, 0.01
    %v1302 = vmul.f32 %v1057, 0.01
    %v1303 = vmul.f32 %v722, 0.01
    %v1304 = vmul.f32 %v724, 0.01
    %v1305 = vmul.f32 %v835, 0.01
    %v1306 = vmul.f32 %v837, 0.01
    %v1307 = vmul.f32 %v948, 0.01
    %v1308 = vmul.f32 %v950, 0.01
    %v1309 = vmul.f32 %v1061, 0.01
    %v1310 = vmul.f32 %v1063, 0.01
    %v1311 = vmul.f32 %v726, 0.01
    %v1312 = vmul.f32 %v728, 0.01
    %v1313 = vmul.f32 %v839, 0.01
    %v1314 = vmul.f32 %v841, 0.01
    %v1315 = vmul.f32 %v952, 0.01
    %v1316 = vmul.f32 %v954, 0.01
    %v1317 = vmul.f32 %v1065, 0.01
    %v1318 = vmul.f32 %v1067, 0.01
    %v1319 = vmul.f32 %v732, 0.01
    %v1320 = vmul.f32 %v734, 0.01
    %v1321 = vmul.f32 %v845, 0.01
    %v1322 = vmul.f32 %v847, 0.01
    %v1323 = vmul.f32 %v958, 0.01
    %v1324 = vmul.f32 %v960, 0.01
    %v1325 = vmul.f32 %v1071, 0.01
    %v1326 = vmul.f32 %v1073, 0.01
    %v1327 = vmul.f32 %v736, 0.01
    %v1328 = vmul.f32 %v738, 0.01
    %v1329 = vmul.f32 %v849, 0.01
    %v1330 = vmul.f32 %v851, 0.01
    %v1331 = vmul.f32 %v962, 0.01
    %v1332 = vmul.f32 %v964, 0.01
    %v1333 = vmul.f32 %v1075, 0.01
    %v1334 = vmul.f32 %v1077, 0.01
    %v1335 = vsel %vm1079, %v662, %v1207
    %v1336 = vsel %vm1080, %v664, %v1208
    %v1337 = vsel %vm1081, %v775, %v1209
    %v1338 = vsel %vm1082, %v777, %v1210
    %v1339 = vsel %vm1083, %v888, %v1211
    %v1340 = vsel %vm1084, %v890, %v1212
    %v1341 = vsel %vm1085, %v1001, %v1213
    %v1342 = vsel %vm1086, %v1003, %v1214
    %v1343 = vsel %vm1087, %v666, %v1215
    %v1344 = vsel %vm1088, %v668, %v1216
    %v1345 = vsel %vm1089, %v779, %v1217
    %v1346 = vsel %vm1090, %v781, %v1218
    %v1347 = vsel %vm1091, %v892, %v1219
    %v1348 = vsel %vm1092, %v894, %v1220
    %v1349 = vsel %vm1093, %v1005, %v1221
    %v1350 = vsel %vm1094, %v1007, %v1222
    %v1351 = vsel %vm1095, %v672, %v1223
    %v1352 = vsel %vm1096, %v674, %v1224
    %v1353 = vsel %vm1097, %v785, %v1225
    %v1354 = vsel %vm1098, %v787, %v1226
    %v1355 = vsel %vm1099, %v898, %v1227
    %v1356 = vsel %vm1100, %v900, %v1228
    %v1357 = vsel %vm1101, %v1011, %v1229
    %v1358 = vsel %vm1102, %v1013, %v1230
    %v1359 = vsel %vm1103, %v676, %v1231
    %v1360 = vsel %vm1104, %v678, %v1232
    %v1361 = vsel %vm1105, %v789, %v1233
    %v1362 = vsel %vm1106, %v791, %v1234
    %v1363 = vsel %vm1107, %v902, %v1235
    %v1364 = vsel %vm1108, %v904, %v1236
    %v1365 = vsel %vm1109, %v1015, %v1237
    %v1366 = vsel %vm1110, %v1017, %v1238
    %v1367 = vsel %vm1111, %v682, %v1239
    %v1368 = vsel %vm1112, %v684, %v1240
    %v1369 = vsel %vm1113, %v795, %v1241
    %v1370 = vsel %vm1114, %v797, %v1242
    %v1371 = vsel %vm1115, %v908, %v1243
    %v1372 = vsel %vm1116, %v910, %v1244
    %v1373 = vsel %vm1117, %v1021, %v1245
    %v1374 = vsel %vm1118, %v1023, %v1246
    %v1375 = vsel %vm1119, %v686, %v1247
    %v1376 = vsel %vm1120, %v688, %v1248
    %v1377 = vsel %vm1121, %v799, %v1249
    %v1378 = vsel %vm1122, %v801, %v1250
    %v1379 = vsel %vm1123, %v912, %v1251
    %v1380 = vsel %vm1124, %v914, %v1252
    %v1381 = vsel %vm1125, %v1025, %v1253
    %v1382 = vsel %vm1126, %v1027, %v1254
    %v1383 = vsel %vm1127, %v692, %v1255
    %v1384 = vsel %vm1128, %v694, %v1256
    %v1385 = vsel %vm1129, %v805, %v1257
    %v1386 = vsel %vm1130, %v807, %v1258
    %v1387 = vsel %vm1131, %v918, %v1259
    %v1388 = vsel %vm1132, %v920, %v1260
    %v1389 = vsel %vm1133, %v1031, %v1261
    %v1390 = vsel %vm1134, %v1033, %v1262
    %v1391 = vsel %vm1135, %v696, %v1263
    %v1392 = vsel %vm1136, %v698, %v1264
    %v1393 = vsel %vm1137, %v809, %v1265
    %v1394 = vsel %vm1138, %v811, %v1266
    %v1395 = vsel %vm1139, %v922, %v1267
    %v1396 = vsel %vm1140, %v924, %v1268
    %v1397 = vsel %vm1141, %v1035, %v1269
    %v1398 = vsel %vm1142, %v1037, %v1270
    %v1399 = vsel %vm1143, %v702, %v1271
    %v1400 = vsel %vm1144, %v704, %v1272
    %v1401 = vsel %vm1145, %v815, %v1273
    %v1402 = vsel %vm1146, %v817, %v1274
    %v1403 = vsel %vm1147, %v928, %v1275
    %v1404 = vsel %vm1148, %v930, %v1276
    %v1405 = vsel %vm1149, %v1041, %v1277
    %v1406 = vsel %vm1150, %v1043, %v1278
    %v1407 = vsel %vm1151, %v706, %v1279
    %v1408 = vsel %vm1152, %v708, %v1280
    %v1409 = vsel %vm1153, %v819, %v1281
    %v1410 = vsel %vm1154, %v821, %v1282
    %v1411 = vsel %vm1155, %v932, %v1283
    %v1412 = vsel %vm1156, %v934, %v1284
    %v1413 = vsel %vm1157, %v1045, %v1285
    %v1414 = vsel %vm1158, %v1047, %v1286
    %v1415 = vsel %vm1159, %v712, %v1287
    %v1416 = vsel %vm1160, %v714, %v1288
    %v1417 = vsel %vm1161, %v825, %v1289
    %v1418 = vsel %vm1162, %v827, %v1290
    %v1419 = vsel %vm1163, %v938, %v1291
    %v1420 = vsel %vm1164, %v940, %v1292
    %v1421 = vsel %vm1165, %v1051, %v1293
    %v1422 = vsel %vm1166, %v1053, %v1294
    %v1423 = vsel %vm1167, %v716, %v1295
    %v1424 = vsel %vm1168, %v718, %v1296
    %v1425 = vsel %vm1169, %v829, %v1297
    %v1426 = vsel %vm1170, %v831, %v1298
    %v1427 = vsel %vm1171, %v942, %v1299
    %v1428 = vsel %vm1172, %v944, %v1300
    %v1429 = vsel %vm1173, %v1055, %v1301
    %v1430 = vsel %vm1174, %v1057, %v1302
    %v1431 = vsel %vm1175, %v722, %v1303
    %v1432 = vsel %vm1176, %v724, %v1304
    %v1433 = vsel %vm1177, %v835, %v1305
    %v1434 = vsel %vm1178, %v837, %v1306
    %v1435 = vsel %vm1179, %v948, %v1307
    %v1436 = vsel %vm1180, %v950, %v1308
    %v1437 = vsel %vm1181, %v1061, %v1309
    %v1438 = vsel %vm1182, %v1063, %v1310
    %v1439 = vsel %vm1183, %v726, %v1311
    %v1440 = vsel %vm1184, %v728, %v1312
    %v1441 = vsel %vm1185, %v839, %v1313
    %v1442 = vsel %vm1186, %v841, %v1314
    %v1443 = vsel %vm1187, %v952, %v1315
    %v1444 = vsel %vm1188, %v954, %v1316
    %v1445 = vsel %vm1189, %v1065, %v1317
    %v1446 = vsel %vm1190, %v1067, %v1318
    %v1447 = vsel %vm1191, %v732, %v1319
    %v1448 = vsel %vm1192, %v734, %v1320
    %v1449 = vsel %vm1193, %v845, %v1321
    %v1450 = vsel %vm1194, %v847, %v1322
    %v1451 = vsel %vm1195, %v958, %v1323
    %v1452 = vsel %vm1196, %v960, %v1324
    %v1453 = vsel %vm1197, %v1071, %v1325
    %v1454 = vsel %vm1198, %v1073, %v1326
    %v1455 = vsel %vm1199, %v736, %v1327
    %v1456 = vsel %vm1200, %v738, %v1328
    %v1457 = vsel %vm1201, %v849, %v1329
    %v1458 = vsel %vm1202, %v851, %v1330
    %v1459 = vsel %vm1203, %v962, %v1331
    %v1460 = vsel %vm1204, %v964, %v1332
    %v1461 = vsel %vm1205, %v1075, %v1333
    %v1462 = vsel %vm1206, %v1077, %v1334
    %v1463 = vpack.c.bf16 %v1343, %v1335
    %v1464 = vpack.c.bf16 %v1344, %v1336
    %v1465 = vpack.c.bf16 %v1345, %v1337
    %v1466 = vpack.c.bf16 %v1346, %v1338
    %v1467 = vpack.c.bf16 %v1347, %v1339
    %v1468 = vpack.c.bf16 %v1348, %v1340
    %v1469 = vpack.c.bf16 %v1349, %v1341
    %v1470 = vpack.c.bf16 %v1350, %v1342
    %v1471 = vpack.c.bf16 %v1359, %v1351
    %v1472 = vpack.c.bf16 %v1360, %v1352
    %v1473 = vpack.c.bf16 %v1361, %v1353
    %v1474 = vpack.c.bf16 %v1362, %v1354
    %v1475 = vpack.c.bf16 %v1363, %v1355
    %v1476 = vpack.c.bf16 %v1364, %v1356
    %v1477 = vpack.c.bf16 %v1365, %v1357
    %v1478 = vpack.c.bf16 %v1366, %v1358
    %v1479 = vpack.c.bf16 %v1375, %v1367
    %v1480 = vpack.c.bf16 %v1376, %v1368
    %v1481 = vpack.c.bf16 %v1377, %v1369
    %v1482 = vpack.c.bf16 %v1378, %v1370
    %v1483 = vpack.c.bf16 %v1379, %v1371
    %v1484 = vpack.c.bf16 %v1380, %v1372
    %v1485 = vpack.c.bf16 %v1381, %v1373
    %v1486 = vpack.c.bf16 %v1382, %v1374
    %v1487 = vpack.c.bf16 %v1391, %v1383
    %v1488 = vpack.c.bf16 %v1392, %v1384
    %v1489 = vpack.c.bf16 %v1393, %v1385
    %v1490 = vpack.c.bf16 %v1394, %v1386
    %v1491 = vpack.c.bf16 %v1395, %v1387
    %v1492 = vpack.c.bf16 %v1396, %v1388
    %v1493 = vpack.c.bf16 %v1397, %v1389
    %v1494 = vpack.c.bf16 %v1398, %v1390
    %v1495 = vpack.c.bf16 %v1407, %v1399
    %v1496 = vpack.c.bf16 %v1408, %v1400
    %v1497 = vpack.c.bf16 %v1409, %v1401
    %v1498 = vpack.c.bf16 %v1410, %v1402
    %v1499 = vpack.c.bf16 %v1411, %v1403
    %v1500 = vpack.c.bf16 %v1412, %v1404
    %v1501 = vpack.c.bf16 %v1413, %v1405
    %v1502 = vpack.c.bf16 %v1414, %v1406
    %v1503 = vpack.c.bf16 %v1423, %v1415
    %v1504 = vpack.c.bf16 %v1424, %v1416
    %v1505 = vpack.c.bf16 %v1425, %v1417
    %v1506 = vpack.c.bf16 %v1426, %v1418
    %v1507 = vpack.c.bf16 %v1427, %v1419
    %v1508 = vpack.c.bf16 %v1428, %v1420
    %v1509 = vpack.c.bf16 %v1429, %v1421
    %v1510 = vpack.c.bf16 %v1430, %v1422
    %v1511 = vpack.c.bf16 %v1439, %v1431
    %v1512 = vpack.c.bf16 %v1440, %v1432
    %v1513 = vpack.c.bf16 %v1441, %v1433
    %v1514 = vpack.c.bf16 %v1442, %v1434
    %v1515 = vpack.c.bf16 %v1443, %v1435
    %v1516 = vpack.c.bf16 %v1444, %v1436
    %v1517 = vpack.c.bf16 %v1445, %v1437
    %v1518 = vpack.c.bf16 %v1446, %v1438
    %v1519 = vpack.c.bf16 %v1455, %v1447
    %v1520 = vpack.c.bf16 %v1456, %v1448
    %v1521 = vpack.c.bf16 %v1457, %v1449
    %v1522 = vpack.c.bf16 %v1458, %v1450
    %v1523 = vpack.c.bf16 %v1459, %v1451
    %v1524 = vpack.c.bf16 %v1460, %v1452
    %v1525 = vpack.c.bf16 %v1461, %v1453
    %v1526 = vpack.c.bf16 %v1462, %v1454
    %v1527 = vld [vmem:[#allocation9] sm:$0xff]
    %v1528 = vld [vmem:[#allocation9 + $0x8] sm:$0xff]
    %v1529 = vld [vmem:[#allocation9 + $0x10] sm:$0xff]
    %v1530 = vld [vmem:[#allocation9 + $0x18] sm:$0xff]
    %v1531 = vld [vmem:[#allocation9 + $0x20] sm:$0xff]
    %v1532 = vld [vmem:[#allocation9 + $0x28] sm:$0xff]
    %v1533 = vld [vmem:[#allocation9 + $0x30] sm:$0xff]
    %v1534 = vld [vmem:[#allocation9 + $0x38] sm:$0xff]
    %v1535 = vld [vmem:[#allocation9 + $0x40] sm:$0xff]
    %v1536 = vld [vmem:[#allocation9 + $0x48] sm:$0xff]
    %v1537 = vld [vmem:[#allocation9 + $0x50] sm:$0xff]
    %v1538 = vld [vmem:[#allocation9 + $0x58] sm:$0xff]
    %v1539 = vld [vmem:[#allocation9 + $0x60] sm:$0xff]
    %v1540 = vld [vmem:[#allocation9 + $0x68] sm:$0xff]
    %v1541 = vld [vmem:[#allocation9 + $0x70] sm:$0xff]
    %v1542 = vld [vmem:[#allocation9 + $0x78] sm:$0xff]
    %v1543 = vld [vmem:[#allocation9 + $0x80] sm:$0xff]
    %v1544 = vld [vmem:[#allocation9 + $0x88] sm:$0xff]
    %v1545 = vld [vmem:[#allocation9 + $0x90] sm:$0xff]
    %v1546 = vld [vmem:[#allocation9 + $0x98] sm:$0xff]
    %v1547 = vld [vmem:[#allocation9 + $0xa0] sm:$0xff]
    %v1548 = vld [vmem:[#allocation9 + $0xa8] sm:$0xff]
    %v1549 = vld [vmem:[#allocation9 + $0xb0] sm:$0xff]
    %v1550 = vld [vmem:[#allocation9 + $0xb8] sm:$0xff]
    %v1551 = vld [vmem:[#allocation9 + $0xc0] sm:$0xff]
    %v1552 = vld [vmem:[#allocation9 + $0xc8] sm:$0xff]
    %v1553 = vld [vmem:[#allocation9 + $0xd0] sm:$0xff]
    %v1554 = vld [vmem:[#allocation9 + $0xd8] sm:$0xff]
    %v1555 = vld [vmem:[#allocation9 + $0xe0] sm:$0xff]
    %v1556 = vld [vmem:[#allocation9 + $0xe8] sm:$0xff]
    %v1557 = vld [vmem:[#allocation9 + $0xf0] sm:$0xff]
    %v1558 = vld [vmem:[#allocation9 + $0xf8] sm:$0xff]
    %v1559 = vld [vmem:[#allocation9 + $0x100] sm:$0xff]
    %v1560 = vld [vmem:[#allocation9 + $0x108] sm:$0xff]
    %v1561 = vld [vmem:[#allocation9 + $0x110] sm:$0xff]
    %v1562 = vld [vmem:[#allocation9 + $0x118] sm:$0xff]
    %v1563 = vld [vmem:[#allocation9 + $0x120] sm:$0xff]
    %v1564 = vld [vmem:[#allocation9 + $0x128] sm:$0xff]
    %v1565 = vld [vmem:[#allocation9 + $0x130] sm:$0xff]
    %v1566 = vld [vmem:[#allocation9 + $0x138] sm:$0xff]
    %v1567 = vld [vmem:[#allocation9 + $0x140] sm:$0xff]
    %v1568 = vld [vmem:[#allocation9 + $0x148] sm:$0xff]
    %v1569 = vld [vmem:[#allocation9 + $0x150] sm:$0xff]
    %v1570 = vld [vmem:[#allocation9 + $0x158] sm:$0xff]
    %v1571 = vld [vmem:[#allocation9 + $0x160] sm:$0xff]
    %v1572 = vld [vmem:[#allocation9 + $0x168] sm:$0xff]
    %v1573 = vld [vmem:[#allocation9 + $0x170] sm:$0xff]
    %v1574 = vld [vmem:[#allocation9 + $0x178] sm:$0xff]
    %v1575 = vld [vmem:[#allocation9 + $0x180] sm:$0xff]
    %v1576 = vld [vmem:[#allocation9 + $0x188] sm:$0xff]
    %v1577 = vld [vmem:[#allocation9 + $0x190] sm:$0xff]
    %v1578 = vld [vmem:[#allocation9 + $0x198] sm:$0xff]
    %v1579 = vld [vmem:[#allocation9 + $0x1a0] sm:$0xff]
    %v1580 = vld [vmem:[#allocation9 + $0x1a8] sm:$0xff]
    %v1581 = vld [vmem:[#allocation9 + $0x1b0] sm:$0xff]
    %v1582 = vld [vmem:[#allocation9 + $0x1b8] sm:$0xff]
    %v1583 = vld [vmem:[#allocation9 + $0x1c0] sm:$0xff]
    %v1584 = vld [vmem:[#allocation9 + $0x1c8] sm:$0xff]
    %v1585 = vld [vmem:[#allocation9 + $0x1d0] sm:$0xff]
    %v1586 = vld [vmem:[#allocation9 + $0x1d8] sm:$0xff]
    %v1587 = vld [vmem:[#allocation9 + $0x1e0] sm:$0xff]
    %v1588 = vld [vmem:[#allocation9 + $0x1e8] sm:$0xff]
    %v1589 = vld [vmem:[#allocation9 + $0x1f0] sm:$0xff]
    %v1590 = vld [vmem:[#allocation9 + $0x1f8] sm:$0xff]
    %v1591 = vld [vmem:[#allocation9 + $0x200] sm:$0xff]
    %v1592 = vld [vmem:[#allocation9 + $0x208] sm:$0xff]
    %v1593 = vld [vmem:[#allocation9 + $0x210] sm:$0xff]
    %v1594 = vld [vmem:[#allocation9 + $0x218] sm:$0xff]
    %v1595 = vld [vmem:[#allocation9 + $0x220] sm:$0xff]
    %v1596 = vld [vmem:[#allocation9 + $0x228] sm:$0xff]
    %v1597 = vld [vmem:[#allocation9 + $0x230] sm:$0xff]
    %v1598 = vld [vmem:[#allocation9 + $0x238] sm:$0xff]
    %v1599 = vld [vmem:[#allocation9 + $0x240] sm:$0xff]
    %v1600 = vld [vmem:[#allocation9 + $0x248] sm:$0xff]
    %v1601 = vld [vmem:[#allocation9 + $0x250] sm:$0xff]
    %v1602 = vld [vmem:[#allocation9 + $0x258] sm:$0xff]
    %v1603 = vld [vmem:[#allocation9 + $0x260] sm:$0xff]
    %v1604 = vld [vmem:[#allocation9 + $0x268] sm:$0xff]
    %v1605 = vld [vmem:[#allocation9 + $0x270] sm:$0xff]
    %v1606 = vld [vmem:[#allocation9 + $0x278] sm:$0xff]
    %v1607 = vld [vmem:[#allocation9 + $0x280] sm:$0xff]
    %v1608 = vld [vmem:[#allocation9 + $0x288] sm:$0xff]
    %v1609 = vld [vmem:[#allocation9 + $0x290] sm:$0xff]
    %v1610 = vld [vmem:[#allocation9 + $0x298] sm:$0xff]
    %v1611 = vld [vmem:[#allocation9 + $0x2a0] sm:$0xff]
    %v1612 = vld [vmem:[#allocation9 + $0x2a8] sm:$0xff]
    %v1613 = vld [vmem:[#allocation9 + $0x2b0] sm:$0xff]
    %v1614 = vld [vmem:[#allocation9 + $0x2b8] sm:$0xff]
    %v1615 = vld [vmem:[#allocation9 + $0x2c0] sm:$0xff]
    %v1616 = vld [vmem:[#allocation9 + $0x2c8] sm:$0xff]
    %v1617 = vld [vmem:[#allocation9 + $0x2d0] sm:$0xff]
    %v1618 = vld [vmem:[#allocation9 + $0x2d8] sm:$0xff]
    %v1619 = vld [vmem:[#allocation9 + $0x2e0] sm:$0xff]
    %v1620 = vld [vmem:[#allocation9 + $0x2e8] sm:$0xff]
    %v1621 = vld [vmem:[#allocation9 + $0x2f0] sm:$0xff]
    %v1622 = vld [vmem:[#allocation9 + $0x2f8] sm:$0xff]
    %v1623 = vld [vmem:[#allocation9 + $0x300] sm:$0xff]
    %v1624 = vld [vmem:[#allocation9 + $0x308] sm:$0xff]
    %v1625 = vld [vmem:[#allocation9 + $0x310] sm:$0xff]
    %v1626 = vld [vmem:[#allocation9 + $0x318] sm:$0xff]
    %v1627 = vld [vmem:[#allocation9 + $0x320] sm:$0xff]
    %v1628 = vld [vmem:[#allocation9 + $0x328] sm:$0xff]
    %v1629 = vld [vmem:[#allocation9 + $0x330] sm:$0xff]
    %v1630 = vld [vmem:[#allocation9 + $0x338] sm:$0xff]
    %v1631 = vld [vmem:[#allocation9 + $0x340] sm:$0xff]
    %v1632 = vld [vmem:[#allocation9 + $0x348] sm:$0xff]
    %v1633 = vld [vmem:[#allocation9 + $0x350] sm:$0xff]
    %v1634 = vld [vmem:[#allocation9 + $0x358] sm:$0xff]
    %v1635 = vld [vmem:[#allocation9 + $0x360] sm:$0xff]
    %v1636 = vld [vmem:[#allocation9 + $0x368] sm:$0xff]
    %v1637 = vld [vmem:[#allocation9 + $0x370] sm:$0xff]
    %v1638 = vld [vmem:[#allocation9 + $0x378] sm:$0xff]
    %v1639 = vld [vmem:[#allocation9 + $0x380] sm:$0xff]
    %v1640 = vld [vmem:[#allocation9 + $0x388] sm:$0xff]
    %v1641 = vld [vmem:[#allocation9 + $0x390] sm:$0xff]
    %v1642 = vld [vmem:[#allocation9 + $0x398] sm:$0xff]
    %v1643 = vld [vmem:[#allocation9 + $0x3a0] sm:$0xff]
    %v1644 = vld [vmem:[#allocation9 + $0x3a8] sm:$0xff]
    %v1645 = vld [vmem:[#allocation9 + $0x3b0] sm:$0xff]
    %v1646 = vld [vmem:[#allocation9 + $0x3b8] sm:$0xff]
    %v1647 = vld [vmem:[#allocation9 + $0x3c0] sm:$0xff]
    %v1648 = vld [vmem:[#allocation9 + $0x3c8] sm:$0xff]
    %v1649 = vld [vmem:[#allocation9 + $0x3d0] sm:$0xff]
    %v1650 = vld [vmem:[#allocation9 + $0x3d8] sm:$0xff]
    %v1651 = vld [vmem:[#allocation9 + $0x3e0] sm:$0xff]
    %v1652 = vld [vmem:[#allocation9 + $0x3e8] sm:$0xff]
    %v1653 = vld [vmem:[#allocation9 + $0x3f0] sm:$0xff]
    %v1654 = vld [vmem:[#allocation9 + $0x3f8] sm:$0xff]
    %v1655 = vld [vmem:[#allocation9 + $0x400] sm:$0xff]
    %v1656 = vld [vmem:[#allocation9 + $0x408] sm:$0xff]
    %v1657 = vld [vmem:[#allocation9 + $0x410] sm:$0xff]
    %v1658 = vld [vmem:[#allocation9 + $0x418] sm:$0xff]
    %v1659 = vld [vmem:[#allocation9 + $0x420] sm:$0xff]
    %v1660 = vld [vmem:[#allocation9 + $0x428] sm:$0xff]
    %v1661 = vld [vmem:[#allocation9 + $0x430] sm:$0xff]
    %v1662 = vld [vmem:[#allocation9 + $0x438] sm:$0xff]
    %v1663 = vld [vmem:[#allocation9 + $0x440] sm:$0xff]
    %v1664 = vld [vmem:[#allocation9 + $0x448] sm:$0xff]
    %v1665 = vld [vmem:[#allocation9 + $0x450] sm:$0xff]
    %v1666 = vld [vmem:[#allocation9 + $0x458] sm:$0xff]
    %v1667 = vld [vmem:[#allocation9 + $0x460] sm:$0xff]
    %v1668 = vld [vmem:[#allocation9 + $0x468] sm:$0xff]
    %v1669 = vld [vmem:[#allocation9 + $0x470] sm:$0xff]
    %v1670 = vld [vmem:[#allocation9 + $0x478] sm:$0xff]
    %v1671 = vld [vmem:[#allocation9 + $0x480] sm:$0xff]
    %v1672 = vld [vmem:[#allocation9 + $0x488] sm:$0xff]
    %v1673 = vld [vmem:[#allocation9 + $0x490] sm:$0xff]
    %v1674 = vld [vmem:[#allocation9 + $0x498] sm:$0xff]
    %v1675 = vld [vmem:[#allocation9 + $0x4a0] sm:$0xff]
    %v1676 = vld [vmem:[#allocation9 + $0x4a8] sm:$0xff]
    %v1677 = vld [vmem:[#allocation9 + $0x4b0] sm:$0xff]
    %v1678 = vld [vmem:[#allocation9 + $0x4b8] sm:$0xff]
    %v1679 = vld [vmem:[#allocation9 + $0x4c0] sm:$0xff]
    %v1680 = vld [vmem:[#allocation9 + $0x4c8] sm:$0xff]
    %v1681 = vld [vmem:[#allocation9 + $0x4d0] sm:$0xff]
    %v1682 = vld [vmem:[#allocation9 + $0x4d8] sm:$0xff]
    %v1683 = vld [vmem:[#allocation9 + $0x4e0] sm:$0xff]
    %v1684 = vld [vmem:[#allocation9 + $0x4e8] sm:$0xff]
    %v1685 = vld [vmem:[#allocation9 + $0x4f0] sm:$0xff]
    %v1686 = vld [vmem:[#allocation9 + $0x4f8] sm:$0xff]
    %v1687 = vld [vmem:[#allocation9 + $0x500] sm:$0xff]
    %v1688 = vld [vmem:[#allocation9 + $0x508] sm:$0xff]
    %v1689 = vld [vmem:[#allocation9 + $0x510] sm:$0xff]
    %v1690 = vld [vmem:[#allocation9 + $0x518] sm:$0xff]
    %v1691 = vld [vmem:[#allocation9 + $0x520] sm:$0xff]
    %v1692 = vld [vmem:[#allocation9 + $0x528] sm:$0xff]
    %v1693 = vld [vmem:[#allocation9 + $0x530] sm:$0xff]
    %v1694 = vld [vmem:[#allocation9 + $0x538] sm:$0xff]
    %v1695 = vld [vmem:[#allocation9 + $0x540] sm:$0xff]
    %v1696 = vld [vmem:[#allocation9 + $0x548] sm:$0xff]
    %v1697 = vld [vmem:[#allocation9 + $0x550] sm:$0xff]
    %v1698 = vld [vmem:[#allocation9 + $0x558] sm:$0xff]
    %v1699 = vld [vmem:[#allocation9 + $0x560] sm:$0xff]
    %v1700 = vld [vmem:[#allocation9 + $0x568] sm:$0xff]
    %v1701 = vld [vmem:[#allocation9 + $0x570] sm:$0xff]
    %v1702 = vld [vmem:[#allocation9 + $0x578] sm:$0xff]
    %v1703 = vld [vmem:[#allocation9 + $0x580] sm:$0xff]
    %v1704 = vld [vmem:[#allocation9 + $0x588] sm:$0xff]
    %v1705 = vld [vmem:[#allocation9 + $0x590] sm:$0xff]
    %v1706 = vld [vmem:[#allocation9 + $0x598] sm:$0xff]
    %v1707 = vld [vmem:[#allocation9 + $0x5a0] sm:$0xff]
    %v1708 = vld [vmem:[#allocation9 + $0x5a8] sm:$0xff]
    %v1709 = vld [vmem:[#allocation9 + $0x5b0] sm:$0xff]
    %v1710 = vld [vmem:[#allocation9 + $0x5b8] sm:$0xff]
    %v1711 = vld [vmem:[#allocation9 + $0x5c0] sm:$0xff]
    %v1712 = vld [vmem:[#allocation9 + $0x5c8] sm:$0xff]
    %v1713 = vld [vmem:[#allocation9 + $0x5d0] sm:$0xff]
    %v1714 = vld [vmem:[#allocation9 + $0x5d8] sm:$0xff]
    %v1715 = vld [vmem:[#allocation9 + $0x5e0] sm:$0xff]
    %v1716 = vld [vmem:[#allocation9 + $0x5e8] sm:$0xff]
    %v1717 = vld [vmem:[#allocation9 + $0x5f0] sm:$0xff]
    %v1718 = vld [vmem:[#allocation9 + $0x5f8] sm:$0xff]
    %v1719 = vld [vmem:[#allocation9 + $0x600] sm:$0xff]
    %v1720 = vld [vmem:[#allocation9 + $0x608] sm:$0xff]
    %v1721 = vld [vmem:[#allocation9 + $0x610] sm:$0xff]
    %v1722 = vld [vmem:[#allocation9 + $0x618] sm:$0xff]
    %v1723 = vld [vmem:[#allocation9 + $0x620] sm:$0xff]
    %v1724 = vld [vmem:[#allocation9 + $0x628] sm:$0xff]
    %v1725 = vld [vmem:[#allocation9 + $0x630] sm:$0xff]
    %v1726 = vld [vmem:[#allocation9 + $0x638] sm:$0xff]
    %v1727 = vld [vmem:[#allocation9 + $0x640] sm:$0xff]
    %v1728 = vld [vmem:[#allocation9 + $0x648] sm:$0xff]
    %v1729 = vld [vmem:[#allocation9 + $0x650] sm:$0xff]
    %v1730 = vld [vmem:[#allocation9 + $0x658] sm:$0xff]
    %v1731 = vld [vmem:[#allocation9 + $0x660] sm:$0xff]
    %v1732 = vld [vmem:[#allocation9 + $0x668] sm:$0xff]
    %v1733 = vld [vmem:[#allocation9 + $0x670] sm:$0xff]
    %v1734 = vld [vmem:[#allocation9 + $0x678] sm:$0xff]
    %v1735 = vld [vmem:[#allocation9 + $0x680] sm:$0xff]
    %v1736 = vld [vmem:[#allocation9 + $0x688] sm:$0xff]
    %v1737 = vld [vmem:[#allocation9 + $0x690] sm:$0xff]
    %v1738 = vld [vmem:[#allocation9 + $0x698] sm:$0xff]
    %v1739 = vld [vmem:[#allocation9 + $0x6a0] sm:$0xff]
    %v1740 = vld [vmem:[#allocation9 + $0x6a8] sm:$0xff]
    %v1741 = vld [vmem:[#allocation9 + $0x6b0] sm:$0xff]
    %v1742 = vld [vmem:[#allocation9 + $0x6b8] sm:$0xff]
    %v1743 = vld [vmem:[#allocation9 + $0x6c0] sm:$0xff]
    %v1744 = vld [vmem:[#allocation9 + $0x6c8] sm:$0xff]
    %v1745 = vld [vmem:[#allocation9 + $0x6d0] sm:$0xff]
    %v1746 = vld [vmem:[#allocation9 + $0x6d8] sm:$0xff]
    %v1747 = vld [vmem:[#allocation9 + $0x6e0] sm:$0xff]
    %v1748 = vld [vmem:[#allocation9 + $0x6e8] sm:$0xff]
    %v1749 = vld [vmem:[#allocation9 + $0x6f0] sm:$0xff]
    %v1750 = vld [vmem:[#allocation9 + $0x6f8] sm:$0xff]
    %v1751 = vld [vmem:[#allocation9 + $0x700] sm:$0xff]
    %v1752 = vld [vmem:[#allocation9 + $0x708] sm:$0xff]
    %v1753 = vld [vmem:[#allocation9 + $0x710] sm:$0xff]
    %v1754 = vld [vmem:[#allocation9 + $0x718] sm:$0xff]
    %v1755 = vld [vmem:[#allocation9 + $0x720] sm:$0xff]
    %v1756 = vld [vmem:[#allocation9 + $0x728] sm:$0xff]
    %v1757 = vld [vmem:[#allocation9 + $0x730] sm:$0xff]
    %v1758 = vld [vmem:[#allocation9 + $0x738] sm:$0xff]
    %v1759 = vld [vmem:[#allocation9 + $0x740] sm:$0xff]
    %v1760 = vld [vmem:[#allocation9 + $0x748] sm:$0xff]
    %v1761 = vld [vmem:[#allocation9 + $0x750] sm:$0xff]
    %v1762 = vld [vmem:[#allocation9 + $0x758] sm:$0xff]
    %v1763 = vld [vmem:[#allocation9 + $0x760] sm:$0xff]
    %v1764 = vld [vmem:[#allocation9 + $0x768] sm:$0xff]
    %v1765 = vld [vmem:[#allocation9 + $0x770] sm:$0xff]
    %v1766 = vld [vmem:[#allocation9 + $0x778] sm:$0xff]
    %v1767 = vld [vmem:[#allocation9 + $0x780] sm:$0xff]
    %v1768 = vld [vmem:[#allocation9 + $0x788] sm:$0xff]
    %v1769 = vld [vmem:[#allocation9 + $0x790] sm:$0xff]
    %v1770 = vld [vmem:[#allocation9 + $0x798] sm:$0xff]
    %v1771 = vld [vmem:[#allocation9 + $0x7a0] sm:$0xff]
    %v1772 = vld [vmem:[#allocation9 + $0x7a8] sm:$0xff]
    %v1773 = vld [vmem:[#allocation9 + $0x7b0] sm:$0xff]
    %v1774 = vld [vmem:[#allocation9 + $0x7b8] sm:$0xff]
    %v1775 = vld [vmem:[#allocation9 + $0x7c0] sm:$0xff]
    %v1776 = vld [vmem:[#allocation9 + $0x7c8] sm:$0xff]
    %v1777 = vld [vmem:[#allocation9 + $0x7d0] sm:$0xff]
    %v1778 = vld [vmem:[#allocation9 + $0x7d8] sm:$0xff]
    %v1779 = vld [vmem:[#allocation9 + $0x7e0] sm:$0xff]
    %v1780 = vld [vmem:[#allocation9 + $0x7e8] sm:$0xff]
    %v1781 = vld [vmem:[#allocation9 + $0x7f0] sm:$0xff]
    %v1782 = vld [vmem:[#allocation9 + $0x7f8] sm:$0xff]
    %v1783 = vld [vmem:[#allocation9 + $0x800] sm:$0xff]
    %v1784 = vld [vmem:[#allocation9 + $0x808] sm:$0xff]
    %v1785 = vld [vmem:[#allocation9 + $0x810] sm:$0xff]
    %v1786 = vld [vmem:[#allocation9 + $0x818] sm:$0xff]
    %v1787 = vld [vmem:[#allocation9 + $0x820] sm:$0xff]
    %v1788 = vld [vmem:[#allocation9 + $0x828] sm:$0xff]
    %v1789 = vld [vmem:[#allocation9 + $0x830] sm:$0xff]
    %v1790 = vld [vmem:[#allocation9 + $0x838] sm:$0xff]
    %v1791 = vld [vmem:[#allocation9 + $0x840] sm:$0xff]
    %v1792 = vld [vmem:[#allocation9 + $0x848] sm:$0xff]
    %v1793 = vld [vmem:[#allocation9 + $0x850] sm:$0xff]
    %v1794 = vld [vmem:[#allocation9 + $0x858] sm:$0xff]
    %v1795 = vld [vmem:[#allocation9 + $0x860] sm:$0xff]
    %v1796 = vld [vmem:[#allocation9 + $0x868] sm:$0xff]
    %v1797 = vld [vmem:[#allocation9 + $0x870] sm:$0xff]
    %v1798 = vld [vmem:[#allocation9 + $0x878] sm:$0xff]
    %v1799 = vld [vmem:[#allocation9 + $0x880] sm:$0xff]
    %v1800 = vld [vmem:[#allocation9 + $0x888] sm:$0xff]
    %v1801 = vld [vmem:[#allocation9 + $0x890] sm:$0xff]
    %v1802 = vld [vmem:[#allocation9 + $0x898] sm:$0xff]
    %v1803 = vld [vmem:[#allocation9 + $0x8a0] sm:$0xff]
    %v1804 = vld [vmem:[#allocation9 + $0x8a8] sm:$0xff]
    %v1805 = vld [vmem:[#allocation9 + $0x8b0] sm:$0xff]
    %v1806 = vld [vmem:[#allocation9 + $0x8b8] sm:$0xff]
    %v1807 = vld [vmem:[#allocation9 + $0x8c0] sm:$0xff]
    %v1808 = vld [vmem:[#allocation9 + $0x8c8] sm:$0xff]
    %v1809 = vld [vmem:[#allocation9 + $0x8d0] sm:$0xff]
    %v1810 = vld [vmem:[#allocation9 + $0x8d8] sm:$0xff]
    %v1811 = vld [vmem:[#allocation9 + $0x8e0] sm:$0xff]
    %v1812 = vld [vmem:[#allocation9 + $0x8e8] sm:$0xff]
    %v1813 = vld [vmem:[#allocation9 + $0x8f0] sm:$0xff]
    %v1814 = vld [vmem:[#allocation9 + $0x8f8] sm:$0xff]
    %v1815 = vld [vmem:[#allocation9 + $0x900] sm:$0xff]
    %v1816 = vld [vmem:[#allocation9 + $0x908] sm:$0xff]
    %v1817 = vld [vmem:[#allocation9 + $0x910] sm:$0xff]
    %v1818 = vld [vmem:[#allocation9 + $0x918] sm:$0xff]
    %v1819 = vld [vmem:[#allocation9 + $0x920] sm:$0xff]
    %v1820 = vld [vmem:[#allocation9 + $0x928] sm:$0xff]
    %v1821 = vld [vmem:[#allocation9 + $0x930] sm:$0xff]
    %v1822 = vld [vmem:[#allocation9 + $0x938] sm:$0xff]
    %v1823 = vld [vmem:[#allocation9 + $0x940] sm:$0xff]
    %v1824 = vld [vmem:[#allocation9 + $0x948] sm:$0xff]
    %v1825 = vld [vmem:[#allocation9 + $0x950] sm:$0xff]
    %v1826 = vld [vmem:[#allocation9 + $0x958] sm:$0xff]
    %v1827 = vld [vmem:[#allocation9 + $0x960] sm:$0xff]
    %v1828 = vld [vmem:[#allocation9 + $0x968] sm:$0xff]
    %v1829 = vld [vmem:[#allocation9 + $0x970] sm:$0xff]
    %v1830 = vld [vmem:[#allocation9 + $0x978] sm:$0xff]
    %v1831 = vld [vmem:[#allocation9 + $0x980] sm:$0xff]
    %v1832 = vld [vmem:[#allocation9 + $0x988] sm:$0xff]
    %v1833 = vld [vmem:[#allocation9 + $0x990] sm:$0xff]
    %v1834 = vld [vmem:[#allocation9 + $0x998] sm:$0xff]
    %v1835 = vld [vmem:[#allocation9 + $0x9a0] sm:$0xff]
    %v1836 = vld [vmem:[#allocation9 + $0x9a8] sm:$0xff]
    %v1837 = vld [vmem:[#allocation9 + $0x9b0] sm:$0xff]
    %v1838 = vld [vmem:[#allocation9 + $0x9b8] sm:$0xff]
    %v1839 = vld [vmem:[#allocation9 + $0x9c0] sm:$0xff]
    %v1840 = vld [vmem:[#allocation9 + $0x9c8] sm:$0xff]
    %v1841 = vld [vmem:[#allocation9 + $0x9d0] sm:$0xff]
    %v1842 = vld [vmem:[#allocation9 + $0x9d8] sm:$0xff]
    %v1843 = vld [vmem:[#allocation9 + $0x9e0] sm:$0xff]
    %v1844 = vld [vmem:[#allocation9 + $0x9e8] sm:$0xff]
    %v1845 = vld [vmem:[#allocation9 + $0x9f0] sm:$0xff]
    %v1846 = vld [vmem:[#allocation9 + $0x9f8] sm:$0xff]
    %v1847 = vld [vmem:[#allocation9 + $0xa00] sm:$0xff]
    %v1848 = vld [vmem:[#allocation9 + $0xa08] sm:$0xff]
    %v1849 = vld [vmem:[#allocation9 + $0xa10] sm:$0xff]
    %v1850 = vld [vmem:[#allocation9 + $0xa18] sm:$0xff]
    %v1851 = vld [vmem:[#allocation9 + $0xa20] sm:$0xff]
    %v1852 = vld [vmem:[#allocation9 + $0xa28] sm:$0xff]
    %v1853 = vld [vmem:[#allocation9 + $0xa30] sm:$0xff]
    %v1854 = vld [vmem:[#allocation9 + $0xa38] sm:$0xff]
    %v1855 = vld [vmem:[#allocation9 + $0xa40] sm:$0xff]
    %v1856 = vld [vmem:[#allocation9 + $0xa48] sm:$0xff]
    %v1857 = vld [vmem:[#allocation9 + $0xa50] sm:$0xff]
    %v1858 = vld [vmem:[#allocation9 + $0xa58] sm:$0xff]
    %v1859 = vld [vmem:[#allocation9 + $0xa60] sm:$0xff]
    %v1860 = vld [vmem:[#allocation9 + $0xa68] sm:$0xff]
    %v1861 = vld [vmem:[#allocation9 + $0xa70] sm:$0xff]
    %v1862 = vld [vmem:[#allocation9 + $0xa78] sm:$0xff]
    %v1863 = vld [vmem:[#allocation9 + $0xa80] sm:$0xff]
    %v1864 = vld [vmem:[#allocation9 + $0xa88] sm:$0xff]
    %v1865 = vld [vmem:[#allocation9 + $0xa90] sm:$0xff]
    %v1866 = vld [vmem:[#allocation9 + $0xa98] sm:$0xff]
    %v1867 = vld [vmem:[#allocation9 + $0xaa0] sm:$0xff]
    %v1868 = vld [vmem:[#allocation9 + $0xaa8] sm:$0xff]
    %v1869 = vld [vmem:[#allocation9 + $0xab0] sm:$0xff]
    %v1870 = vld [vmem:[#allocation9 + $0xab8] sm:$0xff]
    %v1871 = vld [vmem:[#allocation9 + $0xac0] sm:$0xff]
    %v1872 = vld [vmem:[#allocation9 + $0xac8] sm:$0xff]
    %v1873 = vld [vmem:[#allocation9 + $0xad0] sm:$0xff]
    %v1874 = vld [vmem:[#allocation9 + $0xad8] sm:$0xff]
    %v1875 = vld [vmem:[#allocation9 + $0xae0] sm:$0xff]
    %v1876 = vld [vmem:[#allocation9 + $0xae8] sm:$0xff]
    %v1877 = vld [vmem:[#allocation9 + $0xaf0] sm:$0xff]
    %v1878 = vld [vmem:[#allocation9 + $0xaf8] sm:$0xff]
    %v1879 = vld [vmem:[#allocation9 + $0xb00] sm:$0xff]
    %v1880 = vld [vmem:[#allocation9 + $0xb08] sm:$0xff]
    %v1881 = vld [vmem:[#allocation9 + $0xb10] sm:$0xff]
    %v1882 = vld [vmem:[#allocation9 + $0xb18] sm:$0xff]
    %v1883 = vld [vmem:[#allocation9 + $0xb20] sm:$0xff]
    %v1884 = vld [vmem:[#allocation9 + $0xb28] sm:$0xff]
    %v1885 = vld [vmem:[#allocation9 + $0xb30] sm:$0xff]
    %v1886 = vld [vmem:[#allocation9 + $0xb38] sm:$0xff]
    %v1887 = vld [vmem:[#allocation9 + $0xb40] sm:$0xff]
    %v1888 = vld [vmem:[#allocation9 + $0xb48] sm:$0xff]
    %v1889 = vld [vmem:[#allocation9 + $0xb50] sm:$0xff]
    %v1890 = vld [vmem:[#allocation9 + $0xb58] sm:$0xff]
    %v1891 = vld [vmem:[#allocation9 + $0xb60] sm:$0xff]
    %v1892 = vld [vmem:[#allocation9 + $0xb68] sm:$0xff]
    %v1893 = vld [vmem:[#allocation9 + $0xb70] sm:$0xff]
    %v1894 = vld [vmem:[#allocation9 + $0xb78] sm:$0xff]
    %v1895 = vld [vmem:[#allocation9 + $0xb80] sm:$0xff]
    %v1896 = vld [vmem:[#allocation9 + $0xb88] sm:$0xff]
    %v1897 = vld [vmem:[#allocation9 + $0xb90] sm:$0xff]
    %v1898 = vld [vmem:[#allocation9 + $0xb98] sm:$0xff]
    %v1899 = vld [vmem:[#allocation9 + $0xba0] sm:$0xff]
    %v1900 = vld [vmem:[#allocation9 + $0xba8] sm:$0xff]
    %v1901 = vld [vmem:[#allocation9 + $0xbb0] sm:$0xff]
    %v1902 = vld [vmem:[#allocation9 + $0xbb8] sm:$0xff]
    %v1903 = vld [vmem:[#allocation9 + $0xbc0] sm:$0xff]
    %v1904 = vld [vmem:[#allocation9 + $0xbc8] sm:$0xff]
    %v1905 = vld [vmem:[#allocation9 + $0xbd0] sm:$0xff]
    %v1906 = vld [vmem:[#allocation9 + $0xbd8] sm:$0xff]
    %v1907 = vld [vmem:[#allocation9 + $0xbe0] sm:$0xff]
    %v1908 = vld [vmem:[#allocation9 + $0xbe8] sm:$0xff]
    %v1909 = vld [vmem:[#allocation9 + $0xbf0] sm:$0xff]
    %v1910 = vld [vmem:[#allocation9 + $0xbf8] sm:$0xff]
    %v1911 = vld [vmem:[#allocation9 + $0xc00] sm:$0xff]
    %v1912 = vld [vmem:[#allocation9 + $0xc08] sm:$0xff]
    %v1913 = vld [vmem:[#allocation9 + $0xc10] sm:$0xff]
    %v1914 = vld [vmem:[#allocation9 + $0xc18] sm:$0xff]
    %v1915 = vld [vmem:[#allocation9 + $0xc20] sm:$0xff]
    %v1916 = vld [vmem:[#allocation9 + $0xc28] sm:$0xff]
    %v1917 = vld [vmem:[#allocation9 + $0xc30] sm:$0xff]
    %v1918 = vld [vmem:[#allocation9 + $0xc38] sm:$0xff]
    %v1919 = vld [vmem:[#allocation9 + $0xc40] sm:$0xff]
    %v1920 = vld [vmem:[#allocation9 + $0xc48] sm:$0xff]
    %v1921 = vld [vmem:[#allocation9 + $0xc50] sm:$0xff]
    %v1922 = vld [vmem:[#allocation9 + $0xc58] sm:$0xff]
    %v1923 = vld [vmem:[#allocation9 + $0xc60] sm:$0xff]
    %v1924 = vld [vmem:[#allocation9 + $0xc68] sm:$0xff]
    %v1925 = vld [vmem:[#allocation9 + $0xc70] sm:$0xff]
    %v1926 = vld [vmem:[#allocation9 + $0xc78] sm:$0xff]
    %v1927 = vld [vmem:[#allocation9 + $0xc80] sm:$0xff]
    %v1928 = vld [vmem:[#allocation9 + $0xc88] sm:$0xff]
    %v1929 = vld [vmem:[#allocation9 + $0xc90] sm:$0xff]
    %v1930 = vld [vmem:[#allocation9 + $0xc98] sm:$0xff]
    %v1931 = vld [vmem:[#allocation9 + $0xca0] sm:$0xff]
    %v1932 = vld [vmem:[#allocation9 + $0xca8] sm:$0xff]
    %v1933 = vld [vmem:[#allocation9 + $0xcb0] sm:$0xff]
    %v1934 = vld [vmem:[#allocation9 + $0xcb8] sm:$0xff]
    %v1935 = vld [vmem:[#allocation9 + $0xcc0] sm:$0xff]
    %v1936 = vld [vmem:[#allocation9 + $0xcc8] sm:$0xff]
    %v1937 = vld [vmem:[#allocation9 + $0xcd0] sm:$0xff]
    %v1938 = vld [vmem:[#allocation9 + $0xcd8] sm:$0xff]
    %v1939 = vld [vmem:[#allocation9 + $0xce0] sm:$0xff]
    %v1940 = vld [vmem:[#allocation9 + $0xce8] sm:$0xff]
    %v1941 = vld [vmem:[#allocation9 + $0xcf0] sm:$0xff]
    %v1942 = vld [vmem:[#allocation9 + $0xcf8] sm:$0xff]
    %v1943 = vld [vmem:[#allocation9 + $0xd00] sm:$0xff]
    %v1944 = vld [vmem:[#allocation9 + $0xd08] sm:$0xff]
    %v1945 = vld [vmem:[#allocation9 + $0xd10] sm:$0xff]
    %v1946 = vld [vmem:[#allocation9 + $0xd18] sm:$0xff]
    %v1947 = vld [vmem:[#allocation9 + $0xd20] sm:$0xff]
    %v1948 = vld [vmem:[#allocation9 + $0xd28] sm:$0xff]
    %v1949 = vld [vmem:[#allocation9 + $0xd30] sm:$0xff]
    %v1950 = vld [vmem:[#allocation9 + $0xd38] sm:$0xff]
    %v1951 = vld [vmem:[#allocation9 + $0xd40] sm:$0xff]
    %v1952 = vld [vmem:[#allocation9 + $0xd48] sm:$0xff]
    %v1953 = vld [vmem:[#allocation9 + $0xd50] sm:$0xff]
    %v1954 = vld [vmem:[#allocation9 + $0xd58] sm:$0xff]
    %v1955 = vld [vmem:[#allocation9 + $0xd60] sm:$0xff]
    %v1956 = vld [vmem:[#allocation9 + $0xd68] sm:$0xff]
    %v1957 = vld [vmem:[#allocation9 + $0xd70] sm:$0xff]
    %v1958 = vld [vmem:[#allocation9 + $0xd78] sm:$0xff]
    %v1959 = vld [vmem:[#allocation9 + $0xd80] sm:$0xff]
    %v1960 = vld [vmem:[#allocation9 + $0xd88] sm:$0xff]
    %v1961 = vld [vmem:[#allocation9 + $0xd90] sm:$0xff]
    %v1962 = vld [vmem:[#allocation9 + $0xd98] sm:$0xff]
    %v1963 = vld [vmem:[#allocation9 + $0xda0] sm:$0xff]
    %v1964 = vld [vmem:[#allocation9 + $0xda8] sm:$0xff]
    %v1965 = vld [vmem:[#allocation9 + $0xdb0] sm:$0xff]
    %v1966 = vld [vmem:[#allocation9 + $0xdb8] sm:$0xff]
    %v1967 = vld [vmem:[#allocation9 + $0xdc0] sm:$0xff]
    %v1968 = vld [vmem:[#allocation9 + $0xdc8] sm:$0xff]
    %v1969 = vld [vmem:[#allocation9 + $0xdd0] sm:$0xff]
    %v1970 = vld [vmem:[#allocation9 + $0xdd8] sm:$0xff]
    %v1971 = vld [vmem:[#allocation9 + $0xde0] sm:$0xff]
    %v1972 = vld [vmem:[#allocation9 + $0xde8] sm:$0xff]
    %v1973 = vld [vmem:[#allocation9 + $0xdf0] sm:$0xff]
    %v1974 = vld [vmem:[#allocation9 + $0xdf8] sm:$0xff]
    %v1975 = vld [vmem:[#allocation9 + $0xe00] sm:$0xff]
    %v1976 = vld [vmem:[#allocation9 + $0xe08] sm:$0xff]
    %v1977 = vld [vmem:[#allocation9 + $0xe10] sm:$0xff]
    %v1978 = vld [vmem:[#allocation9 + $0xe18] sm:$0xff]
    %v1979 = vld [vmem:[#allocation9 + $0xe20] sm:$0xff]
    %v1980 = vld [vmem:[#allocation9 + $0xe28] sm:$0xff]
    %v1981 = vld [vmem:[#allocation9 + $0xe30] sm:$0xff]
    %v1982 = vld [vmem:[#allocation9 + $0xe38] sm:$0xff]
    %v1983 = vld [vmem:[#allocation9 + $0xe40] sm:$0xff]
    %v1984 = vld [vmem:[#allocation9 + $0xe48] sm:$0xff]
    %v1985 = vld [vmem:[#allocation9 + $0xe50] sm:$0xff]
    %v1986 = vld [vmem:[#allocation9 + $0xe58] sm:$0xff]
    %v1987 = vld [vmem:[#allocation9 + $0xe60] sm:$0xff]
    %v1988 = vld [vmem:[#allocation9 + $0xe68] sm:$0xff]
    %v1989 = vld [vmem:[#allocation9 + $0xe70] sm:$0xff]
    %v1990 = vld [vmem:[#allocation9 + $0xe78] sm:$0xff]
    %v1991 = vld [vmem:[#allocation9 + $0xe80] sm:$0xff]
    %v1992 = vld [vmem:[#allocation9 + $0xe88] sm:$0xff]
    %v1993 = vld [vmem:[#allocation9 + $0xe90] sm:$0xff]
    %v1994 = vld [vmem:[#allocation9 + $0xe98] sm:$0xff]
    %v1995 = vld [vmem:[#allocation9 + $0xea0] sm:$0xff]
    %v1996 = vld [vmem:[#allocation9 + $0xea8] sm:$0xff]
    %v1997 = vld [vmem:[#allocation9 + $0xeb0] sm:$0xff]
    %v1998 = vld [vmem:[#allocation9 + $0xeb8] sm:$0xff]
    %v1999 = vld [vmem:[#allocation9 + $0xec0] sm:$0xff]
    %v2000 = vld [vmem:[#allocation9 + $0xec8] sm:$0xff]
    %v2001 = vld [vmem:[#allocation9 + $0xed0] sm:$0xff]
    %v2002 = vld [vmem:[#allocation9 + $0xed8] sm:$0xff]
    %v2003 = vld [vmem:[#allocation9 + $0xee0] sm:$0xff]
    %v2004 = vld [vmem:[#allocation9 + $0xee8] sm:$0xff]
    %v2005 = vld [vmem:[#allocation9 + $0xef0] sm:$0xff]
    %v2006 = vld [vmem:[#allocation9 + $0xef8] sm:$0xff]
    %v2007 = vld [vmem:[#allocation9 + $0xf00] sm:$0xff]
    %v2008 = vld [vmem:[#allocation9 + $0xf08] sm:$0xff]
    %v2009 = vld [vmem:[#allocation9 + $0xf10] sm:$0xff]
    %v2010 = vld [vmem:[#allocation9 + $0xf18] sm:$0xff]
    %v2011 = vld [vmem:[#allocation9 + $0xf20] sm:$0xff]
    %v2012 = vld [vmem:[#allocation9 + $0xf28] sm:$0xff]
    %v2013 = vld [vmem:[#allocation9 + $0xf30] sm:$0xff]
    %v2014 = vld [vmem:[#allocation9 + $0xf38] sm:$0xff]
    %v2015 = vld [vmem:[#allocation9 + $0xf40] sm:$0xff]
    %v2016 = vld [vmem:[#allocation9 + $0xf48] sm:$0xff]
    %v2017 = vld [vmem:[#allocation9 + $0xf50] sm:$0xff]
    %v2018 = vld [vmem:[#allocation9 + $0xf58] sm:$0xff]
    %v2019 = vld [vmem:[#allocation9 + $0xf60] sm:$0xff]
    %v2020 = vld [vmem:[#allocation9 + $0xf68] sm:$0xff]
    %v2021 = vld [vmem:[#allocation9 + $0xf70] sm:$0xff]
    %v2022 = vld [vmem:[#allocation9 + $0xf78] sm:$0xff]
    %v2023 = vld [vmem:[#allocation9 + $0xf80] sm:$0xff]
    %v2024 = vld [vmem:[#allocation9 + $0xf88] sm:$0xff]
    %v2025 = vld [vmem:[#allocation9 + $0xf90] sm:$0xff]
    %v2026 = vld [vmem:[#allocation9 + $0xf98] sm:$0xff]
    %v2027 = vld [vmem:[#allocation9 + $0xfa0] sm:$0xff]
    %v2028 = vld [vmem:[#allocation9 + $0xfa8] sm:$0xff]
    %v2029 = vld [vmem:[#allocation9 + $0xfb0] sm:$0xff]
    %v2030 = vld [vmem:[#allocation9 + $0xfb8] sm:$0xff]
    %v2031 = vld [vmem:[#allocation9 + $0xfc0] sm:$0xff]
    %v2032 = vld [vmem:[#allocation9 + $0xfc8] sm:$0xff]
    %v2033 = vld [vmem:[#allocation9 + $0xfd0] sm:$0xff]
    %v2034 = vld [vmem:[#allocation9 + $0xfd8] sm:$0xff]
    %v2035 = vld [vmem:[#allocation9 + $0xfe0] sm:$0xff]
    %v2036 = vld [vmem:[#allocation9 + $0xfe8] sm:$0xff]
    %v2037 = vld [vmem:[#allocation9 + $0xff0] sm:$0xff]
    %v2038 = vld [vmem:[#allocation9 + $0xff8] sm:$0xff]
    %v2039 = vld [vmem:[#allocation11] sm:$0xff]
    %v2041 = vlaneseq
    %v2042 = vshrl.u32 %v2041, 7
    %v2043 = vsub.s32 0, %v2042
    %v2044 = vrot.slane %v2039, %v2043
    %v2045 = vlaneseq
    %v2046 = vshrl.u32 %v2045, 7
    %v2047 = vsub.s32 1, %v2046
    %v2048 = vrot.slane %v2039, %v2047
    %v2049 = vlaneseq
    %v2050 = vshrl.u32 %v2049, 7
    %v2051 = vsub.s32 2, %v2050
    %v2052 = vrot.slane %v2039, %v2051
    %v2053 = vlaneseq
    %v2054 = vshrl.u32 %v2053, 7
    %v2055 = vsub.s32 3, %v2054
    %v2056 = vrot.slane %v2039, %v2055
    %v2057 = vlaneseq
    %v2058 = vshrl.u32 %v2057, 7
    %v2059 = vsub.s32 4, %v2058
    %v2060 = vrot.slane %v2039, %v2059
    %v2061 = vlaneseq
    %v2062 = vshrl.u32 %v2061, 7
    %v2063 = vsub.s32 5, %v2062
    %v2064 = vrot.slane %v2039, %v2063
    %v2065 = vlaneseq
    %v2066 = vshrl.u32 %v2065, 7
    %v2067 = vsub.s32 6, %v2066
    %v2068 = vrot.slane %v2039, %v2067
    %v2069 = vlaneseq
    %v2070 = vshrl.u32 %v2069, 7
    %v2071 = vsub.s32 7, %v2070
    %v2072 = vrot.slane %v2039, %v2071
    %v2593 = vunpack.c.l.b16 %v1527
    %v2594 = vunpack.c.h.b16 %v1527
    %v2595 = vunpack.c.l.b16 %v1528
    %v2596 = vunpack.c.h.b16 %v1528
    %v2597 = vunpack.c.l.b16 %v1529
    %v2598 = vunpack.c.h.b16 %v1529
    %v2599 = vunpack.c.l.b16 %v1530
    %v2600 = vunpack.c.h.b16 %v1530
    %v2601 = vunpack.c.l.b16 %v1531
    %v2602 = vunpack.c.h.b16 %v1531
    %v2603 = vunpack.c.l.b16 %v1532
    %v2604 = vunpack.c.h.b16 %v1532
    %v2605 = vunpack.c.l.b16 %v1533
    %v2606 = vunpack.c.h.b16 %v1533
    %v2607 = vunpack.c.l.b16 %v1534
    %v2608 = vunpack.c.h.b16 %v1534
    %v2609 = vunpack.c.l.b16 %v1535
    %v2610 = vunpack.c.h.b16 %v1535
    %v2611 = vunpack.c.l.b16 %v1536
    %v2612 = vunpack.c.h.b16 %v1536
    %v2613 = vunpack.c.l.b16 %v1537
    %v2614 = vunpack.c.h.b16 %v1537
    %v2615 = vunpack.c.l.b16 %v1538
    %v2616 = vunpack.c.h.b16 %v1538
    %v2617 = vunpack.c.l.b16 %v1539
    %v2618 = vunpack.c.h.b16 %v1539
    %v2619 = vunpack.c.l.b16 %v1540
    %v2620 = vunpack.c.h.b16 %v1540
    %v2621 = vunpack.c.l.b16 %v1541
    %v2622 = vunpack.c.h.b16 %v1541
    %v2623 = vunpack.c.l.b16 %v1542
    %v2624 = vunpack.c.h.b16 %v1542
    %v2625 = vunpack.c.l.b16 %v1543
    %v2626 = vunpack.c.h.b16 %v1543
    %v2627 = vunpack.c.l.b16 %v1544
    %v2628 = vunpack.c.h.b16 %v1544
    %v2629 = vunpack.c.l.b16 %v1545
    %v2630 = vunpack.c.h.b16 %v1545
    %v2631 = vunpack.c.l.b16 %v1546
    %v2632 = vunpack.c.h.b16 %v1546
    %v2633 = vunpack.c.l.b16 %v1547
    %v2634 = vunpack.c.h.b16 %v1547
    %v2635 = vunpack.c.l.b16 %v1548
    %v2636 = vunpack.c.h.b16 %v1548
    %v2637 = vunpack.c.l.b16 %v1549
    %v2638 = vunpack.c.h.b16 %v1549
    %v2639 = vunpack.c.l.b16 %v1550
    %v2640 = vunpack.c.h.b16 %v1550
    %v2641 = vunpack.c.l.b16 %v1551
    %v2642 = vunpack.c.h.b16 %v1551
    %v2643 = vunpack.c.l.b16 %v1552
    %v2644 = vunpack.c.h.b16 %v1552
    %v2645 = vunpack.c.l.b16 %v1553
    %v2646 = vunpack.c.h.b16 %v1553
    %v2647 = vunpack.c.l.b16 %v1554
    %v2648 = vunpack.c.h.b16 %v1554
    %v2649 = vunpack.c.l.b16 %v1555
    %v2650 = vunpack.c.h.b16 %v1555
    %v2651 = vunpack.c.l.b16 %v1556
    %v2652 = vunpack.c.h.b16 %v1556
    %v2653 = vunpack.c.l.b16 %v1557
    %v2654 = vunpack.c.h.b16 %v1557
    %v2655 = vunpack.c.l.b16 %v1558
    %v2656 = vunpack.c.h.b16 %v1558
    %v2657 = vunpack.c.l.b16 %v1559
    %v2658 = vunpack.c.h.b16 %v1559
    %v2659 = vunpack.c.l.b16 %v1560
    %v2660 = vunpack.c.h.b16 %v1560
    %v2661 = vunpack.c.l.b16 %v1561
    %v2662 = vunpack.c.h.b16 %v1561
    %v2663 = vunpack.c.l.b16 %v1562
    %v2664 = vunpack.c.h.b16 %v1562
    %v2665 = vunpack.c.l.b16 %v1563
    %v2666 = vunpack.c.h.b16 %v1563
    %v2667 = vunpack.c.l.b16 %v1564
    %v2668 = vunpack.c.h.b16 %v1564
    %v2669 = vunpack.c.l.b16 %v1565
    %v2670 = vunpack.c.h.b16 %v1565
    %v2671 = vunpack.c.l.b16 %v1566
    %v2672 = vunpack.c.h.b16 %v1566
    %v2673 = vunpack.c.l.b16 %v1567
    %v2674 = vunpack.c.h.b16 %v1567
    %v2675 = vunpack.c.l.b16 %v1568
    %v2676 = vunpack.c.h.b16 %v1568
    %v2677 = vunpack.c.l.b16 %v1569
    %v2678 = vunpack.c.h.b16 %v1569
    %v2679 = vunpack.c.l.b16 %v1570
    %v2680 = vunpack.c.h.b16 %v1570
    %v2681 = vunpack.c.l.b16 %v1571
    %v2682 = vunpack.c.h.b16 %v1571
    %v2683 = vunpack.c.l.b16 %v1572
    %v2684 = vunpack.c.h.b16 %v1572
    %v2685 = vunpack.c.l.b16 %v1573
    %v2686 = vunpack.c.h.b16 %v1573
    %v2687 = vunpack.c.l.b16 %v1574
    %v2688 = vunpack.c.h.b16 %v1574
    %v2689 = vunpack.c.l.b16 %v1575
    %v2690 = vunpack.c.h.b16 %v1575
    %v2691 = vunpack.c.l.b16 %v1576
    %v2692 = vunpack.c.h.b16 %v1576
    %v2693 = vunpack.c.l.b16 %v1577
    %v2694 = vunpack.c.h.b16 %v1577
    %v2695 = vunpack.c.l.b16 %v1578
    %v2696 = vunpack.c.h.b16 %v1578
    %v2697 = vunpack.c.l.b16 %v1579
    %v2698 = vunpack.c.h.b16 %v1579
    %v2699 = vunpack.c.l.b16 %v1580
    %v2700 = vunpack.c.h.b16 %v1580
    %v2701 = vunpack.c.l.b16 %v1581
    %v2702 = vunpack.c.h.b16 %v1581
    %v2703 = vunpack.c.l.b16 %v1582
    %v2704 = vunpack.c.h.b16 %v1582
    %v2705 = vunpack.c.l.b16 %v1583
    %v2706 = vunpack.c.h.b16 %v1583
    %v2707 = vunpack.c.l.b16 %v1584
    %v2708 = vunpack.c.h.b16 %v1584
    %v2709 = vunpack.c.l.b16 %v1585
    %v2710 = vunpack.c.h.b16 %v1585
    %v2711 = vunpack.c.l.b16 %v1586
    %v2712 = vunpack.c.h.b16 %v1586
    %v2713 = vunpack.c.l.b16 %v1587
    %v2714 = vunpack.c.h.b16 %v1587
    %v2715 = vunpack.c.l.b16 %v1588
    %v2716 = vunpack.c.h.b16 %v1588
    %v2717 = vunpack.c.l.b16 %v1589
    %v2718 = vunpack.c.h.b16 %v1589
    %v2719 = vunpack.c.l.b16 %v1590
    %v2720 = vunpack.c.h.b16 %v1590
    %v2721 = vunpack.c.l.b16 %v1591
    %v2722 = vunpack.c.h.b16 %v1591
    %v2723 = vunpack.c.l.b16 %v1592
    %v2724 = vunpack.c.h.b16 %v1592
    %v2725 = vunpack.c.l.b16 %v1593
    %v2726 = vunpack.c.h.b16 %v1593
    %v2727 = vunpack.c.l.b16 %v1594
    %v2728 = vunpack.c.h.b16 %v1594
    %v2729 = vunpack.c.l.b16 %v1595
    %v2730 = vunpack.c.h.b16 %v1595
    %v2731 = vunpack.c.l.b16 %v1596
    %v2732 = vunpack.c.h.b16 %v1596
    %v2733 = vunpack.c.l.b16 %v1597
    %v2734 = vunpack.c.h.b16 %v1597
    %v2735 = vunpack.c.l.b16 %v1598
    %v2736 = vunpack.c.h.b16 %v1598
    %v2737 = vunpack.c.l.b16 %v1599
    %v2738 = vunpack.c.h.b16 %v1599
    %v2739 = vunpack.c.l.b16 %v1600
    %v2740 = vunpack.c.h.b16 %v1600
    %v2741 = vunpack.c.l.b16 %v1601
    %v2742 = vunpack.c.h.b16 %v1601
    %v2743 = vunpack.c.l.b16 %v1602
    %v2744 = vunpack.c.h.b16 %v1602
    %v2745 = vunpack.c.l.b16 %v1603
    %v2746 = vunpack.c.h.b16 %v1603
    %v2747 = vunpack.c.l.b16 %v1604
    %v2748 = vunpack.c.h.b16 %v1604
    %v2749 = vunpack.c.l.b16 %v1605
    %v2750 = vunpack.c.h.b16 %v1605
    %v2751 = vunpack.c.l.b16 %v1606
    %v2752 = vunpack.c.h.b16 %v1606
    %v2753 = vunpack.c.l.b16 %v1607
    %v2754 = vunpack.c.h.b16 %v1607
    %v2755 = vunpack.c.l.b16 %v1608
    %v2756 = vunpack.c.h.b16 %v1608
    %v2757 = vunpack.c.l.b16 %v1609
    %v2758 = vunpack.c.h.b16 %v1609
    %v2759 = vunpack.c.l.b16 %v1610
    %v2760 = vunpack.c.h.b16 %v1610
    %v2761 = vunpack.c.l.b16 %v1611
    %v2762 = vunpack.c.h.b16 %v1611
    %v2763 = vunpack.c.l.b16 %v1612
    %v2764 = vunpack.c.h.b16 %v1612
    %v2765 = vunpack.c.l.b16 %v1613
    %v2766 = vunpack.c.h.b16 %v1613
    %v2767 = vunpack.c.l.b16 %v1614
    %v2768 = vunpack.c.h.b16 %v1614
    %v2769 = vunpack.c.l.b16 %v1615
    %v2770 = vunpack.c.h.b16 %v1615
    %v2771 = vunpack.c.l.b16 %v1616
    %v2772 = vunpack.c.h.b16 %v1616
    %v2773 = vunpack.c.l.b16 %v1617
    %v2774 = vunpack.c.h.b16 %v1617
    %v2775 = vunpack.c.l.b16 %v1618
    %v2776 = vunpack.c.h.b16 %v1618
    %v2777 = vunpack.c.l.b16 %v1619
    %v2778 = vunpack.c.h.b16 %v1619
    %v2779 = vunpack.c.l.b16 %v1620
    %v2780 = vunpack.c.h.b16 %v1620
    %v2781 = vunpack.c.l.b16 %v1621
    %v2782 = vunpack.c.h.b16 %v1621
    %v2783 = vunpack.c.l.b16 %v1622
    %v2784 = vunpack.c.h.b16 %v1622
    %v2785 = vunpack.c.l.b16 %v1623
    %v2786 = vunpack.c.h.b16 %v1623
    %v2787 = vunpack.c.l.b16 %v1624
    %v2788 = vunpack.c.h.b16 %v1624
    %v2789 = vunpack.c.l.b16 %v1625
    %v2790 = vunpack.c.h.b16 %v1625
    %v2791 = vunpack.c.l.b16 %v1626
    %v2792 = vunpack.c.h.b16 %v1626
    %v2793 = vunpack.c.l.b16 %v1627
    %v2794 = vunpack.c.h.b16 %v1627
    %v2795 = vunpack.c.l.b16 %v1628
    %v2796 = vunpack.c.h.b16 %v1628
    %v2797 = vunpack.c.l.b16 %v1629
    %v2798 = vunpack.c.h.b16 %v1629
    %v2799 = vunpack.c.l.b16 %v1630
    %v2800 = vunpack.c.h.b16 %v1630
    %v2801 = vunpack.c.l.b16 %v1631
    %v2802 = vunpack.c.h.b16 %v1631
    %v2803 = vunpack.c.l.b16 %v1632
    %v2804 = vunpack.c.h.b16 %v1632
    %v2805 = vunpack.c.l.b16 %v1633
    %v2806 = vunpack.c.h.b16 %v1633
    %v2807 = vunpack.c.l.b16 %v1634
    %v2808 = vunpack.c.h.b16 %v1634
    %v2809 = vunpack.c.l.b16 %v1635
    %v2810 = vunpack.c.h.b16 %v1635
    %v2811 = vunpack.c.l.b16 %v1636
    %v2812 = vunpack.c.h.b16 %v1636
    %v2813 = vunpack.c.l.b16 %v1637
    %v2814 = vunpack.c.h.b16 %v1637
    %v2815 = vunpack.c.l.b16 %v1638
    %v2816 = vunpack.c.h.b16 %v1638
    %v2817 = vunpack.c.l.b16 %v1639
    %v2818 = vunpack.c.h.b16 %v1639
    %v2819 = vunpack.c.l.b16 %v1640
    %v2820 = vunpack.c.h.b16 %v1640
    %v2821 = vunpack.c.l.b16 %v1641
    %v2822 = vunpack.c.h.b16 %v1641
    %v2823 = vunpack.c.l.b16 %v1642
    %v2824 = vunpack.c.h.b16 %v1642
    %v2825 = vunpack.c.l.b16 %v1643
    %v2826 = vunpack.c.h.b16 %v1643
    %v2827 = vunpack.c.l.b16 %v1644
    %v2828 = vunpack.c.h.b16 %v1644
    %v2829 = vunpack.c.l.b16 %v1645
    %v2830 = vunpack.c.h.b16 %v1645
    %v2831 = vunpack.c.l.b16 %v1646
    %v2832 = vunpack.c.h.b16 %v1646
    %v2833 = vunpack.c.l.b16 %v1647
    %v2834 = vunpack.c.h.b16 %v1647
    %v2835 = vunpack.c.l.b16 %v1648
    %v2836 = vunpack.c.h.b16 %v1648
    %v2837 = vunpack.c.l.b16 %v1649
    %v2838 = vunpack.c.h.b16 %v1649
    %v2839 = vunpack.c.l.b16 %v1650
    %v2840 = vunpack.c.h.b16 %v1650
    %v2841 = vunpack.c.l.b16 %v1651
    %v2842 = vunpack.c.h.b16 %v1651
    %v2843 = vunpack.c.l.b16 %v1652
    %v2844 = vunpack.c.h.b16 %v1652
    %v2845 = vunpack.c.l.b16 %v1653
    %v2846 = vunpack.c.h.b16 %v1653
    %v2847 = vunpack.c.l.b16 %v1654
    %v2848 = vunpack.c.h.b16 %v1654
    %v2849 = vunpack.c.l.b16 %v1655
    %v2850 = vunpack.c.h.b16 %v1655
    %v2851 = vunpack.c.l.b16 %v1656
    %v2852 = vunpack.c.h.b16 %v1656
    %v2853 = vunpack.c.l.b16 %v1657
    %v2854 = vunpack.c.h.b16 %v1657
    %v2855 = vunpack.c.l.b16 %v1658
    %v2856 = vunpack.c.h.b16 %v1658
    %v2857 = vunpack.c.l.b16 %v1659
    %v2858 = vunpack.c.h.b16 %v1659
    %v2859 = vunpack.c.l.b16 %v1660
    %v2860 = vunpack.c.h.b16 %v1660
    %v2861 = vunpack.c.l.b16 %v1661
    %v2862 = vunpack.c.h.b16 %v1661
    %v2863 = vunpack.c.l.b16 %v1662
    %v2864 = vunpack.c.h.b16 %v1662
    %v2865 = vunpack.c.l.b16 %v1663
    %v2866 = vunpack.c.h.b16 %v1663
    %v2867 = vunpack.c.l.b16 %v1664
    %v2868 = vunpack.c.h.b16 %v1664
    %v2869 = vunpack.c.l.b16 %v1665
    %v2870 = vunpack.c.h.b16 %v1665
    %v2871 = vunpack.c.l.b16 %v1666
    %v2872 = vunpack.c.h.b16 %v1666
    %v2873 = vunpack.c.l.b16 %v1667
    %v2874 = vunpack.c.h.b16 %v1667
    %v2875 = vunpack.c.l.b16 %v1668
    %v2876 = vunpack.c.h.b16 %v1668
    %v2877 = vunpack.c.l.b16 %v1669
    %v2878 = vunpack.c.h.b16 %v1669
    %v2879 = vunpack.c.l.b16 %v1670
    %v2880 = vunpack.c.h.b16 %v1670
    %v2881 = vunpack.c.l.b16 %v1671
    %v2882 = vunpack.c.h.b16 %v1671
    %v2883 = vunpack.c.l.b16 %v1672
    %v2884 = vunpack.c.h.b16 %v1672
    %v2885 = vunpack.c.l.b16 %v1673
    %v2886 = vunpack.c.h.b16 %v1673
    %v2887 = vunpack.c.l.b16 %v1674
    %v2888 = vunpack.c.h.b16 %v1674
    %v2889 = vunpack.c.l.b16 %v1675
    %v2890 = vunpack.c.h.b16 %v1675
    %v2891 = vunpack.c.l.b16 %v1676
    %v2892 = vunpack.c.h.b16 %v1676
    %v2893 = vunpack.c.l.b16 %v1677
    %v2894 = vunpack.c.h.b16 %v1677
    %v2895 = vunpack.c.l.b16 %v1678
    %v2896 = vunpack.c.h.b16 %v1678
    %v2897 = vunpack.c.l.b16 %v1679
    %v2898 = vunpack.c.h.b16 %v1679
    %v2899 = vunpack.c.l.b16 %v1680
    %v2900 = vunpack.c.h.b16 %v1680
    %v2901 = vunpack.c.l.b16 %v1681
    %v2902 = vunpack.c.h.b16 %v1681
    %v2903 = vunpack.c.l.b16 %v1682
    %v2904 = vunpack.c.h.b16 %v1682
    %v2905 = vunpack.c.l.b16 %v1683
    %v2906 = vunpack.c.h.b16 %v1683
    %v2907 = vunpack.c.l.b16 %v1684
    %v2908 = vunpack.c.h.b16 %v1684
    %v2909 = vunpack.c.l.b16 %v1685
    %v2910 = vunpack.c.h.b16 %v1685
    %v2911 = vunpack.c.l.b16 %v1686
    %v2912 = vunpack.c.h.b16 %v1686
    %v2913 = vunpack.c.l.b16 %v1687
    %v2914 = vunpack.c.h.b16 %v1687
    %v2915 = vunpack.c.l.b16 %v1688
    %v2916 = vunpack.c.h.b16 %v1688
    %v2917 = vunpack.c.l.b16 %v1689
    %v2918 = vunpack.c.h.b16 %v1689
    %v2919 = vunpack.c.l.b16 %v1690
    %v2920 = vunpack.c.h.b16 %v1690
    %v2921 = vunpack.c.l.b16 %v1691
    %v2922 = vunpack.c.h.b16 %v1691
    %v2923 = vunpack.c.l.b16 %v1692
    %v2924 = vunpack.c.h.b16 %v1692
    %v2925 = vunpack.c.l.b16 %v1693
    %v2926 = vunpack.c.h.b16 %v1693
    %v2927 = vunpack.c.l.b16 %v1694
    %v2928 = vunpack.c.h.b16 %v1694
    %v2929 = vunpack.c.l.b16 %v1695
    %v2930 = vunpack.c.h.b16 %v1695
    %v2931 = vunpack.c.l.b16 %v1696
    %v2932 = vunpack.c.h.b16 %v1696
    %v2933 = vunpack.c.l.b16 %v1697
    %v2934 = vunpack.c.h.b16 %v1697
    %v2935 = vunpack.c.l.b16 %v1698
    %v2936 = vunpack.c.h.b16 %v1698
    %v2937 = vunpack.c.l.b16 %v1699
    %v2938 = vunpack.c.h.b16 %v1699
    %v2939 = vunpack.c.l.b16 %v1700
    %v2940 = vunpack.c.h.b16 %v1700
    %v2941 = vunpack.c.l.b16 %v1701
    %v2942 = vunpack.c.h.b16 %v1701
    %v2943 = vunpack.c.l.b16 %v1702
    %v2944 = vunpack.c.h.b16 %v1702
    %v2945 = vunpack.c.l.b16 %v1703
    %v2946 = vunpack.c.h.b16 %v1703
    %v2947 = vunpack.c.l.b16 %v1704
    %v2948 = vunpack.c.h.b16 %v1704
    %v2949 = vunpack.c.l.b16 %v1705
    %v2950 = vunpack.c.h.b16 %v1705
    %v2951 = vunpack.c.l.b16 %v1706
    %v2952 = vunpack.c.h.b16 %v1706
    %v2953 = vunpack.c.l.b16 %v1707
    %v2954 = vunpack.c.h.b16 %v1707
    %v2955 = vunpack.c.l.b16 %v1708
    %v2956 = vunpack.c.h.b16 %v1708
    %v2957 = vunpack.c.l.b16 %v1709
    %v2958 = vunpack.c.h.b16 %v1709
    %v2959 = vunpack.c.l.b16 %v1710
    %v2960 = vunpack.c.h.b16 %v1710
    %v2961 = vunpack.c.l.b16 %v1711
    %v2962 = vunpack.c.h.b16 %v1711
    %v2963 = vunpack.c.l.b16 %v1712
    %v2964 = vunpack.c.h.b16 %v1712
    %v2965 = vunpack.c.l.b16 %v1713
    %v2966 = vunpack.c.h.b16 %v1713
    %v2967 = vunpack.c.l.b16 %v1714
    %v2968 = vunpack.c.h.b16 %v1714
    %v2969 = vunpack.c.l.b16 %v1715
    %v2970 = vunpack.c.h.b16 %v1715
    %v2971 = vunpack.c.l.b16 %v1716
    %v2972 = vunpack.c.h.b16 %v1716
    %v2973 = vunpack.c.l.b16 %v1717
    %v2974 = vunpack.c.h.b16 %v1717
    %v2975 = vunpack.c.l.b16 %v1718
    %v2976 = vunpack.c.h.b16 %v1718
    %v2977 = vunpack.c.l.b16 %v1719
    %v2978 = vunpack.c.h.b16 %v1719
    %v2979 = vunpack.c.l.b16 %v1720
    %v2980 = vunpack.c.h.b16 %v1720
    %v2981 = vunpack.c.l.b16 %v1721
    %v2982 = vunpack.c.h.b16 %v1721
    %v2983 = vunpack.c.l.b16 %v1722
    %v2984 = vunpack.c.h.b16 %v1722
    %v2985 = vunpack.c.l.b16 %v1723
    %v2986 = vunpack.c.h.b16 %v1723
    %v2987 = vunpack.c.l.b16 %v1724
    %v2988 = vunpack.c.h.b16 %v1724
    %v2989 = vunpack.c.l.b16 %v1725
    %v2990 = vunpack.c.h.b16 %v1725
    %v2991 = vunpack.c.l.b16 %v1726
    %v2992 = vunpack.c.h.b16 %v1726
    %v2993 = vunpack.c.l.b16 %v1727
    %v2994 = vunpack.c.h.b16 %v1727
    %v2995 = vunpack.c.l.b16 %v1728
    %v2996 = vunpack.c.h.b16 %v1728
    %v2997 = vunpack.c.l.b16 %v1729
    %v2998 = vunpack.c.h.b16 %v1729
    %v2999 = vunpack.c.l.b16 %v1730
    %v3000 = vunpack.c.h.b16 %v1730
    %v3001 = vunpack.c.l.b16 %v1731
    %v3002 = vunpack.c.h.b16 %v1731
    %v3003 = vunpack.c.l.b16 %v1732
    %v3004 = vunpack.c.h.b16 %v1732
    %v3005 = vunpack.c.l.b16 %v1733
    %v3006 = vunpack.c.h.b16 %v1733
    %v3007 = vunpack.c.l.b16 %v1734
    %v3008 = vunpack.c.h.b16 %v1734
    %v3009 = vunpack.c.l.b16 %v1735
    %v3010 = vunpack.c.h.b16 %v1735
    %v3011 = vunpack.c.l.b16 %v1736
    %v3012 = vunpack.c.h.b16 %v1736
    %v3013 = vunpack.c.l.b16 %v1737
    %v3014 = vunpack.c.h.b16 %v1737
    %v3015 = vunpack.c.l.b16 %v1738
    %v3016 = vunpack.c.h.b16 %v1738
    %v3017 = vunpack.c.l.b16 %v1739
    %v3018 = vunpack.c.h.b16 %v1739
    %v3019 = vunpack.c.l.b16 %v1740
    %v3020 = vunpack.c.h.b16 %v1740
    %v3021 = vunpack.c.l.b16 %v1741
    %v3022 = vunpack.c.h.b16 %v1741
    %v3023 = vunpack.c.l.b16 %v1742
    %v3024 = vunpack.c.h.b16 %v1742
    %v3025 = vunpack.c.l.b16 %v1743
    %v3026 = vunpack.c.h.b16 %v1743
    %v3027 = vunpack.c.l.b16 %v1744
    %v3028 = vunpack.c.h.b16 %v1744
    %v3029 = vunpack.c.l.b16 %v1745
    %v3030 = vunpack.c.h.b16 %v1745
    %v3031 = vunpack.c.l.b16 %v1746
    %v3032 = vunpack.c.h.b16 %v1746
    %v3033 = vunpack.c.l.b16 %v1747
    %v3034 = vunpack.c.h.b16 %v1747
    %v3035 = vunpack.c.l.b16 %v1748
    %v3036 = vunpack.c.h.b16 %v1748
    %v3037 = vunpack.c.l.b16 %v1749
    %v3038 = vunpack.c.h.b16 %v1749
    %v3039 = vunpack.c.l.b16 %v1750
    %v3040 = vunpack.c.h.b16 %v1750
    %v3041 = vunpack.c.l.b16 %v1751
    %v3042 = vunpack.c.h.b16 %v1751
    %v3043 = vunpack.c.l.b16 %v1752
    %v3044 = vunpack.c.h.b16 %v1752
    %v3045 = vunpack.c.l.b16 %v1753
    %v3046 = vunpack.c.h.b16 %v1753
    %v3047 = vunpack.c.l.b16 %v1754
    %v3048 = vunpack.c.h.b16 %v1754
    %v3049 = vunpack.c.l.b16 %v1755
    %v3050 = vunpack.c.h.b16 %v1755
    %v3051 = vunpack.c.l.b16 %v1756
    %v3052 = vunpack.c.h.b16 %v1756
    %v3053 = vunpack.c.l.b16 %v1757
    %v3054 = vunpack.c.h.b16 %v1757
    %v3055 = vunpack.c.l.b16 %v1758
    %v3056 = vunpack.c.h.b16 %v1758
    %v3057 = vunpack.c.l.b16 %v1759
    %v3058 = vunpack.c.h.b16 %v1759
    %v3059 = vunpack.c.l.b16 %v1760
    %v3060 = vunpack.c.h.b16 %v1760
    %v3061 = vunpack.c.l.b16 %v1761
    %v3062 = vunpack.c.h.b16 %v1761
    %v3063 = vunpack.c.l.b16 %v1762
    %v3064 = vunpack.c.h.b16 %v1762
    %v3065 = vunpack.c.l.b16 %v1763
    %v3066 = vunpack.c.h.b16 %v1763
    %v3067 = vunpack.c.l.b16 %v1764
    %v3068 = vunpack.c.h.b16 %v1764
    %v3069 = vunpack.c.l.b16 %v1765
    %v3070 = vunpack.c.h.b16 %v1765
    %v3071 = vunpack.c.l.b16 %v1766
    %v3072 = vunpack.c.h.b16 %v1766
    %v3073 = vunpack.c.l.b16 %v1767
    %v3074 = vunpack.c.h.b16 %v1767
    %v3075 = vunpack.c.l.b16 %v1768
    %v3076 = vunpack.c.h.b16 %v1768
    %v3077 = vunpack.c.l.b16 %v1769
    %v3078 = vunpack.c.h.b16 %v1769
    %v3079 = vunpack.c.l.b16 %v1770
    %v3080 = vunpack.c.h.b16 %v1770
    %v3081 = vunpack.c.l.b16 %v1771
    %v3082 = vunpack.c.h.b16 %v1771
    %v3083 = vunpack.c.l.b16 %v1772
    %v3084 = vunpack.c.h.b16 %v1772
    %v3085 = vunpack.c.l.b16 %v1773
    %v3086 = vunpack.c.h.b16 %v1773
    %v3087 = vunpack.c.l.b16 %v1774
    %v3088 = vunpack.c.h.b16 %v1774
    %v3089 = vunpack.c.l.b16 %v1775
    %v3090 = vunpack.c.h.b16 %v1775
    %v3091 = vunpack.c.l.b16 %v1776
    %v3092 = vunpack.c.h.b16 %v1776
    %v3093 = vunpack.c.l.b16 %v1777
    %v3094 = vunpack.c.h.b16 %v1777
    %v3095 = vunpack.c.l.b16 %v1778
    %v3096 = vunpack.c.h.b16 %v1778
    %v3097 = vunpack.c.l.b16 %v1779
    %v3098 = vunpack.c.h.b16 %v1779
    %v3099 = vunpack.c.l.b16 %v1780
    %v3100 = vunpack.c.h.b16 %v1780
    %v3101 = vunpack.c.l.b16 %v1781
    %v3102 = vunpack.c.h.b16 %v1781
    %v3103 = vunpack.c.l.b16 %v1782
    %v3104 = vunpack.c.h.b16 %v1782
    %v3105 = vunpack.c.l.b16 %v1783
    %v3106 = vunpack.c.h.b16 %v1783
    %v3107 = vunpack.c.l.b16 %v1784
    %v3108 = vunpack.c.h.b16 %v1784
    %v3109 = vunpack.c.l.b16 %v1785
    %v3110 = vunpack.c.h.b16 %v1785
    %v3111 = vunpack.c.l.b16 %v1786
    %v3112 = vunpack.c.h.b16 %v1786
    %v3113 = vunpack.c.l.b16 %v1787
    %v3114 = vunpack.c.h.b16 %v1787
    %v3115 = vunpack.c.l.b16 %v1788
    %v3116 = vunpack.c.h.b16 %v1788
    %v3117 = vunpack.c.l.b16 %v1789
    %v3118 = vunpack.c.h.b16 %v1789
    %v3119 = vunpack.c.l.b16 %v1790
    %v3120 = vunpack.c.h.b16 %v1790
    %v3121 = vunpack.c.l.b16 %v1791
    %v3122 = vunpack.c.h.b16 %v1791
    %v3123 = vunpack.c.l.b16 %v1792
    %v3124 = vunpack.c.h.b16 %v1792
    %v3125 = vunpack.c.l.b16 %v1793
    %v3126 = vunpack.c.h.b16 %v1793
    %v3127 = vunpack.c.l.b16 %v1794
    %v3128 = vunpack.c.h.b16 %v1794
    %v3129 = vunpack.c.l.b16 %v1795
    %v3130 = vunpack.c.h.b16 %v1795
    %v3131 = vunpack.c.l.b16 %v1796
    %v3132 = vunpack.c.h.b16 %v1796
    %v3133 = vunpack.c.l.b16 %v1797
    %v3134 = vunpack.c.h.b16 %v1797
    %v3135 = vunpack.c.l.b16 %v1798
    %v3136 = vunpack.c.h.b16 %v1798
    %v3137 = vunpack.c.l.b16 %v1799
    %v3138 = vunpack.c.h.b16 %v1799
    %v3139 = vunpack.c.l.b16 %v1800
    %v3140 = vunpack.c.h.b16 %v1800
    %v3141 = vunpack.c.l.b16 %v1801
    %v3142 = vunpack.c.h.b16 %v1801
    %v3143 = vunpack.c.l.b16 %v1802
    %v3144 = vunpack.c.h.b16 %v1802
    %v3145 = vunpack.c.l.b16 %v1803
    %v3146 = vunpack.c.h.b16 %v1803
    %v3147 = vunpack.c.l.b16 %v1804
    %v3148 = vunpack.c.h.b16 %v1804
    %v3149 = vunpack.c.l.b16 %v1805
    %v3150 = vunpack.c.h.b16 %v1805
    %v3151 = vunpack.c.l.b16 %v1806
    %v3152 = vunpack.c.h.b16 %v1806
    %v3153 = vunpack.c.l.b16 %v1807
    %v3154 = vunpack.c.h.b16 %v1807
    %v3155 = vunpack.c.l.b16 %v1808
    %v3156 = vunpack.c.h.b16 %v1808
    %v3157 = vunpack.c.l.b16 %v1809
    %v3158 = vunpack.c.h.b16 %v1809
    %v3159 = vunpack.c.l.b16 %v1810
    %v3160 = vunpack.c.h.b16 %v1810
    %v3161 = vunpack.c.l.b16 %v1811
    %v3162 = vunpack.c.h.b16 %v1811
    %v3163 = vunpack.c.l.b16 %v1812
    %v3164 = vunpack.c.h.b16 %v1812
    %v3165 = vunpack.c.l.b16 %v1813
    %v3166 = vunpack.c.h.b16 %v1813
    %v3167 = vunpack.c.l.b16 %v1814
    %v3168 = vunpack.c.h.b16 %v1814
    %v3169 = vunpack.c.l.b16 %v1815
    %v3170 = vunpack.c.h.b16 %v1815
    %v3171 = vunpack.c.l.b16 %v1816
    %v3172 = vunpack.c.h.b16 %v1816
    %v3173 = vunpack.c.l.b16 %v1817
    %v3174 = vunpack.c.h.b16 %v1817
    %v3175 = vunpack.c.l.b16 %v1818
    %v3176 = vunpack.c.h.b16 %v1818
    %v3177 = vunpack.c.l.b16 %v1819
    %v3178 = vunpack.c.h.b16 %v1819
    %v3179 = vunpack.c.l.b16 %v1820
    %v3180 = vunpack.c.h.b16 %v1820
    %v3181 = vunpack.c.l.b16 %v1821
    %v3182 = vunpack.c.h.b16 %v1821
    %v3183 = vunpack.c.l.b16 %v1822
    %v3184 = vunpack.c.h.b16 %v1822
    %v3185 = vunpack.c.l.b16 %v1823
    %v3186 = vunpack.c.h.b16 %v1823
    %v3187 = vunpack.c.l.b16 %v1824
    %v3188 = vunpack.c.h.b16 %v1824
    %v3189 = vunpack.c.l.b16 %v1825
    %v3190 = vunpack.c.h.b16 %v1825
    %v3191 = vunpack.c.l.b16 %v1826
    %v3192 = vunpack.c.h.b16 %v1826
    %v3193 = vunpack.c.l.b16 %v1827
    %v3194 = vunpack.c.h.b16 %v1827
    %v3195 = vunpack.c.l.b16 %v1828
    %v3196 = vunpack.c.h.b16 %v1828
    %v3197 = vunpack.c.l.b16 %v1829
    %v3198 = vunpack.c.h.b16 %v1829
    %v3199 = vunpack.c.l.b16 %v1830
    %v3200 = vunpack.c.h.b16 %v1830
    %v3201 = vunpack.c.l.b16 %v1831
    %v3202 = vunpack.c.h.b16 %v1831
    %v3203 = vunpack.c.l.b16 %v1832
    %v3204 = vunpack.c.h.b16 %v1832
    %v3205 = vunpack.c.l.b16 %v1833
    %v3206 = vunpack.c.h.b16 %v1833
    %v3207 = vunpack.c.l.b16 %v1834
    %v3208 = vunpack.c.h.b16 %v1834
    %v3209 = vunpack.c.l.b16 %v1835
    %v3210 = vunpack.c.h.b16 %v1835
    %v3211 = vunpack.c.l.b16 %v1836
    %v3212 = vunpack.c.h.b16 %v1836
    %v3213 = vunpack.c.l.b16 %v1837
    %v3214 = vunpack.c.h.b16 %v1837
    %v3215 = vunpack.c.l.b16 %v1838
    %v3216 = vunpack.c.h.b16 %v1838
    %v3217 = vunpack.c.l.b16 %v1839
    %v3218 = vunpack.c.h.b16 %v1839
    %v3219 = vunpack.c.l.b16 %v1840
    %v3220 = vunpack.c.h.b16 %v1840
    %v3221 = vunpack.c.l.b16 %v1841
    %v3222 = vunpack.c.h.b16 %v1841
    %v3223 = vunpack.c.l.b16 %v1842
    %v3224 = vunpack.c.h.b16 %v1842
    %v3225 = vunpack.c.l.b16 %v1843
    %v3226 = vunpack.c.h.b16 %v1843
    %v3227 = vunpack.c.l.b16 %v1844
    %v3228 = vunpack.c.h.b16 %v1844
    %v3229 = vunpack.c.l.b16 %v1845
    %v3230 = vunpack.c.h.b16 %v1845
    %v3231 = vunpack.c.l.b16 %v1846
    %v3232 = vunpack.c.h.b16 %v1846
    %v3233 = vunpack.c.l.b16 %v1847
    %v3234 = vunpack.c.h.b16 %v1847
    %v3235 = vunpack.c.l.b16 %v1848
    %v3236 = vunpack.c.h.b16 %v1848
    %v3237 = vunpack.c.l.b16 %v1849
    %v3238 = vunpack.c.h.b16 %v1849
    %v3239 = vunpack.c.l.b16 %v1850
    %v3240 = vunpack.c.h.b16 %v1850
    %v3241 = vunpack.c.l.b16 %v1851
    %v3242 = vunpack.c.h.b16 %v1851
    %v3243 = vunpack.c.l.b16 %v1852
    %v3244 = vunpack.c.h.b16 %v1852
    %v3245 = vunpack.c.l.b16 %v1853
    %v3246 = vunpack.c.h.b16 %v1853
    %v3247 = vunpack.c.l.b16 %v1854
    %v3248 = vunpack.c.h.b16 %v1854
    %v3249 = vunpack.c.l.b16 %v1855
    %v3250 = vunpack.c.h.b16 %v1855
    %v3251 = vunpack.c.l.b16 %v1856
    %v3252 = vunpack.c.h.b16 %v1856
    %v3253 = vunpack.c.l.b16 %v1857
    %v3254 = vunpack.c.h.b16 %v1857
    %v3255 = vunpack.c.l.b16 %v1858
    %v3256 = vunpack.c.h.b16 %v1858
    %v3257 = vunpack.c.l.b16 %v1859
    %v3258 = vunpack.c.h.b16 %v1859
    %v3259 = vunpack.c.l.b16 %v1860
    %v3260 = vunpack.c.h.b16 %v1860
    %v3261 = vunpack.c.l.b16 %v1861
    %v3262 = vunpack.c.h.b16 %v1861
    %v3263 = vunpack.c.l.b16 %v1862
    %v3264 = vunpack.c.h.b16 %v1862
    %v3265 = vunpack.c.l.b16 %v1863
    %v3266 = vunpack.c.h.b16 %v1863
    %v3267 = vunpack.c.l.b16 %v1864
    %v3268 = vunpack.c.h.b16 %v1864
    %v3269 = vunpack.c.l.b16 %v1865
    %v3270 = vunpack.c.h.b16 %v1865
    %v3271 = vunpack.c.l.b16 %v1866
    %v3272 = vunpack.c.h.b16 %v1866
    %v3273 = vunpack.c.l.b16 %v1867
    %v3274 = vunpack.c.h.b16 %v1867
    %v3275 = vunpack.c.l.b16 %v1868
    %v3276 = vunpack.c.h.b16 %v1868
    %v3277 = vunpack.c.l.b16 %v1869
    %v3278 = vunpack.c.h.b16 %v1869
    %v3279 = vunpack.c.l.b16 %v1870
    %v3280 = vunpack.c.h.b16 %v1870
    %v3281 = vunpack.c.l.b16 %v1871
    %v3282 = vunpack.c.h.b16 %v1871
    %v3283 = vunpack.c.l.b16 %v1872
    %v3284 = vunpack.c.h.b16 %v1872
    %v3285 = vunpack.c.l.b16 %v1873
    %v3286 = vunpack.c.h.b16 %v1873
    %v3287 = vunpack.c.l.b16 %v1874
    %v3288 = vunpack.c.h.b16 %v1874
    %v3289 = vunpack.c.l.b16 %v1875
    %v3290 = vunpack.c.h.b16 %v1875
    %v3291 = vunpack.c.l.b16 %v1876
    %v3292 = vunpack.c.h.b16 %v1876
    %v3293 = vunpack.c.l.b16 %v1877
    %v3294 = vunpack.c.h.b16 %v1877
    %v3295 = vunpack.c.l.b16 %v1878
    %v3296 = vunpack.c.h.b16 %v1878
    %v3297 = vunpack.c.l.b16 %v1879
    %v3298 = vunpack.c.h.b16 %v1879
    %v3299 = vunpack.c.l.b16 %v1880
    %v3300 = vunpack.c.h.b16 %v1880
    %v3301 = vunpack.c.l.b16 %v1881
    %v3302 = vunpack.c.h.b16 %v1881
    %v3303 = vunpack.c.l.b16 %v1882
    %v3304 = vunpack.c.h.b16 %v1882
    %v3305 = vunpack.c.l.b16 %v1883
    %v3306 = vunpack.c.h.b16 %v1883
    %v3307 = vunpack.c.l.b16 %v1884
    %v3308 = vunpack.c.h.b16 %v1884
    %v3309 = vunpack.c.l.b16 %v1885
    %v3310 = vunpack.c.h.b16 %v1885
    %v3311 = vunpack.c.l.b16 %v1886
    %v3312 = vunpack.c.h.b16 %v1886
    %v3313 = vunpack.c.l.b16 %v1887
    %v3314 = vunpack.c.h.b16 %v1887
    %v3315 = vunpack.c.l.b16 %v1888
    %v3316 = vunpack.c.h.b16 %v1888
    %v3317 = vunpack.c.l.b16 %v1889
    %v3318 = vunpack.c.h.b16 %v1889
    %v3319 = vunpack.c.l.b16 %v1890
    %v3320 = vunpack.c.h.b16 %v1890
    %v3321 = vunpack.c.l.b16 %v1891
    %v3322 = vunpack.c.h.b16 %v1891
    %v3323 = vunpack.c.l.b16 %v1892
    %v3324 = vunpack.c.h.b16 %v1892
    %v3325 = vunpack.c.l.b16 %v1893
    %v3326 = vunpack.c.h.b16 %v1893
    %v3327 = vunpack.c.l.b16 %v1894
    %v3328 = vunpack.c.h.b16 %v1894
    %v3329 = vunpack.c.l.b16 %v1895
    %v3330 = vunpack.c.h.b16 %v1895
    %v3331 = vunpack.c.l.b16 %v1896
    %v3332 = vunpack.c.h.b16 %v1896
    %v3333 = vunpack.c.l.b16 %v1897
    %v3334 = vunpack.c.h.b16 %v1897
    %v3335 = vunpack.c.l.b16 %v1898
    %v3336 = vunpack.c.h.b16 %v1898
    %v3337 = vunpack.c.l.b16 %v1899
    %v3338 = vunpack.c.h.b16 %v1899
    %v3339 = vunpack.c.l.b16 %v1900
    %v3340 = vunpack.c.h.b16 %v1900
    %v3341 = vunpack.c.l.b16 %v1901
    %v3342 = vunpack.c.h.b16 %v1901
    %v3343 = vunpack.c.l.b16 %v1902
    %v3344 = vunpack.c.h.b16 %v1902
    %v3345 = vunpack.c.l.b16 %v1903
    %v3346 = vunpack.c.h.b16 %v1903
    %v3347 = vunpack.c.l.b16 %v1904
    %v3348 = vunpack.c.h.b16 %v1904
    %v3349 = vunpack.c.l.b16 %v1905
    %v3350 = vunpack.c.h.b16 %v1905
    %v3351 = vunpack.c.l.b16 %v1906
    %v3352 = vunpack.c.h.b16 %v1906
    %v3353 = vunpack.c.l.b16 %v1907
    %v3354 = vunpack.c.h.b16 %v1907
    %v3355 = vunpack.c.l.b16 %v1908
    %v3356 = vunpack.c.h.b16 %v1908
    %v3357 = vunpack.c.l.b16 %v1909
    %v3358 = vunpack.c.h.b16 %v1909
    %v3359 = vunpack.c.l.b16 %v1910
    %v3360 = vunpack.c.h.b16 %v1910
    %v3361 = vunpack.c.l.b16 %v1911
    %v3362 = vunpack.c.h.b16 %v1911
    %v3363 = vunpack.c.l.b16 %v1912
    %v3364 = vunpack.c.h.b16 %v1912
    %v3365 = vunpack.c.l.b16 %v1913
    %v3366 = vunpack.c.h.b16 %v1913
    %v3367 = vunpack.c.l.b16 %v1914
    %v3368 = vunpack.c.h.b16 %v1914
    %v3369 = vunpack.c.l.b16 %v1915
    %v3370 = vunpack.c.h.b16 %v1915
    %v3371 = vunpack.c.l.b16 %v1916
    %v3372 = vunpack.c.h.b16 %v1916
    %v3373 = vunpack.c.l.b16 %v1917
    %v3374 = vunpack.c.h.b16 %v1917
    %v3375 = vunpack.c.l.b16 %v1918
    %v3376 = vunpack.c.h.b16 %v1918
    %v3377 = vunpack.c.l.b16 %v1919
    %v3378 = vunpack.c.h.b16 %v1919
    %v3379 = vunpack.c.l.b16 %v1920
    %v3380 = vunpack.c.h.b16 %v1920
    %v3381 = vunpack.c.l.b16 %v1921
    %v3382 = vunpack.c.h.b16 %v1921
    %v3383 = vunpack.c.l.b16 %v1922
    %v3384 = vunpack.c.h.b16 %v1922
    %v3385 = vunpack.c.l.b16 %v1923
    %v3386 = vunpack.c.h.b16 %v1923
    %v3387 = vunpack.c.l.b16 %v1924
    %v3388 = vunpack.c.h.b16 %v1924
    %v3389 = vunpack.c.l.b16 %v1925
    %v3390 = vunpack.c.h.b16 %v1925
    %v3391 = vunpack.c.l.b16 %v1926
    %v3392 = vunpack.c.h.b16 %v1926
    %v3393 = vunpack.c.l.b16 %v1927
    %v3394 = vunpack.c.h.b16 %v1927
    %v3395 = vunpack.c.l.b16 %v1928
    %v3396 = vunpack.c.h.b16 %v1928
    %v3397 = vunpack.c.l.b16 %v1929
    %v3398 = vunpack.c.h.b16 %v1929
    %v3399 = vunpack.c.l.b16 %v1930
    %v3400 = vunpack.c.h.b16 %v1930
    %v3401 = vunpack.c.l.b16 %v1931
    %v3402 = vunpack.c.h.b16 %v1931
    %v3403 = vunpack.c.l.b16 %v1932
    %v3404 = vunpack.c.h.b16 %v1932
    %v3405 = vunpack.c.l.b16 %v1933
    %v3406 = vunpack.c.h.b16 %v1933
    %v3407 = vunpack.c.l.b16 %v1934
    %v3408 = vunpack.c.h.b16 %v1934
    %v3409 = vunpack.c.l.b16 %v1935
    %v3410 = vunpack.c.h.b16 %v1935
    %v3411 = vunpack.c.l.b16 %v1936
    %v3412 = vunpack.c.h.b16 %v1936
    %v3413 = vunpack.c.l.b16 %v1937
    %v3414 = vunpack.c.h.b16 %v1937
    %v3415 = vunpack.c.l.b16 %v1938
    %v3416 = vunpack.c.h.b16 %v1938
    %v3417 = vunpack.c.l.b16 %v1939
    %v3418 = vunpack.c.h.b16 %v1939
    %v3419 = vunpack.c.l.b16 %v1940
    %v3420 = vunpack.c.h.b16 %v1940
    %v3421 = vunpack.c.l.b16 %v1941
    %v3422 = vunpack.c.h.b16 %v1941
    %v3423 = vunpack.c.l.b16 %v1942
    %v3424 = vunpack.c.h.b16 %v1942
    %v3425 = vunpack.c.l.b16 %v1943
    %v3426 = vunpack.c.h.b16 %v1943
    %v3427 = vunpack.c.l.b16 %v1944
    %v3428 = vunpack.c.h.b16 %v1944
    %v3429 = vunpack.c.l.b16 %v1945
    %v3430 = vunpack.c.h.b16 %v1945
    %v3431 = vunpack.c.l.b16 %v1946
    %v3432 = vunpack.c.h.b16 %v1946
    %v3433 = vunpack.c.l.b16 %v1947
    %v3434 = vunpack.c.h.b16 %v1947
    %v3435 = vunpack.c.l.b16 %v1948
    %v3436 = vunpack.c.h.b16 %v1948
    %v3437 = vunpack.c.l.b16 %v1949
    %v3438 = vunpack.c.h.b16 %v1949
    %v3439 = vunpack.c.l.b16 %v1950
    %v3440 = vunpack.c.h.b16 %v1950
    %v3441 = vunpack.c.l.b16 %v1951
    %v3442 = vunpack.c.h.b16 %v1951
    %v3443 = vunpack.c.l.b16 %v1952
    %v3444 = vunpack.c.h.b16 %v1952
    %v3445 = vunpack.c.l.b16 %v1953
    %v3446 = vunpack.c.h.b16 %v1953
    %v3447 = vunpack.c.l.b16 %v1954
    %v3448 = vunpack.c.h.b16 %v1954
    %v3449 = vunpack.c.l.b16 %v1955
    %v3450 = vunpack.c.h.b16 %v1955
    %v3451 = vunpack.c.l.b16 %v1956
    %v3452 = vunpack.c.h.b16 %v1956
    %v3453 = vunpack.c.l.b16 %v1957
    %v3454 = vunpack.c.h.b16 %v1957
    %v3455 = vunpack.c.l.b16 %v1958
    %v3456 = vunpack.c.h.b16 %v1958
    %v3457 = vunpack.c.l.b16 %v1959
    %v3458 = vunpack.c.h.b16 %v1959
    %v3459 = vunpack.c.l.b16 %v1960
    %v3460 = vunpack.c.h.b16 %v1960
    %v3461 = vunpack.c.l.b16 %v1961
    %v3462 = vunpack.c.h.b16 %v1961
    %v3463 = vunpack.c.l.b16 %v1962
    %v3464 = vunpack.c.h.b16 %v1962
    %v3465 = vunpack.c.l.b16 %v1963
    %v3466 = vunpack.c.h.b16 %v1963
    %v3467 = vunpack.c.l.b16 %v1964
    %v3468 = vunpack.c.h.b16 %v1964
    %v3469 = vunpack.c.l.b16 %v1965
    %v3470 = vunpack.c.h.b16 %v1965
    %v3471 = vunpack.c.l.b16 %v1966
    %v3472 = vunpack.c.h.b16 %v1966
    %v3473 = vunpack.c.l.b16 %v1967
    %v3474 = vunpack.c.h.b16 %v1967
    %v3475 = vunpack.c.l.b16 %v1968
    %v3476 = vunpack.c.h.b16 %v1968
    %v3477 = vunpack.c.l.b16 %v1969
    %v3478 = vunpack.c.h.b16 %v1969
    %v3479 = vunpack.c.l.b16 %v1970
    %v3480 = vunpack.c.h.b16 %v1970
    %v3481 = vunpack.c.l.b16 %v1971
    %v3482 = vunpack.c.h.b16 %v1971
    %v3483 = vunpack.c.l.b16 %v1972
    %v3484 = vunpack.c.h.b16 %v1972
    %v3485 = vunpack.c.l.b16 %v1973
    %v3486 = vunpack.c.h.b16 %v1973
    %v3487 = vunpack.c.l.b16 %v1974
    %v3488 = vunpack.c.h.b16 %v1974
    %v3489 = vunpack.c.l.b16 %v1975
    %v3490 = vunpack.c.h.b16 %v1975
    %v3491 = vunpack.c.l.b16 %v1976
    %v3492 = vunpack.c.h.b16 %v1976
    %v3493 = vunpack.c.l.b16 %v1977
    %v3494 = vunpack.c.h.b16 %v1977
    %v3495 = vunpack.c.l.b16 %v1978
    %v3496 = vunpack.c.h.b16 %v1978
    %v3497 = vunpack.c.l.b16 %v1979
    %v3498 = vunpack.c.h.b16 %v1979
    %v3499 = vunpack.c.l.b16 %v1980
    %v3500 = vunpack.c.h.b16 %v1980
    %v3501 = vunpack.c.l.b16 %v1981
    %v3502 = vunpack.c.h.b16 %v1981
    %v3503 = vunpack.c.l.b16 %v1982
    %v3504 = vunpack.c.h.b16 %v1982
    %v3505 = vunpack.c.l.b16 %v1983
    %v3506 = vunpack.c.h.b16 %v1983
    %v3507 = vunpack.c.l.b16 %v1984
    %v3508 = vunpack.c.h.b16 %v1984
    %v3509 = vunpack.c.l.b16 %v1985
    %v3510 = vunpack.c.h.b16 %v1985
    %v3511 = vunpack.c.l.b16 %v1986
    %v3512 = vunpack.c.h.b16 %v1986
    %v3513 = vunpack.c.l.b16 %v1987
    %v3514 = vunpack.c.h.b16 %v1987
    %v3515 = vunpack.c.l.b16 %v1988
    %v3516 = vunpack.c.h.b16 %v1988
    %v3517 = vunpack.c.l.b16 %v1989
    %v3518 = vunpack.c.h.b16 %v1989
    %v3519 = vunpack.c.l.b16 %v1990
    %v3520 = vunpack.c.h.b16 %v1990
    %v3521 = vunpack.c.l.b16 %v1991
    %v3522 = vunpack.c.h.b16 %v1991
    %v3523 = vunpack.c.l.b16 %v1992
    %v3524 = vunpack.c.h.b16 %v1992
    %v3525 = vunpack.c.l.b16 %v1993
    %v3526 = vunpack.c.h.b16 %v1993
    %v3527 = vunpack.c.l.b16 %v1994
    %v3528 = vunpack.c.h.b16 %v1994
    %v3529 = vunpack.c.l.b16 %v1995
    %v3530 = vunpack.c.h.b16 %v1995
    %v3531 = vunpack.c.l.b16 %v1996
    %v3532 = vunpack.c.h.b16 %v1996
    %v3533 = vunpack.c.l.b16 %v1997
    %v3534 = vunpack.c.h.b16 %v1997
    %v3535 = vunpack.c.l.b16 %v1998
    %v3536 = vunpack.c.h.b16 %v1998
    %v3537 = vunpack.c.l.b16 %v1999
    %v3538 = vunpack.c.h.b16 %v1999
    %v3539 = vunpack.c.l.b16 %v2000
    %v3540 = vunpack.c.h.b16 %v2000
    %v3541 = vunpack.c.l.b16 %v2001
    %v3542 = vunpack.c.h.b16 %v2001
    %v3543 = vunpack.c.l.b16 %v2002
    %v3544 = vunpack.c.h.b16 %v2002
    %v3545 = vunpack.c.l.b16 %v2003
    %v3546 = vunpack.c.h.b16 %v2003
    %v3547 = vunpack.c.l.b16 %v2004
    %v3548 = vunpack.c.h.b16 %v2004
    %v3549 = vunpack.c.l.b16 %v2005
    %v3550 = vunpack.c.h.b16 %v2005
    %v3551 = vunpack.c.l.b16 %v2006
    %v3552 = vunpack.c.h.b16 %v2006
    %v3553 = vunpack.c.l.b16 %v2007
    %v3554 = vunpack.c.h.b16 %v2007
    %v3555 = vunpack.c.l.b16 %v2008
    %v3556 = vunpack.c.h.b16 %v2008
    %v3557 = vunpack.c.l.b16 %v2009
    %v3558 = vunpack.c.h.b16 %v2009
    %v3559 = vunpack.c.l.b16 %v2010
    %v3560 = vunpack.c.h.b16 %v2010
    %v3561 = vunpack.c.l.b16 %v2011
    %v3562 = vunpack.c.h.b16 %v2011
    %v3563 = vunpack.c.l.b16 %v2012
    %v3564 = vunpack.c.h.b16 %v2012
    %v3565 = vunpack.c.l.b16 %v2013
    %v3566 = vunpack.c.h.b16 %v2013
    %v3567 = vunpack.c.l.b16 %v2014
    %v3568 = vunpack.c.h.b16 %v2014
    %v3569 = vunpack.c.l.b16 %v2015
    %v3570 = vunpack.c.h.b16 %v2015
    %v3571 = vunpack.c.l.b16 %v2016
    %v3572 = vunpack.c.h.b16 %v2016
    %v3573 = vunpack.c.l.b16 %v2017
    %v3574 = vunpack.c.h.b16 %v2017
    %v3575 = vunpack.c.l.b16 %v2018
    %v3576 = vunpack.c.h.b16 %v2018
    %v3577 = vunpack.c.l.b16 %v2019
    %v3578 = vunpack.c.h.b16 %v2019
    %v3579 = vunpack.c.l.b16 %v2020
    %v3580 = vunpack.c.h.b16 %v2020
    %v3581 = vunpack.c.l.b16 %v2021
    %v3582 = vunpack.c.h.b16 %v2021
    %v3583 = vunpack.c.l.b16 %v2022
    %v3584 = vunpack.c.h.b16 %v2022
    %v3585 = vunpack.c.l.b16 %v2023
    %v3586 = vunpack.c.h.b16 %v2023
    %v3587 = vunpack.c.l.b16 %v2024
    %v3588 = vunpack.c.h.b16 %v2024
    %v3589 = vunpack.c.l.b16 %v2025
    %v3590 = vunpack.c.h.b16 %v2025
    %v3591 = vunpack.c.l.b16 %v2026
    %v3592 = vunpack.c.h.b16 %v2026
    %v3593 = vunpack.c.l.b16 %v2027
    %v3594 = vunpack.c.h.b16 %v2027
    %v3595 = vunpack.c.l.b16 %v2028
    %v3596 = vunpack.c.h.b16 %v2028
    %v3597 = vunpack.c.l.b16 %v2029
    %v3598 = vunpack.c.h.b16 %v2029
    %v3599 = vunpack.c.l.b16 %v2030
    %v3600 = vunpack.c.h.b16 %v2030
    %v3601 = vunpack.c.l.b16 %v2031
    %v3602 = vunpack.c.h.b16 %v2031
    %v3603 = vunpack.c.l.b16 %v2032
    %v3604 = vunpack.c.h.b16 %v2032
    %v3605 = vunpack.c.l.b16 %v2033
    %v3606 = vunpack.c.h.b16 %v2033
    %v3607 = vunpack.c.l.b16 %v2034
    %v3608 = vunpack.c.h.b16 %v2034
    %v3609 = vunpack.c.l.b16 %v2035
    %v3610 = vunpack.c.h.b16 %v2035
    %v3611 = vunpack.c.l.b16 %v2036
    %v3612 = vunpack.c.h.b16 %v2036
    %v3613 = vunpack.c.l.b16 %v2037
    %v3614 = vunpack.c.h.b16 %v2037
    %v3615 = vunpack.c.l.b16 %v2038
    %v3616 = vunpack.c.h.b16 %v2038
    %v3617 = vpack.c.b16 %v2601, %v2593
    %v3618 = vpack.c.b16 %v2602, %v2594
    %v3619 = vpack.c.b16 %v2603, %v2595
    %v3620 = vpack.c.b16 %v2604, %v2596
    %v3621 = vpack.c.b16 %v2605, %v2597
    %v3622 = vpack.c.b16 %v2606, %v2598
    %v3623 = vpack.c.b16 %v2607, %v2599
    %v3624 = vpack.c.b16 %v2608, %v2600
    %v3625 = vpack.c.b16 %v2617, %v2609
    %v3626 = vpack.c.b16 %v2618, %v2610
    %v3627 = vpack.c.b16 %v2619, %v2611
    %v3628 = vpack.c.b16 %v2620, %v2612
    %v3629 = vpack.c.b16 %v2621, %v2613
    %v3630 = vpack.c.b16 %v2622, %v2614
    %v3631 = vpack.c.b16 %v2623, %v2615
    %v3632 = vpack.c.b16 %v2624, %v2616
    %v3633 = vpack.c.b16 %v2633, %v2625
    %v3634 = vpack.c.b16 %v2634, %v2626
    %v3635 = vpack.c.b16 %v2635, %v2627
    %v3636 = vpack.c.b16 %v2636, %v2628
    %v3637 = vpack.c.b16 %v2637, %v2629
    %v3638 = vpack.c.b16 %v2638, %v2630
    %v3639 = vpack.c.b16 %v2639, %v2631
    %v3640 = vpack.c.b16 %v2640, %v2632
    %v3641 = vpack.c.b16 %v2649, %v2641
    %v3642 = vpack.c.b16 %v2650, %v2642
    %v3643 = vpack.c.b16 %v2651, %v2643
    %v3644 = vpack.c.b16 %v2652, %v2644
    %v3645 = vpack.c.b16 %v2653, %v2645
    %v3646 = vpack.c.b16 %v2654, %v2646
    %v3647 = vpack.c.b16 %v2655, %v2647
    %v3648 = vpack.c.b16 %v2656, %v2648
    %v3649 = vpack.c.b16 %v2665, %v2657
    %v3650 = vpack.c.b16 %v2666, %v2658
    %v3651 = vpack.c.b16 %v2667, %v2659
    %v3652 = vpack.c.b16 %v2668, %v2660
    %v3653 = vpack.c.b16 %v2669, %v2661
    %v3654 = vpack.c.b16 %v2670, %v2662
    %v3655 = vpack.c.b16 %v2671, %v2663
    %v3656 = vpack.c.b16 %v2672, %v2664
    %v3657 = vpack.c.b16 %v2681, %v2673
    %v3658 = vpack.c.b16 %v2682, %v2674
    %v3659 = vpack.c.b16 %v2683, %v2675
    %v3660 = vpack.c.b16 %v2684, %v2676
    %v3661 = vpack.c.b16 %v2685, %v2677
    %v3662 = vpack.c.b16 %v2686, %v2678
    %v3663 = vpack.c.b16 %v2687, %v2679
    %v3664 = vpack.c.b16 %v2688, %v2680
    %v3665 = vpack.c.b16 %v2697, %v2689
    %v3666 = vpack.c.b16 %v2698, %v2690
    %v3667 = vpack.c.b16 %v2699, %v2691
    %v3668 = vpack.c.b16 %v2700, %v2692
    %v3669 = vpack.c.b16 %v2701, %v2693
    %v3670 = vpack.c.b16 %v2702, %v2694
    %v3671 = vpack.c.b16 %v2703, %v2695
    %v3672 = vpack.c.b16 %v2704, %v2696
    %v3673 = vpack.c.b16 %v2713, %v2705
    %v3674 = vpack.c.b16 %v2714, %v2706
    %v3675 = vpack.c.b16 %v2715, %v2707
    %v3676 = vpack.c.b16 %v2716, %v2708
    %v3677 = vpack.c.b16 %v2717, %v2709
    %v3678 = vpack.c.b16 %v2718, %v2710
    %v3679 = vpack.c.b16 %v2719, %v2711
    %v3680 = vpack.c.b16 %v2720, %v2712
    %v3681 = vpack.c.b16 %v2729, %v2721
    %v3682 = vpack.c.b16 %v2730, %v2722
    %v3683 = vpack.c.b16 %v2731, %v2723
    %v3684 = vpack.c.b16 %v2732, %v2724
    %v3685 = vpack.c.b16 %v2733, %v2725
    %v3686 = vpack.c.b16 %v2734, %v2726
    %v3687 = vpack.c.b16 %v2735, %v2727
    %v3688 = vpack.c.b16 %v2736, %v2728
    %v3689 = vpack.c.b16 %v2745, %v2737
    %v3690 = vpack.c.b16 %v2746, %v2738
    %v3691 = vpack.c.b16 %v2747, %v2739
    %v3692 = vpack.c.b16 %v2748, %v2740
    %v3693 = vpack.c.b16 %v2749, %v2741
    %v3694 = vpack.c.b16 %v2750, %v2742
    %v3695 = vpack.c.b16 %v2751, %v2743
    %v3696 = vpack.c.b16 %v2752, %v2744
    %v3697 = vpack.c.b16 %v2761, %v2753
    %v3698 = vpack.c.b16 %v2762, %v2754
    %v3699 = vpack.c.b16 %v2763, %v2755
    %v3700 = vpack.c.b16 %v2764, %v2756
    %v3701 = vpack.c.b16 %v2765, %v2757
    %v3702 = vpack.c.b16 %v2766, %v2758
    %v3703 = vpack.c.b16 %v2767, %v2759
    %v3704 = vpack.c.b16 %v2768, %v2760
    %v3705 = vpack.c.b16 %v2777, %v2769
    %v3706 = vpack.c.b16 %v2778, %v2770
    %v3707 = vpack.c.b16 %v2779, %v2771
    %v3708 = vpack.c.b16 %v2780, %v2772
    %v3709 = vpack.c.b16 %v2781, %v2773
    %v3710 = vpack.c.b16 %v2782, %v2774
    %v3711 = vpack.c.b16 %v2783, %v2775
    %v3712 = vpack.c.b16 %v2784, %v2776
    %v3713 = vpack.c.b16 %v2793, %v2785
    %v3714 = vpack.c.b16 %v2794, %v2786
    %v3715 = vpack.c.b16 %v2795, %v2787
    %v3716 = vpack.c.b16 %v2796, %v2788
    %v3717 = vpack.c.b16 %v2797, %v2789
    %v3718 = vpack.c.b16 %v2798, %v2790
    %v3719 = vpack.c.b16 %v2799, %v2791
    %v3720 = vpack.c.b16 %v2800, %v2792
    %v3721 = vpack.c.b16 %v2809, %v2801
    %v3722 = vpack.c.b16 %v2810, %v2802
    %v3723 = vpack.c.b16 %v2811, %v2803
    %v3724 = vpack.c.b16 %v2812, %v2804
    %v3725 = vpack.c.b16 %v2813, %v2805
    %v3726 = vpack.c.b16 %v2814, %v2806
    %v3727 = vpack.c.b16 %v2815, %v2807
    %v3728 = vpack.c.b16 %v2816, %v2808
    %v3729 = vpack.c.b16 %v2825, %v2817
    %v3730 = vpack.c.b16 %v2826, %v2818
    %v3731 = vpack.c.b16 %v2827, %v2819
    %v3732 = vpack.c.b16 %v2828, %v2820
    %v3733 = vpack.c.b16 %v2829, %v2821
    %v3734 = vpack.c.b16 %v2830, %v2822
    %v3735 = vpack.c.b16 %v2831, %v2823
    %v3736 = vpack.c.b16 %v2832, %v2824
    %v3737 = vpack.c.b16 %v2841, %v2833
    %v3738 = vpack.c.b16 %v2842, %v2834
    %v3739 = vpack.c.b16 %v2843, %v2835
    %v3740 = vpack.c.b16 %v2844, %v2836
    %v3741 = vpack.c.b16 %v2845, %v2837
    %v3742 = vpack.c.b16 %v2846, %v2838
    %v3743 = vpack.c.b16 %v2847, %v2839
    %v3744 = vpack.c.b16 %v2848, %v2840
    %v3745 = vpack.c.b16 %v2857, %v2849
    %v3746 = vpack.c.b16 %v2858, %v2850
    %v3747 = vpack.c.b16 %v2859, %v2851
    %v3748 = vpack.c.b16 %v2860, %v2852
    %v3749 = vpack.c.b16 %v2861, %v2853
    %v3750 = vpack.c.b16 %v2862, %v2854
    %v3751 = vpack.c.b16 %v2863, %v2855
    %v3752 = vpack.c.b16 %v2864, %v2856
    %v3753 = vpack.c.b16 %v2873, %v2865
    %v3754 = vpack.c.b16 %v2874, %v2866
    %v3755 = vpack.c.b16 %v2875, %v2867
    %v3756 = vpack.c.b16 %v2876, %v2868
    %v3757 = vpack.c.b16 %v2877, %v2869
    %v3758 = vpack.c.b16 %v2878, %v2870
    %v3759 = vpack.c.b16 %v2879, %v2871
    %v3760 = vpack.c.b16 %v2880, %v2872
    %v3761 = vpack.c.b16 %v2889, %v2881
    %v3762 = vpack.c.b16 %v2890, %v2882
    %v3763 = vpack.c.b16 %v2891, %v2883
    %v3764 = vpack.c.b16 %v2892, %v2884
    %v3765 = vpack.c.b16 %v2893, %v2885
    %v3766 = vpack.c.b16 %v2894, %v2886
    %v3767 = vpack.c.b16 %v2895, %v2887
    %v3768 = vpack.c.b16 %v2896, %v2888
    %v3769 = vpack.c.b16 %v2905, %v2897
    %v3770 = vpack.c.b16 %v2906, %v2898
    %v3771 = vpack.c.b16 %v2907, %v2899
    %v3772 = vpack.c.b16 %v2908, %v2900
    %v3773 = vpack.c.b16 %v2909, %v2901
    %v3774 = vpack.c.b16 %v2910, %v2902
    %v3775 = vpack.c.b16 %v2911, %v2903
    %v3776 = vpack.c.b16 %v2912, %v2904
    %v3777 = vpack.c.b16 %v2921, %v2913
    %v3778 = vpack.c.b16 %v2922, %v2914
    %v3779 = vpack.c.b16 %v2923, %v2915
    %v3780 = vpack.c.b16 %v2924, %v2916
    %v3781 = vpack.c.b16 %v2925, %v2917
    %v3782 = vpack.c.b16 %v2926, %v2918
    %v3783 = vpack.c.b16 %v2927, %v2919
    %v3784 = vpack.c.b16 %v2928, %v2920
    %v3785 = vpack.c.b16 %v2937, %v2929
    %v3786 = vpack.c.b16 %v2938, %v2930
    %v3787 = vpack.c.b16 %v2939, %v2931
    %v3788 = vpack.c.b16 %v2940, %v2932
    %v3789 = vpack.c.b16 %v2941, %v2933
    %v3790 = vpack.c.b16 %v2942, %v2934
    %v3791 = vpack.c.b16 %v2943, %v2935
    %v3792 = vpack.c.b16 %v2944, %v2936
    %v3793 = vpack.c.b16 %v2953, %v2945
    %v3794 = vpack.c.b16 %v2954, %v2946
    %v3795 = vpack.c.b16 %v2955, %v2947
    %v3796 = vpack.c.b16 %v2956, %v2948
    %v3797 = vpack.c.b16 %v2957, %v2949
    %v3798 = vpack.c.b16 %v2958, %v2950
    %v3799 = vpack.c.b16 %v2959, %v2951
    %v3800 = vpack.c.b16 %v2960, %v2952
    %v3801 = vpack.c.b16 %v2969, %v2961
    %v3802 = vpack.c.b16 %v2970, %v2962
    %v3803 = vpack.c.b16 %v2971, %v2963
    %v3804 = vpack.c.b16 %v2972, %v2964
    %v3805 = vpack.c.b16 %v2973, %v2965
    %v3806 = vpack.c.b16 %v2974, %v2966
    %v3807 = vpack.c.b16 %v2975, %v2967
    %v3808 = vpack.c.b16 %v2976, %v2968
    %v3809 = vpack.c.b16 %v2985, %v2977
    %v3810 = vpack.c.b16 %v2986, %v2978
    %v3811 = vpack.c.b16 %v2987, %v2979
    %v3812 = vpack.c.b16 %v2988, %v2980
    %v3813 = vpack.c.b16 %v2989, %v2981
    %v3814 = vpack.c.b16 %v2990, %v2982
    %v3815 = vpack.c.b16 %v2991, %v2983
    %v3816 = vpack.c.b16 %v2992, %v2984
    %v3817 = vpack.c.b16 %v3001, %v2993
    %v3818 = vpack.c.b16 %v3002, %v2994
    %v3819 = vpack.c.b16 %v3003, %v2995
    %v3820 = vpack.c.b16 %v3004, %v2996
    %v3821 = vpack.c.b16 %v3005, %v2997
    %v3822 = vpack.c.b16 %v3006, %v2998
    %v3823 = vpack.c.b16 %v3007, %v2999
    %v3824 = vpack.c.b16 %v3008, %v3000
    %v3825 = vpack.c.b16 %v3017, %v3009
    %v3826 = vpack.c.b16 %v3018, %v3010
    %v3827 = vpack.c.b16 %v3019, %v3011
    %v3828 = vpack.c.b16 %v3020, %v3012
    %v3829 = vpack.c.b16 %v3021, %v3013
    %v3830 = vpack.c.b16 %v3022, %v3014
    %v3831 = vpack.c.b16 %v3023, %v3015
    %v3832 = vpack.c.b16 %v3024, %v3016
    %v3833 = vpack.c.b16 %v3033, %v3025
    %v3834 = vpack.c.b16 %v3034, %v3026
    %v3835 = vpack.c.b16 %v3035, %v3027
    %v3836 = vpack.c.b16 %v3036, %v3028
    %v3837 = vpack.c.b16 %v3037, %v3029
    %v3838 = vpack.c.b16 %v3038, %v3030
    %v3839 = vpack.c.b16 %v3039, %v3031
    %v3840 = vpack.c.b16 %v3040, %v3032
    %v3841 = vpack.c.b16 %v3049, %v3041
    %v3842 = vpack.c.b16 %v3050, %v3042
    %v3843 = vpack.c.b16 %v3051, %v3043
    %v3844 = vpack.c.b16 %v3052, %v3044
    %v3845 = vpack.c.b16 %v3053, %v3045
    %v3846 = vpack.c.b16 %v3054, %v3046
    %v3847 = vpack.c.b16 %v3055, %v3047
    %v3848 = vpack.c.b16 %v3056, %v3048
    %v3849 = vpack.c.b16 %v3065, %v3057
    %v3850 = vpack.c.b16 %v3066, %v3058
    %v3851 = vpack.c.b16 %v3067, %v3059
    %v3852 = vpack.c.b16 %v3068, %v3060
    %v3853 = vpack.c.b16 %v3069, %v3061
    %v3854 = vpack.c.b16 %v3070, %v3062
    %v3855 = vpack.c.b16 %v3071, %v3063
    %v3856 = vpack.c.b16 %v3072, %v3064
    %v3857 = vpack.c.b16 %v3081, %v3073
    %v3858 = vpack.c.b16 %v3082, %v3074
    %v3859 = vpack.c.b16 %v3083, %v3075
    %v3860 = vpack.c.b16 %v3084, %v3076
    %v3861 = vpack.c.b16 %v3085, %v3077
    %v3862 = vpack.c.b16 %v3086, %v3078
    %v3863 = vpack.c.b16 %v3087, %v3079
    %v3864 = vpack.c.b16 %v3088, %v3080
    %v3865 = vpack.c.b16 %v3097, %v3089
    %v3866 = vpack.c.b16 %v3098, %v3090
    %v3867 = vpack.c.b16 %v3099, %v3091
    %v3868 = vpack.c.b16 %v3100, %v3092
    %v3869 = vpack.c.b16 %v3101, %v3093
    %v3870 = vpack.c.b16 %v3102, %v3094
    %v3871 = vpack.c.b16 %v3103, %v3095
    %v3872 = vpack.c.b16 %v3104, %v3096
    %v3873 = vpack.c.b16 %v3113, %v3105
    %v3874 = vpack.c.b16 %v3114, %v3106
    %v3875 = vpack.c.b16 %v3115, %v3107
    %v3876 = vpack.c.b16 %v3116, %v3108
    %v3877 = vpack.c.b16 %v3117, %v3109
    %v3878 = vpack.c.b16 %v3118, %v3110
    %v3879 = vpack.c.b16 %v3119, %v3111
    %v3880 = vpack.c.b16 %v3120, %v3112
    %v3881 = vpack.c.b16 %v3129, %v3121
    %v3882 = vpack.c.b16 %v3130, %v3122
    %v3883 = vpack.c.b16 %v3131, %v3123
    %v3884 = vpack.c.b16 %v3132, %v3124
    %v3885 = vpack.c.b16 %v3133, %v3125
    %v3886 = vpack.c.b16 %v3134, %v3126
    %v3887 = vpack.c.b16 %v3135, %v3127
    %v3888 = vpack.c.b16 %v3136, %v3128
    %v3889 = vpack.c.b16 %v3145, %v3137
    %v3890 = vpack.c.b16 %v3146, %v3138
    %v3891 = vpack.c.b16 %v3147, %v3139
    %v3892 = vpack.c.b16 %v3148, %v3140
    %v3893 = vpack.c.b16 %v3149, %v3141
    %v3894 = vpack.c.b16 %v3150, %v3142
    %v3895 = vpack.c.b16 %v3151, %v3143
    %v3896 = vpack.c.b16 %v3152, %v3144
    %v3897 = vpack.c.b16 %v3161, %v3153
    %v3898 = vpack.c.b16 %v3162, %v3154
    %v3899 = vpack.c.b16 %v3163, %v3155
    %v3900 = vpack.c.b16 %v3164, %v3156
    %v3901 = vpack.c.b16 %v3165, %v3157
    %v3902 = vpack.c.b16 %v3166, %v3158
    %v3903 = vpack.c.b16 %v3167, %v3159
    %v3904 = vpack.c.b16 %v3168, %v3160
    %v3905 = vpack.c.b16 %v3177, %v3169
    %v3906 = vpack.c.b16 %v3178, %v3170
    %v3907 = vpack.c.b16 %v3179, %v3171
    %v3908 = vpack.c.b16 %v3180, %v3172
    %v3909 = vpack.c.b16 %v3181, %v3173
    %v3910 = vpack.c.b16 %v3182, %v3174
    %v3911 = vpack.c.b16 %v3183, %v3175
    %v3912 = vpack.c.b16 %v3184, %v3176
    %v3913 = vpack.c.b16 %v3193, %v3185
    %v3914 = vpack.c.b16 %v3194, %v3186
    %v3915 = vpack.c.b16 %v3195, %v3187
    %v3916 = vpack.c.b16 %v3196, %v3188
    %v3917 = vpack.c.b16 %v3197, %v3189
    %v3918 = vpack.c.b16 %v3198, %v3190
    %v3919 = vpack.c.b16 %v3199, %v3191
    %v3920 = vpack.c.b16 %v3200, %v3192
    %v3921 = vpack.c.b16 %v3209, %v3201
    %v3922 = vpack.c.b16 %v3210, %v3202
    %v3923 = vpack.c.b16 %v3211, %v3203
    %v3924 = vpack.c.b16 %v3212, %v3204
    %v3925 = vpack.c.b16 %v3213, %v3205
    %v3926 = vpack.c.b16 %v3214, %v3206
    %v3927 = vpack.c.b16 %v3215, %v3207
    %v3928 = vpack.c.b16 %v3216, %v3208
    %v3929 = vpack.c.b16 %v3225, %v3217
    %v3930 = vpack.c.b16 %v3226, %v3218
    %v3931 = vpack.c.b16 %v3227, %v3219
    %v3932 = vpack.c.b16 %v3228, %v3220
    %v3933 = vpack.c.b16 %v3229, %v3221
    %v3934 = vpack.c.b16 %v3230, %v3222
    %v3935 = vpack.c.b16 %v3231, %v3223
    %v3936 = vpack.c.b16 %v3232, %v3224
    %v3937 = vpack.c.b16 %v3241, %v3233
    %v3938 = vpack.c.b16 %v3242, %v3234
    %v3939 = vpack.c.b16 %v3243, %v3235
    %v3940 = vpack.c.b16 %v3244, %v3236
    %v3941 = vpack.c.b16 %v3245, %v3237
    %v3942 = vpack.c.b16 %v3246, %v3238
    %v3943 = vpack.c.b16 %v3247, %v3239
    %v3944 = vpack.c.b16 %v3248, %v3240
    %v3945 = vpack.c.b16 %v3257, %v3249
    %v3946 = vpack.c.b16 %v3258, %v3250
    %v3947 = vpack.c.b16 %v3259, %v3251
    %v3948 = vpack.c.b16 %v3260, %v3252
    %v3949 = vpack.c.b16 %v3261, %v3253
    %v3950 = vpack.c.b16 %v3262, %v3254
    %v3951 = vpack.c.b16 %v3263, %v3255
    %v3952 = vpack.c.b16 %v3264, %v3256
    %v3953 = vpack.c.b16 %v3273, %v3265
    %v3954 = vpack.c.b16 %v3274, %v3266
    %v3955 = vpack.c.b16 %v3275, %v3267
    %v3956 = vpack.c.b16 %v3276, %v3268
    %v3957 = vpack.c.b16 %v3277, %v3269
    %v3958 = vpack.c.b16 %v3278, %v3270
    %v3959 = vpack.c.b16 %v3279, %v3271
    %v3960 = vpack.c.b16 %v3280, %v3272
    %v3961 = vpack.c.b16 %v3289, %v3281
    %v3962 = vpack.c.b16 %v3290, %v3282
    %v3963 = vpack.c.b16 %v3291, %v3283
    %v3964 = vpack.c.b16 %v3292, %v3284
    %v3965 = vpack.c.b16 %v3293, %v3285
    %v3966 = vpack.c.b16 %v3294, %v3286
    %v3967 = vpack.c.b16 %v3295, %v3287
    %v3968 = vpack.c.b16 %v3296, %v3288
    %v3969 = vpack.c.b16 %v3305, %v3297
    %v3970 = vpack.c.b16 %v3306, %v3298
    %v3971 = vpack.c.b16 %v3307, %v3299
    %v3972 = vpack.c.b16 %v3308, %v3300
    %v3973 = vpack.c.b16 %v3309, %v3301
    %v3974 = vpack.c.b16 %v3310, %v3302
    %v3975 = vpack.c.b16 %v3311, %v3303
    %v3976 = vpack.c.b16 %v3312, %v3304
    %v3977 = vpack.c.b16 %v3321, %v3313
    %v3978 = vpack.c.b16 %v3322, %v3314
    %v3979 = vpack.c.b16 %v3323, %v3315
    %v3980 = vpack.c.b16 %v3324, %v3316
    %v3981 = vpack.c.b16 %v3325, %v3317
    %v3982 = vpack.c.b16 %v3326, %v3318
    %v3983 = vpack.c.b16 %v3327, %v3319
    %v3984 = vpack.c.b16 %v3328, %v3320
    %v3985 = vpack.c.b16 %v3337, %v3329
    %v3986 = vpack.c.b16 %v3338, %v3330
    %v3987 = vpack.c.b16 %v3339, %v3331
    %v3988 = vpack.c.b16 %v3340, %v3332
    %v3989 = vpack.c.b16 %v3341, %v3333
    %v3990 = vpack.c.b16 %v3342, %v3334
    %v3991 = vpack.c.b16 %v3343, %v3335
    %v3992 = vpack.c.b16 %v3344, %v3336
    %v3993 = vpack.c.b16 %v3353, %v3345
    %v3994 = vpack.c.b16 %v3354, %v3346
    %v3995 = vpack.c.b16 %v3355, %v3347
    %v3996 = vpack.c.b16 %v3356, %v3348
    %v3997 = vpack.c.b16 %v3357, %v3349
    %v3998 = vpack.c.b16 %v3358, %v3350
    %v3999 = vpack.c.b16 %v3359, %v3351
    %v4000 = vpack.c.b16 %v3360, %v3352
    %v4001 = vpack.c.b16 %v3369, %v3361
    %v4002 = vpack.c.b16 %v3370, %v3362
    %v4003 = vpack.c.b16 %v3371, %v3363
    %v4004 = vpack.c.b16 %v3372, %v3364
    %v4005 = vpack.c.b16 %v3373, %v3365
    %v4006 = vpack.c.b16 %v3374, %v3366
    %v4007 = vpack.c.b16 %v3375, %v3367
    %v4008 = vpack.c.b16 %v3376, %v3368
    %v4009 = vpack.c.b16 %v3385, %v3377
    %v4010 = vpack.c.b16 %v3386, %v3378
    %v4011 = vpack.c.b16 %v3387, %v3379
    %v4012 = vpack.c.b16 %v3388, %v3380
    %v4013 = vpack.c.b16 %v3389, %v3381
    %v4014 = vpack.c.b16 %v3390, %v3382
    %v4015 = vpack.c.b16 %v3391, %v3383
    %v4016 = vpack.c.b16 %v3392, %v3384
    %v4017 = vpack.c.b16 %v3401, %v3393
    %v4018 = vpack.c.b16 %v3402, %v3394
    %v4019 = vpack.c.b16 %v3403, %v3395
    %v4020 = vpack.c.b16 %v3404, %v3396
    %v4021 = vpack.c.b16 %v3405, %v3397
    %v4022 = vpack.c.b16 %v3406, %v3398
    %v4023 = vpack.c.b16 %v3407, %v3399
    %v4024 = vpack.c.b16 %v3408, %v3400
    %v4025 = vpack.c.b16 %v3417, %v3409
    %v4026 = vpack.c.b16 %v3418, %v3410
    %v4027 = vpack.c.b16 %v3419, %v3411
    %v4028 = vpack.c.b16 %v3420, %v3412
    %v4029 = vpack.c.b16 %v3421, %v3413
    %v4030 = vpack.c.b16 %v3422, %v3414
    %v4031 = vpack.c.b16 %v3423, %v3415
    %v4032 = vpack.c.b16 %v3424, %v3416
    %v4033 = vpack.c.b16 %v3433, %v3425
    %v4034 = vpack.c.b16 %v3434, %v3426
    %v4035 = vpack.c.b16 %v3435, %v3427
    %v4036 = vpack.c.b16 %v3436, %v3428
    %v4037 = vpack.c.b16 %v3437, %v3429
    %v4038 = vpack.c.b16 %v3438, %v3430
    %v4039 = vpack.c.b16 %v3439, %v3431
    %v4040 = vpack.c.b16 %v3440, %v3432
    %v4041 = vpack.c.b16 %v3449, %v3441
    %v4042 = vpack.c.b16 %v3450, %v3442
    %v4043 = vpack.c.b16 %v3451, %v3443
    %v4044 = vpack.c.b16 %v3452, %v3444
    %v4045 = vpack.c.b16 %v3453, %v3445
    %v4046 = vpack.c.b16 %v3454, %v3446
    %v4047 = vpack.c.b16 %v3455, %v3447
    %v4048 = vpack.c.b16 %v3456, %v3448
    %v4049 = vpack.c.b16 %v3465, %v3457
    %v4050 = vpack.c.b16 %v3466, %v3458
    %v4051 = vpack.c.b16 %v3467, %v3459
    %v4052 = vpack.c.b16 %v3468, %v3460
    %v4053 = vpack.c.b16 %v3469, %v3461
    %v4054 = vpack.c.b16 %v3470, %v3462
    %v4055 = vpack.c.b16 %v3471, %v3463
    %v4056 = vpack.c.b16 %v3472, %v3464
    %v4057 = vpack.c.b16 %v3481, %v3473
    %v4058 = vpack.c.b16 %v3482, %v3474
    %v4059 = vpack.c.b16 %v3483, %v3475
    %v4060 = vpack.c.b16 %v3484, %v3476
    %v4061 = vpack.c.b16 %v3485, %v3477
    %v4062 = vpack.c.b16 %v3486, %v3478
    %v4063 = vpack.c.b16 %v3487, %v3479
    %v4064 = vpack.c.b16 %v3488, %v3480
    %v4065 = vpack.c.b16 %v3497, %v3489
    %v4066 = vpack.c.b16 %v3498, %v3490
    %v4067 = vpack.c.b16 %v3499, %v3491
    %v4068 = vpack.c.b16 %v3500, %v3492
    %v4069 = vpack.c.b16 %v3501, %v3493
    %v4070 = vpack.c.b16 %v3502, %v3494
    %v4071 = vpack.c.b16 %v3503, %v3495
    %v4072 = vpack.c.b16 %v3504, %v3496
    %v4073 = vpack.c.b16 %v3513, %v3505
    %v4074 = vpack.c.b16 %v3514, %v3506
    %v4075 = vpack.c.b16 %v3515, %v3507
    %v4076 = vpack.c.b16 %v3516, %v3508
    %v4077 = vpack.c.b16 %v3517, %v3509
    %v4078 = vpack.c.b16 %v3518, %v3510
    %v4079 = vpack.c.b16 %v3519, %v3511
    %v4080 = vpack.c.b16 %v3520, %v3512
    %v4081 = vpack.c.b16 %v3529, %v3521
    %v4082 = vpack.c.b16 %v3530, %v3522
    %v4083 = vpack.c.b16 %v3531, %v3523
    %v4084 = vpack.c.b16 %v3532, %v3524
    %v4085 = vpack.c.b16 %v3533, %v3525
    %v4086 = vpack.c.b16 %v3534, %v3526
    %v4087 = vpack.c.b16 %v3535, %v3527
    %v4088 = vpack.c.b16 %v3536, %v3528
    %v4089 = vpack.c.b16 %v3545, %v3537
    %v4090 = vpack.c.b16 %v3546, %v3538
    %v4091 = vpack.c.b16 %v3547, %v3539
    %v4092 = vpack.c.b16 %v3548, %v3540
    %v4093 = vpack.c.b16 %v3549, %v3541
    %v4094 = vpack.c.b16 %v3550, %v3542
    %v4095 = vpack.c.b16 %v3551, %v3543
    %v4096 = vpack.c.b16 %v3552, %v3544
    %v4097 = vpack.c.b16 %v3561, %v3553
    %v4098 = vpack.c.b16 %v3562, %v3554
    %v4099 = vpack.c.b16 %v3563, %v3555
    %v4100 = vpack.c.b16 %v3564, %v3556
    %v4101 = vpack.c.b16 %v3565, %v3557
    %v4102 = vpack.c.b16 %v3566, %v3558
    %v4103 = vpack.c.b16 %v3567, %v3559
    %v4104 = vpack.c.b16 %v3568, %v3560
    %v4105 = vpack.c.b16 %v3577, %v3569
    %v4106 = vpack.c.b16 %v3578, %v3570
    %v4107 = vpack.c.b16 %v3579, %v3571
    %v4108 = vpack.c.b16 %v3580, %v3572
    %v4109 = vpack.c.b16 %v3581, %v3573
    %v4110 = vpack.c.b16 %v3582, %v3574
    %v4111 = vpack.c.b16 %v3583, %v3575
    %v4112 = vpack.c.b16 %v3584, %v3576
    %v4113 = vpack.c.b16 %v3593, %v3585
    %v4114 = vpack.c.b16 %v3594, %v3586
    %v4115 = vpack.c.b16 %v3595, %v3587
    %v4116 = vpack.c.b16 %v3596, %v3588
    %v4117 = vpack.c.b16 %v3597, %v3589
    %v4118 = vpack.c.b16 %v3598, %v3590
    %v4119 = vpack.c.b16 %v3599, %v3591
    %v4120 = vpack.c.b16 %v3600, %v3592
    %v4121 = vpack.c.b16 %v3609, %v3601
    %v4122 = vpack.c.b16 %v3610, %v3602
    %v4123 = vpack.c.b16 %v3611, %v3603
    %v4124 = vpack.c.b16 %v3612, %v3604
    %v4125 = vpack.c.b16 %v3613, %v3605
    %v4126 = vpack.c.b16 %v3614, %v3606
    %v4127 = vpack.c.b16 %v3615, %v3607
    %v4128 = vpack.c.b16 %v3616, %v3608
    %4641 = vmatprep.subr.bf16.mxu0 %v3674
    %4642 = vmatpush1.bf16.msra.mxu0 %v3673
    %4643 = vmatprep.subr.bf16.mxu0 %v3666
    %4644 = vmatpush1.bf16.msra.mxu0 %v3665
    %4645 = vmatprep.subr.bf16.mxu0 %v3658
    %4646 = vmatpush1.bf16.msra.mxu0 %v3657
    %4647 = vmatprep.subr.bf16.mxu0 %v3650
    %4648 = vmatpush1.bf16.msra.mxu0 %v3649
    %4649 = vmatprep.subr.bf16.mxu0 %v3642
    %4650 = vmatpush1.bf16.msra.mxu0 %v3641
    %4651 = vmatprep.subr.bf16.mxu0 %v3634
    %4652 = vmatpush1.bf16.msra.mxu0 %v3633
    %4653 = vmatprep.subr.bf16.mxu0 %v3626
    %4654 = vmatpush1.bf16.msra.mxu0 %v3625
    %4655 = vmatprep.subr.bf16.mxu0 %v3618
    %4656 = vmatpush1.bf16.msra.mxu0 %v3617
    %4657 = vmatprep.subr.bf16.mxu0 %v3738
    %4658 = vmatpush2.bf16.msra.mxu0 %v3737
    %4659 = vmatprep.subr.bf16.mxu0 %v3730
    %4660 = vmatpush2.bf16.msra.mxu0 %v3729
    %4661 = vmatprep.subr.bf16.mxu0 %v3722
    %4662 = vmatpush2.bf16.msra.mxu0 %v3721
    %4663 = vmatprep.subr.bf16.mxu0 %v3714
    %4664 = vmatpush2.bf16.msra.mxu0 %v3713
    %4665 = vmatprep.subr.bf16.mxu0 %v3706
    %4666 = vmatpush2.bf16.msra.mxu0 %v3705
    %4667 = vmatprep.subr.bf16.mxu0 %v3698
    %4668 = vmatpush2.bf16.msra.mxu0 %v3697
    %4669 = vmatprep.subr.bf16.mxu0 %v3690
    %4670 = vmatpush2.bf16.msra.mxu0 %v3689
    %4671 = vmatprep.subr.bf16.mxu0 %v3682
    %4672 = vmatpush2.bf16.msra.mxu0 %v3681
    %4673 = vmatprep.mubr.bf16.mxu0 %v1464
    %4674 = vmatmul.mubr.bf16.gmra.mxu0 %v1463
    %v4675 = vpop.f32.mrf.mxu0
    %v4676 = vadd.f32 %v2044, %v4675
    %v4677 = vpop.f32.mrf.mxu0
    %v4678 = vadd.f32 %v2048, %v4677
    %v4679 = vpop.f32.mrf.mxu0
    %v4680 = vadd.f32 %v2044, %v4679
    %v4681 = vpop.f32.mrf.mxu0
    %v4682 = vadd.f32 %v2048, %v4681
    %4683 = vmatprep.mubr.bf16.mxu0 %v1472
    %4684 = vmatmul.mubr.bf16.gmra.mxu0 %v1471
    %v4685 = vpop.f32.mrf.mxu0
    %v4686 = vadd.f32 %v2044, %v4685
    %v4687 = vpop.f32.mrf.mxu0
    %v4688 = vadd.f32 %v2048, %v4687
    %v4689 = vpop.f32.mrf.mxu0
    %v4690 = vadd.f32 %v2044, %v4689
    %v4691 = vpop.f32.mrf.mxu0
    %v4692 = vadd.f32 %v2048, %v4691
    %4693 = vmatprep.mubr.bf16.mxu0 %v1480
    %4694 = vmatmul.mubr.bf16.gmra.mxu0 %v1479
    %v4695 = vpop.f32.mrf.mxu0
    %v4696 = vadd.f32 %v2044, %v4695
    %v4697 = vpop.f32.mrf.mxu0
    %v4698 = vadd.f32 %v2048, %v4697
    %v4699 = vpop.f32.mrf.mxu0
    %v4700 = vadd.f32 %v2044, %v4699
    %v4701 = vpop.f32.mrf.mxu0
    %v4702 = vadd.f32 %v2048, %v4701
    %4703 = vmatprep.mubr.bf16.mxu0 %v1488
    %4704 = vmatmul.mubr.bf16.gmra.mxu0 %v1487
    %v4705 = vpop.f32.mrf.mxu0
    %v4706 = vadd.f32 %v2044, %v4705
    %v4707 = vpop.f32.mrf.mxu0
    %v4708 = vadd.f32 %v2048, %v4707
    %v4709 = vpop.f32.mrf.mxu0
    %v4710 = vadd.f32 %v2044, %v4709
    %v4711 = vpop.f32.mrf.mxu0
    %v4712 = vadd.f32 %v2048, %v4711
    %4713 = vmatprep.mubr.bf16.mxu0 %v1496
    %4714 = vmatmul.mubr.bf16.gmra.mxu0 %v1495
    %v4715 = vpop.f32.mrf.mxu0
    %v4716 = vadd.f32 %v2044, %v4715
    %v4717 = vpop.f32.mrf.mxu0
    %v4718 = vadd.f32 %v2048, %v4717
    %v4719 = vpop.f32.mrf.mxu0
    %v4720 = vadd.f32 %v2044, %v4719
    %v4721 = vpop.f32.mrf.mxu0
    %v4722 = vadd.f32 %v2048, %v4721
    %4723 = vmatprep.mubr.bf16.mxu0 %v1504
    %4724 = vmatmul.mubr.bf16.gmra.mxu0 %v1503
    %v4725 = vpop.f32.mrf.mxu0
    %v4726 = vadd.f32 %v2044, %v4725
    %v4727 = vpop.f32.mrf.mxu0
    %v4728 = vadd.f32 %v2048, %v4727
    %v4729 = vpop.f32.mrf.mxu0
    %v4730 = vadd.f32 %v2044, %v4729
    %v4731 = vpop.f32.mrf.mxu0
    %v4732 = vadd.f32 %v2048, %v4731
    %4733 = vmatprep.mubr.bf16.mxu0 %v1512
    %4734 = vmatmul.mubr.bf16.gmra.mxu0 %v1511
    %v4735 = vpop.f32.mrf.mxu0
    %v4736 = vadd.f32 %v2044, %v4735
    %v4737 = vpop.f32.mrf.mxu0
    %v4738 = vadd.f32 %v2048, %v4737
    %v4739 = vpop.f32.mrf.mxu0
    %v4740 = vadd.f32 %v2044, %v4739
    %v4741 = vpop.f32.mrf.mxu0
    %v4742 = vadd.f32 %v2048, %v4741
    %4743 = vmatprep.mubr.bf16.mxu0 %v1520
    %4744 = vmatmul.mubr.bf16.gmra.mxu0 %v1519
    %v4745 = vpop.f32.mrf.mxu0
    %v4746 = vadd.f32 %v2044, %v4745
    %v4747 = vpop.f32.mrf.mxu0
    %v4748 = vadd.f32 %v2048, %v4747
    %v4749 = vpop.f32.mrf.mxu0
    %v4750 = vadd.f32 %v2044, %v4749
    %v4751 = vpop.f32.mrf.mxu0
    %v4752 = vadd.f32 %v2048, %v4751
    %4753 = vdwg.mxu0
    %4754 = vmatprep.subr.bf16.mxu0 %v3802
    %4755 = vmatpush1.bf16.msra.mxu0 %v3801
    %4756 = vmatprep.subr.bf16.mxu0 %v3794
    %4757 = vmatpush1.bf16.msra.mxu0 %v3793
    %4758 = vmatprep.subr.bf16.mxu0 %v3786
    %4759 = vmatpush1.bf16.msra.mxu0 %v3785
    %4760 = vmatprep.subr.bf16.mxu0 %v3778
    %4761 = vmatpush1.bf16.msra.mxu0 %v3777
    %4762 = vmatprep.subr.bf16.mxu0 %v3770
    %4763 = vmatpush1.bf16.msra.mxu0 %v3769
    %4764 = vmatprep.subr.bf16.mxu0 %v3762
    %4765 = vmatpush1.bf16.msra.mxu0 %v3761
    %4766 = vmatprep.subr.bf16.mxu0 %v3754
    %4767 = vmatpush1.bf16.msra.mxu0 %v3753
    %4768 = vmatprep.subr.bf16.mxu0 %v3746
    %4769 = vmatpush1.bf16.msra.mxu0 %v3745
    %4770 = vmatprep.subr.bf16.mxu0 %v3866
    %4771 = vmatpush2.bf16.msra.mxu0 %v3865
    %4772 = vmatprep.subr.bf16.mxu0 %v3858
    %4773 = vmatpush2.bf16.msra.mxu0 %v3857
    %4774 = vmatprep.subr.bf16.mxu0 %v3850
    %4775 = vmatpush2.bf16.msra.mxu0 %v3849
    %4776 = vmatprep.subr.bf16.mxu0 %v3842
    %4777 = vmatpush2.bf16.msra.mxu0 %v3841
    %4778 = vmatprep.subr.bf16.mxu0 %v3834
    %4779 = vmatpush2.bf16.msra.mxu0 %v3833
    %4780 = vmatprep.subr.bf16.mxu0 %v3826
    %4781 = vmatpush2.bf16.msra.mxu0 %v3825
    %4782 = vmatprep.subr.bf16.mxu0 %v3818
    %4783 = vmatpush2.bf16.msra.mxu0 %v3817
    %4784 = vmatprep.subr.bf16.mxu0 %v3810
    %4785 = vmatpush2.bf16.msra.mxu0 %v3809
    %4786 = vmatprep.mubr.bf16.mxu0 %v1466
    %4787 = vmatmul.mubr.bf16.gmra.mxu0 %v1465
    %v4788 = vpop.f32.mrf.mxu0
    %v4789 = vadd.f32 %v4676, %v4788
    %v4790 = vpop.f32.mrf.mxu0
    %v4791 = vadd.f32 %v4678, %v4790
    %v4792 = vpop.f32.mrf.mxu0
    %v4793 = vadd.f32 %v4680, %v4792
    %v4794 = vpop.f32.mrf.mxu0
    %v4795 = vadd.f32 %v4682, %v4794
    %4796 = vmatprep.mubr.bf16.mxu0 %v1474
    %4797 = vmatmul.mubr.bf16.gmra.mxu0 %v1473
    %v4798 = vpop.f32.mrf.mxu0
    %v4799 = vadd.f32 %v4686, %v4798
    %v4800 = vpop.f32.mrf.mxu0
    %v4801 = vadd.f32 %v4688, %v4800
    %v4802 = vpop.f32.mrf.mxu0
    %v4803 = vadd.f32 %v4690, %v4802
    %v4804 = vpop.f32.mrf.mxu0
    %v4805 = vadd.f32 %v4692, %v4804
    %4806 = vmatprep.mubr.bf16.mxu0 %v1482
    %4807 = vmatmul.mubr.bf16.gmra.mxu0 %v1481
    %v4808 = vpop.f32.mrf.mxu0
    %v4809 = vadd.f32 %v4696, %v4808
    %v4810 = vpop.f32.mrf.mxu0
    %v4811 = vadd.f32 %v4698, %v4810
    %v4812 = vpop.f32.mrf.mxu0
    %v4813 = vadd.f32 %v4700, %v4812
    %v4814 = vpop.f32.mrf.mxu0
    %v4815 = vadd.f32 %v4702, %v4814
    %4816 = vmatprep.mubr.bf16.mxu0 %v1490
    %4817 = vmatmul.mubr.bf16.gmra.mxu0 %v1489
    %v4818 = vpop.f32.mrf.mxu0
    %v4819 = vadd.f32 %v4706, %v4818
    %v4820 = vpop.f32.mrf.mxu0
    %v4821 = vadd.f32 %v4708, %v4820
    %v4822 = vpop.f32.mrf.mxu0
    %v4823 = vadd.f32 %v4710, %v4822
    %v4824 = vpop.f32.mrf.mxu0
    %v4825 = vadd.f32 %v4712, %v4824
    %4826 = vmatprep.mubr.bf16.mxu0 %v1498
    %4827 = vmatmul.mubr.bf16.gmra.mxu0 %v1497
    %v4828 = vpop.f32.mrf.mxu0
    %v4829 = vadd.f32 %v4716, %v4828
    %v4830 = vpop.f32.mrf.mxu0
    %v4831 = vadd.f32 %v4718, %v4830
    %v4832 = vpop.f32.mrf.mxu0
    %v4833 = vadd.f32 %v4720, %v4832
    %v4834 = vpop.f32.mrf.mxu0
    %v4835 = vadd.f32 %v4722, %v4834
    %4836 = vmatprep.mubr.bf16.mxu0 %v1506
    %4837 = vmatmul.mubr.bf16.gmra.mxu0 %v1505
    %v4838 = vpop.f32.mrf.mxu0
    %v4839 = vadd.f32 %v4726, %v4838
    %v4840 = vpop.f32.mrf.mxu0
    %v4841 = vadd.f32 %v4728, %v4840
    %v4842 = vpop.f32.mrf.mxu0
    %v4843 = vadd.f32 %v4730, %v4842
    %v4844 = vpop.f32.mrf.mxu0
    %v4845 = vadd.f32 %v4732, %v4844
    %4846 = vmatprep.mubr.bf16.mxu0 %v1514
    %4847 = vmatmul.mubr.bf16.gmra.mxu0 %v1513
    %v4848 = vpop.f32.mrf.mxu0
    %v4849 = vadd.f32 %v4736, %v4848
    %v4850 = vpop.f32.mrf.mxu0
    %v4851 = vadd.f32 %v4738, %v4850
    %v4852 = vpop.f32.mrf.mxu0
    %v4853 = vadd.f32 %v4740, %v4852
    %v4854 = vpop.f32.mrf.mxu0
    %v4855 = vadd.f32 %v4742, %v4854
    %4856 = vmatprep.mubr.bf16.mxu0 %v1522
    %4857 = vmatmul.mubr.bf16.gmra.mxu0 %v1521
    %v4858 = vpop.f32.mrf.mxu0
    %v4859 = vadd.f32 %v4746, %v4858
    %v4860 = vpop.f32.mrf.mxu0
    %v4861 = vadd.f32 %v4748, %v4860
    %v4862 = vpop.f32.mrf.mxu0
    %v4863 = vadd.f32 %v4750, %v4862
    %v4864 = vpop.f32.mrf.mxu0
    %v4865 = vadd.f32 %v4752, %v4864
    %4866 = vdwg.mxu0
    %4867 = vmatprep.subr.bf16.mxu0 %v3930
    %4868 = vmatpush1.bf16.msra.mxu0 %v3929
    %4869 = vmatprep.subr.bf16.mxu0 %v3922
    %4870 = vmatpush1.bf16.msra.mxu0 %v3921
    %4871 = vmatprep.subr.bf16.mxu0 %v3914
    %4872 = vmatpush1.bf16.msra.mxu0 %v3913
    %4873 = vmatprep.subr.bf16.mxu0 %v3906
    %4874 = vmatpush1.bf16.msra.mxu0 %v3905
    %4875 = vmatprep.subr.bf16.mxu0 %v3898
    %4876 = vmatpush1.bf16.msra.mxu0 %v3897
    %4877 = vmatprep.subr.bf16.mxu0 %v3890
    %4878 = vmatpush1.bf16.msra.mxu0 %v3889
    %4879 = vmatprep.subr.bf16.mxu0 %v3882
    %4880 = vmatpush1.bf16.msra.mxu0 %v3881
    %4881 = vmatprep.subr.bf16.mxu0 %v3874
    %4882 = vmatpush1.bf16.msra.mxu0 %v3873
    %4883 = vmatprep.subr.bf16.mxu0 %v3994
    %4884 = vmatpush2.bf16.msra.mxu0 %v3993
    %4885 = vmatprep.subr.bf16.mxu0 %v3986
    %4886 = vmatpush2.bf16.msra.mxu0 %v3985
    %4887 = vmatprep.subr.bf16.mxu0 %v3978
    %4888 = vmatpush2.bf16.msra.mxu0 %v3977
    %4889 = vmatprep.subr.bf16.mxu0 %v3970
    %4890 = vmatpush2.bf16.msra.mxu0 %v3969
    %4891 = vmatprep.subr.bf16.mxu0 %v3962
    %4892 = vmatpush2.bf16.msra.mxu0 %v3961
    %4893 = vmatprep.subr.bf16.mxu0 %v3954
    %4894 = vmatpush2.bf16.msra.mxu0 %v3953
    %4895 = vmatprep.subr.bf16.mxu0 %v3946
    %4896 = vmatpush2.bf16.msra.mxu0 %v3945
    %4897 = vmatprep.subr.bf16.mxu0 %v3938
    %4898 = vmatpush2.bf16.msra.mxu0 %v3937
    %4899 = vmatprep.mubr.bf16.mxu0 %v1468
    %4900 = vmatmul.mubr.bf16.gmra.mxu0 %v1467
    %v4901 = vpop.f32.mrf.mxu0
    %v4902 = vadd.f32 %v4789, %v4901
    %v4903 = vpop.f32.mrf.mxu0
    %v4904 = vadd.f32 %v4791, %v4903
    %v4905 = vpop.f32.mrf.mxu0
    %v4906 = vadd.f32 %v4793, %v4905
    %v4907 = vpop.f32.mrf.mxu0
    %v4908 = vadd.f32 %v4795, %v4907
    %4909 = vmatprep.mubr.bf16.mxu0 %v1476
    %4910 = vmatmul.mubr.bf16.gmra.mxu0 %v1475
    %v4911 = vpop.f32.mrf.mxu0
    %v4912 = vadd.f32 %v4799, %v4911
    %v4913 = vpop.f32.mrf.mxu0
    %v4914 = vadd.f32 %v4801, %v4913
    %v4915 = vpop.f32.mrf.mxu0
    %v4916 = vadd.f32 %v4803, %v4915
    %v4917 = vpop.f32.mrf.mxu0
    %v4918 = vadd.f32 %v4805, %v4917
    %4919 = vmatprep.mubr.bf16.mxu0 %v1484
    %4920 = vmatmul.mubr.bf16.gmra.mxu0 %v1483
    %v4921 = vpop.f32.mrf.mxu0
    %v4922 = vadd.f32 %v4809, %v4921
    %v4923 = vpop.f32.mrf.mxu0
    %v4924 = vadd.f32 %v4811, %v4923
    %v4925 = vpop.f32.mrf.mxu0
    %v4926 = vadd.f32 %v4813, %v4925
    %v4927 = vpop.f32.mrf.mxu0
    %v4928 = vadd.f32 %v4815, %v4927
    %4929 = vmatprep.mubr.bf16.mxu0 %v1492
    %4930 = vmatmul.mubr.bf16.gmra.mxu0 %v1491
    %v4931 = vpop.f32.mrf.mxu0
    %v4932 = vadd.f32 %v4819, %v4931
    %v4933 = vpop.f32.mrf.mxu0
    %v4934 = vadd.f32 %v4821, %v4933
    %v4935 = vpop.f32.mrf.mxu0
    %v4936 = vadd.f32 %v4823, %v4935
    %v4937 = vpop.f32.mrf.mxu0
    %v4938 = vadd.f32 %v4825, %v4937
    %4939 = vmatprep.mubr.bf16.mxu0 %v1500
    %4940 = vmatmul.mubr.bf16.gmra.mxu0 %v1499
    %v4941 = vpop.f32.mrf.mxu0
    %v4942 = vadd.f32 %v4829, %v4941
    %v4943 = vpop.f32.mrf.mxu0
    %v4944 = vadd.f32 %v4831, %v4943
    %v4945 = vpop.f32.mrf.mxu0
    %v4946 = vadd.f32 %v4833, %v4945
    %v4947 = vpop.f32.mrf.mxu0
    %v4948 = vadd.f32 %v4835, %v4947
    %4949 = vmatprep.mubr.bf16.mxu0 %v1508
    %4950 = vmatmul.mubr.bf16.gmra.mxu0 %v1507
    %v4951 = vpop.f32.mrf.mxu0
    %v4952 = vadd.f32 %v4839, %v4951
    %v4953 = vpop.f32.mrf.mxu0
    %v4954 = vadd.f32 %v4841, %v4953
    %v4955 = vpop.f32.mrf.mxu0
    %v4956 = vadd.f32 %v4843, %v4955
    %v4957 = vpop.f32.mrf.mxu0
    %v4958 = vadd.f32 %v4845, %v4957
    %4959 = vmatprep.mubr.bf16.mxu0 %v1516
    %4960 = vmatmul.mubr.bf16.gmra.mxu0 %v1515
    %v4961 = vpop.f32.mrf.mxu0
    %v4962 = vadd.f32 %v4849, %v4961
    %v4963 = vpop.f32.mrf.mxu0
    %v4964 = vadd.f32 %v4851, %v4963
    %v4965 = vpop.f32.mrf.mxu0
    %v4966 = vadd.f32 %v4853, %v4965
    %v4967 = vpop.f32.mrf.mxu0
    %v4968 = vadd.f32 %v4855, %v4967
    %4969 = vmatprep.mubr.bf16.mxu0 %v1524
    %4970 = vmatmul.mubr.bf16.gmra.mxu0 %v1523
    %v4971 = vpop.f32.mrf.mxu0
    %v4972 = vadd.f32 %v4859, %v4971
    %v4973 = vpop.f32.mrf.mxu0
    %v4974 = vadd.f32 %v4861, %v4973
    %v4975 = vpop.f32.mrf.mxu0
    %v4976 = vadd.f32 %v4863, %v4975
    %v4977 = vpop.f32.mrf.mxu0
    %v4978 = vadd.f32 %v4865, %v4977
    %4979 = vdwg.mxu0
    %4980 = vmatprep.subr.bf16.mxu0 %v4058
    %4981 = vmatpush1.bf16.msra.mxu0 %v4057
    %4982 = vmatprep.subr.bf16.mxu0 %v4050
    %4983 = vmatpush1.bf16.msra.mxu0 %v4049
    %4984 = vmatprep.subr.bf16.mxu0 %v4042
    %4985 = vmatpush1.bf16.msra.mxu0 %v4041
    %4986 = vmatprep.subr.bf16.mxu0 %v4034
    %4987 = vmatpush1.bf16.msra.mxu0 %v4033
    %4988 = vmatprep.subr.bf16.mxu0 %v4026
    %4989 = vmatpush1.bf16.msra.mxu0 %v4025
    %4990 = vmatprep.subr.bf16.mxu0 %v4018
    %4991 = vmatpush1.bf16.msra.mxu0 %v4017
    %4992 = vmatprep.subr.bf16.mxu0 %v4010
    %4993 = vmatpush1.bf16.msra.mxu0 %v4009
    %4994 = vmatprep.subr.bf16.mxu0 %v4002
    %4995 = vmatpush1.bf16.msra.mxu0 %v4001
    %4996 = vmatprep.subr.bf16.mxu0 %v4122
    %4997 = vmatpush2.bf16.msra.mxu0 %v4121
    %4998 = vmatprep.subr.bf16.mxu0 %v4114
    %4999 = vmatpush2.bf16.msra.mxu0 %v4113
    %5000 = vmatprep.subr.bf16.mxu0 %v4106
    %5001 = vmatpush2.bf16.msra.mxu0 %v4105
    %5002 = vmatprep.subr.bf16.mxu0 %v4098
    %5003 = vmatpush2.bf16.msra.mxu0 %v4097
    %5004 = vmatprep.subr.bf16.mxu0 %v4090
    %5005 = vmatpush2.bf16.msra.mxu0 %v4089
    %5006 = vmatprep.subr.bf16.mxu0 %v4082
    %5007 = vmatpush2.bf16.msra.mxu0 %v4081
    %5008 = vmatprep.subr.bf16.mxu0 %v4074
    %5009 = vmatpush2.bf16.msra.mxu0 %v4073
    %5010 = vmatprep.subr.bf16.mxu0 %v4066
    %5011 = vmatpush2.bf16.msra.mxu0 %v4065
    %5012 = vmatprep.mubr.bf16.mxu0 %v1470
    %5013 = vmatmul.mubr.bf16.gmra.mxu0 %v1469
    %v5014 = vpop.f32.mrf.mxu0
    %v5015 = vadd.f32 %v4902, %v5014
    %v5016 = vpop.f32.mrf.mxu0
    %v5017 = vadd.f32 %v4904, %v5016
    %v5018 = vpop.f32.mrf.mxu0
    %v5019 = vadd.f32 %v4906, %v5018
    %v5020 = vpop.f32.mrf.mxu0
    %v5021 = vadd.f32 %v4908, %v5020
    %5022 = vmatprep.mubr.bf16.mxu0 %v1478
    %5023 = vmatmul.mubr.bf16.gmra.mxu0 %v1477
    %v5024 = vpop.f32.mrf.mxu0
    %v5025 = vadd.f32 %v4912, %v5024
    %v5026 = vpop.f32.mrf.mxu0
    %v5027 = vadd.f32 %v4914, %v5026
    %v5028 = vpop.f32.mrf.mxu0
    %v5029 = vadd.f32 %v4916, %v5028
    %v5030 = vpop.f32.mrf.mxu0
    %v5031 = vadd.f32 %v4918, %v5030
    %5032 = vmatprep.mubr.bf16.mxu0 %v1486
    %5033 = vmatmul.mubr.bf16.gmra.mxu0 %v1485
    %v5034 = vpop.f32.mrf.mxu0
    %v5035 = vadd.f32 %v4922, %v5034
    %v5036 = vpop.f32.mrf.mxu0
    %v5037 = vadd.f32 %v4924, %v5036
    %v5038 = vpop.f32.mrf.mxu0
    %v5039 = vadd.f32 %v4926, %v5038
    %v5040 = vpop.f32.mrf.mxu0
    %v5041 = vadd.f32 %v4928, %v5040
    %5042 = vmatprep.mubr.bf16.mxu0 %v1494
    %5043 = vmatmul.mubr.bf16.gmra.mxu0 %v1493
    %v5044 = vpop.f32.mrf.mxu0
    %v5045 = vadd.f32 %v4932, %v5044
    %v5046 = vpop.f32.mrf.mxu0
    %v5047 = vadd.f32 %v4934, %v5046
    %v5048 = vpop.f32.mrf.mxu0
    %v5049 = vadd.f32 %v4936, %v5048
    %v5050 = vpop.f32.mrf.mxu0
    %v5051 = vadd.f32 %v4938, %v5050
    %5052 = vmatprep.mubr.bf16.mxu0 %v1502
    %5053 = vmatmul.mubr.bf16.gmra.mxu0 %v1501
    %v5054 = vpop.f32.mrf.mxu0
    %v5055 = vadd.f32 %v4942, %v5054
    %v5056 = vpop.f32.mrf.mxu0
    %v5057 = vadd.f32 %v4944, %v5056
    %v5058 = vpop.f32.mrf.mxu0
    %v5059 = vadd.f32 %v4946, %v5058
    %v5060 = vpop.f32.mrf.mxu0
    %v5061 = vadd.f32 %v4948, %v5060
    %5062 = vmatprep.mubr.bf16.mxu0 %v1510
    %5063 = vmatmul.mubr.bf16.gmra.mxu0 %v1509
    %v5064 = vpop.f32.mrf.mxu0
    %v5065 = vadd.f32 %v4952, %v5064
    %v5066 = vpop.f32.mrf.mxu0
    %v5067 = vadd.f32 %v4954, %v5066
    %v5068 = vpop.f32.mrf.mxu0
    %v5069 = vadd.f32 %v4956, %v5068
    %v5070 = vpop.f32.mrf.mxu0
    %v5071 = vadd.f32 %v4958, %v5070
    %5072 = vmatprep.mubr.bf16.mxu0 %v1518
    %5073 = vmatmul.mubr.bf16.gmra.mxu0 %v1517
    %v5074 = vpop.f32.mrf.mxu0
    %v5075 = vadd.f32 %v4962, %v5074
    %v5076 = vpop.f32.mrf.mxu0
    %v5077 = vadd.f32 %v4964, %v5076
    %v5078 = vpop.f32.mrf.mxu0
    %v5079 = vadd.f32 %v4966, %v5078
    %v5080 = vpop.f32.mrf.mxu0
    %v5081 = vadd.f32 %v4968, %v5080
    %5082 = vmatprep.mubr.bf16.mxu0 %v1526
    %5083 = vmatmul.mubr.bf16.gmra.mxu0 %v1525
    %v5084 = vpop.f32.mrf.mxu0
    %v5085 = vadd.f32 %v4972, %v5084
    %v5086 = vpop.f32.mrf.mxu0
    %v5087 = vadd.f32 %v4974, %v5086
    %v5088 = vpop.f32.mrf.mxu0
    %v5089 = vadd.f32 %v4976, %v5088
    %v5090 = vpop.f32.mrf.mxu0
    %v5091 = vadd.f32 %v4978, %v5090
    %5092 = vdwg.mxu0
    %5093 = vmatprep.subr.bf16.mxu0 %v3676
    %5094 = vmatpush1.bf16.msra.mxu0 %v3675
    %5095 = vmatprep.subr.bf16.mxu0 %v3668
    %5096 = vmatpush1.bf16.msra.mxu0 %v3667
    %5097 = vmatprep.subr.bf16.mxu0 %v3660
    %5098 = vmatpush1.bf16.msra.mxu0 %v3659
    %5099 = vmatprep.subr.bf16.mxu0 %v3652
    %5100 = vmatpush1.bf16.msra.mxu0 %v3651
    %5101 = vmatprep.subr.bf16.mxu0 %v3644
    %5102 = vmatpush1.bf16.msra.mxu0 %v3643
    %5103 = vmatprep.subr.bf16.mxu0 %v3636
    %5104 = vmatpush1.bf16.msra.mxu0 %v3635
    %5105 = vmatprep.subr.bf16.mxu0 %v3628
    %5106 = vmatpush1.bf16.msra.mxu0 %v3627
    %5107 = vmatprep.subr.bf16.mxu0 %v3620
    %5108 = vmatpush1.bf16.msra.mxu0 %v3619
    %5109 = vmatprep.subr.bf16.mxu0 %v3740
    %5110 = vmatpush2.bf16.msra.mxu0 %v3739
    %5111 = vmatprep.subr.bf16.mxu0 %v3732
    %5112 = vmatpush2.bf16.msra.mxu0 %v3731
    %5113 = vmatprep.subr.bf16.mxu0 %v3724
    %5114 = vmatpush2.bf16.msra.mxu0 %v3723
    %5115 = vmatprep.subr.bf16.mxu0 %v3716
    %5116 = vmatpush2.bf16.msra.mxu0 %v3715
    %5117 = vmatprep.subr.bf16.mxu0 %v3708
    %5118 = vmatpush2.bf16.msra.mxu0 %v3707
    %5119 = vmatprep.subr.bf16.mxu0 %v3700
    %5120 = vmatpush2.bf16.msra.mxu0 %v3699
    %5121 = vmatprep.subr.bf16.mxu0 %v3692
    %5122 = vmatpush2.bf16.msra.mxu0 %v3691
    %5123 = vmatprep.subr.bf16.mxu0 %v3684
    %5124 = vmatpush2.bf16.msra.mxu0 %v3683
    %5125 = vmatprep.mubr.bf16.mxu0 %v1464
    %5126 = vmatmul.mubr.bf16.gmra.mxu0 %v1463
    %v5127 = vpop.f32.mrf.mxu0
    %v5128 = vadd.f32 %v2052, %v5127
    %v5129 = vpop.f32.mrf.mxu0
    %v5130 = vadd.f32 %v2056, %v5129
    %v5131 = vpop.f32.mrf.mxu0
    %v5132 = vadd.f32 %v2052, %v5131
    %v5133 = vpop.f32.mrf.mxu0
    %v5134 = vadd.f32 %v2056, %v5133
    %5135 = vmatprep.mubr.bf16.mxu0 %v1472
    %5136 = vmatmul.mubr.bf16.gmra.mxu0 %v1471
    %v5137 = vpop.f32.mrf.mxu0
    %v5138 = vadd.f32 %v2052, %v5137
    %v5139 = vpop.f32.mrf.mxu0
    %v5140 = vadd.f32 %v2056, %v5139
    %v5141 = vpop.f32.mrf.mxu0
    %v5142 = vadd.f32 %v2052, %v5141
    %v5143 = vpop.f32.mrf.mxu0
    %v5144 = vadd.f32 %v2056, %v5143
    %5145 = vmatprep.mubr.bf16.mxu0 %v1480
    %5146 = vmatmul.mubr.bf16.gmra.mxu0 %v1479
    %v5147 = vpop.f32.mrf.mxu0
    %v5148 = vadd.f32 %v2052, %v5147
    %v5149 = vpop.f32.mrf.mxu0
    %v5150 = vadd.f32 %v2056, %v5149
    %v5151 = vpop.f32.mrf.mxu0
    %v5152 = vadd.f32 %v2052, %v5151
    %v5153 = vpop.f32.mrf.mxu0
    %v5154 = vadd.f32 %v2056, %v5153
    %5155 = vmatprep.mubr.bf16.mxu0 %v1488
    %5156 = vmatmul.mubr.bf16.gmra.mxu0 %v1487
    %v5157 = vpop.f32.mrf.mxu0
    %v5158 = vadd.f32 %v2052, %v5157
    %v5159 = vpop.f32.mrf.mxu0
    %v5160 = vadd.f32 %v2056, %v5159
    %v5161 = vpop.f32.mrf.mxu0
    %v5162 = vadd.f32 %v2052, %v5161
    %v5163 = vpop.f32.mrf.mxu0
    %v5164 = vadd.f32 %v2056, %v5163
    %5165 = vmatprep.mubr.bf16.mxu0 %v1496
    %5166 = vmatmul.mubr.bf16.gmra.mxu0 %v1495
    %v5167 = vpop.f32.mrf.mxu0
    %v5168 = vadd.f32 %v2052, %v5167
    %v5169 = vpop.f32.mrf.mxu0
    %v5170 = vadd.f32 %v2056, %v5169
    %v5171 = vpop.f32.mrf.mxu0
    %v5172 = vadd.f32 %v2052, %v5171
    %v5173 = vpop.f32.mrf.mxu0
    %v5174 = vadd.f32 %v2056, %v5173
    %5175 = vmatprep.mubr.bf16.mxu0 %v1504
    %5176 = vmatmul.mubr.bf16.gmra.mxu0 %v1503
    %v5177 = vpop.f32.mrf.mxu0
    %v5178 = vadd.f32 %v2052, %v5177
    %v5179 = vpop.f32.mrf.mxu0
    %v5180 = vadd.f32 %v2056, %v5179
    %v5181 = vpop.f32.mrf.mxu0
    %v5182 = vadd.f32 %v2052, %v5181
    %v5183 = vpop.f32.mrf.mxu0
    %v5184 = vadd.f32 %v2056, %v5183
    %5185 = vmatprep.mubr.bf16.mxu0 %v1512
    %5186 = vmatmul.mubr.bf16.gmra.mxu0 %v1511
    %v5187 = vpop.f32.mrf.mxu0
    %v5188 = vadd.f32 %v2052, %v5187
    %v5189 = vpop.f32.mrf.mxu0
    %v5190 = vadd.f32 %v2056, %v5189
    %v5191 = vpop.f32.mrf.mxu0
    %v5192 = vadd.f32 %v2052, %v5191
    %v5193 = vpop.f32.mrf.mxu0
    %v5194 = vadd.f32 %v2056, %v5193
    %5195 = vmatprep.mubr.bf16.mxu0 %v1520
    %5196 = vmatmul.mubr.bf16.gmra.mxu0 %v1519
    %v5197 = vpop.f32.mrf.mxu0
    %v5198 = vadd.f32 %v2052, %v5197
    %v5199 = vpop.f32.mrf.mxu0
    %v5200 = vadd.f32 %v2056, %v5199
    %v5201 = vpop.f32.mrf.mxu0
    %v5202 = vadd.f32 %v2052, %v5201
    %v5203 = vpop.f32.mrf.mxu0
    %v5204 = vadd.f32 %v2056, %v5203
    %5205 = vdwg.mxu0
    %5206 = vmatprep.subr.bf16.mxu0 %v3804
    %5207 = vmatpush1.bf16.msra.mxu0 %v3803
    %5208 = vmatprep.subr.bf16.mxu0 %v3796
    %5209 = vmatpush1.bf16.msra.mxu0 %v3795
    %5210 = vmatprep.subr.bf16.mxu0 %v3788
    %5211 = vmatpush1.bf16.msra.mxu0 %v3787
    %5212 = vmatprep.subr.bf16.mxu0 %v3780
    %5213 = vmatpush1.bf16.msra.mxu0 %v3779
    %5214 = vmatprep.subr.bf16.mxu0 %v3772
    %5215 = vmatpush1.bf16.msra.mxu0 %v3771
    %5216 = vmatprep.subr.bf16.mxu0 %v3764
    %5217 = vmatpush1.bf16.msra.mxu0 %v3763
    %5218 = vmatprep.subr.bf16.mxu0 %v3756
    %5219 = vmatpush1.bf16.msra.mxu0 %v3755
    %5220 = vmatprep.subr.bf16.mxu0 %v3748
    %5221 = vmatpush1.bf16.msra.mxu0 %v3747
    %5222 = vmatprep.subr.bf16.mxu0 %v3868
    %5223 = vmatpush2.bf16.msra.mxu0 %v3867
    %5224 = vmatprep.subr.bf16.mxu0 %v3860
    %5225 = vmatpush2.bf16.msra.mxu0 %v3859
    %5226 = vmatprep.subr.bf16.mxu0 %v3852
    %5227 = vmatpush2.bf16.msra.mxu0 %v3851
    %5228 = vmatprep.subr.bf16.mxu0 %v3844
    %5229 = vmatpush2.bf16.msra.mxu0 %v3843
    %5230 = vmatprep.subr.bf16.mxu0 %v3836
    %5231 = vmatpush2.bf16.msra.mxu0 %v3835
    %5232 = vmatprep.subr.bf16.mxu0 %v3828
    %5233 = vmatpush2.bf16.msra.mxu0 %v3827
    %5234 = vmatprep.subr.bf16.mxu0 %v3820
    %5235 = vmatpush2.bf16.msra.mxu0 %v3819
    %5236 = vmatprep.subr.bf16.mxu0 %v3812
    %5237 = vmatpush2.bf16.msra.mxu0 %v3811
    %5238 = vmatprep.mubr.bf16.mxu0 %v1466
    %5239 = vmatmul.mubr.bf16.gmra.mxu0 %v1465
    %v5240 = vpop.f32.mrf.mxu0
    %v5241 = vadd.f32 %v5128, %v5240
    %v5242 = vpop.f32.mrf.mxu0
    %v5243 = vadd.f32 %v5130, %v5242
    %v5244 = vpop.f32.mrf.mxu0
    %v5245 = vadd.f32 %v5132, %v5244
    %v5246 = vpop.f32.mrf.mxu0
    %v5247 = vadd.f32 %v5134, %v5246
    %5248 = vmatprep.mubr.bf16.mxu0 %v1474
    %5249 = vmatmul.mubr.bf16.gmra.mxu0 %v1473
    %v5250 = vpop.f32.mrf.mxu0
    %v5251 = vadd.f32 %v5138, %v5250
    %v5252 = vpop.f32.mrf.mxu0
    %v5253 = vadd.f32 %v5140, %v5252
    %v5254 = vpop.f32.mrf.mxu0
    %v5255 = vadd.f32 %v5142, %v5254
    %v5256 = vpop.f32.mrf.mxu0
    %v5257 = vadd.f32 %v5144, %v5256
    %5258 = vmatprep.mubr.bf16.mxu0 %v1482
    %5259 = vmatmul.mubr.bf16.gmra.mxu0 %v1481
    %v5260 = vpop.f32.mrf.mxu0
    %v5261 = vadd.f32 %v5148, %v5260
    %v5262 = vpop.f32.mrf.mxu0
    %v5263 = vadd.f32 %v5150, %v5262
    %v5264 = vpop.f32.mrf.mxu0
    %v5265 = vadd.f32 %v5152, %v5264
    %v5266 = vpop.f32.mrf.mxu0
    %v5267 = vadd.f32 %v5154, %v5266
    %5268 = vmatprep.mubr.bf16.mxu0 %v1490
    %5269 = vmatmul.mubr.bf16.gmra.mxu0 %v1489
    %v5270 = vpop.f32.mrf.mxu0
    %v5271 = vadd.f32 %v5158, %v5270
    %v5272 = vpop.f32.mrf.mxu0
    %v5273 = vadd.f32 %v5160, %v5272
    %v5274 = vpop.f32.mrf.mxu0
    %v5275 = vadd.f32 %v5162, %v5274
    %v5276 = vpop.f32.mrf.mxu0
    %v5277 = vadd.f32 %v5164, %v5276
    %5278 = vmatprep.mubr.bf16.mxu0 %v1498
    %5279 = vmatmul.mubr.bf16.gmra.mxu0 %v1497
    %v5280 = vpop.f32.mrf.mxu0
    %v5281 = vadd.f32 %v5168, %v5280
    %v5282 = vpop.f32.mrf.mxu0
    %v5283 = vadd.f32 %v5170, %v5282
    %v5284 = vpop.f32.mrf.mxu0
    %v5285 = vadd.f32 %v5172, %v5284
    %v5286 = vpop.f32.mrf.mxu0
    %v5287 = vadd.f32 %v5174, %v5286
    %5288 = vmatprep.mubr.bf16.mxu0 %v1506
    %5289 = vmatmul.mubr.bf16.gmra.mxu0 %v1505
    %v5290 = vpop.f32.mrf.mxu0
    %v5291 = vadd.f32 %v5178, %v5290
    %v5292 = vpop.f32.mrf.mxu0
    %v5293 = vadd.f32 %v5180, %v5292
    %v5294 = vpop.f32.mrf.mxu0
    %v5295 = vadd.f32 %v5182, %v5294
    %v5296 = vpop.f32.mrf.mxu0
    %v5297 = vadd.f32 %v5184, %v5296
    %5298 = vmatprep.mubr.bf16.mxu0 %v1514
    %5299 = vmatmul.mubr.bf16.gmra.mxu0 %v1513
    %v5300 = vpop.f32.mrf.mxu0
    %v5301 = vadd.f32 %v5188, %v5300
    %v5302 = vpop.f32.mrf.mxu0
    %v5303 = vadd.f32 %v5190, %v5302
    %v5304 = vpop.f32.mrf.mxu0
    %v5305 = vadd.f32 %v5192, %v5304
    %v5306 = vpop.f32.mrf.mxu0
    %v5307 = vadd.f32 %v5194, %v5306
    %5308 = vmatprep.mubr.bf16.mxu0 %v1522
    %5309 = vmatmul.mubr.bf16.gmra.mxu0 %v1521
    %v5310 = vpop.f32.mrf.mxu0
    %v5311 = vadd.f32 %v5198, %v5310
    %v5312 = vpop.f32.mrf.mxu0
    %v5313 = vadd.f32 %v5200, %v5312
    %v5314 = vpop.f32.mrf.mxu0
    %v5315 = vadd.f32 %v5202, %v5314
    %v5316 = vpop.f32.mrf.mxu0
    %v5317 = vadd.f32 %v5204, %v5316
    %5318 = vdwg.mxu0
    %5319 = vmatprep.subr.bf16.mxu0 %v3932
    %5320 = vmatpush1.bf16.msra.mxu0 %v3931
    %5321 = vmatprep.subr.bf16.mxu0 %v3924
    %5322 = vmatpush1.bf16.msra.mxu0 %v3923
    %5323 = vmatprep.subr.bf16.mxu0 %v3916
    %5324 = vmatpush1.bf16.msra.mxu0 %v3915
    %5325 = vmatprep.subr.bf16.mxu0 %v3908
    %5326 = vmatpush1.bf16.msra.mxu0 %v3907
    %5327 = vmatprep.subr.bf16.mxu0 %v3900
    %5328 = vmatpush1.bf16.msra.mxu0 %v3899
    %5329 = vmatprep.subr.bf16.mxu0 %v3892
    %5330 = vmatpush1.bf16.msra.mxu0 %v3891
    %5331 = vmatprep.subr.bf16.mxu0 %v3884
    %5332 = vmatpush1.bf16.msra.mxu0 %v3883
    %5333 = vmatprep.subr.bf16.mxu0 %v3876
    %5334 = vmatpush1.bf16.msra.mxu0 %v3875
    %5335 = vmatprep.subr.bf16.mxu0 %v3996
    %5336 = vmatpush2.bf16.msra.mxu0 %v3995
    %5337 = vmatprep.subr.bf16.mxu0 %v3988
    %5338 = vmatpush2.bf16.msra.mxu0 %v3987
    %5339 = vmatprep.subr.bf16.mxu0 %v3980
    %5340 = vmatpush2.bf16.msra.mxu0 %v3979
    %5341 = vmatprep.subr.bf16.mxu0 %v3972
    %5342 = vmatpush2.bf16.msra.mxu0 %v3971
    %5343 = vmatprep.subr.bf16.mxu0 %v3964
    %5344 = vmatpush2.bf16.msra.mxu0 %v3963
    %5345 = vmatprep.subr.bf16.mxu0 %v3956
    %5346 = vmatpush2.bf16.msra.mxu0 %v3955
    %5347 = vmatprep.subr.bf16.mxu0 %v3948
    %5348 = vmatpush2.bf16.msra.mxu0 %v3947
    %5349 = vmatprep.subr.bf16.mxu0 %v3940
    %5350 = vmatpush2.bf16.msra.mxu0 %v3939
    %5351 = vmatprep.mubr.bf16.mxu0 %v1468
    %5352 = vmatmul.mubr.bf16.gmra.mxu0 %v1467
    %v5353 = vpop.f32.mrf.mxu0
    %v5354 = vadd.f32 %v5241, %v5353
    %v5355 = vpop.f32.mrf.mxu0
    %v5356 = vadd.f32 %v5243, %v5355
    %v5357 = vpop.f32.mrf.mxu0
    %v5358 = vadd.f32 %v5245, %v5357
    %v5359 = vpop.f32.mrf.mxu0
    %v5360 = vadd.f32 %v5247, %v5359
    %5361 = vmatprep.mubr.bf16.mxu0 %v1476
    %5362 = vmatmul.mubr.bf16.gmra.mxu0 %v1475
    %v5363 = vpop.f32.mrf.mxu0
    %v5364 = vadd.f32 %v5251, %v5363
    %v5365 = vpop.f32.mrf.mxu0
    %v5366 = vadd.f32 %v5253, %v5365
    %v5367 = vpop.f32.mrf.mxu0
    %v5368 = vadd.f32 %v5255, %v5367
    %v5369 = vpop.f32.mrf.mxu0
    %v5370 = vadd.f32 %v5257, %v5369
    %5371 = vmatprep.mubr.bf16.mxu0 %v1484
    %5372 = vmatmul.mubr.bf16.gmra.mxu0 %v1483
    %v5373 = vpop.f32.mrf.mxu0
    %v5374 = vadd.f32 %v5261, %v5373
    %v5375 = vpop.f32.mrf.mxu0
    %v5376 = vadd.f32 %v5263, %v5375
    %v5377 = vpop.f32.mrf.mxu0
    %v5378 = vadd.f32 %v5265, %v5377
    %v5379 = vpop.f32.mrf.mxu0
    %v5380 = vadd.f32 %v5267, %v5379
    %5381 = vmatprep.mubr.bf16.mxu0 %v1492
    %5382 = vmatmul.mubr.bf16.gmra.mxu0 %v1491
    %v5383 = vpop.f32.mrf.mxu0
    %v5384 = vadd.f32 %v5271, %v5383
    %v5385 = vpop.f32.mrf.mxu0
    %v5386 = vadd.f32 %v5273, %v5385
    %v5387 = vpop.f32.mrf.mxu0
    %v5388 = vadd.f32 %v5275, %v5387
    %v5389 = vpop.f32.mrf.mxu0
    %v5390 = vadd.f32 %v5277, %v5389
    %5391 = vmatprep.mubr.bf16.mxu0 %v1500
    %5392 = vmatmul.mubr.bf16.gmra.mxu0 %v1499
    %v5393 = vpop.f32.mrf.mxu0
    %v5394 = vadd.f32 %v5281, %v5393
    %v5395 = vpop.f32.mrf.mxu0
    %v5396 = vadd.f32 %v5283, %v5395
    %v5397 = vpop.f32.mrf.mxu0
    %v5398 = vadd.f32 %v5285, %v5397
    %v5399 = vpop.f32.mrf.mxu0
    %v5400 = vadd.f32 %v5287, %v5399
    %5401 = vmatprep.mubr.bf16.mxu0 %v1508
    %5402 = vmatmul.mubr.bf16.gmra.mxu0 %v1507
    %v5403 = vpop.f32.mrf.mxu0
    %v5404 = vadd.f32 %v5291, %v5403
    %v5405 = vpop.f32.mrf.mxu0
    %v5406 = vadd.f32 %v5293, %v5405
    %v5407 = vpop.f32.mrf.mxu0
    %v5408 = vadd.f32 %v5295, %v5407
    %v5409 = vpop.f32.mrf.mxu0
    %v5410 = vadd.f32 %v5297, %v5409
    %5411 = vmatprep.mubr.bf16.mxu0 %v1516
    %5412 = vmatmul.mubr.bf16.gmra.mxu0 %v1515
    %v5413 = vpop.f32.mrf.mxu0
    %v5414 = vadd.f32 %v5301, %v5413
    %v5415 = vpop.f32.mrf.mxu0
    %v5416 = vadd.f32 %v5303, %v5415
    %v5417 = vpop.f32.mrf.mxu0
    %v5418 = vadd.f32 %v5305, %v5417
    %v5419 = vpop.f32.mrf.mxu0
    %v5420 = vadd.f32 %v5307, %v5419
    %5421 = vmatprep.mubr.bf16.mxu0 %v1524
    %5422 = vmatmul.mubr.bf16.gmra.mxu0 %v1523
    %v5423 = vpop.f32.mrf.mxu0
    %v5424 = vadd.f32 %v5311, %v5423
    %v5425 = vpop.f32.mrf.mxu0
    %v5426 = vadd.f32 %v5313, %v5425
    %v5427 = vpop.f32.mrf.mxu0
    %v5428 = vadd.f32 %v5315, %v5427
    %v5429 = vpop.f32.mrf.mxu0
    %v5430 = vadd.f32 %v5317, %v5429
    %5431 = vdwg.mxu0
    %5432 = vmatprep.subr.bf16.mxu0 %v4060
    %5433 = vmatpush1.bf16.msra.mxu0 %v4059
    %5434 = vmatprep.subr.bf16.mxu0 %v4052
    %5435 = vmatpush1.bf16.msra.mxu0 %v4051
    %5436 = vmatprep.subr.bf16.mxu0 %v4044
    %5437 = vmatpush1.bf16.msra.mxu0 %v4043
    %5438 = vmatprep.subr.bf16.mxu0 %v4036
    %5439 = vmatpush1.bf16.msra.mxu0 %v4035
    %5440 = vmatprep.subr.bf16.mxu0 %v4028
    %5441 = vmatpush1.bf16.msra.mxu0 %v4027
    %5442 = vmatprep.subr.bf16.mxu0 %v4020
    %5443 = vmatpush1.bf16.msra.mxu0 %v4019
    %5444 = vmatprep.subr.bf16.mxu0 %v4012
    %5445 = vmatpush1.bf16.msra.mxu0 %v4011
    %5446 = vmatprep.subr.bf16.mxu0 %v4004
    %5447 = vmatpush1.bf16.msra.mxu0 %v4003
    %5448 = vmatprep.subr.bf16.mxu0 %v4124
    %5449 = vmatpush2.bf16.msra.mxu0 %v4123
    %5450 = vmatprep.subr.bf16.mxu0 %v4116
    %5451 = vmatpush2.bf16.msra.mxu0 %v4115
    %5452 = vmatprep.subr.bf16.mxu0 %v4108
    %5453 = vmatpush2.bf16.msra.mxu0 %v4107
    %5454 = vmatprep.subr.bf16.mxu0 %v4100
    %5455 = vmatpush2.bf16.msra.mxu0 %v4099
    %5456 = vmatprep.subr.bf16.mxu0 %v4092
    %5457 = vmatpush2.bf16.msra.mxu0 %v4091
    %5458 = vmatprep.subr.bf16.mxu0 %v4084
    %5459 = vmatpush2.bf16.msra.mxu0 %v4083
    %5460 = vmatprep.subr.bf16.mxu0 %v4076
    %5461 = vmatpush2.bf16.msra.mxu0 %v4075
    %5462 = vmatprep.subr.bf16.mxu0 %v4068
    %5463 = vmatpush2.bf16.msra.mxu0 %v4067
    %5464 = vmatprep.mubr.bf16.mxu0 %v1470
    %5465 = vmatmul.mubr.bf16.gmra.mxu0 %v1469
    %v5466 = vpop.f32.mrf.mxu0
    %v5467 = vadd.f32 %v5354, %v5466
    %v5468 = vpop.f32.mrf.mxu0
    %v5469 = vadd.f32 %v5356, %v5468
    %v5470 = vpop.f32.mrf.mxu0
    %v5471 = vadd.f32 %v5358, %v5470
    %v5472 = vpop.f32.mrf.mxu0
    %v5473 = vadd.f32 %v5360, %v5472
    %5474 = vmatprep.mubr.bf16.mxu0 %v1478
    %5475 = vmatmul.mubr.bf16.gmra.mxu0 %v1477
    %v5476 = vpop.f32.mrf.mxu0
    %v5477 = vadd.f32 %v5364, %v5476
    %v5478 = vpop.f32.mrf.mxu0
    %v5479 = vadd.f32 %v5366, %v5478
    %v5480 = vpop.f32.mrf.mxu0
    %v5481 = vadd.f32 %v5368, %v5480
    %v5482 = vpop.f32.mrf.mxu0
    %v5483 = vadd.f32 %v5370, %v5482
    %5484 = vmatprep.mubr.bf16.mxu0 %v1486
    %5485 = vmatmul.mubr.bf16.gmra.mxu0 %v1485
    %v5486 = vpop.f32.mrf.mxu0
    %v5487 = vadd.f32 %v5374, %v5486
    %v5488 = vpop.f32.mrf.mxu0
    %v5489 = vadd.f32 %v5376, %v5488
    %v5490 = vpop.f32.mrf.mxu0
    %v5491 = vadd.f32 %v5378, %v5490
    %v5492 = vpop.f32.mrf.mxu0
    %v5493 = vadd.f32 %v5380, %v5492
    %5494 = vmatprep.mubr.bf16.mxu0 %v1494
    %5495 = vmatmul.mubr.bf16.gmra.mxu0 %v1493
    %v5496 = vpop.f32.mrf.mxu0
    %v5497 = vadd.f32 %v5384, %v5496
    %v5498 = vpop.f32.mrf.mxu0
    %v5499 = vadd.f32 %v5386, %v5498
    %v5500 = vpop.f32.mrf.mxu0
    %v5501 = vadd.f32 %v5388, %v5500
    %v5502 = vpop.f32.mrf.mxu0
    %v5503 = vadd.f32 %v5390, %v5502
    %5504 = vmatprep.mubr.bf16.mxu0 %v1502
    %5505 = vmatmul.mubr.bf16.gmra.mxu0 %v1501
    %v5506 = vpop.f32.mrf.mxu0
    %v5507 = vadd.f32 %v5394, %v5506
    %v5508 = vpop.f32.mrf.mxu0
    %v5509 = vadd.f32 %v5396, %v5508
    %v5510 = vpop.f32.mrf.mxu0
    %v5511 = vadd.f32 %v5398, %v5510
    %v5512 = vpop.f32.mrf.mxu0
    %v5513 = vadd.f32 %v5400, %v5512
    %5514 = vmatprep.mubr.bf16.mxu0 %v1510
    %5515 = vmatmul.mubr.bf16.gmra.mxu0 %v1509
    %v5516 = vpop.f32.mrf.mxu0
    %v5517 = vadd.f32 %v5404, %v5516
    %v5518 = vpop.f32.mrf.mxu0
    %v5519 = vadd.f32 %v5406, %v5518
    %v5520 = vpop.f32.mrf.mxu0
    %v5521 = vadd.f32 %v5408, %v5520
    %v5522 = vpop.f32.mrf.mxu0
    %v5523 = vadd.f32 %v5410, %v5522
    %5524 = vmatprep.mubr.bf16.mxu0 %v1518
    %5525 = vmatmul.mubr.bf16.gmra.mxu0 %v1517
    %v5526 = vpop.f32.mrf.mxu0
    %v5527 = vadd.f32 %v5414, %v5526
    %v5528 = vpop.f32.mrf.mxu0
    %v5529 = vadd.f32 %v5416, %v5528
    %v5530 = vpop.f32.mrf.mxu0
    %v5531 = vadd.f32 %v5418, %v5530
    %v5532 = vpop.f32.mrf.mxu0
    %v5533 = vadd.f32 %v5420, %v5532
    %5534 = vmatprep.mubr.bf16.mxu0 %v1526
    %5535 = vmatmul.mubr.bf16.gmra.mxu0 %v1525
    %v5536 = vpop.f32.mrf.mxu0
    %v5537 = vadd.f32 %v5424, %v5536
    %v5538 = vpop.f32.mrf.mxu0
    %v5539 = vadd.f32 %v5426, %v5538
    %v5540 = vpop.f32.mrf.mxu0
    %v5541 = vadd.f32 %v5428, %v5540
    %v5542 = vpop.f32.mrf.mxu0
    %v5543 = vadd.f32 %v5430, %v5542
    %5544 = vdwg.mxu0
    %5545 = vmatprep.subr.bf16.mxu0 %v3678
    %5546 = vmatpush1.bf16.msra.mxu0 %v3677
    %5547 = vmatprep.subr.bf16.mxu0 %v3670
    %5548 = vmatpush1.bf16.msra.mxu0 %v3669
    %5549 = vmatprep.subr.bf16.mxu0 %v3662
    %5550 = vmatpush1.bf16.msra.mxu0 %v3661
    %5551 = vmatprep.subr.bf16.mxu0 %v3654
    %5552 = vmatpush1.bf16.msra.mxu0 %v3653
    %5553 = vmatprep.subr.bf16.mxu0 %v3646
    %5554 = vmatpush1.bf16.msra.mxu0 %v3645
    %5555 = vmatprep.subr.bf16.mxu0 %v3638
    %5556 = vmatpush1.bf16.msra.mxu0 %v3637
    %5557 = vmatprep.subr.bf16.mxu0 %v3630
    %5558 = vmatpush1.bf16.msra.mxu0 %v3629
    %5559 = vmatprep.subr.bf16.mxu0 %v3622
    %5560 = vmatpush1.bf16.msra.mxu0 %v3621
    %5561 = vmatprep.subr.bf16.mxu0 %v3742
    %5562 = vmatpush2.bf16.msra.mxu0 %v3741
    %5563 = vmatprep.subr.bf16.mxu0 %v3734
    %5564 = vmatpush2.bf16.msra.mxu0 %v3733
    %5565 = vmatprep.subr.bf16.mxu0 %v3726
    %5566 = vmatpush2.bf16.msra.mxu0 %v3725
    %5567 = vmatprep.subr.bf16.mxu0 %v3718
    %5568 = vmatpush2.bf16.msra.mxu0 %v3717
    %5569 = vmatprep.subr.bf16.mxu0 %v3710
    %5570 = vmatpush2.bf16.msra.mxu0 %v3709
    %5571 = vmatprep.subr.bf16.mxu0 %v3702
    %5572 = vmatpush2.bf16.msra.mxu0 %v3701
    %5573 = vmatprep.subr.bf16.mxu0 %v3694
    %5574 = vmatpush2.bf16.msra.mxu0 %v3693
    %5575 = vmatprep.subr.bf16.mxu0 %v3686
    %5576 = vmatpush2.bf16.msra.mxu0 %v3685
    %5577 = vmatprep.mubr.bf16.mxu0 %v1464
    %5578 = vmatmul.mubr.bf16.gmra.mxu0 %v1463
    %v5579 = vpop.f32.mrf.mxu0
    %v5580 = vadd.f32 %v2060, %v5579
    %v5581 = vpop.f32.mrf.mxu0
    %v5582 = vadd.f32 %v2064, %v5581
    %v5583 = vpop.f32.mrf.mxu0
    %v5584 = vadd.f32 %v2060, %v5583
    %v5585 = vpop.f32.mrf.mxu0
    %v5586 = vadd.f32 %v2064, %v5585
    %5587 = vmatprep.mubr.bf16.mxu0 %v1472
    %5588 = vmatmul.mubr.bf16.gmra.mxu0 %v1471
    %v5589 = vpop.f32.mrf.mxu0
    %v5590 = vadd.f32 %v2060, %v5589
    %v5591 = vpop.f32.mrf.mxu0
    %v5592 = vadd.f32 %v2064, %v5591
    %v5593 = vpop.f32.mrf.mxu0
    %v5594 = vadd.f32 %v2060, %v5593
    %v5595 = vpop.f32.mrf.mxu0
    %v5596 = vadd.f32 %v2064, %v5595
    %5597 = vmatprep.mubr.bf16.mxu0 %v1480
    %5598 = vmatmul.mubr.bf16.gmra.mxu0 %v1479
    %v5599 = vpop.f32.mrf.mxu0
    %v5600 = vadd.f32 %v2060, %v5599
    %v5601 = vpop.f32.mrf.mxu0
    %v5602 = vadd.f32 %v2064, %v5601
    %v5603 = vpop.f32.mrf.mxu0
    %v5604 = vadd.f32 %v2060, %v5603
    %v5605 = vpop.f32.mrf.mxu0
    %v5606 = vadd.f32 %v2064, %v5605
    %5607 = vmatprep.mubr.bf16.mxu0 %v1488
    %5608 = vmatmul.mubr.bf16.gmra.mxu0 %v1487
    %v5609 = vpop.f32.mrf.mxu0
    %v5610 = vadd.f32 %v2060, %v5609
    %v5611 = vpop.f32.mrf.mxu0
    %v5612 = vadd.f32 %v2064, %v5611
    %v5613 = vpop.f32.mrf.mxu0
    %v5614 = vadd.f32 %v2060, %v5613
    %v5615 = vpop.f32.mrf.mxu0
    %v5616 = vadd.f32 %v2064, %v5615
    %5617 = vmatprep.mubr.bf16.mxu0 %v1496
    %5618 = vmatmul.mubr.bf16.gmra.mxu0 %v1495
    %v5619 = vpop.f32.mrf.mxu0
    %v5620 = vadd.f32 %v2060, %v5619
    %v5621 = vpop.f32.mrf.mxu0
    %v5622 = vadd.f32 %v2064, %v5621
    %v5623 = vpop.f32.mrf.mxu0
    %v5624 = vadd.f32 %v2060, %v5623
    %v5625 = vpop.f32.mrf.mxu0
    %v5626 = vadd.f32 %v2064, %v5625
    %5627 = vmatprep.mubr.bf16.mxu0 %v1504
    %5628 = vmatmul.mubr.bf16.gmra.mxu0 %v1503
    %v5629 = vpop.f32.mrf.mxu0
    %v5630 = vadd.f32 %v2060, %v5629
    %v5631 = vpop.f32.mrf.mxu0
    %v5632 = vadd.f32 %v2064, %v5631
    %v5633 = vpop.f32.mrf.mxu0
    %v5634 = vadd.f32 %v2060, %v5633
    %v5635 = vpop.f32.mrf.mxu0
    %v5636 = vadd.f32 %v2064, %v5635
    %5637 = vmatprep.mubr.bf16.mxu0 %v1512
    %5638 = vmatmul.mubr.bf16.gmra.mxu0 %v1511
    %v5639 = vpop.f32.mrf.mxu0
    %v5640 = vadd.f32 %v2060, %v5639
    %v5641 = vpop.f32.mrf.mxu0
    %v5642 = vadd.f32 %v2064, %v5641
    %v5643 = vpop.f32.mrf.mxu0
    %v5644 = vadd.f32 %v2060, %v5643
    %v5645 = vpop.f32.mrf.mxu0
    %v5646 = vadd.f32 %v2064, %v5645
    %5647 = vmatprep.mubr.bf16.mxu0 %v1520
    %5648 = vmatmul.mubr.bf16.gmra.mxu0 %v1519
    %v5649 = vpop.f32.mrf.mxu0
    %v5650 = vadd.f32 %v2060, %v5649
    %v5651 = vpop.f32.mrf.mxu0
    %v5652 = vadd.f32 %v2064, %v5651
    %v5653 = vpop.f32.mrf.mxu0
    %v5654 = vadd.f32 %v2060, %v5653
    %v5655 = vpop.f32.mrf.mxu0
    %v5656 = vadd.f32 %v2064, %v5655
    %5657 = vdwg.mxu0
    %5658 = vmatprep.subr.bf16.mxu0 %v3806
    %5659 = vmatpush1.bf16.msra.mxu0 %v3805
    %5660 = vmatprep.subr.bf16.mxu0 %v3798
    %5661 = vmatpush1.bf16.msra.mxu0 %v3797
    %5662 = vmatprep.subr.bf16.mxu0 %v3790
    %5663 = vmatpush1.bf16.msra.mxu0 %v3789
    %5664 = vmatprep.subr.bf16.mxu0 %v3782
    %5665 = vmatpush1.bf16.msra.mxu0 %v3781
    %5666 = vmatprep.subr.bf16.mxu0 %v3774
    %5667 = vmatpush1.bf16.msra.mxu0 %v3773
    %5668 = vmatprep.subr.bf16.mxu0 %v3766
    %5669 = vmatpush1.bf16.msra.mxu0 %v3765
    %5670 = vmatprep.subr.bf16.mxu0 %v3758
    %5671 = vmatpush1.bf16.msra.mxu0 %v3757
    %5672 = vmatprep.subr.bf16.mxu0 %v3750
    %5673 = vmatpush1.bf16.msra.mxu0 %v3749
    %5674 = vmatprep.subr.bf16.mxu0 %v3870
    %5675 = vmatpush2.bf16.msra.mxu0 %v3869
    %5676 = vmatprep.subr.bf16.mxu0 %v3862
    %5677 = vmatpush2.bf16.msra.mxu0 %v3861
    %5678 = vmatprep.subr.bf16.mxu0 %v3854
    %5679 = vmatpush2.bf16.msra.mxu0 %v3853
    %5680 = vmatprep.subr.bf16.mxu0 %v3846
    %5681 = vmatpush2.bf16.msra.mxu0 %v3845
    %5682 = vmatprep.subr.bf16.mxu0 %v3838
    %5683 = vmatpush2.bf16.msra.mxu0 %v3837
    %5684 = vmatprep.subr.bf16.mxu0 %v3830
    %5685 = vmatpush2.bf16.msra.mxu0 %v3829
    %5686 = vmatprep.subr.bf16.mxu0 %v3822
    %5687 = vmatpush2.bf16.msra.mxu0 %v3821
    %5688 = vmatprep.subr.bf16.mxu0 %v3814
    %5689 = vmatpush2.bf16.msra.mxu0 %v3813
    %5690 = vmatprep.mubr.bf16.mxu0 %v1466
    %5691 = vmatmul.mubr.bf16.gmra.mxu0 %v1465
    %v5692 = vpop.f32.mrf.mxu0
    %v5693 = vadd.f32 %v5580, %v5692
    %v5694 = vpop.f32.mrf.mxu0
    %v5695 = vadd.f32 %v5582, %v5694
    %v5696 = vpop.f32.mrf.mxu0
    %v5697 = vadd.f32 %v5584, %v5696
    %v5698 = vpop.f32.mrf.mxu0
    %v5699 = vadd.f32 %v5586, %v5698
    %5700 = vmatprep.mubr.bf16.mxu0 %v1474
    %5701 = vmatmul.mubr.bf16.gmra.mxu0 %v1473
    %v5702 = vpop.f32.mrf.mxu0
    %v5703 = vadd.f32 %v5590, %v5702
    %v5704 = vpop.f32.mrf.mxu0
    %v5705 = vadd.f32 %v5592, %v5704
    %v5706 = vpop.f32.mrf.mxu0
    %v5707 = vadd.f32 %v5594, %v5706
    %v5708 = vpop.f32.mrf.mxu0
    %v5709 = vadd.f32 %v5596, %v5708
    %5710 = vmatprep.mubr.bf16.mxu0 %v1482
    %5711 = vmatmul.mubr.bf16.gmra.mxu0 %v1481
    %v5712 = vpop.f32.mrf.mxu0
    %v5713 = vadd.f32 %v5600, %v5712
    %v5714 = vpop.f32.mrf.mxu0
    %v5715 = vadd.f32 %v5602, %v5714
    %v5716 = vpop.f32.mrf.mxu0
    %v5717 = vadd.f32 %v5604, %v5716
    %v5718 = vpop.f32.mrf.mxu0
    %v5719 = vadd.f32 %v5606, %v5718
    %5720 = vmatprep.mubr.bf16.mxu0 %v1490
    %5721 = vmatmul.mubr.bf16.gmra.mxu0 %v1489
    %v5722 = vpop.f32.mrf.mxu0
    %v5723 = vadd.f32 %v5610, %v5722
    %v5724 = vpop.f32.mrf.mxu0
    %v5725 = vadd.f32 %v5612, %v5724
    %v5726 = vpop.f32.mrf.mxu0
    %v5727 = vadd.f32 %v5614, %v5726
    %v5728 = vpop.f32.mrf.mxu0
    %v5729 = vadd.f32 %v5616, %v5728
    %5730 = vmatprep.mubr.bf16.mxu0 %v1498
    %5731 = vmatmul.mubr.bf16.gmra.mxu0 %v1497
    %v5732 = vpop.f32.mrf.mxu0
    %v5733 = vadd.f32 %v5620, %v5732
    %v5734 = vpop.f32.mrf.mxu0
    %v5735 = vadd.f32 %v5622, %v5734
    %v5736 = vpop.f32.mrf.mxu0
    %v5737 = vadd.f32 %v5624, %v5736
    %v5738 = vpop.f32.mrf.mxu0
    %v5739 = vadd.f32 %v5626, %v5738
    %5740 = vmatprep.mubr.bf16.mxu0 %v1506
    %5741 = vmatmul.mubr.bf16.gmra.mxu0 %v1505
    %v5742 = vpop.f32.mrf.mxu0
    %v5743 = vadd.f32 %v5630, %v5742
    %v5744 = vpop.f32.mrf.mxu0
    %v5745 = vadd.f32 %v5632, %v5744
    %v5746 = vpop.f32.mrf.mxu0
    %v5747 = vadd.f32 %v5634, %v5746
    %v5748 = vpop.f32.mrf.mxu0
    %v5749 = vadd.f32 %v5636, %v5748
    %5750 = vmatprep.mubr.bf16.mxu0 %v1514
    %5751 = vmatmul.mubr.bf16.gmra.mxu0 %v1513
    %v5752 = vpop.f32.mrf.mxu0
    %v5753 = vadd.f32 %v5640, %v5752
    %v5754 = vpop.f32.mrf.mxu0
    %v5755 = vadd.f32 %v5642, %v5754
    %v5756 = vpop.f32.mrf.mxu0
    %v5757 = vadd.f32 %v5644, %v5756
    %v5758 = vpop.f32.mrf.mxu0
    %v5759 = vadd.f32 %v5646, %v5758
    %5760 = vmatprep.mubr.bf16.mxu0 %v1522
    %5761 = vmatmul.mubr.bf16.gmra.mxu0 %v1521
    %v5762 = vpop.f32.mrf.mxu0
    %v5763 = vadd.f32 %v5650, %v5762
    %v5764 = vpop.f32.mrf.mxu0
    %v5765 = vadd.f32 %v5652, %v5764
    %v5766 = vpop.f32.mrf.mxu0
    %v5767 = vadd.f32 %v5654, %v5766
    %v5768 = vpop.f32.mrf.mxu0
    %v5769 = vadd.f32 %v5656, %v5768
    %5770 = vdwg.mxu0
    %5771 = vmatprep.subr.bf16.mxu0 %v3934
    %5772 = vmatpush1.bf16.msra.mxu0 %v3933
    %5773 = vmatprep.subr.bf16.mxu0 %v3926
    %5774 = vmatpush1.bf16.msra.mxu0 %v3925
    %5775 = vmatprep.subr.bf16.mxu0 %v3918
    %5776 = vmatpush1.bf16.msra.mxu0 %v3917
    %5777 = vmatprep.subr.bf16.mxu0 %v3910
    %5778 = vmatpush1.bf16.msra.mxu0 %v3909
    %5779 = vmatprep.subr.bf16.mxu0 %v3902
    %5780 = vmatpush1.bf16.msra.mxu0 %v3901
    %5781 = vmatprep.subr.bf16.mxu0 %v3894
    %5782 = vmatpush1.bf16.msra.mxu0 %v3893
    %5783 = vmatprep.subr.bf16.mxu0 %v3886
    %5784 = vmatpush1.bf16.msra.mxu0 %v3885
    %5785 = vmatprep.subr.bf16.mxu0 %v3878
    %5786 = vmatpush1.bf16.msra.mxu0 %v3877
    %5787 = vmatprep.subr.bf16.mxu0 %v3998
    %5788 = vmatpush2.bf16.msra.mxu0 %v3997
    %5789 = vmatprep.subr.bf16.mxu0 %v3990
    %5790 = vmatpush2.bf16.msra.mxu0 %v3989
    %5791 = vmatprep.subr.bf16.mxu0 %v3982
    %5792 = vmatpush2.bf16.msra.mxu0 %v3981
    %5793 = vmatprep.subr.bf16.mxu0 %v3974
    %5794 = vmatpush2.bf16.msra.mxu0 %v3973
    %5795 = vmatprep.subr.bf16.mxu0 %v3966
    %5796 = vmatpush2.bf16.msra.mxu0 %v3965
    %5797 = vmatprep.subr.bf16.mxu0 %v3958
    %5798 = vmatpush2.bf16.msra.mxu0 %v3957
    %5799 = vmatprep.subr.bf16.mxu0 %v3950
    %5800 = vmatpush2.bf16.msra.mxu0 %v3949
    %5801 = vmatprep.subr.bf16.mxu0 %v3942
    %5802 = vmatpush2.bf16.msra.mxu0 %v3941
    %5803 = vmatprep.mubr.bf16.mxu0 %v1468
    %5804 = vmatmul.mubr.bf16.gmra.mxu0 %v1467
    %v5805 = vpop.f32.mrf.mxu0
    %v5806 = vadd.f32 %v5693, %v5805
    %v5807 = vpop.f32.mrf.mxu0
    %v5808 = vadd.f32 %v5695, %v5807
    %v5809 = vpop.f32.mrf.mxu0
    %v5810 = vadd.f32 %v5697, %v5809
    %v5811 = vpop.f32.mrf.mxu0
    %v5812 = vadd.f32 %v5699, %v5811
    %5813 = vmatprep.mubr.bf16.mxu0 %v1476
    %5814 = vmatmul.mubr.bf16.gmra.mxu0 %v1475
    %v5815 = vpop.f32.mrf.mxu0
    %v5816 = vadd.f32 %v5703, %v5815
    %v5817 = vpop.f32.mrf.mxu0
    %v5818 = vadd.f32 %v5705, %v5817
    %v5819 = vpop.f32.mrf.mxu0
    %v5820 = vadd.f32 %v5707, %v5819
    %v5821 = vpop.f32.mrf.mxu0
    %v5822 = vadd.f32 %v5709, %v5821
    %5823 = vmatprep.mubr.bf16.mxu0 %v1484
    %5824 = vmatmul.mubr.bf16.gmra.mxu0 %v1483
    %v5825 = vpop.f32.mrf.mxu0
    %v5826 = vadd.f32 %v5713, %v5825
    %v5827 = vpop.f32.mrf.mxu0
    %v5828 = vadd.f32 %v5715, %v5827
    %v5829 = vpop.f32.mrf.mxu0
    %v5830 = vadd.f32 %v5717, %v5829
    %v5831 = vpop.f32.mrf.mxu0
    %v5832 = vadd.f32 %v5719, %v5831
    %5833 = vmatprep.mubr.bf16.mxu0 %v1492
    %5834 = vmatmul.mubr.bf16.gmra.mxu0 %v1491
    %v5835 = vpop.f32.mrf.mxu0
    %v5836 = vadd.f32 %v5723, %v5835
    %v5837 = vpop.f32.mrf.mxu0
    %v5838 = vadd.f32 %v5725, %v5837
    %v5839 = vpop.f32.mrf.mxu0
    %v5840 = vadd.f32 %v5727, %v5839
    %v5841 = vpop.f32.mrf.mxu0
    %v5842 = vadd.f32 %v5729, %v5841
    %5843 = vmatprep.mubr.bf16.mxu0 %v1500
    %5844 = vmatmul.mubr.bf16.gmra.mxu0 %v1499
    %v5845 = vpop.f32.mrf.mxu0
    %v5846 = vadd.f32 %v5733, %v5845
    %v5847 = vpop.f32.mrf.mxu0
    %v5848 = vadd.f32 %v5735, %v5847
    %v5849 = vpop.f32.mrf.mxu0
    %v5850 = vadd.f32 %v5737, %v5849
    %v5851 = vpop.f32.mrf.mxu0
    %v5852 = vadd.f32 %v5739, %v5851
    %5853 = vmatprep.mubr.bf16.mxu0 %v1508
    %5854 = vmatmul.mubr.bf16.gmra.mxu0 %v1507
    %v5855 = vpop.f32.mrf.mxu0
    %v5856 = vadd.f32 %v5743, %v5855
    %v5857 = vpop.f32.mrf.mxu0
    %v5858 = vadd.f32 %v5745, %v5857
    %v5859 = vpop.f32.mrf.mxu0
    %v5860 = vadd.f32 %v5747, %v5859
    %v5861 = vpop.f32.mrf.mxu0
    %v5862 = vadd.f32 %v5749, %v5861
    %5863 = vmatprep.mubr.bf16.mxu0 %v1516
    %5864 = vmatmul.mubr.bf16.gmra.mxu0 %v1515
    %v5865 = vpop.f32.mrf.mxu0
    %v5866 = vadd.f32 %v5753, %v5865
    %v5867 = vpop.f32.mrf.mxu0
    %v5868 = vadd.f32 %v5755, %v5867
    %v5869 = vpop.f32.mrf.mxu0
    %v5870 = vadd.f32 %v5757, %v5869
    %v5871 = vpop.f32.mrf.mxu0
    %v5872 = vadd.f32 %v5759, %v5871
    %5873 = vmatprep.mubr.bf16.mxu0 %v1524
    %5874 = vmatmul.mubr.bf16.gmra.mxu0 %v1523
    %v5875 = vpop.f32.mrf.mxu0
    %v5876 = vadd.f32 %v5763, %v5875
    %v5877 = vpop.f32.mrf.mxu0
    %v5878 = vadd.f32 %v5765, %v5877
    %v5879 = vpop.f32.mrf.mxu0
    %v5880 = vadd.f32 %v5767, %v5879
    %v5881 = vpop.f32.mrf.mxu0
    %v5882 = vadd.f32 %v5769, %v5881
    %5883 = vdwg.mxu0
    %5884 = vmatprep.subr.bf16.mxu0 %v4062
    %5885 = vmatpush1.bf16.msra.mxu0 %v4061
    %5886 = vmatprep.subr.bf16.mxu0 %v4054
    %5887 = vmatpush1.bf16.msra.mxu0 %v4053
    %5888 = vmatprep.subr.bf16.mxu0 %v4046
    %5889 = vmatpush1.bf16.msra.mxu0 %v4045
    %5890 = vmatprep.subr.bf16.mxu0 %v4038
    %5891 = vmatpush1.bf16.msra.mxu0 %v4037
    %5892 = vmatprep.subr.bf16.mxu0 %v4030
    %5893 = vmatpush1.bf16.msra.mxu0 %v4029
    %5894 = vmatprep.subr.bf16.mxu0 %v4022
    %5895 = vmatpush1.bf16.msra.mxu0 %v4021
    %5896 = vmatprep.subr.bf16.mxu0 %v4014
    %5897 = vmatpush1.bf16.msra.mxu0 %v4013
    %5898 = vmatprep.subr.bf16.mxu0 %v4006
    %5899 = vmatpush1.bf16.msra.mxu0 %v4005
    %5900 = vmatprep.subr.bf16.mxu0 %v4126
    %5901 = vmatpush2.bf16.msra.mxu0 %v4125
    %5902 = vmatprep.subr.bf16.mxu0 %v4118
    %5903 = vmatpush2.bf16.msra.mxu0 %v4117
    %5904 = vmatprep.subr.bf16.mxu0 %v4110
    %5905 = vmatpush2.bf16.msra.mxu0 %v4109
    %5906 = vmatprep.subr.bf16.mxu0 %v4102
    %5907 = vmatpush2.bf16.msra.mxu0 %v4101
    %5908 = vmatprep.subr.bf16.mxu0 %v4094
    %5909 = vmatpush2.bf16.msra.mxu0 %v4093
    %5910 = vmatprep.subr.bf16.mxu0 %v4086
    %5911 = vmatpush2.bf16.msra.mxu0 %v4085
    %5912 = vmatprep.subr.bf16.mxu0 %v4078
    %5913 = vmatpush2.bf16.msra.mxu0 %v4077
    %5914 = vmatprep.subr.bf16.mxu0 %v4070
    %5915 = vmatpush2.bf16.msra.mxu0 %v4069
    %5916 = vmatprep.mubr.bf16.mxu0 %v1470
    %5917 = vmatmul.mubr.bf16.gmra.mxu0 %v1469
    %v5918 = vpop.f32.mrf.mxu0
    %v5919 = vadd.f32 %v5806, %v5918
    %v5920 = vpop.f32.mrf.mxu0
    %v5921 = vadd.f32 %v5808, %v5920
    %v5922 = vpop.f32.mrf.mxu0
    %v5923 = vadd.f32 %v5810, %v5922
    %v5924 = vpop.f32.mrf.mxu0
    %v5925 = vadd.f32 %v5812, %v5924
    %5926 = vmatprep.mubr.bf16.mxu0 %v1478
    %5927 = vmatmul.mubr.bf16.gmra.mxu0 %v1477
    %v5928 = vpop.f32.mrf.mxu0
    %v5929 = vadd.f32 %v5816, %v5928
    %v5930 = vpop.f32.mrf.mxu0
    %v5931 = vadd.f32 %v5818, %v5930
    %v5932 = vpop.f32.mrf.mxu0
    %v5933 = vadd.f32 %v5820, %v5932
    %v5934 = vpop.f32.mrf.mxu0
    %v5935 = vadd.f32 %v5822, %v5934
    %5936 = vmatprep.mubr.bf16.mxu0 %v1486
    %5937 = vmatmul.mubr.bf16.gmra.mxu0 %v1485
    %v5938 = vpop.f32.mrf.mxu0
    %v5939 = vadd.f32 %v5826, %v5938
    %v5940 = vpop.f32.mrf.mxu0
    %v5941 = vadd.f32 %v5828, %v5940
    %v5942 = vpop.f32.mrf.mxu0
    %v5943 = vadd.f32 %v5830, %v5942
    %v5944 = vpop.f32.mrf.mxu0
    %v5945 = vadd.f32 %v5832, %v5944
    %5946 = vmatprep.mubr.bf16.mxu0 %v1494
    %5947 = vmatmul.mubr.bf16.gmra.mxu0 %v1493
    %v5948 = vpop.f32.mrf.mxu0
    %v5949 = vadd.f32 %v5836, %v5948
    %v5950 = vpop.f32.mrf.mxu0
    %v5951 = vadd.f32 %v5838, %v5950
    %v5952 = vpop.f32.mrf.mxu0
    %v5953 = vadd.f32 %v5840, %v5952
    %v5954 = vpop.f32.mrf.mxu0
    %v5955 = vadd.f32 %v5842, %v5954
    %5956 = vmatprep.mubr.bf16.mxu0 %v1502
    %5957 = vmatmul.mubr.bf16.gmra.mxu0 %v1501
    %v5958 = vpop.f32.mrf.mxu0
    %v5959 = vadd.f32 %v5846, %v5958
    %v5960 = vpop.f32.mrf.mxu0
    %v5961 = vadd.f32 %v5848, %v5960
    %v5962 = vpop.f32.mrf.mxu0
    %v5963 = vadd.f32 %v5850, %v5962
    %v5964 = vpop.f32.mrf.mxu0
    %v5965 = vadd.f32 %v5852, %v5964
    %5966 = vmatprep.mubr.bf16.mxu0 %v1510
    %5967 = vmatmul.mubr.bf16.gmra.mxu0 %v1509
    %v5968 = vpop.f32.mrf.mxu0
    %v5969 = vadd.f32 %v5856, %v5968
    %v5970 = vpop.f32.mrf.mxu0
    %v5971 = vadd.f32 %v5858, %v5970
    %v5972 = vpop.f32.mrf.mxu0
    %v5973 = vadd.f32 %v5860, %v5972
    %v5974 = vpop.f32.mrf.mxu0
    %v5975 = vadd.f32 %v5862, %v5974
    %5976 = vmatprep.mubr.bf16.mxu0 %v1518
    %5977 = vmatmul.mubr.bf16.gmra.mxu0 %v1517
    %v5978 = vpop.f32.mrf.mxu0
    %v5979 = vadd.f32 %v5866, %v5978
    %v5980 = vpop.f32.mrf.mxu0
    %v5981 = vadd.f32 %v5868, %v5980
    %v5982 = vpop.f32.mrf.mxu0
    %v5983 = vadd.f32 %v5870, %v5982
    %v5984 = vpop.f32.mrf.mxu0
    %v5985 = vadd.f32 %v5872, %v5984
    %5986 = vmatprep.mubr.bf16.mxu0 %v1526
    %5987 = vmatmul.mubr.bf16.gmra.mxu0 %v1525
    %v5988 = vpop.f32.mrf.mxu0
    %v5989 = vadd.f32 %v5876, %v5988
    %v5990 = vpop.f32.mrf.mxu0
    %v5991 = vadd.f32 %v5878, %v5990
    %v5992 = vpop.f32.mrf.mxu0
    %v5993 = vadd.f32 %v5880, %v5992
    %v5994 = vpop.f32.mrf.mxu0
    %v5995 = vadd.f32 %v5882, %v5994
    %5996 = vdwg.mxu0
    %5997 = vmatprep.subr.bf16.mxu0 %v3680
    %5998 = vmatpush1.bf16.msra.mxu0 %v3679
    %5999 = vmatprep.subr.bf16.mxu0 %v3672
    %6000 = vmatpush1.bf16.msra.mxu0 %v3671
    %6001 = vmatprep.subr.bf16.mxu0 %v3664
    %6002 = vmatpush1.bf16.msra.mxu0 %v3663
    %6003 = vmatprep.subr.bf16.mxu0 %v3656
    %6004 = vmatpush1.bf16.msra.mxu0 %v3655
    %6005 = vmatprep.subr.bf16.mxu0 %v3648
    %6006 = vmatpush1.bf16.msra.mxu0 %v3647
    %6007 = vmatprep.subr.bf16.mxu0 %v3640
    %6008 = vmatpush1.bf16.msra.mxu0 %v3639
    %6009 = vmatprep.subr.bf16.mxu0 %v3632
    %6010 = vmatpush1.bf16.msra.mxu0 %v3631
    %6011 = vmatprep.subr.bf16.mxu0 %v3624
    %6012 = vmatpush1.bf16.msra.mxu0 %v3623
    %6013 = vmatprep.subr.bf16.mxu0 %v3744
    %6014 = vmatpush2.bf16.msra.mxu0 %v3743
    %6015 = vmatprep.subr.bf16.mxu0 %v3736
    %6016 = vmatpush2.bf16.msra.mxu0 %v3735
    %6017 = vmatprep.subr.bf16.mxu0 %v3728
    %6018 = vmatpush2.bf16.msra.mxu0 %v3727
    %6019 = vmatprep.subr.bf16.mxu0 %v3720
    %6020 = vmatpush2.bf16.msra.mxu0 %v3719
    %6021 = vmatprep.subr.bf16.mxu0 %v3712
    %6022 = vmatpush2.bf16.msra.mxu0 %v3711
    %6023 = vmatprep.subr.bf16.mxu0 %v3704
    %6024 = vmatpush2.bf16.msra.mxu0 %v3703
    %6025 = vmatprep.subr.bf16.mxu0 %v3696
    %6026 = vmatpush2.bf16.msra.mxu0 %v3695
    %6027 = vmatprep.subr.bf16.mxu0 %v3688
    %6028 = vmatpush2.bf16.msra.mxu0 %v3687
    %6029 = vmatprep.mubr.bf16.mxu0 %v1464
    %6030 = vmatmul.mubr.bf16.gmra.mxu0 %v1463
    %v6031 = vpop.f32.mrf.mxu0
    %v6032 = vadd.f32 %v2068, %v6031
    %v6033 = vpop.f32.mrf.mxu0
    %v6034 = vadd.f32 %v2072, %v6033
    %v6035 = vpop.f32.mrf.mxu0
    %v6036 = vadd.f32 %v2068, %v6035
    %v6037 = vpop.f32.mrf.mxu0
    %v6038 = vadd.f32 %v2072, %v6037
    %6039 = vmatprep.mubr.bf16.mxu0 %v1472
    %6040 = vmatmul.mubr.bf16.gmra.mxu0 %v1471
    %v6041 = vpop.f32.mrf.mxu0
    %v6042 = vadd.f32 %v2068, %v6041
    %v6043 = vpop.f32.mrf.mxu0
    %v6044 = vadd.f32 %v2072, %v6043
    %v6045 = vpop.f32.mrf.mxu0
    %v6046 = vadd.f32 %v2068, %v6045
    %v6047 = vpop.f32.mrf.mxu0
    %v6048 = vadd.f32 %v2072, %v6047
    %6049 = vmatprep.mubr.bf16.mxu0 %v1480
    %6050 = vmatmul.mubr.bf16.gmra.mxu0 %v1479
    %v6051 = vpop.f32.mrf.mxu0
    %v6052 = vadd.f32 %v2068, %v6051
    %v6053 = vpop.f32.mrf.mxu0
    %v6054 = vadd.f32 %v2072, %v6053
    %v6055 = vpop.f32.mrf.mxu0
    %v6056 = vadd.f32 %v2068, %v6055
    %v6057 = vpop.f32.mrf.mxu0
    %v6058 = vadd.f32 %v2072, %v6057
    %6059 = vmatprep.mubr.bf16.mxu0 %v1488
    %6060 = vmatmul.mubr.bf16.gmra.mxu0 %v1487
    %v6061 = vpop.f32.mrf.mxu0
    %v6062 = vadd.f32 %v2068, %v6061
    %v6063 = vpop.f32.mrf.mxu0
    %v6064 = vadd.f32 %v2072, %v6063
    %v6065 = vpop.f32.mrf.mxu0
    %v6066 = vadd.f32 %v2068, %v6065
    %v6067 = vpop.f32.mrf.mxu0
    %v6068 = vadd.f32 %v2072, %v6067
    %6069 = vmatprep.mubr.bf16.mxu0 %v1496
    %6070 = vmatmul.mubr.bf16.gmra.mxu0 %v1495
    %v6071 = vpop.f32.mrf.mxu0
    %v6072 = vadd.f32 %v2068, %v6071
    %v6073 = vpop.f32.mrf.mxu0
    %v6074 = vadd.f32 %v2072, %v6073
    %v6075 = vpop.f32.mrf.mxu0
    %v6076 = vadd.f32 %v2068, %v6075
    %v6077 = vpop.f32.mrf.mxu0
    %v6078 = vadd.f32 %v2072, %v6077
    %6079 = vmatprep.mubr.bf16.mxu0 %v1504
    %6080 = vmatmul.mubr.bf16.gmra.mxu0 %v1503
    %v6081 = vpop.f32.mrf.mxu0
    %v6082 = vadd.f32 %v2068, %v6081
    %v6083 = vpop.f32.mrf.mxu0
    %v6084 = vadd.f32 %v2072, %v6083
    %v6085 = vpop.f32.mrf.mxu0
    %v6086 = vadd.f32 %v2068, %v6085
    %v6087 = vpop.f32.mrf.mxu0
    %v6088 = vadd.f32 %v2072, %v6087
    %6089 = vmatprep.mubr.bf16.mxu0 %v1512
    %6090 = vmatmul.mubr.bf16.gmra.mxu0 %v1511
    %v6091 = vpop.f32.mrf.mxu0
    %v6092 = vadd.f32 %v2068, %v6091
    %v6093 = vpop.f32.mrf.mxu0
    %v6094 = vadd.f32 %v2072, %v6093
    %v6095 = vpop.f32.mrf.mxu0
    %v6096 = vadd.f32 %v2068, %v6095
    %v6097 = vpop.f32.mrf.mxu0
    %v6098 = vadd.f32 %v2072, %v6097
    %6099 = vmatprep.mubr.bf16.mxu0 %v1520
    %6100 = vmatmul.mubr.bf16.gmra.mxu0 %v1519
    %v6101 = vpop.f32.mrf.mxu0
    %v6102 = vadd.f32 %v2068, %v6101
    %v6103 = vpop.f32.mrf.mxu0
    %v6104 = vadd.f32 %v2072, %v6103
    %v6105 = vpop.f32.mrf.mxu0
    %v6106 = vadd.f32 %v2068, %v6105
    %v6107 = vpop.f32.mrf.mxu0
    %v6108 = vadd.f32 %v2072, %v6107
    %6109 = vdwg.mxu0
    %6110 = vmatprep.subr.bf16.mxu0 %v3808
    %6111 = vmatpush1.bf16.msra.mxu0 %v3807
    %6112 = vmatprep.subr.bf16.mxu0 %v3800
    %6113 = vmatpush1.bf16.msra.mxu0 %v3799
    %6114 = vmatprep.subr.bf16.mxu0 %v3792
    %6115 = vmatpush1.bf16.msra.mxu0 %v3791
    %6116 = vmatprep.subr.bf16.mxu0 %v3784
    %6117 = vmatpush1.bf16.msra.mxu0 %v3783
    %6118 = vmatprep.subr.bf16.mxu0 %v3776
    %6119 = vmatpush1.bf16.msra.mxu0 %v3775
    %6120 = vmatprep.subr.bf16.mxu0 %v3768
    %6121 = vmatpush1.bf16.msra.mxu0 %v3767
    %6122 = vmatprep.subr.bf16.mxu0 %v3760
    %6123 = vmatpush1.bf16.msra.mxu0 %v3759
    %6124 = vmatprep.subr.bf16.mxu0 %v3752
    %6125 = vmatpush1.bf16.msra.mxu0 %v3751
    %6126 = vmatprep.subr.bf16.mxu0 %v3872
    %6127 = vmatpush2.bf16.msra.mxu0 %v3871
    %6128 = vmatprep.subr.bf16.mxu0 %v3864
    %6129 = vmatpush2.bf16.msra.mxu0 %v3863
    %6130 = vmatprep.subr.bf16.mxu0 %v3856
    %6131 = vmatpush2.bf16.msra.mxu0 %v3855
    %6132 = vmatprep.subr.bf16.mxu0 %v3848
    %6133 = vmatpush2.bf16.msra.mxu0 %v3847
    %6134 = vmatprep.subr.bf16.mxu0 %v3840
    %6135 = vmatpush2.bf16.msra.mxu0 %v3839
    %6136 = vmatprep.subr.bf16.mxu0 %v3832
    %6137 = vmatpush2.bf16.msra.mxu0 %v3831
    %6138 = vmatprep.subr.bf16.mxu0 %v3824
    %6139 = vmatpush2.bf16.msra.mxu0 %v3823
    %6140 = vmatprep.subr.bf16.mxu0 %v3816
    %6141 = vmatpush2.bf16.msra.mxu0 %v3815
    %6142 = vmatprep.mubr.bf16.mxu0 %v1466
    %6143 = vmatmul.mubr.bf16.gmra.mxu0 %v1465
    %v6144 = vpop.f32.mrf.mxu0
    %v6145 = vadd.f32 %v6032, %v6144
    %v6146 = vpop.f32.mrf.mxu0
    %v6147 = vadd.f32 %v6034, %v6146
    %v6148 = vpop.f32.mrf.mxu0
    %v6149 = vadd.f32 %v6036, %v6148
    %v6150 = vpop.f32.mrf.mxu0
    %v6151 = vadd.f32 %v6038, %v6150
    %6152 = vmatprep.mubr.bf16.mxu0 %v1474
    %6153 = vmatmul.mubr.bf16.gmra.mxu0 %v1473
    %v6154 = vpop.f32.mrf.mxu0
    %v6155 = vadd.f32 %v6042, %v6154
    %v6156 = vpop.f32.mrf.mxu0
    %v6157 = vadd.f32 %v6044, %v6156
    %v6158 = vpop.f32.mrf.mxu0
    %v6159 = vadd.f32 %v6046, %v6158
    %v6160 = vpop.f32.mrf.mxu0
    %v6161 = vadd.f32 %v6048, %v6160
    %6162 = vmatprep.mubr.bf16.mxu0 %v1482
    %6163 = vmatmul.mubr.bf16.gmra.mxu0 %v1481
    %v6164 = vpop.f32.mrf.mxu0
    %v6165 = vadd.f32 %v6052, %v6164
    %v6166 = vpop.f32.mrf.mxu0
    %v6167 = vadd.f32 %v6054, %v6166
    %v6168 = vpop.f32.mrf.mxu0
    %v6169 = vadd.f32 %v6056, %v6168
    %v6170 = vpop.f32.mrf.mxu0
    %v6171 = vadd.f32 %v6058, %v6170
    %6172 = vmatprep.mubr.bf16.mxu0 %v1490
    %6173 = vmatmul.mubr.bf16.gmra.mxu0 %v1489
    %v6174 = vpop.f32.mrf.mxu0
    %v6175 = vadd.f32 %v6062, %v6174
    %v6176 = vpop.f32.mrf.mxu0
    %v6177 = vadd.f32 %v6064, %v6176
    %v6178 = vpop.f32.mrf.mxu0
    %v6179 = vadd.f32 %v6066, %v6178
    %v6180 = vpop.f32.mrf.mxu0
    %v6181 = vadd.f32 %v6068, %v6180
    %6182 = vmatprep.mubr.bf16.mxu0 %v1498
    %6183 = vmatmul.mubr.bf16.gmra.mxu0 %v1497
    %v6184 = vpop.f32.mrf.mxu0
    %v6185 = vadd.f32 %v6072, %v6184
    %v6186 = vpop.f32.mrf.mxu0
    %v6187 = vadd.f32 %v6074, %v6186
    %v6188 = vpop.f32.mrf.mxu0
    %v6189 = vadd.f32 %v6076, %v6188
    %v6190 = vpop.f32.mrf.mxu0
    %v6191 = vadd.f32 %v6078, %v6190
    %6192 = vmatprep.mubr.bf16.mxu0 %v1506
    %6193 = vmatmul.mubr.bf16.gmra.mxu0 %v1505
    %v6194 = vpop.f32.mrf.mxu0
    %v6195 = vadd.f32 %v6082, %v6194
    %v6196 = vpop.f32.mrf.mxu0
    %v6197 = vadd.f32 %v6084, %v6196
    %v6198 = vpop.f32.mrf.mxu0
    %v6199 = vadd.f32 %v6086, %v6198
    %v6200 = vpop.f32.mrf.mxu0
    %v6201 = vadd.f32 %v6088, %v6200
    %6202 = vmatprep.mubr.bf16.mxu0 %v1514
    %6203 = vmatmul.mubr.bf16.gmra.mxu0 %v1513
    %v6204 = vpop.f32.mrf.mxu0
    %v6205 = vadd.f32 %v6092, %v6204
    %v6206 = vpop.f32.mrf.mxu0
    %v6207 = vadd.f32 %v6094, %v6206
    %v6208 = vpop.f32.mrf.mxu0
    %v6209 = vadd.f32 %v6096, %v6208
    %v6210 = vpop.f32.mrf.mxu0
    %v6211 = vadd.f32 %v6098, %v6210
    %6212 = vmatprep.mubr.bf16.mxu0 %v1522
    %6213 = vmatmul.mubr.bf16.gmra.mxu0 %v1521
    %v6214 = vpop.f32.mrf.mxu0
    %v6215 = vadd.f32 %v6102, %v6214
    %v6216 = vpop.f32.mrf.mxu0
    %v6217 = vadd.f32 %v6104, %v6216
    %v6218 = vpop.f32.mrf.mxu0
    %v6219 = vadd.f32 %v6106, %v6218
    %v6220 = vpop.f32.mrf.mxu0
    %v6221 = vadd.f32 %v6108, %v6220
    %6222 = vdwg.mxu0
    %6223 = vmatprep.subr.bf16.mxu0 %v3936
    %6224 = vmatpush1.bf16.msra.mxu0 %v3935
    %6225 = vmatprep.subr.bf16.mxu0 %v3928
    %6226 = vmatpush1.bf16.msra.mxu0 %v3927
    %6227 = vmatprep.subr.bf16.mxu0 %v3920
    %6228 = vmatpush1.bf16.msra.mxu0 %v3919
    %6229 = vmatprep.subr.bf16.mxu0 %v3912
    %6230 = vmatpush1.bf16.msra.mxu0 %v3911
    %6231 = vmatprep.subr.bf16.mxu0 %v3904
    %6232 = vmatpush1.bf16.msra.mxu0 %v3903
    %6233 = vmatprep.subr.bf16.mxu0 %v3896
    %6234 = vmatpush1.bf16.msra.mxu0 %v3895
    %6235 = vmatprep.subr.bf16.mxu0 %v3888
    %6236 = vmatpush1.bf16.msra.mxu0 %v3887
    %6237 = vmatprep.subr.bf16.mxu0 %v3880
    %6238 = vmatpush1.bf16.msra.mxu0 %v3879
    %6239 = vmatprep.subr.bf16.mxu0 %v4000
    %6240 = vmatpush2.bf16.msra.mxu0 %v3999
    %6241 = vmatprep.subr.bf16.mxu0 %v3992
    %6242 = vmatpush2.bf16.msra.mxu0 %v3991
    %6243 = vmatprep.subr.bf16.mxu0 %v3984
    %6244 = vmatpush2.bf16.msra.mxu0 %v3983
    %6245 = vmatprep.subr.bf16.mxu0 %v3976
    %6246 = vmatpush2.bf16.msra.mxu0 %v3975
    %6247 = vmatprep.subr.bf16.mxu0 %v3968
    %6248 = vmatpush2.bf16.msra.mxu0 %v3967
    %6249 = vmatprep.subr.bf16.mxu0 %v3960
    %6250 = vmatpush2.bf16.msra.mxu0 %v3959
    %6251 = vmatprep.subr.bf16.mxu0 %v3952
    %6252 = vmatpush2.bf16.msra.mxu0 %v3951
    %6253 = vmatprep.subr.bf16.mxu0 %v3944
    %6254 = vmatpush2.bf16.msra.mxu0 %v3943
    %6255 = vmatprep.mubr.bf16.mxu0 %v1468
    %6256 = vmatmul.mubr.bf16.gmra.mxu0 %v1467
    %v6257 = vpop.f32.mrf.mxu0
    %v6258 = vadd.f32 %v6145, %v6257
    %v6259 = vpop.f32.mrf.mxu0
    %v6260 = vadd.f32 %v6147, %v6259
    %v6261 = vpop.f32.mrf.mxu0
    %v6262 = vadd.f32 %v6149, %v6261
    %v6263 = vpop.f32.mrf.mxu0
    %v6264 = vadd.f32 %v6151, %v6263
    %6265 = vmatprep.mubr.bf16.mxu0 %v1476
    %6266 = vmatmul.mubr.bf16.gmra.mxu0 %v1475
    %v6267 = vpop.f32.mrf.mxu0
    %v6268 = vadd.f32 %v6155, %v6267
    %v6269 = vpop.f32.mrf.mxu0
    %v6270 = vadd.f32 %v6157, %v6269
    %v6271 = vpop.f32.mrf.mxu0
    %v6272 = vadd.f32 %v6159, %v6271
    %v6273 = vpop.f32.mrf.mxu0
    %v6274 = vadd.f32 %v6161, %v6273
    %6275 = vmatprep.mubr.bf16.mxu0 %v1484
    %6276 = vmatmul.mubr.bf16.gmra.mxu0 %v1483
    %v6277 = vpop.f32.mrf.mxu0
    %v6278 = vadd.f32 %v6165, %v6277
    %v6279 = vpop.f32.mrf.mxu0
    %v6280 = vadd.f32 %v6167, %v6279
    %v6281 = vpop.f32.mrf.mxu0
    %v6282 = vadd.f32 %v6169, %v6281
    %v6283 = vpop.f32.mrf.mxu0
    %v6284 = vadd.f32 %v6171, %v6283
    %6285 = vmatprep.mubr.bf16.mxu0 %v1492
    %6286 = vmatmul.mubr.bf16.gmra.mxu0 %v1491
    %v6287 = vpop.f32.mrf.mxu0
    %v6288 = vadd.f32 %v6175, %v6287
    %v6289 = vpop.f32.mrf.mxu0
    %v6290 = vadd.f32 %v6177, %v6289
    %v6291 = vpop.f32.mrf.mxu0
    %v6292 = vadd.f32 %v6179, %v6291
    %v6293 = vpop.f32.mrf.mxu0
    %v6294 = vadd.f32 %v6181, %v6293
    %6295 = vmatprep.mubr.bf16.mxu0 %v1500
    %6296 = vmatmul.mubr.bf16.gmra.mxu0 %v1499
    %v6297 = vpop.f32.mrf.mxu0
    %v6298 = vadd.f32 %v6185, %v6297
    %v6299 = vpop.f32.mrf.mxu0
    %v6300 = vadd.f32 %v6187, %v6299
    %v6301 = vpop.f32.mrf.mxu0
    %v6302 = vadd.f32 %v6189, %v6301
    %v6303 = vpop.f32.mrf.mxu0
    %v6304 = vadd.f32 %v6191, %v6303
    %6305 = vmatprep.mubr.bf16.mxu0 %v1508
    %6306 = vmatmul.mubr.bf16.gmra.mxu0 %v1507
    %v6307 = vpop.f32.mrf.mxu0
    %v6308 = vadd.f32 %v6195, %v6307
    %v6309 = vpop.f32.mrf.mxu0
    %v6310 = vadd.f32 %v6197, %v6309
    %v6311 = vpop.f32.mrf.mxu0
    %v6312 = vadd.f32 %v6199, %v6311
    %v6313 = vpop.f32.mrf.mxu0
    %v6314 = vadd.f32 %v6201, %v6313
    %6315 = vmatprep.mubr.bf16.mxu0 %v1516
    %6316 = vmatmul.mubr.bf16.gmra.mxu0 %v1515
    %v6317 = vpop.f32.mrf.mxu0
    %v6318 = vadd.f32 %v6205, %v6317
    %v6319 = vpop.f32.mrf.mxu0
    %v6320 = vadd.f32 %v6207, %v6319
    %v6321 = vpop.f32.mrf.mxu0
    %v6322 = vadd.f32 %v6209, %v6321
    %v6323 = vpop.f32.mrf.mxu0
    %v6324 = vadd.f32 %v6211, %v6323
    %6325 = vmatprep.mubr.bf16.mxu0 %v1524
    %6326 = vmatmul.mubr.bf16.gmra.mxu0 %v1523
    %v6327 = vpop.f32.mrf.mxu0
    %v6328 = vadd.f32 %v6215, %v6327
    %v6329 = vpop.f32.mrf.mxu0
    %v6330 = vadd.f32 %v6217, %v6329
    %v6331 = vpop.f32.mrf.mxu0
    %v6332 = vadd.f32 %v6219, %v6331
    %v6333 = vpop.f32.mrf.mxu0
    %v6334 = vadd.f32 %v6221, %v6333
    %6335 = vdwg.mxu0
    %6336 = vmatprep.subr.bf16.mxu0 %v4064
    %6337 = vmatpush1.bf16.msra.mxu0 %v4063
    %6338 = vmatprep.subr.bf16.mxu0 %v4056
    %6339 = vmatpush1.bf16.msra.mxu0 %v4055
    %6340 = vmatprep.subr.bf16.mxu0 %v4048
    %6341 = vmatpush1.bf16.msra.mxu0 %v4047
    %6342 = vmatprep.subr.bf16.mxu0 %v4040
    %6343 = vmatpush1.bf16.msra.mxu0 %v4039
    %6344 = vmatprep.subr.bf16.mxu0 %v4032
    %6345 = vmatpush1.bf16.msra.mxu0 %v4031
    %6346 = vmatprep.subr.bf16.mxu0 %v4024
    %6347 = vmatpush1.bf16.msra.mxu0 %v4023
    %6348 = vmatprep.subr.bf16.mxu0 %v4016
    %6349 = vmatpush1.bf16.msra.mxu0 %v4015
    %6350 = vmatprep.subr.bf16.mxu0 %v4008
    %6351 = vmatpush1.bf16.msra.mxu0 %v4007
    %6352 = vmatprep.subr.bf16.mxu0 %v4128
    %6353 = vmatpush2.bf16.msra.mxu0 %v4127
    %6354 = vmatprep.subr.bf16.mxu0 %v4120
    %6355 = vmatpush2.bf16.msra.mxu0 %v4119
    %6356 = vmatprep.subr.bf16.mxu0 %v4112
    %6357 = vmatpush2.bf16.msra.mxu0 %v4111
    %6358 = vmatprep.subr.bf16.mxu0 %v4104
    %6359 = vmatpush2.bf16.msra.mxu0 %v4103
    %6360 = vmatprep.subr.bf16.mxu0 %v4096
    %6361 = vmatpush2.bf16.msra.mxu0 %v4095
    %6362 = vmatprep.subr.bf16.mxu0 %v4088
    %6363 = vmatpush2.bf16.msra.mxu0 %v4087
    %6364 = vmatprep.subr.bf16.mxu0 %v4080
    %6365 = vmatpush2.bf16.msra.mxu0 %v4079
    %6366 = vmatprep.subr.bf16.mxu0 %v4072
    %6367 = vmatpush2.bf16.msra.mxu0 %v4071
    %6368 = vmatprep.mubr.bf16.mxu0 %v1470
    %6369 = vmatmul.mubr.bf16.gmra.mxu0 %v1469
    %v6370 = vpop.f32.mrf.mxu0
    %v6371 = vadd.f32 %v6258, %v6370
    %v6372 = vpop.f32.mrf.mxu0
    %v6373 = vadd.f32 %v6260, %v6372
    %v6374 = vpop.f32.mrf.mxu0
    %v6375 = vadd.f32 %v6262, %v6374
    %v6376 = vpop.f32.mrf.mxu0
    %v6377 = vadd.f32 %v6264, %v6376
    %6378 = vmatprep.mubr.bf16.mxu0 %v1478
    %6379 = vmatmul.mubr.bf16.gmra.mxu0 %v1477
    %v6380 = vpop.f32.mrf.mxu0
    %v6381 = vadd.f32 %v6268, %v6380
    %v6382 = vpop.f32.mrf.mxu0
    %v6383 = vadd.f32 %v6270, %v6382
    %v6384 = vpop.f32.mrf.mxu0
    %v6385 = vadd.f32 %v6272, %v6384
    %v6386 = vpop.f32.mrf.mxu0
    %v6387 = vadd.f32 %v6274, %v6386
    %6388 = vmatprep.mubr.bf16.mxu0 %v1486
    %6389 = vmatmul.mubr.bf16.gmra.mxu0 %v1485
    %v6390 = vpop.f32.mrf.mxu0
    %v6391 = vadd.f32 %v6278, %v6390
    %v6392 = vpop.f32.mrf.mxu0
    %v6393 = vadd.f32 %v6280, %v6392
    %v6394 = vpop.f32.mrf.mxu0
    %v6395 = vadd.f32 %v6282, %v6394
    %v6396 = vpop.f32.mrf.mxu0
    %v6397 = vadd.f32 %v6284, %v6396
    %6398 = vmatprep.mubr.bf16.mxu0 %v1494
    %6399 = vmatmul.mubr.bf16.gmra.mxu0 %v1493
    %v6400 = vpop.f32.mrf.mxu0
    %v6401 = vadd.f32 %v6288, %v6400
    %v6402 = vpop.f32.mrf.mxu0
    %v6403 = vadd.f32 %v6290, %v6402
    %v6404 = vpop.f32.mrf.mxu0
    %v6405 = vadd.f32 %v6292, %v6404
    %v6406 = vpop.f32.mrf.mxu0
    %v6407 = vadd.f32 %v6294, %v6406
    %6408 = vmatprep.mubr.bf16.mxu0 %v1502
    %6409 = vmatmul.mubr.bf16.gmra.mxu0 %v1501
    %v6410 = vpop.f32.mrf.mxu0
    %v6411 = vadd.f32 %v6298, %v6410
    %v6412 = vpop.f32.mrf.mxu0
    %v6413 = vadd.f32 %v6300, %v6412
    %v6414 = vpop.f32.mrf.mxu0
    %v6415 = vadd.f32 %v6302, %v6414
    %v6416 = vpop.f32.mrf.mxu0
    %v6417 = vadd.f32 %v6304, %v6416
    %6418 = vmatprep.mubr.bf16.mxu0 %v1510
    %6419 = vmatmul.mubr.bf16.gmra.mxu0 %v1509
    %v6420 = vpop.f32.mrf.mxu0
    %v6421 = vadd.f32 %v6308, %v6420
    %v6422 = vpop.f32.mrf.mxu0
    %v6423 = vadd.f32 %v6310, %v6422
    %v6424 = vpop.f32.mrf.mxu0
    %v6425 = vadd.f32 %v6312, %v6424
    %v6426 = vpop.f32.mrf.mxu0
    %v6427 = vadd.f32 %v6314, %v6426
    %6428 = vmatprep.mubr.bf16.mxu0 %v1518
    %6429 = vmatmul.mubr.bf16.gmra.mxu0 %v1517
    %v6430 = vpop.f32.mrf.mxu0
    %v6431 = vadd.f32 %v6318, %v6430
    %v6432 = vpop.f32.mrf.mxu0
    %v6433 = vadd.f32 %v6320, %v6432
    %v6434 = vpop.f32.mrf.mxu0
    %v6435 = vadd.f32 %v6322, %v6434
    %v6436 = vpop.f32.mrf.mxu0
    %v6437 = vadd.f32 %v6324, %v6436
    %6438 = vmatprep.mubr.bf16.mxu0 %v1526
    %6439 = vmatmul.mubr.bf16.gmra.mxu0 %v1525
    %v6440 = vpop.f32.mrf.mxu0
    %v6441 = vadd.f32 %v6328, %v6440
    %v6442 = vpop.f32.mrf.mxu0
    %v6443 = vadd.f32 %v6330, %v6442
    %v6444 = vpop.f32.mrf.mxu0
    %v6445 = vadd.f32 %v6332, %v6444
    %v6446 = vpop.f32.mrf.mxu0
    %v6447 = vadd.f32 %v6334, %v6446
    %6448 = vdwg.mxu0
    %vm6449 = vcmp.gt.f32.partialorder %v5015, 0.0
    %vm6450 = vcmp.gt.f32.partialorder %v5017, 0.0
    %vm6451 = vcmp.gt.f32.partialorder %v5467, 0.0
    %vm6452 = vcmp.gt.f32.partialorder %v5469, 0.0
    %vm6453 = vcmp.gt.f32.partialorder %v5919, 0.0
    %vm6454 = vcmp.gt.f32.partialorder %v5921, 0.0
    %vm6455 = vcmp.gt.f32.partialorder %v6371, 0.0
    %vm6456 = vcmp.gt.f32.partialorder %v6373, 0.0
    %vm6457 = vcmp.gt.f32.partialorder %v5019, 0.0
    %vm6458 = vcmp.gt.f32.partialorder %v5021, 0.0
    %vm6459 = vcmp.gt.f32.partialorder %v5471, 0.0
    %vm6460 = vcmp.gt.f32.partialorder %v5473, 0.0
    %vm6461 = vcmp.gt.f32.partialorder %v5923, 0.0
    %vm6462 = vcmp.gt.f32.partialorder %v5925, 0.0
    %vm6463 = vcmp.gt.f32.partialorder %v6375, 0.0
    %vm6464 = vcmp.gt.f32.partialorder %v6377, 0.0
    %vm6465 = vcmp.gt.f32.partialorder %v5025, 0.0
    %vm6466 = vcmp.gt.f32.partialorder %v5027, 0.0
    %vm6467 = vcmp.gt.f32.partialorder %v5477, 0.0
    %vm6468 = vcmp.gt.f32.partialorder %v5479, 0.0
    %vm6469 = vcmp.gt.f32.partialorder %v5929, 0.0
    %vm6470 = vcmp.gt.f32.partialorder %v5931, 0.0
    %vm6471 = vcmp.gt.f32.partialorder %v6381, 0.0
    %vm6472 = vcmp.gt.f32.partialorder %v6383, 0.0
    %vm6473 = vcmp.gt.f32.partialorder %v5029, 0.0
    %vm6474 = vcmp.gt.f32.partialorder %v5031, 0.0
    %vm6475 = vcmp.gt.f32.partialorder %v5481, 0.0
    %vm6476 = vcmp.gt.f32.partialorder %v5483, 0.0
    %vm6477 = vcmp.gt.f32.partialorder %v5933, 0.0
    %vm6478 = vcmp.gt.f32.partialorder %v5935, 0.0
    %vm6479 = vcmp.gt.f32.partialorder %v6385, 0.0
    %vm6480 = vcmp.gt.f32.partialorder %v6387, 0.0
    %vm6481 = vcmp.gt.f32.partialorder %v5035, 0.0
    %vm6482 = vcmp.gt.f32.partialorder %v5037, 0.0
    %vm6483 = vcmp.gt.f32.partialorder %v5487, 0.0
    %vm6484 = vcmp.gt.f32.partialorder %v5489, 0.0
    %vm6485 = vcmp.gt.f32.partialorder %v5939, 0.0
    %vm6486 = vcmp.gt.f32.partialorder %v5941, 0.0
    %vm6487 = vcmp.gt.f32.partialorder %v6391, 0.0
    %vm6488 = vcmp.gt.f32.partialorder %v6393, 0.0
    %vm6489 = vcmp.gt.f32.partialorder %v5039, 0.0
    %vm6490 = vcmp.gt.f32.partialorder %v5041, 0.0
    %vm6491 = vcmp.gt.f32.partialorder %v5491, 0.0
    %vm6492 = vcmp.gt.f32.partialorder %v5493, 0.0
    %vm6493 = vcmp.gt.f32.partialorder %v5943, 0.0
    %vm6494 = vcmp.gt.f32.partialorder %v5945, 0.0
    %vm6495 = vcmp.gt.f32.partialorder %v6395, 0.0
    %vm6496 = vcmp.gt.f32.partialorder %v6397, 0.0
    %vm6497 = vcmp.gt.f32.partialorder %v5045, 0.0
    %vm6498 = vcmp.gt.f32.partialorder %v5047, 0.0
    %vm6499 = vcmp.gt.f32.partialorder %v5497, 0.0
    %vm6500 = vcmp.gt.f32.partialorder %v5499, 0.0
    %vm6501 = vcmp.gt.f32.partialorder %v5949, 0.0
    %vm6502 = vcmp.gt.f32.partialorder %v5951, 0.0
    %vm6503 = vcmp.gt.f32.partialorder %v6401, 0.0
    %vm6504 = vcmp.gt.f32.partialorder %v6403, 0.0
    %vm6505 = vcmp.gt.f32.partialorder %v5049, 0.0
    %vm6506 = vcmp.gt.f32.partialorder %v5051, 0.0
    %vm6507 = vcmp.gt.f32.partialorder %v5501, 0.0
    %vm6508 = vcmp.gt.f32.partialorder %v5503, 0.0
    %vm6509 = vcmp.gt.f32.partialorder %v5953, 0.0
    %vm6510 = vcmp.gt.f32.partialorder %v5955, 0.0
    %vm6511 = vcmp.gt.f32.partialorder %v6405, 0.0
    %vm6512 = vcmp.gt.f32.partialorder %v6407, 0.0
    %vm6513 = vcmp.gt.f32.partialorder %v5055, 0.0
    %vm6514 = vcmp.gt.f32.partialorder %v5057, 0.0
    %vm6515 = vcmp.gt.f32.partialorder %v5507, 0.0
    %vm6516 = vcmp.gt.f32.partialorder %v5509, 0.0
    %vm6517 = vcmp.gt.f32.partialorder %v5959, 0.0
    %vm6518 = vcmp.gt.f32.partialorder %v5961, 0.0
    %vm6519 = vcmp.gt.f32.partialorder %v6411, 0.0
    %vm6520 = vcmp.gt.f32.partialorder %v6413, 0.0
    %vm6521 = vcmp.gt.f32.partialorder %v5059, 0.0
    %vm6522 = vcmp.gt.f32.partialorder %v5061, 0.0
    %vm6523 = vcmp.gt.f32.partialorder %v5511, 0.0
    %vm6524 = vcmp.gt.f32.partialorder %v5513, 0.0
    %vm6525 = vcmp.gt.f32.partialorder %v5963, 0.0
    %vm6526 = vcmp.gt.f32.partialorder %v5965, 0.0
    %vm6527 = vcmp.gt.f32.partialorder %v6415, 0.0
    %vm6528 = vcmp.gt.f32.partialorder %v6417, 0.0
    %vm6529 = vcmp.gt.f32.partialorder %v5065, 0.0
    %vm6530 = vcmp.gt.f32.partialorder %v5067, 0.0
    %vm6531 = vcmp.gt.f32.partialorder %v5517, 0.0
    %vm6532 = vcmp.gt.f32.partialorder %v5519, 0.0
    %vm6533 = vcmp.gt.f32.partialorder %v5969, 0.0
    %vm6534 = vcmp.gt.f32.partialorder %v5971, 0.0
    %vm6535 = vcmp.gt.f32.partialorder %v6421, 0.0
    %vm6536 = vcmp.gt.f32.partialorder %v6423, 0.0
    %vm6537 = vcmp.gt.f32.partialorder %v5069, 0.0
    %vm6538 = vcmp.gt.f32.partialorder %v5071, 0.0
    %vm6539 = vcmp.gt.f32.partialorder %v5521, 0.0
    %vm6540 = vcmp.gt.f32.partialorder %v5523, 0.0
    %vm6541 = vcmp.gt.f32.partialorder %v5973, 0.0
    %vm6542 = vcmp.gt.f32.partialorder %v5975, 0.0
    %vm6543 = vcmp.gt.f32.partialorder %v6425, 0.0
    %vm6544 = vcmp.gt.f32.partialorder %v6427, 0.0
    %vm6545 = vcmp.gt.f32.partialorder %v5075, 0.0
    %vm6546 = vcmp.gt.f32.partialorder %v5077, 0.0
    %vm6547 = vcmp.gt.f32.partialorder %v5527, 0.0
    %vm6548 = vcmp.gt.f32.partialorder %v5529, 0.0
    %vm6549 = vcmp.gt.f32.partialorder %v5979, 0.0
    %vm6550 = vcmp.gt.f32.partialorder %v5981, 0.0
    %vm6551 = vcmp.gt.f32.partialorder %v6431, 0.0
    %vm6552 = vcmp.gt.f32.partialorder %v6433, 0.0
    %vm6553 = vcmp.gt.f32.partialorder %v5079, 0.0
    %vm6554 = vcmp.gt.f32.partialorder %v5081, 0.0
    %vm6555 = vcmp.gt.f32.partialorder %v5531, 0.0
    %vm6556 = vcmp.gt.f32.partialorder %v5533, 0.0
    %vm6557 = vcmp.gt.f32.partialorder %v5983, 0.0
    %vm6558 = vcmp.gt.f32.partialorder %v5985, 0.0
    %vm6559 = vcmp.gt.f32.partialorder %v6435, 0.0
    %vm6560 = vcmp.gt.f32.partialorder %v6437, 0.0
    %vm6561 = vcmp.gt.f32.partialorder %v5085, 0.0
    %vm6562 = vcmp.gt.f32.partialorder %v5087, 0.0
    %vm6563 = vcmp.gt.f32.partialorder %v5537, 0.0
    %vm6564 = vcmp.gt.f32.partialorder %v5539, 0.0
    %vm6565 = vcmp.gt.f32.partialorder %v5989, 0.0
    %vm6566 = vcmp.gt.f32.partialorder %v5991, 0.0
    %vm6567 = vcmp.gt.f32.partialorder %v6441, 0.0
    %vm6568 = vcmp.gt.f32.partialorder %v6443, 0.0
    %vm6569 = vcmp.gt.f32.partialorder %v5089, 0.0
    %vm6570 = vcmp.gt.f32.partialorder %v5091, 0.0
    %vm6571 = vcmp.gt.f32.partialorder %v5541, 0.0
    %vm6572 = vcmp.gt.f32.partialorder %v5543, 0.0
    %vm6573 = vcmp.gt.f32.partialorder %v5993, 0.0
    %vm6574 = vcmp.gt.f32.partialorder %v5995, 0.0
    %vm6575 = vcmp.gt.f32.partialorder %v6445, 0.0
    %vm6576 = vcmp.gt.f32.partialorder %v6447, 0.0
    %v6577 = vmul.f32 %v5015, 0.01
    %v6578 = vmul.f32 %v5017, 0.01
    %v6579 = vmul.f32 %v5467, 0.01
    %v6580 = vmul.f32 %v5469, 0.01
    %v6581 = vmul.f32 %v5919, 0.01
    %v6582 = vmul.f32 %v5921, 0.01
    %v6583 = vmul.f32 %v6371, 0.01
    %v6584 = vmul.f32 %v6373, 0.01
    %v6585 = vmul.f32 %v5019, 0.01
    %v6586 = vmul.f32 %v5021, 0.01
    %v6587 = vmul.f32 %v5471, 0.01
    %v6588 = vmul.f32 %v5473, 0.01
    %v6589 = vmul.f32 %v5923, 0.01
    %v6590 = vmul.f32 %v5925, 0.01
    %v6591 = vmul.f32 %v6375, 0.01
    %v6592 = vmul.f32 %v6377, 0.01
    %v6593 = vmul.f32 %v5025, 0.01
    %v6594 = vmul.f32 %v5027, 0.01
    %v6595 = vmul.f32 %v5477, 0.01
    %v6596 = vmul.f32 %v5479, 0.01
    %v6597 = vmul.f32 %v5929, 0.01
    %v6598 = vmul.f32 %v5931, 0.01
    %v6599 = vmul.f32 %v6381, 0.01
    %v6600 = vmul.f32 %v6383, 0.01
    %v6601 = vmul.f32 %v5029, 0.01
    %v6602 = vmul.f32 %v5031, 0.01
    %v6603 = vmul.f32 %v5481, 0.01
    %v6604 = vmul.f32 %v5483, 0.01
    %v6605 = vmul.f32 %v5933, 0.01
    %v6606 = vmul.f32 %v5935, 0.01
    %v6607 = vmul.f32 %v6385, 0.01
    %v6608 = vmul.f32 %v6387, 0.01
    %v6609 = vmul.f32 %v5035, 0.01
    %v6610 = vmul.f32 %v5037, 0.01
    %v6611 = vmul.f32 %v5487, 0.01
    %v6612 = vmul.f32 %v5489, 0.01
    %v6613 = vmul.f32 %v5939, 0.01
    %v6614 = vmul.f32 %v5941, 0.01
    %v6615 = vmul.f32 %v6391, 0.01
    %v6616 = vmul.f32 %v6393, 0.01
    %v6617 = vmul.f32 %v5039, 0.01
    %v6618 = vmul.f32 %v5041, 0.01
    %v6619 = vmul.f32 %v5491, 0.01
    %v6620 = vmul.f32 %v5493, 0.01
    %v6621 = vmul.f32 %v5943, 0.01
    %v6622 = vmul.f32 %v5945, 0.01
    %v6623 = vmul.f32 %v6395, 0.01
    %v6624 = vmul.f32 %v6397, 0.01
    %v6625 = vmul.f32 %v5045, 0.01
    %v6626 = vmul.f32 %v5047, 0.01
    %v6627 = vmul.f32 %v5497, 0.01
    %v6628 = vmul.f32 %v5499, 0.01
    %v6629 = vmul.f32 %v5949, 0.01
    %v6630 = vmul.f32 %v5951, 0.01
    %v6631 = vmul.f32 %v6401, 0.01
    %v6632 = vmul.f32 %v6403, 0.01
    %v6633 = vmul.f32 %v5049, 0.01
    %v6634 = vmul.f32 %v5051, 0.01
    %v6635 = vmul.f32 %v5501, 0.01
    %v6636 = vmul.f32 %v5503, 0.01
    %v6637 = vmul.f32 %v5953, 0.01
    %v6638 = vmul.f32 %v5955, 0.01
    %v6639 = vmul.f32 %v6405, 0.01
    %v6640 = vmul.f32 %v6407, 0.01
    %v6641 = vmul.f32 %v5055, 0.01
    %v6642 = vmul.f32 %v5057, 0.01
    %v6643 = vmul.f32 %v5507, 0.01
    %v6644 = vmul.f32 %v5509, 0.01
    %v6645 = vmul.f32 %v5959, 0.01
    %v6646 = vmul.f32 %v5961, 0.01
    %v6647 = vmul.f32 %v6411, 0.01
    %v6648 = vmul.f32 %v6413, 0.01
    %v6649 = vmul.f32 %v5059, 0.01
    %v6650 = vmul.f32 %v5061, 0.01
    %v6651 = vmul.f32 %v5511, 0.01
    %v6652 = vmul.f32 %v5513, 0.01
    %v6653 = vmul.f32 %v5963, 0.01
    %v6654 = vmul.f32 %v5965, 0.01
    %v6655 = vmul.f32 %v6415, 0.01
    %v6656 = vmul.f32 %v6417, 0.01
    %v6657 = vmul.f32 %v5065, 0.01
    %v6658 = vmul.f32 %v5067, 0.01
    %v6659 = vmul.f32 %v5517, 0.01
    %v6660 = vmul.f32 %v5519, 0.01
    %v6661 = vmul.f32 %v5969, 0.01
    %v6662 = vmul.f32 %v5971, 0.01
    %v6663 = vmul.f32 %v6421, 0.01
    %v6664 = vmul.f32 %v6423, 0.01
    %v6665 = vmul.f32 %v5069, 0.01
    %v6666 = vmul.f32 %v5071, 0.01
    %v6667 = vmul.f32 %v5521, 0.01
    %v6668 = vmul.f32 %v5523, 0.01
    %v6669 = vmul.f32 %v5973, 0.01
    %v6670 = vmul.f32 %v5975, 0.01
    %v6671 = vmul.f32 %v6425, 0.01
    %v6672 = vmul.f32 %v6427, 0.01
    %v6673 = vmul.f32 %v5075, 0.01
    %v6674 = vmul.f32 %v5077, 0.01
    %v6675 = vmul.f32 %v5527, 0.01
    %v6676 = vmul.f32 %v5529, 0.01
    %v6677 = vmul.f32 %v5979, 0.01
    %v6678 = vmul.f32 %v5981, 0.01
    %v6679 = vmul.f32 %v6431, 0.01
    %v6680 = vmul.f32 %v6433, 0.01
    %v6681 = vmul.f32 %v5079, 0.01
    %v6682 = vmul.f32 %v5081, 0.01
    %v6683 = vmul.f32 %v5531, 0.01
    %v6684 = vmul.f32 %v5533, 0.01
    %v6685 = vmul.f32 %v5983, 0.01
    %v6686 = vmul.f32 %v5985, 0.01
    %v6687 = vmul.f32 %v6435, 0.01
    %v6688 = vmul.f32 %v6437, 0.01
    %v6689 = vmul.f32 %v5085, 0.01
    %v6690 = vmul.f32 %v5087, 0.01
    %v6691 = vmul.f32 %v5537, 0.01
    %v6692 = vmul.f32 %v5539, 0.01
    %v6693 = vmul.f32 %v5989, 0.01
    %v6694 = vmul.f32 %v5991, 0.01
    %v6695 = vmul.f32 %v6441, 0.01
    %v6696 = vmul.f32 %v6443, 0.01
    %v6697 = vmul.f32 %v5089, 0.01
    %v6698 = vmul.f32 %v5091, 0.01
    %v6699 = vmul.f32 %v5541, 0.01
    %v6700 = vmul.f32 %v5543, 0.01
    %v6701 = vmul.f32 %v5993, 0.01
    %v6702 = vmul.f32 %v5995, 0.01
    %v6703 = vmul.f32 %v6445, 0.01
    %v6704 = vmul.f32 %v6447, 0.01
    %v6705 = vsel %vm6449, %v5015, %v6577
    %v6706 = vsel %vm6450, %v5017, %v6578
    %v6707 = vsel %vm6451, %v5467, %v6579
    %v6708 = vsel %vm6452, %v5469, %v6580
    %v6709 = vsel %vm6453, %v5919, %v6581
    %v6710 = vsel %vm6454, %v5921, %v6582
    %v6711 = vsel %vm6455, %v6371, %v6583
    %v6712 = vsel %vm6456, %v6373, %v6584
    %v6713 = vsel %vm6457, %v5019, %v6585
    %v6714 = vsel %vm6458, %v5021, %v6586
    %v6715 = vsel %vm6459, %v5471, %v6587
    %v6716 = vsel %vm6460, %v5473, %v6588
    %v6717 = vsel %vm6461, %v5923, %v6589
    %v6718 = vsel %vm6462, %v5925, %v6590
    %v6719 = vsel %vm6463, %v6375, %v6591
    %v6720 = vsel %vm6464, %v6377, %v6592
    %v6721 = vsel %vm6465, %v5025, %v6593
    %v6722 = vsel %vm6466, %v5027, %v6594
    %v6723 = vsel %vm6467, %v5477, %v6595
    %v6724 = vsel %vm6468, %v5479, %v6596
    %v6725 = vsel %vm6469, %v5929, %v6597
    %v6726 = vsel %vm6470, %v5931, %v6598
    %v6727 = vsel %vm6471, %v6381, %v6599
    %v6728 = vsel %vm6472, %v6383, %v6600
    %v6729 = vsel %vm6473, %v5029, %v6601
    %v6730 = vsel %vm6474, %v5031, %v6602
    %v6731 = vsel %vm6475, %v5481, %v6603
    %v6732 = vsel %vm6476, %v5483, %v6604
    %v6733 = vsel %vm6477, %v5933, %v6605
    %v6734 = vsel %vm6478, %v5935, %v6606
    %v6735 = vsel %vm6479, %v6385, %v6607
    %v6736 = vsel %vm6480, %v6387, %v6608
    %v6737 = vsel %vm6481, %v5035, %v6609
    %v6738 = vsel %vm6482, %v5037, %v6610
    %v6739 = vsel %vm6483, %v5487, %v6611
    %v6740 = vsel %vm6484, %v5489, %v6612
    %v6741 = vsel %vm6485, %v5939, %v6613
    %v6742 = vsel %vm6486, %v5941, %v6614
    %v6743 = vsel %vm6487, %v6391, %v6615
    %v6744 = vsel %vm6488, %v6393, %v6616
    %v6745 = vsel %vm6489, %v5039, %v6617
    %v6746 = vsel %vm6490, %v5041, %v6618
    %v6747 = vsel %vm6491, %v5491, %v6619
    %v6748 = vsel %vm6492, %v5493, %v6620
    %v6749 = vsel %vm6493, %v5943, %v6621
    %v6750 = vsel %vm6494, %v5945, %v6622
    %v6751 = vsel %vm6495, %v6395, %v6623
    %v6752 = vsel %vm6496, %v6397, %v6624
    %v6753 = vsel %vm6497, %v5045, %v6625
    %v6754 = vsel %vm6498, %v5047, %v6626
    %v6755 = vsel %vm6499, %v5497, %v6627
    %v6756 = vsel %vm6500, %v5499, %v6628
    %v6757 = vsel %vm6501, %v5949, %v6629
    %v6758 = vsel %vm6502, %v5951, %v6630
    %v6759 = vsel %vm6503, %v6401, %v6631
    %v6760 = vsel %vm6504, %v6403, %v6632
    %v6761 = vsel %vm6505, %v5049, %v6633
    %v6762 = vsel %vm6506, %v5051, %v6634
    %v6763 = vsel %vm6507, %v5501, %v6635
    %v6764 = vsel %vm6508, %v5503, %v6636
    %v6765 = vsel %vm6509, %v5953, %v6637
    %v6766 = vsel %vm6510, %v5955, %v6638
    %v6767 = vsel %vm6511, %v6405, %v6639
    %v6768 = vsel %vm6512, %v6407, %v6640
    %v6769 = vsel %vm6513, %v5055, %v6641
    %v6770 = vsel %vm6514, %v5057, %v6642
    %v6771 = vsel %vm6515, %v5507, %v6643
    %v6772 = vsel %vm6516, %v5509, %v6644
    %v6773 = vsel %vm6517, %v5959, %v6645
    %v6774 = vsel %vm6518, %v5961, %v6646
    %v6775 = vsel %vm6519, %v6411, %v6647
    %v6776 = vsel %vm6520, %v6413, %v6648
    %v6777 = vsel %vm6521, %v5059, %v6649
    %v6778 = vsel %vm6522, %v5061, %v6650
    %v6779 = vsel %vm6523, %v5511, %v6651
    %v6780 = vsel %vm6524, %v5513, %v6652
    %v6781 = vsel %vm6525, %v5963, %v6653
    %v6782 = vsel %vm6526, %v5965, %v6654
    %v6783 = vsel %vm6527, %v6415, %v6655
    %v6784 = vsel %vm6528, %v6417, %v6656
    %v6785 = vsel %vm6529, %v5065, %v6657
    %v6786 = vsel %vm6530, %v5067, %v6658
    %v6787 = vsel %vm6531, %v5517, %v6659
    %v6788 = vsel %vm6532, %v5519, %v6660
    %v6789 = vsel %vm6533, %v5969, %v6661
    %v6790 = vsel %vm6534, %v5971, %v6662
    %v6791 = vsel %vm6535, %v6421, %v6663
    %v6792 = vsel %vm6536, %v6423, %v6664
    %v6793 = vsel %vm6537, %v5069, %v6665
    %v6794 = vsel %vm6538, %v5071, %v6666
    %v6795 = vsel %vm6539, %v5521, %v6667
    %v6796 = vsel %vm6540, %v5523, %v6668
    %v6797 = vsel %vm6541, %v5973, %v6669
    %v6798 = vsel %vm6542, %v5975, %v6670
    %v6799 = vsel %vm6543, %v6425, %v6671
    %v6800 = vsel %vm6544, %v6427, %v6672
    %v6801 = vsel %vm6545, %v5075, %v6673
    %v6802 = vsel %vm6546, %v5077, %v6674
    %v6803 = vsel %vm6547, %v5527, %v6675
    %v6804 = vsel %vm6548, %v5529, %v6676
    %v6805 = vsel %vm6549, %v5979, %v6677
    %v6806 = vsel %vm6550, %v5981, %v6678
    %v6807 = vsel %vm6551, %v6431, %v6679
    %v6808 = vsel %vm6552, %v6433, %v6680
    %v6809 = vsel %vm6553, %v5079, %v6681
    %v6810 = vsel %vm6554, %v5081, %v6682
    %v6811 = vsel %vm6555, %v5531, %v6683
    %v6812 = vsel %vm6556, %v5533, %v6684
    %v6813 = vsel %vm6557, %v5983, %v6685
    %v6814 = vsel %vm6558, %v5985, %v6686
    %v6815 = vsel %vm6559, %v6435, %v6687
    %v6816 = vsel %vm6560, %v6437, %v6688
    %v6817 = vsel %vm6561, %v5085, %v6689
    %v6818 = vsel %vm6562, %v5087, %v6690
    %v6819 = vsel %vm6563, %v5537, %v6691
    %v6820 = vsel %vm6564, %v5539, %v6692
    %v6821 = vsel %vm6565, %v5989, %v6693
    %v6822 = vsel %vm6566, %v5991, %v6694
    %v6823 = vsel %vm6567, %v6441, %v6695
    %v6824 = vsel %vm6568, %v6443, %v6696
    %v6825 = vsel %vm6569, %v5089, %v6697
    %v6826 = vsel %vm6570, %v5091, %v6698
    %v6827 = vsel %vm6571, %v5541, %v6699
    %v6828 = vsel %vm6572, %v5543, %v6700
    %v6829 = vsel %vm6573, %v5993, %v6701
    %v6830 = vsel %vm6574, %v5995, %v6702
    %v6831 = vsel %vm6575, %v6445, %v6703
    %v6832 = vsel %vm6576, %v6447, %v6704
    %v6833 = vpack.c.bf16 %v6713, %v6705
    %v6834 = vpack.c.bf16 %v6714, %v6706
    %v6835 = vpack.c.bf16 %v6715, %v6707
    %v6836 = vpack.c.bf16 %v6716, %v6708
    %v6837 = vpack.c.bf16 %v6717, %v6709
    %v6838 = vpack.c.bf16 %v6718, %v6710
    %v6839 = vpack.c.bf16 %v6719, %v6711
    %v6840 = vpack.c.bf16 %v6720, %v6712
    %v6841 = vpack.c.bf16 %v6729, %v6721
    %v6842 = vpack.c.bf16 %v6730, %v6722
    %v6843 = vpack.c.bf16 %v6731, %v6723
    %v6844 = vpack.c.bf16 %v6732, %v6724
    %v6845 = vpack.c.bf16 %v6733, %v6725
    %v6846 = vpack.c.bf16 %v6734, %v6726
    %v6847 = vpack.c.bf16 %v6735, %v6727
    %v6848 = vpack.c.bf16 %v6736, %v6728
    %v6849 = vpack.c.bf16 %v6745, %v6737
    %v6850 = vpack.c.bf16 %v6746, %v6738
    %v6851 = vpack.c.bf16 %v6747, %v6739
    %v6852 = vpack.c.bf16 %v6748, %v6740
    %v6853 = vpack.c.bf16 %v6749, %v6741
    %v6854 = vpack.c.bf16 %v6750, %v6742
    %v6855 = vpack.c.bf16 %v6751, %v6743
    %v6856 = vpack.c.bf16 %v6752, %v6744
    %v6857 = vpack.c.bf16 %v6761, %v6753
    %v6858 = vpack.c.bf16 %v6762, %v6754
    %v6859 = vpack.c.bf16 %v6763, %v6755
    %v6860 = vpack.c.bf16 %v6764, %v6756
    %v6861 = vpack.c.bf16 %v6765, %v6757
    %v6862 = vpack.c.bf16 %v6766, %v6758
    %v6863 = vpack.c.bf16 %v6767, %v6759
    %v6864 = vpack.c.bf16 %v6768, %v6760
    %v6865 = vpack.c.bf16 %v6777, %v6769
    %v6866 = vpack.c.bf16 %v6778, %v6770
    %v6867 = vpack.c.bf16 %v6779, %v6771
    %v6868 = vpack.c.bf16 %v6780, %v6772
    %v6869 = vpack.c.bf16 %v6781, %v6773
    %v6870 = vpack.c.bf16 %v6782, %v6774
    %v6871 = vpack.c.bf16 %v6783, %v6775
    %v6872 = vpack.c.bf16 %v6784, %v6776
    %v6873 = vpack.c.bf16 %v6793, %v6785
    %v6874 = vpack.c.bf16 %v6794, %v6786
    %v6875 = vpack.c.bf16 %v6795, %v6787
    %v6876 = vpack.c.bf16 %v6796, %v6788
    %v6877 = vpack.c.bf16 %v6797, %v6789
    %v6878 = vpack.c.bf16 %v6798, %v6790
    %v6879 = vpack.c.bf16 %v6799, %v6791
    %v6880 = vpack.c.bf16 %v6800, %v6792
    %v6881 = vpack.c.bf16 %v6809, %v6801
    %v6882 = vpack.c.bf16 %v6810, %v6802
    %v6883 = vpack.c.bf16 %v6811, %v6803
    %v6884 = vpack.c.bf16 %v6812, %v6804
    %v6885 = vpack.c.bf16 %v6813, %v6805
    %v6886 = vpack.c.bf16 %v6814, %v6806
    %v6887 = vpack.c.bf16 %v6815, %v6807
    %v6888 = vpack.c.bf16 %v6816, %v6808
    %v6889 = vpack.c.bf16 %v6825, %v6817
    %v6890 = vpack.c.bf16 %v6826, %v6818
    %v6891 = vpack.c.bf16 %v6827, %v6819
    %v6892 = vpack.c.bf16 %v6828, %v6820
    %v6893 = vpack.c.bf16 %v6829, %v6821
    %v6894 = vpack.c.bf16 %v6830, %v6822
    %v6895 = vpack.c.bf16 %v6831, %v6823
    %v6896 = vpack.c.bf16 %v6832, %v6824
    %v6897 = vld [vmem:[#allocation12] sm:$0xf]
    %v6898 = vld [vmem:[#allocation12 + $0x4] sm:$0xf]
    %v6899 = vld [vmem:[#allocation12 + $0x8] sm:$0xf]
    %v6900 = vld [vmem:[#allocation12 + $0xc] sm:$0xf]
    %v6901 = vld [vmem:[#allocation12 + $0x10] sm:$0xf]
    %v6902 = vld [vmem:[#allocation12 + $0x14] sm:$0xf]
    %v6903 = vld [vmem:[#allocation12 + $0x18] sm:$0xf]
    %v6904 = vld [vmem:[#allocation12 + $0x1c] sm:$0xf]
    %v6905 = vld [vmem:[#allocation12 + $0x20] sm:$0xf]
    %v6906 = vld [vmem:[#allocation12 + $0x24] sm:$0xf]
    %v6907 = vld [vmem:[#allocation12 + $0x28] sm:$0xf]
    %v6908 = vld [vmem:[#allocation12 + $0x2c] sm:$0xf]
    %v6909 = vld [vmem:[#allocation12 + $0x30] sm:$0xf]
    %v6910 = vld [vmem:[#allocation12 + $0x34] sm:$0xf]
    %v6911 = vld [vmem:[#allocation12 + $0x38] sm:$0xf]
    %v6912 = vld [vmem:[#allocation12 + $0x3c] sm:$0xf]
    %v6913 = vld [vmem:[#allocation12 + $0x40] sm:$0xf]
    %v6914 = vld [vmem:[#allocation12 + $0x44] sm:$0xf]
    %v6915 = vld [vmem:[#allocation12 + $0x48] sm:$0xf]
    %v6916 = vld [vmem:[#allocation12 + $0x4c] sm:$0xf]
    %v6917 = vld [vmem:[#allocation12 + $0x50] sm:$0xf]
    %v6918 = vld [vmem:[#allocation12 + $0x54] sm:$0xf]
    %v6919 = vld [vmem:[#allocation12 + $0x58] sm:$0xf]
    %v6920 = vld [vmem:[#allocation12 + $0x5c] sm:$0xf]
    %v6921 = vld [vmem:[#allocation12 + $0x60] sm:$0xf]
    %v6922 = vld [vmem:[#allocation12 + $0x64] sm:$0xf]
    %v6923 = vld [vmem:[#allocation12 + $0x68] sm:$0xf]
    %v6924 = vld [vmem:[#allocation12 + $0x6c] sm:$0xf]
    %v6925 = vld [vmem:[#allocation12 + $0x70] sm:$0xf]
    %v6926 = vld [vmem:[#allocation12 + $0x74] sm:$0xf]
    %v6927 = vld [vmem:[#allocation12 + $0x78] sm:$0xf]
    %v6928 = vld [vmem:[#allocation12 + $0x7c] sm:$0xf]
    %v6929 = vld [vmem:[#allocation12 + $0x80] sm:$0xf]
    %v6930 = vld [vmem:[#allocation12 + $0x84] sm:$0xf]
    %v6931 = vld [vmem:[#allocation12 + $0x88] sm:$0xf]
    %v6932 = vld [vmem:[#allocation12 + $0x8c] sm:$0xf]
    %v6933 = vld [vmem:[#allocation12 + $0x90] sm:$0xf]
    %v6934 = vld [vmem:[#allocation12 + $0x94] sm:$0xf]
    %v6935 = vld [vmem:[#allocation12 + $0x98] sm:$0xf]
    %v6936 = vld [vmem:[#allocation12 + $0x9c] sm:$0xf]
    %v6937 = vld [vmem:[#allocation12 + $0xa0] sm:$0xf]
    %v6938 = vld [vmem:[#allocation12 + $0xa4] sm:$0xf]
    %v6939 = vld [vmem:[#allocation12 + $0xa8] sm:$0xf]
    %v6940 = vld [vmem:[#allocation12 + $0xac] sm:$0xf]
    %v6941 = vld [vmem:[#allocation12 + $0xb0] sm:$0xf]
    %v6942 = vld [vmem:[#allocation12 + $0xb4] sm:$0xf]
    %v6943 = vld [vmem:[#allocation12 + $0xb8] sm:$0xf]
    %v6944 = vld [vmem:[#allocation12 + $0xbc] sm:$0xf]
    %v6945 = vld [vmem:[#allocation12 + $0xc0] sm:$0xf]
    %v6946 = vld [vmem:[#allocation12 + $0xc4] sm:$0xf]
    %v6947 = vld [vmem:[#allocation12 + $0xc8] sm:$0xf]
    %v6948 = vld [vmem:[#allocation12 + $0xcc] sm:$0xf]
    %v6949 = vld [vmem:[#allocation12 + $0xd0] sm:$0xf]
    %v6950 = vld [vmem:[#allocation12 + $0xd4] sm:$0xf]
    %v6951 = vld [vmem:[#allocation12 + $0xd8] sm:$0xf]
    %v6952 = vld [vmem:[#allocation12 + $0xdc] sm:$0xf]
    %v6953 = vld [vmem:[#allocation12 + $0xe0] sm:$0xf]
    %v6954 = vld [vmem:[#allocation12 + $0xe4] sm:$0xf]
    %v6955 = vld [vmem:[#allocation12 + $0xe8] sm:$0xf]
    %v6956 = vld [vmem:[#allocation12 + $0xec] sm:$0xf]
    %v6957 = vld [vmem:[#allocation12 + $0xf0] sm:$0xf]
    %v6958 = vld [vmem:[#allocation12 + $0xf4] sm:$0xf]
    %v6959 = vld [vmem:[#allocation12 + $0xf8] sm:$0xf]
    %v6960 = vld [vmem:[#allocation12 + $0xfc] sm:$0xf]
    %v6961 = vld [vmem:[#allocation12 + $0x100] sm:$0xf]
    %v6962 = vld [vmem:[#allocation12 + $0x104] sm:$0xf]
    %v6963 = vld [vmem:[#allocation12 + $0x108] sm:$0xf]
    %v6964 = vld [vmem:[#allocation12 + $0x10c] sm:$0xf]
    %v6965 = vld [vmem:[#allocation12 + $0x110] sm:$0xf]
    %v6966 = vld [vmem:[#allocation12 + $0x114] sm:$0xf]
    %v6967 = vld [vmem:[#allocation12 + $0x118] sm:$0xf]
    %v6968 = vld [vmem:[#allocation12 + $0x11c] sm:$0xf]
    %v6969 = vld [vmem:[#allocation12 + $0x120] sm:$0xf]
    %v6970 = vld [vmem:[#allocation12 + $0x124] sm:$0xf]
    %v6971 = vld [vmem:[#allocation12 + $0x128] sm:$0xf]
    %v6972 = vld [vmem:[#allocation12 + $0x12c] sm:$0xf]
    %v6973 = vld [vmem:[#allocation12 + $0x130] sm:$0xf]
    %v6974 = vld [vmem:[#allocation12 + $0x134] sm:$0xf]
    %v6975 = vld [vmem:[#allocation12 + $0x138] sm:$0xf]
    %v6976 = vld [vmem:[#allocation12 + $0x13c] sm:$0xf]
    %v6977 = vld [vmem:[#allocation12 + $0x140] sm:$0xf]
    %v6978 = vld [vmem:[#allocation12 + $0x144] sm:$0xf]
    %v6979 = vld [vmem:[#allocation12 + $0x148] sm:$0xf]
    %v6980 = vld [vmem:[#allocation12 + $0x14c] sm:$0xf]
    %v6981 = vld [vmem:[#allocation12 + $0x150] sm:$0xf]
    %v6982 = vld [vmem:[#allocation12 + $0x154] sm:$0xf]
    %v6983 = vld [vmem:[#allocation12 + $0x158] sm:$0xf]
    %v6984 = vld [vmem:[#allocation12 + $0x15c] sm:$0xf]
    %v6985 = vld [vmem:[#allocation12 + $0x160] sm:$0xf]
    %v6986 = vld [vmem:[#allocation12 + $0x164] sm:$0xf]
    %v6987 = vld [vmem:[#allocation12 + $0x168] sm:$0xf]
    %v6988 = vld [vmem:[#allocation12 + $0x16c] sm:$0xf]
    %v6989 = vld [vmem:[#allocation12 + $0x170] sm:$0xf]
    %v6990 = vld [vmem:[#allocation12 + $0x174] sm:$0xf]
    %v6991 = vld [vmem:[#allocation12 + $0x178] sm:$0xf]
    %v6992 = vld [vmem:[#allocation12 + $0x17c] sm:$0xf]
    %v6993 = vld [vmem:[#allocation12 + $0x180] sm:$0xf]
    %v6994 = vld [vmem:[#allocation12 + $0x184] sm:$0xf]
    %v6995 = vld [vmem:[#allocation12 + $0x188] sm:$0xf]
    %v6996 = vld [vmem:[#allocation12 + $0x18c] sm:$0xf]
    %v6997 = vld [vmem:[#allocation12 + $0x190] sm:$0xf]
    %v6998 = vld [vmem:[#allocation12 + $0x194] sm:$0xf]
    %v6999 = vld [vmem:[#allocation12 + $0x198] sm:$0xf]
    %v7000 = vld [vmem:[#allocation12 + $0x19c] sm:$0xf]
    %v7001 = vld [vmem:[#allocation12 + $0x1a0] sm:$0xf]
    %v7002 = vld [vmem:[#allocation12 + $0x1a4] sm:$0xf]
    %v7003 = vld [vmem:[#allocation12 + $0x1a8] sm:$0xf]
    %v7004 = vld [vmem:[#allocation12 + $0x1ac] sm:$0xf]
    %v7005 = vld [vmem:[#allocation12 + $0x1b0] sm:$0xf]
    %v7006 = vld [vmem:[#allocation12 + $0x1b4] sm:$0xf]
    %v7007 = vld [vmem:[#allocation12 + $0x1b8] sm:$0xf]
    %v7008 = vld [vmem:[#allocation12 + $0x1bc] sm:$0xf]
    %v7009 = vld [vmem:[#allocation12 + $0x1c0] sm:$0xf]
    %v7010 = vld [vmem:[#allocation12 + $0x1c4] sm:$0xf]
    %v7011 = vld [vmem:[#allocation12 + $0x1c8] sm:$0xf]
    %v7012 = vld [vmem:[#allocation12 + $0x1cc] sm:$0xf]
    %v7013 = vld [vmem:[#allocation12 + $0x1d0] sm:$0xf]
    %v7014 = vld [vmem:[#allocation12 + $0x1d4] sm:$0xf]
    %v7015 = vld [vmem:[#allocation12 + $0x1d8] sm:$0xf]
    %v7016 = vld [vmem:[#allocation12 + $0x1dc] sm:$0xf]
    %v7017 = vld [vmem:[#allocation12 + $0x1e0] sm:$0xf]
    %v7018 = vld [vmem:[#allocation12 + $0x1e4] sm:$0xf]
    %v7019 = vld [vmem:[#allocation12 + $0x1e8] sm:$0xf]
    %v7020 = vld [vmem:[#allocation12 + $0x1ec] sm:$0xf]
    %v7021 = vld [vmem:[#allocation12 + $0x1f0] sm:$0xf]
    %v7022 = vld [vmem:[#allocation12 + $0x1f4] sm:$0xf]
    %v7023 = vld [vmem:[#allocation12 + $0x1f8] sm:$0xf]
    %v7024 = vld [vmem:[#allocation12 + $0x1fc] sm:$0xf]
    %v7025 = vld [vmem:[#allocation14] sm:$0x1]
    %v7027 = vlaneseq
    %v7028 = vshrl.u32 %v7027, 7
    %v7029 = vsub.s32 0, %v7028
    %v7030 = vrot.slane %v7025, %v7029
    %v7160 = vunpack.c.l.b16 %v6897
    %v7161 = vunpack.c.l.b16 %v6898
    %v7162 = vunpack.c.l.b16 %v6899
    %v7163 = vunpack.c.l.b16 %v6900
    %v7164 = vunpack.c.l.b16 %v6901
    %v7165 = vunpack.c.l.b16 %v6902
    %v7166 = vunpack.c.l.b16 %v6903
    %v7167 = vunpack.c.l.b16 %v6904
    %v7168 = vunpack.c.l.b16 %v6905
    %v7169 = vunpack.c.l.b16 %v6906
    %v7170 = vunpack.c.l.b16 %v6907
    %v7171 = vunpack.c.l.b16 %v6908
    %v7172 = vunpack.c.l.b16 %v6909
    %v7173 = vunpack.c.l.b16 %v6910
    %v7174 = vunpack.c.l.b16 %v6911
    %v7175 = vunpack.c.l.b16 %v6912
    %v7176 = vunpack.c.l.b16 %v6913
    %v7177 = vunpack.c.l.b16 %v6914
    %v7178 = vunpack.c.l.b16 %v6915
    %v7179 = vunpack.c.l.b16 %v6916
    %v7180 = vunpack.c.l.b16 %v6917
    %v7181 = vunpack.c.l.b16 %v6918
    %v7182 = vunpack.c.l.b16 %v6919
    %v7183 = vunpack.c.l.b16 %v6920
    %v7184 = vunpack.c.l.b16 %v6921
    %v7185 = vunpack.c.l.b16 %v6922
    %v7186 = vunpack.c.l.b16 %v6923
    %v7187 = vunpack.c.l.b16 %v6924
    %v7188 = vunpack.c.l.b16 %v6925
    %v7189 = vunpack.c.l.b16 %v6926
    %v7190 = vunpack.c.l.b16 %v6927
    %v7191 = vunpack.c.l.b16 %v6928
    %v7192 = vunpack.c.l.b16 %v6929
    %v7193 = vunpack.c.l.b16 %v6930
    %v7194 = vunpack.c.l.b16 %v6931
    %v7195 = vunpack.c.l.b16 %v6932
    %v7196 = vunpack.c.l.b16 %v6933
    %v7197 = vunpack.c.l.b16 %v6934
    %v7198 = vunpack.c.l.b16 %v6935
    %v7199 = vunpack.c.l.b16 %v6936
    %v7200 = vunpack.c.l.b16 %v6937
    %v7201 = vunpack.c.l.b16 %v6938
    %v7202 = vunpack.c.l.b16 %v6939
    %v7203 = vunpack.c.l.b16 %v6940
    %v7204 = vunpack.c.l.b16 %v6941
    %v7205 = vunpack.c.l.b16 %v6942
    %v7206 = vunpack.c.l.b16 %v6943
    %v7207 = vunpack.c.l.b16 %v6944
    %v7208 = vunpack.c.l.b16 %v6945
    %v7209 = vunpack.c.l.b16 %v6946
    %v7210 = vunpack.c.l.b16 %v6947
    %v7211 = vunpack.c.l.b16 %v6948
    %v7212 = vunpack.c.l.b16 %v6949
    %v7213 = vunpack.c.l.b16 %v6950
    %v7214 = vunpack.c.l.b16 %v6951
    %v7215 = vunpack.c.l.b16 %v6952
    %v7216 = vunpack.c.l.b16 %v6953
    %v7217 = vunpack.c.l.b16 %v6954
    %v7218 = vunpack.c.l.b16 %v6955
    %v7219 = vunpack.c.l.b16 %v6956
    %v7220 = vunpack.c.l.b16 %v6957
    %v7221 = vunpack.c.l.b16 %v6958
    %v7222 = vunpack.c.l.b16 %v6959
    %v7223 = vunpack.c.l.b16 %v6960
    %v7224 = vunpack.c.l.b16 %v6961
    %v7225 = vunpack.c.l.b16 %v6962
    %v7226 = vunpack.c.l.b16 %v6963
    %v7227 = vunpack.c.l.b16 %v6964
    %v7228 = vunpack.c.l.b16 %v6965
    %v7229 = vunpack.c.l.b16 %v6966
    %v7230 = vunpack.c.l.b16 %v6967
    %v7231 = vunpack.c.l.b16 %v6968
    %v7232 = vunpack.c.l.b16 %v6969
    %v7233 = vunpack.c.l.b16 %v6970
    %v7234 = vunpack.c.l.b16 %v6971
    %v7235 = vunpack.c.l.b16 %v6972
    %v7236 = vunpack.c.l.b16 %v6973
    %v7237 = vunpack.c.l.b16 %v6974
    %v7238 = vunpack.c.l.b16 %v6975
    %v7239 = vunpack.c.l.b16 %v6976
    %v7240 = vunpack.c.l.b16 %v6977
    %v7241 = vunpack.c.l.b16 %v6978
    %v7242 = vunpack.c.l.b16 %v6979
    %v7243 = vunpack.c.l.b16 %v6980
    %v7244 = vunpack.c.l.b16 %v6981
    %v7245 = vunpack.c.l.b16 %v6982
    %v7246 = vunpack.c.l.b16 %v6983
    %v7247 = vunpack.c.l.b16 %v6984
    %v7248 = vunpack.c.l.b16 %v6985
    %v7249 = vunpack.c.l.b16 %v6986
    %v7250 = vunpack.c.l.b16 %v6987
    %v7251 = vunpack.c.l.b16 %v6988
    %v7252 = vunpack.c.l.b16 %v6989
    %v7253 = vunpack.c.l.b16 %v6990
    %v7254 = vunpack.c.l.b16 %v6991
    %v7255 = vunpack.c.l.b16 %v6992
    %v7256 = vunpack.c.l.b16 %v6993
    %v7257 = vunpack.c.l.b16 %v6994
    %v7258 = vunpack.c.l.b16 %v6995
    %v7259 = vunpack.c.l.b16 %v6996
    %v7260 = vunpack.c.l.b16 %v6997
    %v7261 = vunpack.c.l.b16 %v6998
    %v7262 = vunpack.c.l.b16 %v6999
    %v7263 = vunpack.c.l.b16 %v7000
    %v7264 = vunpack.c.l.b16 %v7001
    %v7265 = vunpack.c.l.b16 %v7002
    %v7266 = vunpack.c.l.b16 %v7003
    %v7267 = vunpack.c.l.b16 %v7004
    %v7268 = vunpack.c.l.b16 %v7005
    %v7269 = vunpack.c.l.b16 %v7006
    %v7270 = vunpack.c.l.b16 %v7007
    %v7271 = vunpack.c.l.b16 %v7008
    %v7272 = vunpack.c.l.b16 %v7009
    %v7273 = vunpack.c.l.b16 %v7010
    %v7274 = vunpack.c.l.b16 %v7011
    %v7275 = vunpack.c.l.b16 %v7012
    %v7276 = vunpack.c.l.b16 %v7013
    %v7277 = vunpack.c.l.b16 %v7014
    %v7278 = vunpack.c.l.b16 %v7015
    %v7279 = vunpack.c.l.b16 %v7016
    %v7280 = vunpack.c.l.b16 %v7017
    %v7281 = vunpack.c.l.b16 %v7018
    %v7282 = vunpack.c.l.b16 %v7019
    %v7283 = vunpack.c.l.b16 %v7020
    %v7284 = vunpack.c.l.b16 %v7021
    %v7285 = vunpack.c.l.b16 %v7022
    %v7286 = vunpack.c.l.b16 %v7023
    %v7287 = vunpack.c.l.b16 %v7024
    %v7288 = vpack.c.b16 %v7161, %v7160
    %v7289 = vpack.c.b16 %v7163, %v7162
    %v7290 = vpack.c.b16 %v7165, %v7164
    %v7291 = vpack.c.b16 %v7167, %v7166
    %v7292 = vpack.c.b16 %v7169, %v7168
    %v7293 = vpack.c.b16 %v7171, %v7170
    %v7294 = vpack.c.b16 %v7173, %v7172
    %v7295 = vpack.c.b16 %v7175, %v7174
    %v7296 = vpack.c.b16 %v7177, %v7176
    %v7297 = vpack.c.b16 %v7179, %v7178
    %v7298 = vpack.c.b16 %v7181, %v7180
    %v7299 = vpack.c.b16 %v7183, %v7182
    %v7300 = vpack.c.b16 %v7185, %v7184
    %v7301 = vpack.c.b16 %v7187, %v7186
    %v7302 = vpack.c.b16 %v7189, %v7188
    %v7303 = vpack.c.b16 %v7191, %v7190
    %v7304 = vpack.c.b16 %v7193, %v7192
    %v7305 = vpack.c.b16 %v7195, %v7194
    %v7306 = vpack.c.b16 %v7197, %v7196
    %v7307 = vpack.c.b16 %v7199, %v7198
    %v7308 = vpack.c.b16 %v7201, %v7200
    %v7309 = vpack.c.b16 %v7203, %v7202
    %v7310 = vpack.c.b16 %v7205, %v7204
    %v7311 = vpack.c.b16 %v7207, %v7206
    %v7312 = vpack.c.b16 %v7209, %v7208
    %v7313 = vpack.c.b16 %v7211, %v7210
    %v7314 = vpack.c.b16 %v7213, %v7212
    %v7315 = vpack.c.b16 %v7215, %v7214
    %v7316 = vpack.c.b16 %v7217, %v7216
    %v7317 = vpack.c.b16 %v7219, %v7218
    %v7318 = vpack.c.b16 %v7221, %v7220
    %v7319 = vpack.c.b16 %v7223, %v7222
    %v7320 = vpack.c.b16 %v7225, %v7224
    %v7321 = vpack.c.b16 %v7227, %v7226
    %v7322 = vpack.c.b16 %v7229, %v7228
    %v7323 = vpack.c.b16 %v7231, %v7230
    %v7324 = vpack.c.b16 %v7233, %v7232
    %v7325 = vpack.c.b16 %v7235, %v7234
    %v7326 = vpack.c.b16 %v7237, %v7236
    %v7327 = vpack.c.b16 %v7239, %v7238
    %v7328 = vpack.c.b16 %v7241, %v7240
    %v7329 = vpack.c.b16 %v7243, %v7242
    %v7330 = vpack.c.b16 %v7245, %v7244
    %v7331 = vpack.c.b16 %v7247, %v7246
    %v7332 = vpack.c.b16 %v7249, %v7248
    %v7333 = vpack.c.b16 %v7251, %v7250
    %v7334 = vpack.c.b16 %v7253, %v7252
    %v7335 = vpack.c.b16 %v7255, %v7254
    %v7336 = vpack.c.b16 %v7257, %v7256
    %v7337 = vpack.c.b16 %v7259, %v7258
    %v7338 = vpack.c.b16 %v7261, %v7260
    %v7339 = vpack.c.b16 %v7263, %v7262
    %v7340 = vpack.c.b16 %v7265, %v7264
    %v7341 = vpack.c.b16 %v7267, %v7266
    %v7342 = vpack.c.b16 %v7269, %v7268
    %v7343 = vpack.c.b16 %v7271, %v7270
    %v7344 = vpack.c.b16 %v7273, %v7272
    %v7345 = vpack.c.b16 %v7275, %v7274
    %v7346 = vpack.c.b16 %v7277, %v7276
    %v7347 = vpack.c.b16 %v7279, %v7278
    %v7348 = vpack.c.b16 %v7281, %v7280
    %v7349 = vpack.c.b16 %v7283, %v7282
    %v7350 = vpack.c.b16 %v7285, %v7284
    %v7351 = vpack.c.b16 %v7287, %v7286
    %7416 = vmatprep.subr.bf16.mxu0 0
    %7417 = vmatpush1.bf16.msra.mxu0 %v7295
    %7418 = vmatprep.subr.bf16.mxu0 0
    %7419 = vmatpush1.bf16.msra.mxu0 %v7294
    %7420 = vmatprep.subr.bf16.mxu0 0
    %7421 = vmatpush1.bf16.msra.mxu0 %v7293
    %7422 = vmatprep.subr.bf16.mxu0 0
    %7423 = vmatpush1.bf16.msra.mxu0 %v7292
    %7424 = vmatprep.subr.bf16.mxu0 0
    %7425 = vmatpush1.bf16.msra.mxu0 %v7291
    %7426 = vmatprep.subr.bf16.mxu0 0
    %7427 = vmatpush1.bf16.msra.mxu0 %v7290
    %7428 = vmatprep.subr.bf16.mxu0 0
    %7429 = vmatpush1.bf16.msra.mxu0 %v7289
    %7430 = vmatprep.subr.bf16.mxu0 0
    %7431 = vmatpush1.bf16.msra.mxu0 %v7288
    %7432 = vmatprep.subr.bf16.mxu0 0
    %7433 = vmatpush2.bf16.msra.mxu0 %v7303
    %7434 = vmatprep.subr.bf16.mxu0 0
    %7435 = vmatpush2.bf16.msra.mxu0 %v7302
    %7436 = vmatprep.subr.bf16.mxu0 0
    %7437 = vmatpush2.bf16.msra.mxu0 %v7301
    %7438 = vmatprep.subr.bf16.mxu0 0
    %7439 = vmatpush2.bf16.msra.mxu0 %v7300
    %7440 = vmatprep.subr.bf16.mxu0 0
    %7441 = vmatpush2.bf16.msra.mxu0 %v7299
    %7442 = vmatprep.subr.bf16.mxu0 0
    %7443 = vmatpush2.bf16.msra.mxu0 %v7298
    %7444 = vmatprep.subr.bf16.mxu0 0
    %7445 = vmatpush2.bf16.msra.mxu0 %v7297
    %7446 = vmatprep.subr.bf16.mxu0 0
    %7447 = vmatpush2.bf16.msra.mxu0 %v7296
    %7448 = vmatprep.mubr.bf16.mxu0 %v6834
    %7449 = vmatmul.mubr.bf16.gmra.mxu0 %v6833
    %v7450 = vpop.f32.mrf.mxu0
    %v7451 = vadd.f32 %v7030, %v7450
    %v7452 = vpop.f32.mrf.mxu0
    %v7453 = vpop.f32.mrf.mxu0
    %v7454 = vadd.f32 %v7030, %v7453
    %v7455 = vpop.f32.mrf.mxu0
    %7456 = vmatprep.mubr.bf16.mxu0 %v6842
    %7457 = vmatmul.mubr.bf16.gmra.mxu0 %v6841
    %v7458 = vpop.f32.mrf.mxu0
    %v7459 = vadd.f32 %v7030, %v7458
    %v7460 = vpop.f32.mrf.mxu0
    %v7461 = vpop.f32.mrf.mxu0
    %v7462 = vadd.f32 %v7030, %v7461
    %v7463 = vpop.f32.mrf.mxu0
    %7464 = vmatprep.mubr.bf16.mxu0 %v6850
    %7465 = vmatmul.mubr.bf16.gmra.mxu0 %v6849
    %v7466 = vpop.f32.mrf.mxu0
    %v7467 = vadd.f32 %v7030, %v7466
    %v7468 = vpop.f32.mrf.mxu0
    %v7469 = vpop.f32.mrf.mxu0
    %v7470 = vadd.f32 %v7030, %v7469
    %v7471 = vpop.f32.mrf.mxu0
    %7472 = vmatprep.mubr.bf16.mxu0 %v6858
    %7473 = vmatmul.mubr.bf16.gmra.mxu0 %v6857
    %v7474 = vpop.f32.mrf.mxu0
    %v7475 = vadd.f32 %v7030, %v7474
    %v7476 = vpop.f32.mrf.mxu0
    %v7477 = vpop.f32.mrf.mxu0
    %v7478 = vadd.f32 %v7030, %v7477
    %v7479 = vpop.f32.mrf.mxu0
    %7480 = vmatprep.mubr.bf16.mxu0 %v6866
    %7481 = vmatmul.mubr.bf16.gmra.mxu0 %v6865
    %v7482 = vpop.f32.mrf.mxu0
    %v7483 = vadd.f32 %v7030, %v7482
    %v7484 = vpop.f32.mrf.mxu0
    %v7485 = vpop.f32.mrf.mxu0
    %v7486 = vadd.f32 %v7030, %v7485
    %v7487 = vpop.f32.mrf.mxu0
    %7488 = vmatprep.mubr.bf16.mxu0 %v6874
    %7489 = vmatmul.mubr.bf16.gmra.mxu0 %v6873
    %v7490 = vpop.f32.mrf.mxu0
    %v7491 = vadd.f32 %v7030, %v7490
    %v7492 = vpop.f32.mrf.mxu0
    %v7493 = vpop.f32.mrf.mxu0
    %v7494 = vadd.f32 %v7030, %v7493
    %v7495 = vpop.f32.mrf.mxu0
    %7496 = vmatprep.mubr.bf16.mxu0 %v6882
    %7497 = vmatmul.mubr.bf16.gmra.mxu0 %v6881
    %v7498 = vpop.f32.mrf.mxu0
    %v7499 = vadd.f32 %v7030, %v7498
    %v7500 = vpop.f32.mrf.mxu0
    %v7501 = vpop.f32.mrf.mxu0
    %v7502 = vadd.f32 %v7030, %v7501
    %v7503 = vpop.f32.mrf.mxu0
    %7504 = vmatprep.mubr.bf16.mxu0 %v6890
    %7505 = vmatmul.mubr.bf16.gmra.mxu0 %v6889
    %v7506 = vpop.f32.mrf.mxu0
    %v7507 = vadd.f32 %v7030, %v7506
    %v7508 = vpop.f32.mrf.mxu0
    %v7509 = vpop.f32.mrf.mxu0
    %v7510 = vadd.f32 %v7030, %v7509
    %v7511 = vpop.f32.mrf.mxu0
    %7512 = vdwg.mxu0
    %7513 = vmatprep.subr.bf16.mxu0 0
    %7514 = vmatpush1.bf16.msra.mxu0 %v7311
    %7515 = vmatprep.subr.bf16.mxu0 0
    %7516 = vmatpush1.bf16.msra.mxu0 %v7310
    %7517 = vmatprep.subr.bf16.mxu0 0
    %7518 = vmatpush1.bf16.msra.mxu0 %v7309
    %7519 = vmatprep.subr.bf16.mxu0 0
    %7520 = vmatpush1.bf16.msra.mxu0 %v7308
    %7521 = vmatprep.subr.bf16.mxu0 0
    %7522 = vmatpush1.bf16.msra.mxu0 %v7307
    %7523 = vmatprep.subr.bf16.mxu0 0
    %7524 = vmatpush1.bf16.msra.mxu0 %v7306
    %7525 = vmatprep.subr.bf16.mxu0 0
    %7526 = vmatpush1.bf16.msra.mxu0 %v7305
    %7527 = vmatprep.subr.bf16.mxu0 0
    %7528 = vmatpush1.bf16.msra.mxu0 %v7304
    %7529 = vmatprep.subr.bf16.mxu0 0
    %7530 = vmatpush2.bf16.msra.mxu0 %v7319
    %7531 = vmatprep.subr.bf16.mxu0 0
    %7532 = vmatpush2.bf16.msra.mxu0 %v7318
    %7533 = vmatprep.subr.bf16.mxu0 0
    %7534 = vmatpush2.bf16.msra.mxu0 %v7317
    %7535 = vmatprep.subr.bf16.mxu0 0
    %7536 = vmatpush2.bf16.msra.mxu0 %v7316
    %7537 = vmatprep.subr.bf16.mxu0 0
    %7538 = vmatpush2.bf16.msra.mxu0 %v7315
    %7539 = vmatprep.subr.bf16.mxu0 0
    %7540 = vmatpush2.bf16.msra.mxu0 %v7314
    %7541 = vmatprep.subr.bf16.mxu0 0
    %7542 = vmatpush2.bf16.msra.mxu0 %v7313
    %7543 = vmatprep.subr.bf16.mxu0 0
    %7544 = vmatpush2.bf16.msra.mxu0 %v7312
    %7545 = vmatprep.mubr.bf16.mxu0 %v6836
    %7546 = vmatmul.mubr.bf16.gmra.mxu0 %v6835
    %v7547 = vpop.f32.mrf.mxu0
    %v7548 = vadd.f32 %v7451, %v7547
    %v7549 = vpop.f32.mrf.mxu0
    %v7550 = vpop.f32.mrf.mxu0
    %v7551 = vadd.f32 %v7454, %v7550
    %v7552 = vpop.f32.mrf.mxu0
    %7553 = vmatprep.mubr.bf16.mxu0 %v6844
    %7554 = vmatmul.mubr.bf16.gmra.mxu0 %v6843
    %v7555 = vpop.f32.mrf.mxu0
    %v7556 = vadd.f32 %v7459, %v7555
    %v7557 = vpop.f32.mrf.mxu0
    %v7558 = vpop.f32.mrf.mxu0
    %v7559 = vadd.f32 %v7462, %v7558
    %v7560 = vpop.f32.mrf.mxu0
    %7561 = vmatprep.mubr.bf16.mxu0 %v6852
    %7562 = vmatmul.mubr.bf16.gmra.mxu0 %v6851
    %v7563 = vpop.f32.mrf.mxu0
    %v7564 = vadd.f32 %v7467, %v7563
    %v7565 = vpop.f32.mrf.mxu0
    %v7566 = vpop.f32.mrf.mxu0
    %v7567 = vadd.f32 %v7470, %v7566
    %v7568 = vpop.f32.mrf.mxu0
    %7569 = vmatprep.mubr.bf16.mxu0 %v6860
    %7570 = vmatmul.mubr.bf16.gmra.mxu0 %v6859
    %v7571 = vpop.f32.mrf.mxu0
    %v7572 = vadd.f32 %v7475, %v7571
    %v7573 = vpop.f32.mrf.mxu0
    %v7574 = vpop.f32.mrf.mxu0
    %v7575 = vadd.f32 %v7478, %v7574
    %v7576 = vpop.f32.mrf.mxu0
    %7577 = vmatprep.mubr.bf16.mxu0 %v6868
    %7578 = vmatmul.mubr.bf16.gmra.mxu0 %v6867
    %v7579 = vpop.f32.mrf.mxu0
    %v7580 = vadd.f32 %v7483, %v7579
    %v7581 = vpop.f32.mrf.mxu0
    %v7582 = vpop.f32.mrf.mxu0
    %v7583 = vadd.f32 %v7486, %v7582
    %v7584 = vpop.f32.mrf.mxu0
    %7585 = vmatprep.mubr.bf16.mxu0 %v6876
    %7586 = vmatmul.mubr.bf16.gmra.mxu0 %v6875
    %v7587 = vpop.f32.mrf.mxu0
    %v7588 = vadd.f32 %v7491, %v7587
    %v7589 = vpop.f32.mrf.mxu0
    %v7590 = vpop.f32.mrf.mxu0
    %v7591 = vadd.f32 %v7494, %v7590
    %v7592 = vpop.f32.mrf.mxu0
    %7593 = vmatprep.mubr.bf16.mxu0 %v6884
    %7594 = vmatmul.mubr.bf16.gmra.mxu0 %v6883
    %v7595 = vpop.f32.mrf.mxu0
    %v7596 = vadd.f32 %v7499, %v7595
    %v7597 = vpop.f32.mrf.mxu0
    %v7598 = vpop.f32.mrf.mxu0
    %v7599 = vadd.f32 %v7502, %v7598
    %v7600 = vpop.f32.mrf.mxu0
    %7601 = vmatprep.mubr.bf16.mxu0 %v6892
    %7602 = vmatmul.mubr.bf16.gmra.mxu0 %v6891
    %v7603 = vpop.f32.mrf.mxu0
    %v7604 = vadd.f32 %v7507, %v7603
    %v7605 = vpop.f32.mrf.mxu0
    %v7606 = vpop.f32.mrf.mxu0
    %v7607 = vadd.f32 %v7510, %v7606
    %v7608 = vpop.f32.mrf.mxu0
    %7609 = vdwg.mxu0
    %7610 = vmatprep.subr.bf16.mxu0 0
    %7611 = vmatpush1.bf16.msra.mxu0 %v7327
    %7612 = vmatprep.subr.bf16.mxu0 0
    %7613 = vmatpush1.bf16.msra.mxu0 %v7326
    %7614 = vmatprep.subr.bf16.mxu0 0
    %7615 = vmatpush1.bf16.msra.mxu0 %v7325
    %7616 = vmatprep.subr.bf16.mxu0 0
    %7617 = vmatpush1.bf16.msra.mxu0 %v7324
    %7618 = vmatprep.subr.bf16.mxu0 0
    %7619 = vmatpush1.bf16.msra.mxu0 %v7323
    %7620 = vmatprep.subr.bf16.mxu0 0
    %7621 = vmatpush1.bf16.msra.mxu0 %v7322
    %7622 = vmatprep.subr.bf16.mxu0 0
    %7623 = vmatpush1.bf16.msra.mxu0 %v7321
    %7624 = vmatprep.subr.bf16.mxu0 0
    %7625 = vmatpush1.bf16.msra.mxu0 %v7320
    %7626 = vmatprep.subr.bf16.mxu0 0
    %7627 = vmatpush2.bf16.msra.mxu0 %v7335
    %7628 = vmatprep.subr.bf16.mxu0 0
    %7629 = vmatpush2.bf16.msra.mxu0 %v7334
    %7630 = vmatprep.subr.bf16.mxu0 0
    %7631 = vmatpush2.bf16.msra.mxu0 %v7333
    %7632 = vmatprep.subr.bf16.mxu0 0
    %7633 = vmatpush2.bf16.msra.mxu0 %v7332
    %7634 = vmatprep.subr.bf16.mxu0 0
    %7635 = vmatpush2.bf16.msra.mxu0 %v7331
    %7636 = vmatprep.subr.bf16.mxu0 0
    %7637 = vmatpush2.bf16.msra.mxu0 %v7330
    %7638 = vmatprep.subr.bf16.mxu0 0
    %7639 = vmatpush2.bf16.msra.mxu0 %v7329
    %7640 = vmatprep.subr.bf16.mxu0 0
    %7641 = vmatpush2.bf16.msra.mxu0 %v7328
    %7642 = vmatprep.mubr.bf16.mxu0 %v6838
    %7643 = vmatmul.mubr.bf16.gmra.mxu0 %v6837
    %v7644 = vpop.f32.mrf.mxu0
    %v7645 = vadd.f32 %v7548, %v7644
    %v7646 = vpop.f32.mrf.mxu0
    %v7647 = vpop.f32.mrf.mxu0
    %v7648 = vadd.f32 %v7551, %v7647
    %v7649 = vpop.f32.mrf.mxu0
    %7650 = vmatprep.mubr.bf16.mxu0 %v6846
    %7651 = vmatmul.mubr.bf16.gmra.mxu0 %v6845
    %v7652 = vpop.f32.mrf.mxu0
    %v7653 = vadd.f32 %v7556, %v7652
    %v7654 = vpop.f32.mrf.mxu0
    %v7655 = vpop.f32.mrf.mxu0
    %v7656 = vadd.f32 %v7559, %v7655
    %v7657 = vpop.f32.mrf.mxu0
    %7658 = vmatprep.mubr.bf16.mxu0 %v6854
    %7659 = vmatmul.mubr.bf16.gmra.mxu0 %v6853
    %v7660 = vpop.f32.mrf.mxu0
    %v7661 = vadd.f32 %v7564, %v7660
    %v7662 = vpop.f32.mrf.mxu0
    %v7663 = vpop.f32.mrf.mxu0
    %v7664 = vadd.f32 %v7567, %v7663
    %v7665 = vpop.f32.mrf.mxu0
    %7666 = vmatprep.mubr.bf16.mxu0 %v6862
    %7667 = vmatmul.mubr.bf16.gmra.mxu0 %v6861
    %v7668 = vpop.f32.mrf.mxu0
    %v7669 = vadd.f32 %v7572, %v7668
    %v7670 = vpop.f32.mrf.mxu0
    %v7671 = vpop.f32.mrf.mxu0
    %v7672 = vadd.f32 %v7575, %v7671
    %v7673 = vpop.f32.mrf.mxu0
    %7674 = vmatprep.mubr.bf16.mxu0 %v6870
    %7675 = vmatmul.mubr.bf16.gmra.mxu0 %v6869
    %v7676 = vpop.f32.mrf.mxu0
    %v7677 = vadd.f32 %v7580, %v7676
    %v7678 = vpop.f32.mrf.mxu0
    %v7679 = vpop.f32.mrf.mxu0
    %v7680 = vadd.f32 %v7583, %v7679
    %v7681 = vpop.f32.mrf.mxu0
    %7682 = vmatprep.mubr.bf16.mxu0 %v6878
    %7683 = vmatmul.mubr.bf16.gmra.mxu0 %v6877
    %v7684 = vpop.f32.mrf.mxu0
    %v7685 = vadd.f32 %v7588, %v7684
    %v7686 = vpop.f32.mrf.mxu0
    %v7687 = vpop.f32.mrf.mxu0
    %v7688 = vadd.f32 %v7591, %v7687
    %v7689 = vpop.f32.mrf.mxu0
    %7690 = vmatprep.mubr.bf16.mxu0 %v6886
    %7691 = vmatmul.mubr.bf16.gmra.mxu0 %v6885
    %v7692 = vpop.f32.mrf.mxu0
    %v7693 = vadd.f32 %v7596, %v7692
    %v7694 = vpop.f32.mrf.mxu0
    %v7695 = vpop.f32.mrf.mxu0
    %v7696 = vadd.f32 %v7599, %v7695
    %v7697 = vpop.f32.mrf.mxu0
    %7698 = vmatprep.mubr.bf16.mxu0 %v6894
    %7699 = vmatmul.mubr.bf16.gmra.mxu0 %v6893
    %v7700 = vpop.f32.mrf.mxu0
    %v7701 = vadd.f32 %v7604, %v7700
    %v7702 = vpop.f32.mrf.mxu0
    %v7703 = vpop.f32.mrf.mxu0
    %v7704 = vadd.f32 %v7607, %v7703
    %v7705 = vpop.f32.mrf.mxu0
    %7706 = vdwg.mxu0
    %7707 = vmatprep.subr.bf16.mxu0 0
    %7708 = vmatpush1.bf16.msra.mxu0 %v7343
    %7709 = vmatprep.subr.bf16.mxu0 0
    %7710 = vmatpush1.bf16.msra.mxu0 %v7342
    %7711 = vmatprep.subr.bf16.mxu0 0
    %7712 = vmatpush1.bf16.msra.mxu0 %v7341
    %7713 = vmatprep.subr.bf16.mxu0 0
    %7714 = vmatpush1.bf16.msra.mxu0 %v7340
    %7715 = vmatprep.subr.bf16.mxu0 0
    %7716 = vmatpush1.bf16.msra.mxu0 %v7339
    %7717 = vmatprep.subr.bf16.mxu0 0
    %7718 = vmatpush1.bf16.msra.mxu0 %v7338
    %7719 = vmatprep.subr.bf16.mxu0 0
    %7720 = vmatpush1.bf16.msra.mxu0 %v7337
    %7721 = vmatprep.subr.bf16.mxu0 0
    %7722 = vmatpush1.bf16.msra.mxu0 %v7336
    %7723 = vmatprep.subr.bf16.mxu0 0
    %7724 = vmatpush2.bf16.msra.mxu0 %v7351
    %7725 = vmatprep.subr.bf16.mxu0 0
    %7726 = vmatpush2.bf16.msra.mxu0 %v7350
    %7727 = vmatprep.subr.bf16.mxu0 0
    %7728 = vmatpush2.bf16.msra.mxu0 %v7349
    %7729 = vmatprep.subr.bf16.mxu0 0
    %7730 = vmatpush2.bf16.msra.mxu0 %v7348
    %7731 = vmatprep.subr.bf16.mxu0 0
    %7732 = vmatpush2.bf16.msra.mxu0 %v7347
    %7733 = vmatprep.subr.bf16.mxu0 0
    %7734 = vmatpush2.bf16.msra.mxu0 %v7346
    %7735 = vmatprep.subr.bf16.mxu0 0
    %7736 = vmatpush2.bf16.msra.mxu0 %v7345
    %7737 = vmatprep.subr.bf16.mxu0 0
    %7738 = vmatpush2.bf16.msra.mxu0 %v7344
    %7739 = vmatprep.mubr.bf16.mxu0 %v6840
    %7740 = vmatmul.mubr.bf16.gmra.mxu0 %v6839
    %v7741 = vpop.f32.mrf.mxu0
    %v7742 = vadd.f32 %v7645, %v7741
    %v7743 = vpop.f32.mrf.mxu0
    %v7744 = vpop.f32.mrf.mxu0
    %v7745 = vadd.f32 %v7648, %v7744
    %v7746 = vpop.f32.mrf.mxu0
    %7747 = vmatprep.mubr.bf16.mxu0 %v6848
    %7748 = vmatmul.mubr.bf16.gmra.mxu0 %v6847
    %v7749 = vpop.f32.mrf.mxu0
    %v7750 = vadd.f32 %v7653, %v7749
    %v7751 = vpop.f32.mrf.mxu0
    %v7752 = vpop.f32.mrf.mxu0
    %v7753 = vadd.f32 %v7656, %v7752
    %v7754 = vpop.f32.mrf.mxu0
    %7755 = vmatprep.mubr.bf16.mxu0 %v6856
    %7756 = vmatmul.mubr.bf16.gmra.mxu0 %v6855
    %v7757 = vpop.f32.mrf.mxu0
    %v7758 = vadd.f32 %v7661, %v7757
    %v7759 = vpop.f32.mrf.mxu0
    %v7760 = vpop.f32.mrf.mxu0
    %v7761 = vadd.f32 %v7664, %v7760
    %v7762 = vpop.f32.mrf.mxu0
    %7763 = vmatprep.mubr.bf16.mxu0 %v6864
    %7764 = vmatmul.mubr.bf16.gmra.mxu0 %v6863
    %v7765 = vpop.f32.mrf.mxu0
    %v7766 = vadd.f32 %v7669, %v7765
    %v7767 = vpop.f32.mrf.mxu0
    %v7768 = vpop.f32.mrf.mxu0
    %v7769 = vadd.f32 %v7672, %v7768
    %v7770 = vpop.f32.mrf.mxu0
    %7771 = vmatprep.mubr.bf16.mxu0 %v6872
    %7772 = vmatmul.mubr.bf16.gmra.mxu0 %v6871
    %v7773 = vpop.f32.mrf.mxu0
    %v7774 = vadd.f32 %v7677, %v7773
    %v7775 = vpop.f32.mrf.mxu0
    %v7776 = vpop.f32.mrf.mxu0
    %v7777 = vadd.f32 %v7680, %v7776
    %v7778 = vpop.f32.mrf.mxu0
    %7779 = vmatprep.mubr.bf16.mxu0 %v6880
    %7780 = vmatmul.mubr.bf16.gmra.mxu0 %v6879
    %v7781 = vpop.f32.mrf.mxu0
    %v7782 = vadd.f32 %v7685, %v7781
    %v7783 = vpop.f32.mrf.mxu0
    %v7784 = vpop.f32.mrf.mxu0
    %v7785 = vadd.f32 %v7688, %v7784
    %v7786 = vpop.f32.mrf.mxu0
    %7787 = vmatprep.mubr.bf16.mxu0 %v6888
    %7788 = vmatmul.mubr.bf16.gmra.mxu0 %v6887
    %v7789 = vpop.f32.mrf.mxu0
    %v7790 = vadd.f32 %v7693, %v7789
    %v7791 = vpop.f32.mrf.mxu0
    %v7792 = vpop.f32.mrf.mxu0
    %v7793 = vadd.f32 %v7696, %v7792
    %v7794 = vpop.f32.mrf.mxu0
    %7795 = vmatprep.mubr.bf16.mxu0 %v6896
    %7796 = vmatmul.mubr.bf16.gmra.mxu0 %v6895
    %v7797 = vpop.f32.mrf.mxu0
    %v7798 = vadd.f32 %v7701, %v7797
    %v7799 = vpop.f32.mrf.mxu0
    %v7800 = vpop.f32.mrf.mxu0
    %v7801 = vadd.f32 %v7704, %v7800
    %v7802 = vpop.f32.mrf.mxu0
    %7803 = vdwg.mxu0
    %vm7804 = vcmp.gt.f32.partialorder %v7742, 0.0
    %vm7805 = vcmp.gt.f32.partialorder %v7745, 0.0
    %vm7806 = vcmp.gt.f32.partialorder %v7750, 0.0
    %vm7807 = vcmp.gt.f32.partialorder %v7753, 0.0
    %vm7808 = vcmp.gt.f32.partialorder %v7758, 0.0
    %vm7809 = vcmp.gt.f32.partialorder %v7761, 0.0
    %vm7810 = vcmp.gt.f32.partialorder %v7766, 0.0
    %vm7811 = vcmp.gt.f32.partialorder %v7769, 0.0
    %vm7812 = vcmp.gt.f32.partialorder %v7774, 0.0
    %vm7813 = vcmp.gt.f32.partialorder %v7777, 0.0
    %vm7814 = vcmp.gt.f32.partialorder %v7782, 0.0
    %vm7815 = vcmp.gt.f32.partialorder %v7785, 0.0
    %vm7816 = vcmp.gt.f32.partialorder %v7790, 0.0
    %vm7817 = vcmp.gt.f32.partialorder %v7793, 0.0
    %vm7818 = vcmp.gt.f32.partialorder %v7798, 0.0
    %vm7819 = vcmp.gt.f32.partialorder %v7801, 0.0
    %v7820 = vmul.f32 %v7742, 0.01
    %v7821 = vmul.f32 %v7745, 0.01
    %v7822 = vmul.f32 %v7750, 0.01
    %v7823 = vmul.f32 %v7753, 0.01
    %v7824 = vmul.f32 %v7758, 0.01
    %v7825 = vmul.f32 %v7761, 0.01
    %v7826 = vmul.f32 %v7766, 0.01
    %v7827 = vmul.f32 %v7769, 0.01
    %v7828 = vmul.f32 %v7774, 0.01
    %v7829 = vmul.f32 %v7777, 0.01
    %v7830 = vmul.f32 %v7782, 0.01
    %v7831 = vmul.f32 %v7785, 0.01
    %v7832 = vmul.f32 %v7790, 0.01
    %v7833 = vmul.f32 %v7793, 0.01
    %v7834 = vmul.f32 %v7798, 0.01
    %v7835 = vmul.f32 %v7801, 0.01
    %v7836 = vsel %vm7804, %v7742, %v7820
    %v7837 = vsel %vm7805, %v7745, %v7821
    %v7838 = vsel %vm7806, %v7750, %v7822
    %v7839 = vsel %vm7807, %v7753, %v7823
    %v7840 = vsel %vm7808, %v7758, %v7824
    %v7841 = vsel %vm7809, %v7761, %v7825
    %v7842 = vsel %vm7810, %v7766, %v7826
    %v7843 = vsel %vm7811, %v7769, %v7827
    %v7844 = vsel %vm7812, %v7774, %v7828
    %v7845 = vsel %vm7813, %v7777, %v7829
    %v7846 = vsel %vm7814, %v7782, %v7830
    %v7847 = vsel %vm7815, %v7785, %v7831
    %v7848 = vsel %vm7816, %v7790, %v7832
    %v7849 = vsel %vm7817, %v7793, %v7833
    %v7850 = vsel %vm7818, %v7798, %v7834
    %v7851 = vsel %vm7819, %v7801, %v7835
    %v7852 = vld [vmem:[#allocation15] sm:$0x1]
    %v7854 = vlaneseq
    %v7855 = vshrl.u32 %v7854, 7
    %v7856 = vsub.s32 0, %v7855
    %v7857 = vrot.slane %v7852, %v7856
    %v7859 = vmul.f32 %v7836, %v7857
    %v7860 = vmul.f32 %v7837, %v7857
    %v7861 = vmul.f32 %v7838, %v7857
    %v7862 = vmul.f32 %v7839, %v7857
    %v7863 = vmul.f32 %v7840, %v7857
    %v7864 = vmul.f32 %v7841, %v7857
    %v7865 = vmul.f32 %v7842, %v7857
    %v7866 = vmul.f32 %v7843, %v7857
    %v7867 = vmul.f32 %v7844, %v7857
    %v7868 = vmul.f32 %v7845, %v7857
    %v7869 = vmul.f32 %v7846, %v7857
    %v7870 = vmul.f32 %v7847, %v7857
    %v7871 = vmul.f32 %v7848, %v7857
    %v7872 = vmul.f32 %v7849, %v7857
    %v7873 = vmul.f32 %v7850, %v7857
    %v7874 = vmul.f32 %v7851, %v7857
    %7875 = vadd.xlane.f32.xlu0 %v7859
    %v7876 = vpop.xlane.xlu0 %7875
    %7877 = vadd.xlane.f32.xlu0 %v7860
    %v7878 = vpop.xlane.xlu0 %7877
    %7879 = vadd.xlane.f32.xlu0 %v7861
    %v7880 = vpop.xlane.xlu0 %7879
    %7881 = vadd.xlane.f32.xlu0 %v7862
    %v7882 = vpop.xlane.xlu0 %7881
    %7883 = vadd.xlane.f32.xlu0 %v7863
    %v7884 = vpop.xlane.xlu0 %7883
    %7885 = vadd.xlane.f32.xlu0 %v7864
    %v7886 = vpop.xlane.xlu0 %7885
    %7887 = vadd.xlane.f32.xlu0 %v7865
    %v7888 = vpop.xlane.xlu0 %7887
    %7889 = vadd.xlane.f32.xlu0 %v7866
    %v7890 = vpop.xlane.xlu0 %7889
    %7891 = vadd.xlane.f32.xlu0 %v7867
    %v7892 = vpop.xlane.xlu0 %7891
    %7893 = vadd.xlane.f32.xlu0 %v7868
    %v7894 = vpop.xlane.xlu0 %7893
    %7895 = vadd.xlane.f32.xlu0 %v7869
    %v7896 = vpop.xlane.xlu0 %7895
    %7897 = vadd.xlane.f32.xlu0 %v7870
    %v7898 = vpop.xlane.xlu0 %7897
    %7899 = vadd.xlane.f32.xlu0 %v7871
    %v7900 = vpop.xlane.xlu0 %7899
    %7901 = vadd.xlane.f32.xlu0 %v7872
    %v7902 = vpop.xlane.xlu0 %7901
    %7903 = vadd.xlane.f32.xlu0 %v7873
    %v7904 = vpop.xlane.xlu0 %7903
    %7905 = vadd.xlane.f32.xlu0 %v7874
    %v7906 = vpop.xlane.xlu0 %7905
    %v7907 = vld [vmem:[#allocation2] sm:$0x1]
    %v7909 = vlaneseq
    %v7910 = vshrl.u32 %v7909, 7
    %v7911 = vsub.s32 0, %v7910
    %v7912 = vrot.slane %v7907, %v7911
    %v7914 = vadd.f32 %v7876, %v7912
    %v7915 = vadd.f32 %v7878, %v7912
    %v7916 = vadd.f32 %v7880, %v7912
    %v7917 = vadd.f32 %v7882, %v7912
    %v7918 = vadd.f32 %v7884, %v7912
    %v7919 = vadd.f32 %v7886, %v7912
    %v7920 = vadd.f32 %v7888, %v7912
    %v7921 = vadd.f32 %v7890, %v7912
    %v7922 = vadd.f32 %v7892, %v7912
    %v7923 = vadd.f32 %v7894, %v7912
    %v7924 = vadd.f32 %v7896, %v7912
    %v7925 = vadd.f32 %v7898, %v7912
    %v7926 = vadd.f32 %v7900, %v7912
    %v7927 = vadd.f32 %v7902, %v7912
    %v7928 = vadd.f32 %v7904, %v7912
    %v7929 = vadd.f32 %v7906, %v7912
    %7946 = vset.pattern.permute.xlu0 0
    %7947 = vperm.xlu0 %7946, %v7914
    %v7948 = vpop.permute.xlu0 %7947
    %7949 = vset.pattern.permute.xlu0 0
    %7950 = vperm.xlu0 %7949, %v7915
    %v7951 = vpop.permute.xlu0 %7950
    %7952 = vset.pattern.permute.xlu0 0
    %7953 = vperm.xlu0 %7952, %v7916
    %v7954 = vpop.permute.xlu0 %7953
    %7955 = vset.pattern.permute.xlu0 0
    %7956 = vperm.xlu0 %7955, %v7917
    %v7957 = vpop.permute.xlu0 %7956
    %7958 = vset.pattern.permute.xlu0 0
    %7959 = vperm.xlu0 %7958, %v7918
    %v7960 = vpop.permute.xlu0 %7959
    %7961 = vset.pattern.permute.xlu0 0
    %7962 = vperm.xlu0 %7961, %v7919
    %v7963 = vpop.permute.xlu0 %7962
    %7964 = vset.pattern.permute.xlu0 0
    %7965 = vperm.xlu0 %7964, %v7920
    %v7966 = vpop.permute.xlu0 %7965
    %7967 = vset.pattern.permute.xlu0 0
    %7968 = vperm.xlu0 %7967, %v7921
    %v7969 = vpop.permute.xlu0 %7968
    %7970 = vset.pattern.permute.xlu0 0
    %7971 = vperm.xlu0 %7970, %v7922
    %v7972 = vpop.permute.xlu0 %7971
    %7973 = vset.pattern.permute.xlu0 0
    %7974 = vperm.xlu0 %7973, %v7923
    %v7975 = vpop.permute.xlu0 %7974
    %7976 = vset.pattern.permute.xlu0 0
    %7977 = vperm.xlu0 %7976, %v7924
    %v7978 = vpop.permute.xlu0 %7977
    %7979 = vset.pattern.permute.xlu0 0
    %7980 = vperm.xlu0 %7979, %v7925
    %v7981 = vpop.permute.xlu0 %7980
    %7982 = vset.pattern.permute.xlu0 0
    %7983 = vperm.xlu0 %7982, %v7926
    %v7984 = vpop.permute.xlu0 %7983
    %7985 = vset.pattern.permute.xlu0 0
    %7986 = vperm.xlu0 %7985, %v7927
    %v7987 = vpop.permute.xlu0 %7986
    %7988 = vset.pattern.permute.xlu0 0
    %7989 = vperm.xlu0 %7988, %v7928
    %v7990 = vpop.permute.xlu0 %7989
    %7991 = vset.pattern.permute.xlu0 0
    %7992 = vperm.xlu0 %7991, %v7929
    %v7993 = vpop.permute.xlu0 %7992
    %v7994 = vlaneseq
    %v7995 = vand.u32 %v7994, 127
    %v7996 = vlaneseq
    %v7997 = vshrl.u32 %v7996, 7
    %v7998 = vsub.s32 %v7995, %v7997
    %v7999 = vrot.slane %v7948, %v7998
    %v8000 = vadd.s32 %v7995, 4294967288
    %v8001 = vlaneseq
    %v8002 = vshrl.u32 %v8001, 7
    %v8003 = vsub.s32 %v8000, %v8002
    %v8004 = vrot.slane %v7951, %v8003
    %vm8005 = vcmask 130112
    %v8006 = vsel %vm8005, %v8004, %v7999
    %v8007 = vadd.s32 %v7995, 4294967280
    %v8008 = vlaneseq
    %v8009 = vshrl.u32 %v8008, 7
    %v8010 = vsub.s32 %v8007, %v8009
    %v8011 = vrot.slane %v7954, %v8010
    %vm8012 = vcmask 195712
    %v8013 = vsel %vm8012, %v8011, %v8006
    %v8014 = vadd.s32 %v7995, 4294967272
    %v8015 = vlaneseq
    %v8016 = vshrl.u32 %v8015, 7
    %v8017 = vsub.s32 %v8014, %v8016
    %v8018 = vrot.slane %v7957, %v8017
    %vm8019 = vcmask 261312
    %v8020 = vsel %vm8019, %v8018, %v8013
    %v8021 = vadd.s32 %v7995, 4294967264
    %v8022 = vlaneseq
    %v8023 = vshrl.u32 %v8022, 7
    %v8024 = vsub.s32 %v8021, %v8023
    %v8025 = vrot.slane %v7960, %v8024
    %vm8026 = vcmask 326912
    %v8027 = vsel %vm8026, %v8025, %v8020
    %v8028 = vadd.s32 %v7995, 4294967256
    %v8029 = vlaneseq
    %v8030 = vshrl.u32 %v8029, 7
    %v8031 = vsub.s32 %v8028, %v8030
    %v8032 = vrot.slane %v7963, %v8031
    %vm8033 = vcmask 392512
    %v8034 = vsel %vm8033, %v8032, %v8027
    %v8035 = vadd.s32 %v7995, 4294967248
    %v8036 = vlaneseq
    %v8037 = vshrl.u32 %v8036, 7
    %v8038 = vsub.s32 %v8035, %v8037
    %v8039 = vrot.slane %v7966, %v8038
    %vm8040 = vcmask 458112
    %v8041 = vsel %vm8040, %v8039, %v8034
    %v8042 = vadd.s32 %v7995, 4294967240
    %v8043 = vlaneseq
    %v8044 = vshrl.u32 %v8043, 7
    %v8045 = vsub.s32 %v8042, %v8044
    %v8046 = vrot.slane %v7969, %v8045
    %vm8047 = vcmask 523712
    %v8048 = vsel %vm8047, %v8046, %v8041
    %v8049 = vadd.s32 %v7995, 4294967232
    %v8050 = vlaneseq
    %v8051 = vshrl.u32 %v8050, 7
    %v8052 = vsub.s32 %v8049, %v8051
    %v8053 = vrot.slane %v7972, %v8052
    %vm8054 = vcmask 589312
    %v8055 = vsel %vm8054, %v8053, %v8048
    %v8056 = vadd.s32 %v7995, 4294967224
    %v8057 = vlaneseq
    %v8058 = vshrl.u32 %v8057, 7
    %v8059 = vsub.s32 %v8056, %v8058
    %v8060 = vrot.slane %v7975, %v8059
    %vm8061 = vcmask 654912
    %v8062 = vsel %vm8061, %v8060, %v8055
    %v8063 = vadd.s32 %v7995, 4294967216
    %v8064 = vlaneseq
    %v8065 = vshrl.u32 %v8064, 7
    %v8066 = vsub.s32 %v8063, %v8065
    %v8067 = vrot.slane %v7978, %v8066
    %vm8068 = vcmask 720512
    %v8069 = vsel %vm8068, %v8067, %v8062
    %v8070 = vadd.s32 %v7995, 4294967208
    %v8071 = vlaneseq
    %v8072 = vshrl.u32 %v8071, 7
    %v8073 = vsub.s32 %v8070, %v8072
    %v8074 = vrot.slane %v7981, %v8073
    %vm8075 = vcmask 786112
    %v8076 = vsel %vm8075, %v8074, %v8069
    %v8077 = vadd.s32 %v7995, 4294967200
    %v8078 = vlaneseq
    %v8079 = vshrl.u32 %v8078, 7
    %v8080 = vsub.s32 %v8077, %v8079
    %v8081 = vrot.slane %v7984, %v8080
    %vm8082 = vcmask 851712
    %v8083 = vsel %vm8082, %v8081, %v8076
    %v8084 = vadd.s32 %v7995, 4294967192
    %v8085 = vlaneseq
    %v8086 = vshrl.u32 %v8085, 7
    %v8087 = vsub.s32 %v8084, %v8086
    %v8088 = vrot.slane %v7987, %v8087
    %vm8089 = vcmask 917312
    %v8090 = vsel %vm8089, %v8088, %v8083
    %v8091 = vadd.s32 %v7995, 4294967184
    %v8092 = vlaneseq
    %v8093 = vshrl.u32 %v8092, 7
    %v8094 = vsub.s32 %v8091, %v8093
    %v8095 = vrot.slane %v7990, %v8094
    %vm8096 = vcmask 982912
    %v8097 = vsel %vm8096, %v8095, %v8090
    %v8098 = vadd.s32 %v7995, 4294967176
    %v8099 = vlaneseq
    %v8100 = vshrl.u32 %v8099, 7
    %v8101 = vsub.s32 %v8098, %v8100
    %v8102 = vrot.slane %v7993, %v8101
    %vm8103 = vcmask 1048512
    %v8104 = vsel %vm8103, %v8102, %v8097
    %8106 = vst [vmem:[#allocation17] sm:$0x1] %v8104
    // Predicated region
    $region70: #{tpu_custom_call.1} parent=1 // pred_check
      _
    $region71: #{tpu_custom_call.1} parent=1 // pred_check_branch
      %8108 = sbr.rel (0) target = $region73
    $region72: #{tpu_custom_call.1} parent=1 // pred_region
      %s8110 = ssub.s32 16, 16
      %8111 = vsyncadd [#allocation5], %s8110
      %s8113 = sshll.u32 [#allocation17], 4
      %s8114 = int_to_ptr.vmem [resolvable:$true] %s8113
      %8116 = dma.vmem_to_hbm [thread:$0]  %s8114, 16, %s9, [#allocation5]
    $region73: #{tpu_custom_call.1} parent=1 // pred_fallthru
      _
    // Predicated region
    $region74: #{tpu_custom_call.1} parent=1 // pred_check
      _
    $region75: #{tpu_custom_call.1} parent=1 // pred_check_branch
      %8118 = sbr.rel (0) target = $region77
    $region76: #{tpu_custom_call.1} parent=1 // pred_region
      %8119 = dma.done [#allocation5], 16
    $region77: #{tpu_custom_call.1} parent=1 // pred_fallthru
      _
    %8120 = vsyncpa [#allocation4], 1
    %8121 = vsyncpa [#allocation7], 1
    %8122 = vsyncpa [#allocation10], 1
    %8123 = vsyncpa [#allocation13], 1
    %8124 = vsyncpa [#allocation16], 1
    %8125 = vsyncpa [#allocation5], 1

</llo_original>
